<compile_context>
chip_gen: v7x
topology: tpu7x:2x2x1
jax: 0.10.0
libtpu: 0.0.40
codegen_flags: <defaults>
</compile_context>

<pallas_src>
import functools
import math

import numpy as np
import jax
import jax.numpy as jnp
from jax.experimental import pallas as pl
from jax.experimental.pallas import tpu as pltpu

LANE = 128      # TPU lane width
SUBLANE = 8     # TPU sublane width


def _round_up(n, m):
    return ((n + m - 1) // m) * m


# ---------------------------------------------------------------------------
# Kernel 1: fused Conv2d(valid) + bias + ReLU + MaxPool2d(2, 2)
# ---------------------------------------------------------------------------
def _conv_relu_pool_kernel(x_ref, w_ref, b_ref, s_ref, o_ref, *, K, H, W, ICp):
    """One image per grid step.

    x_ref: (1, H*W, ICp)        input image, flat (h*W + w) rows, padded chans
    w_ref: (K*K*ICp, OCp)       packed conv weight; rows [(kh*K+kw)*ICp + ic]
    b_ref: (1, OCp)             padded bias
    s_ref: (PH*PW, R-1-W)       0/1 selection matrix extracting pooled rows
    o_ref: (1, PH*PW, OCp)      pooled output, flat (ph*PW + pw) rows
    """
    OH, OW = H - K + 1, W - K + 1
    R = (OH - 1) * W + OW                 # accumulator rows (index j = h*W + w)
    OCp = o_ref.shape[-1]

    # Conv as K*K shifted matmuls: row j of the accumulator receives the
    # contribution of input pixel (h+kh, w+kw) for j = h*W + w.  Rows with
    # w >= OW are wrap-around garbage and are never selected by s_ref.
    acc = jnp.zeros((R, OCp), jnp.float32)
    for kh in range(K):
        for kw in range(K):
            t = kh * K + kw
            off = kh * W + kw
            lhs = x_ref[0, off:off + R, :]                  # (R, ICp)
            rhs = w_ref[t * ICp:(t + 1) * ICp, :]           # (ICp, OCp)
            acc = acc + jnp.dot(lhs, rhs, preferred_element_type=jnp.float32)

    # Bias + ReLU epilogue (still VMEM-resident).
    y = jnp.maximum(acc + b_ref[...], 0.0)                  # (R, OCp)

    # 2x2 / stride-2 max pool epilogue:
    #   m1[j] = max(y[j], y[j+1])            (horizontal pair)
    #   m2[j] = max(m1[j], m1[j+W])          (adds the vertical pair)
    # so m2[2*ph*W + 2*pw] is exactly the pooled value at (ph, pw); the tiny
    # 0/1 matmul gathers those strided rows without reshapes/strided slices.
    m1 = jnp.maximum(y[:R - 1, :], y[1:, :])                # (R-1, OCp)
    m2 = jnp.maximum(m1[:R - 1 - W, :], m1[W:, :])          # (R-1-W, OCp)
    pooled = jnp.dot(s_ref[...], m2, preferred_element_type=jnp.float32)
    o_ref[0] = pooled.astype(o_ref.dtype)


def conv_relu_pool(x_flat, w_mat, b_row, s_sel, *, K, H, W):
    """x_flat: (N, H*W, ICp) -> (N, PH*PW, OCp)."""
    N, HW, ICp = x_flat.shape
    assert HW == H * W
    OCp = w_mat.shape[1]
    OH, OW = H - K + 1, W - K + 1
    PH, PW = OH // 2, OW // 2
    kernel = functools.partial(_conv_relu_pool_kernel, K=K, H=H, W=W, ICp=ICp)
    return pl.pallas_call(
        kernel,
        out_shape=jax.ShapeDtypeStruct((N, PH * PW, OCp), x_flat.dtype),
        grid=(N,),
        in_specs=[
            pl.BlockSpec((1, HW, ICp), lambda n: (n, 0, 0)),
            pl.BlockSpec(w_mat.shape, lambda n: (0, 0)),
            pl.BlockSpec(b_row.shape, lambda n: (0, 0)),
            pl.BlockSpec(s_sel.shape, lambda n: (0, 0)),
        ],
        out_specs=pl.BlockSpec((1, PH * PW, OCp), lambda n: (n, 0, 0)),
        compiler_params=pltpu.CompilerParams(
            dimension_semantics=("parallel",),        # batch sharded across TCs
            vmem_limit_bytes=32 * 1024 * 1024),
    )(x_flat, w_mat, b_row, s_sel)


# ---------------------------------------------------------------------------
# Kernel 2: fused FC stack  (Linear -> ReLU -> ... -> Linear)
# ---------------------------------------------------------------------------
def _mlp_kernel(*refs, n_layers):
    x_ref, o_ref = refs[0], refs[-1]
    h = x_ref[...]
    for i in range(n_layers):
        w = refs[1 + 2 * i][...]                     # (Din_pad, Dout_pad)
        b = refs[2 + 2 * i][...]                     # (1, Dout_pad)
        h = jnp.dot(h, w, preferred_element_type=jnp.float32) + b
        if i < n_layers - 1:                         # ReLU on all but the last
            h = jnp.maximum(h, 0.0)
    o_ref[...] = h.astype(o_ref.dtype)


def mlp_forward(x, fcs):
    """x: (M, D0_pad); fcs: list of (w (Din_pad, Dout_pad), b (1, Dout_pad))."""
    M, D0 = x.shape
    n = len(fcs)
    d_out = fcs[-1][0].shape[1]
    TM = M if M <= 256 else 256                      # M-tile (full batch if small)
    in_specs = [pl.BlockSpec((TM, D0), lambda i: (i, 0))]
    args = [x]
    for (w, b) in fcs:
        in_specs.append(pl.BlockSpec(w.shape, lambda i: (0, 0)))
        in_specs.append(pl.BlockSpec(b.shape, lambda i: (0, 0)))
        args.extend([w, b])
    return pl.pallas_call(
        functools.partial(_mlp_kernel, n_layers=n),
        out_shape=jax.ShapeDtypeStruct((M, d_out), x.dtype),
        grid=(pl.cdiv(M, TM),),
        in_specs=in_specs,
        out_specs=pl.BlockSpec((TM, d_out), lambda i: (i, 0)),
        compiler_params=pltpu.CompilerParams(
            dimension_semantics=("parallel",),
            vmem_limit_bytes=32 * 1024 * 1024),
    )(*args)


# ---------------------------------------------------------------------------
# Parameter init (deterministic, PyTorch-default-style uniform bounds)
# ---------------------------------------------------------------------------
def init_params(key, input_dim, input_channels, num_classes,
                hidden_channels=(6, 16), hidden_fc_layers=(120, 84),
                kernel_size=5):
    convs, fcs = [], []
    ic, lin = input_channels, input_dim
    for oc in hidden_channels:
        key, k1, k2 = jax.random.split(key, 3)
        fan_in = ic * kernel_size * kernel_size
        bound = 1.0 / math.sqrt(fan_in)
        w = jax.random.uniform(k1, (oc, ic, kernel_size, kernel_size),
                               jnp.float32, -bound, bound)
        b = jax.random.uniform(k2, (oc,), jnp.float32, -bound, bound)
        convs.append((w, b))
        ic = oc
        lin = (lin - kernel_size + 1) // 2            # conv(valid) then pool(2,2)
    lin = lin * lin * ic
    for out_dim in list(hidden_fc_layers) + [num_classes]:
        key, k1, k2 = jax.random.split(key, 3)
        bound = 1.0 / math.sqrt(lin)
        w = jax.random.uniform(k1, (out_dim, lin), jnp.float32, -bound, bound)
        b = jax.random.uniform(k2, (out_dim,), jnp.float32, -bound, bound)
        fcs.append((w, b))
        lin = out_dim
    return {"convs": convs, "fcs": fcs}


# ---------------------------------------------------------------------------
# One-time packing of torch-layout params into kernel-friendly layouts
# ---------------------------------------------------------------------------
def _pool_select_matrix(PH, PW, W, R):
    rows = R - 1 - W
    s = np.zeros((PH * PW, rows), np.float32)
    for ph in range(PH):
        for pw in range(PW):
            s[ph * PW + pw, 2 * ph * W + 2 * pw] = 1.0
    return jnp.asarray(s)


def pack_params(params, *, input_dim, input_channels, kernel_size):
    """Done ONCE: pad/transpose weights, fold flatten-order into FC1 weight."""
    K = kernel_size
    icp = _round_up(max(input_channels, SUBLANE), SUBLANE)   # first-layer Cpad
    dim = input_dim
    convs_p = []
    for (w, b) in params["convs"]:
        oc, ic = w.shape[0], w.shape[1]
        ocp = _round_up(oc, LANE)
        wt = jnp.transpose(w, (2, 3, 1, 0))                   # (K, K, IC, OC)
        wt = jnp.pad(wt, ((0, 0), (0, 0), (0, icp - ic), (0, ocp - oc)))
        w_mat = wt.reshape(K * K * icp, ocp)                  # rows: (kh, kw, ic)
        b_row = jnp.pad(b, (0, ocp - oc)).reshape(1, ocp)
        oh = dim - K + 1
        ph = oh // 2
        R = (oh - 1) * dim + oh
        s_sel = _pool_select_matrix(ph, ph, dim, R)
        convs_p.append((w_mat, b_row, s_sel))
        dim, icp = ph, ocp

    # FC stack: weights stored as (in_pad, out_pad); the first one also absorbs
    # the torch.flatten (c, h, w) ordering + channel padding of the conv output.
    c_real = params["convs"][-1][0].shape[0]
    c_pad, ph = icp, dim
    fcs_p, first, din_pad = [], True, ph * ph * c_pad
    for (w, b) in params["fcs"]:
        dout, din = w.shape
        doutp = _round_up(dout, LANE)
        if first:
            wr = w.reshape(dout, c_real, ph, ph)              # (O, C, H, W)
            wr = jnp.transpose(wr, (2, 3, 1, 0))              # (H, W, C, O)
            wr = jnp.pad(wr, ((0, 0), (0, 0),
                              (0, c_pad - c_real), (0, doutp - dout)))
            w_mat = wr.reshape(ph * ph * c_pad, doutp)
            first = False
        else:
            w_mat = jnp.pad(w.T, ((0, din_pad - din), (0, doutp - dout)))
        b_row = jnp.pad(b, (0, doutp - dout)).reshape(1, doutp)
        fcs_p.append((w_mat, b_row))
        din_pad = doutp
    return {"convs": convs_p, "fcs": fcs_p}


# ---------------------------------------------------------------------------
# Forward pass (matches CNN.forward with the default config)
# ---------------------------------------------------------------------------
@functools.partial(jax.jit, static_argnames=("kernel_size", "num_classes"))
def cnn_forward(x_nchw, packed, *, kernel_size, num_classes):
    K = kernel_size
    N, C, H, W = x_nchw.shape
    icp0 = _round_up(max(C, SUBLANE), SUBLANE)
    x = jnp.transpose(x_nchw, (0, 2, 3, 1))                   # NCHW -> NHWC
    x = jnp.pad(x, ((0, 0), (0, 0), (0, 0), (0, icp0 - C)))   # pad channels
    x = x.reshape(N, H * W, icp0)                             # flat spatial rows
    h, w = H, W
    for (w_mat, b_row, s_sel) in packed["convs"]:
        x = conv_relu_pool(x, w_mat, b_row, s_sel, K=K, H=h, W=w)
        h, w = (h - K + 1) // 2, (w - K + 1) // 2
    x = x.reshape(N, -1)                                      # (N, h*w*Cpad)
    x = mlp_forward(x, packed["fcs"])                         # fused FC stack
    return x[:, :num_classes]
    # TODO(synk): Dropout / BatchNorm1d branches are inactive in the default
    # config (dropout_prob=None, use_batchnorm=False) and are not implemented.


# ---------------------------------------------------------------------------
# Pure-JAX reference (for correctness check against identical weights)
# ---------------------------------------------------------------------------
def cnn_reference(x_nchw, params):
    x = x_nchw
    for (w, b) in params["convs"]:
        x = jax.lax.conv_general_dilated(
            x, w, window_strides=(1, 1), padding="VALID",
            dimension_numbers=("NCHW", "OIHW", "NCHW"))
        x = jnp.maximum(x + b[None, :, None, None], 0.0)
        x = jax.lax.reduce_window(x, -jnp.inf, jax.lax.max,
                                  (1, 1, 2, 2), (1, 1, 2, 2), "VALID")
    x = x.reshape(x.shape[0], -1)
    n = len(params["fcs"])
    for i, (w, b) in enumerate(params["fcs"]):
        x = x @ w.T + b
        if i < n - 1:
            x = jnp.maximum(x, 0.0)
    return x


if __name__ == "__main__":
    BATCH, IN_CH, IN_DIM, NUM_CLASSES, KSIZE = 2, 3, 16, 10, 5
    key = jax.random.PRNGKey(0)
    key, xkey = jax.random.split(key)
    x = jax.random.normal(xkey, (BATCH, IN_CH, IN_DIM, IN_DIM), jnp.float32)

    params = init_params(key, IN_DIM, IN_CH, NUM_CLASSES, kernel_size=KSIZE)
    packed = pack_params(params, input_dim=IN_DIM, input_channels=IN_CH,
                         kernel_size=KSIZE)

    out = cnn_forward(x, packed, kernel_size=KSIZE, num_classes=NUM_CLASSES)
    jax.block_until_ready(out)
    assert out.shape == (BATCH, NUM_CLASSES), out.shape

    ref = cnn_reference(x, params)
    assert bool(jnp.allclose(out, ref, rtol=2e-2, atol=2e-2)), (
        "mismatch vs reference: max abs err = "
        f"{float(jnp.max(jnp.abs(out - ref)))}")
    print("KERNEL_OK")
</pallas_src>

<mosaic_0001>
module attributes {stable_mosaic.version = 11 : i64} {
  func.func @_conv_relu_pool_kernel(%arg0: i32, %arg1: memref<1x256x8xf32, #tpu.memory_space<vmem>>, %arg2: memref<200x128xf32, #tpu.memory_space<vmem>>, %arg3: memref<1x128xf32, #tpu.memory_space<vmem>>, %arg4: memref<36x171xf32, #tpu.memory_space<vmem>>, %arg5: memref<1x36x128xf32, #tpu.memory_space<vmem>>) attributes {dimension_semantics = [#tpu.dimension_semantics<parallel>], iteration_bounds = array<i64: 2>, scalar_prefetch = 0 : i64, scratch_operands = 0 : i64, tpu.core_type = #tpu.core_type<tc>, window_params = [{transform_indices = @transform_0, window_bounds = array<i64: 1, 256, 8>}, {pipeline_mode = #tpu.pipeline_mode<synchronous>, transform_indices = @transform_1, window_bounds = array<i64: 200, 128>}, {pipeline_mode = #tpu.pipeline_mode<synchronous>, transform_indices = @transform_2, window_bounds = array<i64: 1, 128>}, {pipeline_mode = #tpu.pipeline_mode<synchronous>, transform_indices = @transform_3, window_bounds = array<i64: 36, 171>}, {transform_indices = @transform_4, window_bounds = array<i64: 1, 36, 128>}]} {
    %cst = arith.constant 0.000000e+00 : f32
    %0 = vector.broadcast %cst : f32 to vector<188x128xf32>
    %c0 = arith.constant 0 : index
    %c0_0 = arith.constant 0 : index
    %c0_1 = arith.constant 0 : index
    %1 = vector.load %arg1[%c0, %c0_0, %c0_1] : memref<1x256x8xf32, #tpu.memory_space<vmem>>, vector<1x188x8xf32>
    %2 = vector.shape_cast %1 : vector<1x188x8xf32> to vector<188x8xf32>
    %c0_2 = arith.constant 0 : index
    %c0_3 = arith.constant 0 : index
    %3 = vector.load %arg2[%c0_2, %c0_3] : memref<200x128xf32, #tpu.memory_space<vmem>>, vector<8x128xf32>
    %cst_4 = arith.constant dense<0.000000e+00> : vector<188x128xf32>
    %4 = tpu.matmul %2, %3, %cst_4 {dimension_numbers = #tpu.dot_dimension_numbers<[1], [0], [0], [1], [0, 0, 1, 1], [], []>} : vector<188x8xf32>, vector<8x128xf32>, vector<188x128xf32> -> vector<188x128xf32>
    %5 = arith.addf %0, %4 : vector<188x128xf32>
    %c0_5 = arith.constant 0 : index
    %c1 = arith.constant 1 : index
    %c0_6 = arith.constant 0 : index
    %6 = vector.load %arg1[%c0_5, %c1, %c0_6] : memref<1x256x8xf32, #tpu.memory_space<vmem>>, vector<1x188x8xf32>
    %7 = vector.shape_cast %6 : vector<1x188x8xf32> to vector<188x8xf32>
    %c8 = arith.constant 8 : index
    %c0_7 = arith.constant 0 : index
    %8 = vector.load %arg2[%c8, %c0_7] : memref<200x128xf32, #tpu.memory_space<vmem>>, vector<8x128xf32>
    %cst_8 = arith.constant dense<0.000000e+00> : vector<188x128xf32>
    %9 = tpu.matmul %7, %8, %cst_8 {dimension_numbers = #tpu.dot_dimension_numbers<[1], [0], [0], [1], [0, 0, 1, 1], [], []>} : vector<188x8xf32>, vector<8x128xf32>, vector<188x128xf32> -> vector<188x128xf32>
    %10 = arith.addf %5, %9 : vector<188x128xf32>
    %c0_9 = arith.constant 0 : index
    %c2 = arith.constant 2 : index
    %c0_10 = arith.constant 0 : index
    %11 = vector.load %arg1[%c0_9, %c2, %c0_10] : memref<1x256x8xf32, #tpu.memory_space<vmem>>, vector<1x188x8xf32>
    %12 = vector.shape_cast %11 : vector<1x188x8xf32> to vector<188x8xf32>
    %c16 = arith.constant 16 : index
    %c0_11 = arith.constant 0 : index
    %13 = vector.load %arg2[%c16, %c0_11] : memref<200x128xf32, #tpu.memory_space<vmem>>, vector<8x128xf32>
    %cst_12 = arith.constant dense<0.000000e+00> : vector<188x128xf32>
    %14 = tpu.matmul %12, %13, %cst_12 {dimension_numbers = #tpu.dot_dimension_numbers<[1], [0], [0], [1], [0, 0, 1, 1], [], []>} : vector<188x8xf32>, vector<8x128xf32>, vector<188x128xf32> -> vector<188x128xf32>
    %15 = arith.addf %10, %14 : vector<188x128xf32>
    %c0_13 = arith.constant 0 : index
    %c3 = arith.constant 3 : index
    %c0_14 = arith.constant 0 : index
    %16 = vector.load %arg1[%c0_13, %c3, %c0_14] : memref<1x256x8xf32, #tpu.memory_space<vmem>>, vector<1x188x8xf32>
    %17 = vector.shape_cast %16 : vector<1x188x8xf32> to vector<188x8xf32>
    %c24 = arith.constant 24 : index
    %c0_15 = arith.constant 0 : index
    %18 = vector.load %arg2[%c24, %c0_15] : memref<200x128xf32, #tpu.memory_space<vmem>>, vector<8x128xf32>
    %cst_16 = arith.constant dense<0.000000e+00> : vector<188x128xf32>
    %19 = tpu.matmul %17, %18, %cst_16 {dimension_numbers = #tpu.dot_dimension_numbers<[1], [0], [0], [1], [0, 0, 1, 1], [], []>} : vector<188x8xf32>, vector<8x128xf32>, vector<188x128xf32> -> vector<188x128xf32>
    %20 = arith.addf %15, %19 : vector<188x128xf32>
    %c0_17 = arith.constant 0 : index
    %c4 = arith.constant 4 : index
    %c0_18 = arith.constant 0 : index
    %21 = vector.load %arg1[%c0_17, %c4, %c0_18] : memref<1x256x8xf32, #tpu.memory_space<vmem>>, vector<1x188x8xf32>
    %22 = vector.shape_cast %21 : vector<1x188x8xf32> to vector<188x8xf32>
    %c32 = arith.constant 32 : index
    %c0_19 = arith.constant 0 : index
    %23 = vector.load %arg2[%c32, %c0_19] : memref<200x128xf32, #tpu.memory_space<vmem>>, vector<8x128xf32>
    %cst_20 = arith.constant dense<0.000000e+00> : vector<188x128xf32>
    %24 = tpu.matmul %22, %23, %cst_20 {dimension_numbers = #tpu.dot_dimension_numbers<[1], [0], [0], [1], [0, 0, 1, 1], [], []>} : vector<188x8xf32>, vector<8x128xf32>, vector<188x128xf32> -> vector<188x128xf32>
    %25 = arith.addf %20, %24 : vector<188x128xf32>
    %c0_21 = arith.constant 0 : index
    %c16_22 = arith.constant 16 : index
    %c0_23 = arith.constant 0 : index
    %26 = vector.load %arg1[%c0_21, %c16_22, %c0_23] : memref<1x256x8xf32, #tpu.memory_space<vmem>>, vector<1x188x8xf32>
    %27 = vector.shape_cast %26 : vector<1x188x8xf32> to vector<188x8xf32>
    %c40 = arith.constant 40 : index
    %c0_24 = arith.constant 0 : index
    %28 = vector.load %arg2[%c40, %c0_24] : memref<200x128xf32, #tpu.memory_space<vmem>>, vector<8x128xf32>
    %cst_25 = arith.constant dense<0.000000e+00> : vector<188x128xf32>
    %29 = tpu.matmul %27, %28, %cst_25 {dimension_numbers = #tpu.dot_dimension_numbers<[1], [0], [0], [1], [0, 0, 1, 1], [], []>} : vector<188x8xf32>, vector<8x128xf32>, vector<188x128xf32> -> vector<188x128xf32>
    %30 = arith.addf %25, %29 : vector<188x128xf32>
    %c0_26 = arith.constant 0 : index
    %c17 = arith.constant 17 : index
    %c0_27 = arith.constant 0 : index
    %31 = vector.load %arg1[%c0_26, %c17, %c0_27] : memref<1x256x8xf32, #tpu.memory_space<vmem>>, vector<1x188x8xf32>
    %32 = vector.shape_cast %31 : vector<1x188x8xf32> to vector<188x8xf32>
    %c48 = arith.constant 48 : index
    %c0_28 = arith.constant 0 : index
    %33 = vector.load %arg2[%c48, %c0_28] : memref<200x128xf32, #tpu.memory_space<vmem>>, vector<8x128xf32>
    %cst_29 = arith.constant dense<0.000000e+00> : vector<188x128xf32>
    %34 = tpu.matmul %32, %33, %cst_29 {dimension_numbers = #tpu.dot_dimension_numbers<[1], [0], [0], [1], [0, 0, 1, 1], [], []>} : vector<188x8xf32>, vector<8x128xf32>, vector<188x128xf32> -> vector<188x128xf32>
    %35 = arith.addf %30, %34 : vector<188x128xf32>
    %c0_30 = arith.constant 0 : index
    %c18 = arith.constant 18 : index
    %c0_31 = arith.constant 0 : index
    %36 = vector.load %arg1[%c0_30, %c18, %c0_31] : memref<1x256x8xf32, #tpu.memory_space<vmem>>, vector<1x188x8xf32>
    %37 = vector.shape_cast %36 : vector<1x188x8xf32> to vector<188x8xf32>
    %c56 = arith.constant 56 : index
    %c0_32 = arith.constant 0 : index
    %38 = vector.load %arg2[%c56, %c0_32] : memref<200x128xf32, #tpu.memory_space<vmem>>, vector<8x128xf32>
    %cst_33 = arith.constant dense<0.000000e+00> : vector<188x128xf32>
    %39 = tpu.matmul %37, %38, %cst_33 {dimension_numbers = #tpu.dot_dimension_numbers<[1], [0], [0], [1], [0, 0, 1, 1], [], []>} : vector<188x8xf32>, vector<8x128xf32>, vector<188x128xf32> -> vector<188x128xf32>
    %40 = arith.addf %35, %39 : vector<188x128xf32>
    %c0_34 = arith.constant 0 : index
    %c19 = arith.constant 19 : index
    %c0_35 = arith.constant 0 : index
    %41 = vector.load %arg1[%c0_34, %c19, %c0_35] : memref<1x256x8xf32, #tpu.memory_space<vmem>>, vector<1x188x8xf32>
    %42 = vector.shape_cast %41 : vector<1x188x8xf32> to vector<188x8xf32>
    %c64 = arith.constant 64 : index
    %c0_36 = arith.constant 0 : index
    %43 = vector.load %arg2[%c64, %c0_36] : memref<200x128xf32, #tpu.memory_space<vmem>>, vector<8x128xf32>
    %cst_37 = arith.constant dense<0.000000e+00> : vector<188x128xf32>
    %44 = tpu.matmul %42, %43, %cst_37 {dimension_numbers = #tpu.dot_dimension_numbers<[1], [0], [0], [1], [0, 0, 1, 1], [], []>} : vector<188x8xf32>, vector<8x128xf32>, vector<188x128xf32> -> vector<188x128xf32>
    %45 = arith.addf %40, %44 : vector<188x128xf32>
    %c0_38 = arith.constant 0 : index
    %c20 = arith.constant 20 : index
    %c0_39 = arith.constant 0 : index
    %46 = vector.load %arg1[%c0_38, %c20, %c0_39] : memref<1x256x8xf32, #tpu.memory_space<vmem>>, vector<1x188x8xf32>
    %47 = vector.shape_cast %46 : vector<1x188x8xf32> to vector<188x8xf32>
    %c72 = arith.constant 72 : index
    %c0_40 = arith.constant 0 : index
    %48 = vector.load %arg2[%c72, %c0_40] : memref<200x128xf32, #tpu.memory_space<vmem>>, vector<8x128xf32>
    %cst_41 = arith.constant dense<0.000000e+00> : vector<188x128xf32>
    %49 = tpu.matmul %47, %48, %cst_41 {dimension_numbers = #tpu.dot_dimension_numbers<[1], [0], [0], [1], [0, 0, 1, 1], [], []>} : vector<188x8xf32>, vector<8x128xf32>, vector<188x128xf32> -> vector<188x128xf32>
    %50 = arith.addf %45, %49 : vector<188x128xf32>
    %c0_42 = arith.constant 0 : index
    %c32_43 = arith.constant 32 : index
    %c0_44 = arith.constant 0 : index
    %51 = vector.load %arg1[%c0_42, %c32_43, %c0_44] : memref<1x256x8xf32, #tpu.memory_space<vmem>>, vector<1x188x8xf32>
    %52 = vector.shape_cast %51 : vector<1x188x8xf32> to vector<188x8xf32>
    %c80 = arith.constant 80 : index
    %c0_45 = arith.constant 0 : index
    %53 = vector.load %arg2[%c80, %c0_45] : memref<200x128xf32, #tpu.memory_space<vmem>>, vector<8x128xf32>
    %cst_46 = arith.constant dense<0.000000e+00> : vector<188x128xf32>
    %54 = tpu.matmul %52, %53, %cst_46 {dimension_numbers = #tpu.dot_dimension_numbers<[1], [0], [0], [1], [0, 0, 1, 1], [], []>} : vector<188x8xf32>, vector<8x128xf32>, vector<188x128xf32> -> vector<188x128xf32>
    %55 = arith.addf %50, %54 : vector<188x128xf32>
    %c0_47 = arith.constant 0 : index
    %c33 = arith.constant 33 : index
    %c0_48 = arith.constant 0 : index
    %56 = vector.load %arg1[%c0_47, %c33, %c0_48] : memref<1x256x8xf32, #tpu.memory_space<vmem>>, vector<1x188x8xf32>
    %57 = vector.shape_cast %56 : vector<1x188x8xf32> to vector<188x8xf32>
    %c88 = arith.constant 88 : index
    %c0_49 = arith.constant 0 : index
    %58 = vector.load %arg2[%c88, %c0_49] : memref<200x128xf32, #tpu.memory_space<vmem>>, vector<8x128xf32>
    %cst_50 = arith.constant dense<0.000000e+00> : vector<188x128xf32>
    %59 = tpu.matmul %57, %58, %cst_50 {dimension_numbers = #tpu.dot_dimension_numbers<[1], [0], [0], [1], [0, 0, 1, 1], [], []>} : vector<188x8xf32>, vector<8x128xf32>, vector<188x128xf32> -> vector<188x128xf32>
    %60 = arith.addf %55, %59 : vector<188x128xf32>
    %c0_51 = arith.constant 0 : index
    %c34 = arith.constant 34 : index
    %c0_52 = arith.constant 0 : index
    %61 = vector.load %arg1[%c0_51, %c34, %c0_52] : memref<1x256x8xf32, #tpu.memory_space<vmem>>, vector<1x188x8xf32>
    %62 = vector.shape_cast %61 : vector<1x188x8xf32> to vector<188x8xf32>
    %c96 = arith.constant 96 : index
    %c0_53 = arith.constant 0 : index
    %63 = vector.load %arg2[%c96, %c0_53] : memref<200x128xf32, #tpu.memory_space<vmem>>, vector<8x128xf32>
    %cst_54 = arith.constant dense<0.000000e+00> : vector<188x128xf32>
    %64 = tpu.matmul %62, %63, %cst_54 {dimension_numbers = #tpu.dot_dimension_numbers<[1], [0], [0], [1], [0, 0, 1, 1], [], []>} : vector<188x8xf32>, vector<8x128xf32>, vector<188x128xf32> -> vector<188x128xf32>
    %65 = arith.addf %60, %64 : vector<188x128xf32>
    %c0_55 = arith.constant 0 : index
    %c35 = arith.constant 35 : index
    %c0_56 = arith.constant 0 : index
    %66 = vector.load %arg1[%c0_55, %c35, %c0_56] : memref<1x256x8xf32, #tpu.memory_space<vmem>>, vector<1x188x8xf32>
    %67 = vector.shape_cast %66 : vector<1x188x8xf32> to vector<188x8xf32>
    %c104 = arith.constant 104 : index
    %c0_57 = arith.constant 0 : index
    %68 = vector.load %arg2[%c104, %c0_57] : memref<200x128xf32, #tpu.memory_space<vmem>>, vector<8x128xf32>
    %cst_58 = arith.constant dense<0.000000e+00> : vector<188x128xf32>
    %69 = tpu.matmul %67, %68, %cst_58 {dimension_numbers = #tpu.dot_dimension_numbers<[1], [0], [0], [1], [0, 0, 1, 1], [], []>} : vector<188x8xf32>, vector<8x128xf32>, vector<188x128xf32> -> vector<188x128xf32>
    %70 = arith.addf %65, %69 : vector<188x128xf32>
    %c0_59 = arith.constant 0 : index
    %c36 = arith.constant 36 : index
    %c0_60 = arith.constant 0 : index
    %71 = vector.load %arg1[%c0_59, %c36, %c0_60] : memref<1x256x8xf32, #tpu.memory_space<vmem>>, vector<1x188x8xf32>
    %72 = vector.shape_cast %71 : vector<1x188x8xf32> to vector<188x8xf32>
    %c112 = arith.constant 112 : index
    %c0_61 = arith.constant 0 : index
    %73 = vector.load %arg2[%c112, %c0_61] : memref<200x128xf32, #tpu.memory_space<vmem>>, vector<8x128xf32>
    %cst_62 = arith.constant dense<0.000000e+00> : vector<188x128xf32>
    %74 = tpu.matmul %72, %73, %cst_62 {dimension_numbers = #tpu.dot_dimension_numbers<[1], [0], [0], [1], [0, 0, 1, 1], [], []>} : vector<188x8xf32>, vector<8x128xf32>, vector<188x128xf32> -> vector<188x128xf32>
    %75 = arith.addf %70, %74 : vector<188x128xf32>
    %c0_63 = arith.constant 0 : index
    %c48_64 = arith.constant 48 : index
    %c0_65 = arith.constant 0 : index
    %76 = vector.load %arg1[%c0_63, %c48_64, %c0_65] : memref<1x256x8xf32, #tpu.memory_space<vmem>>, vector<1x188x8xf32>
    %77 = vector.shape_cast %76 : vector<1x188x8xf32> to vector<188x8xf32>
    %c120 = arith.constant 120 : index
    %c0_66 = arith.constant 0 : index
    %78 = vector.load %arg2[%c120, %c0_66] : memref<200x128xf32, #tpu.memory_space<vmem>>, vector<8x128xf32>
    %cst_67 = arith.constant dense<0.000000e+00> : vector<188x128xf32>
    %79 = tpu.matmul %77, %78, %cst_67 {dimension_numbers = #tpu.dot_dimension_numbers<[1], [0], [0], [1], [0, 0, 1, 1], [], []>} : vector<188x8xf32>, vector<8x128xf32>, vector<188x128xf32> -> vector<188x128xf32>
    %80 = arith.addf %75, %79 : vector<188x128xf32>
    %c0_68 = arith.constant 0 : index
    %c49 = arith.constant 49 : index
    %c0_69 = arith.constant 0 : index
    %81 = vector.load %arg1[%c0_68, %c49, %c0_69] : memref<1x256x8xf32, #tpu.memory_space<vmem>>, vector<1x188x8xf32>
    %82 = vector.shape_cast %81 : vector<1x188x8xf32> to vector<188x8xf32>
    %c128 = arith.constant 128 : index
    %c0_70 = arith.constant 0 : index
    %83 = vector.load %arg2[%c128, %c0_70] : memref<200x128xf32, #tpu.memory_space<vmem>>, vector<8x128xf32>
    %cst_71 = arith.constant dense<0.000000e+00> : vector<188x128xf32>
    %84 = tpu.matmul %82, %83, %cst_71 {dimension_numbers = #tpu.dot_dimension_numbers<[1], [0], [0], [1], [0, 0, 1, 1], [], []>} : vector<188x8xf32>, vector<8x128xf32>, vector<188x128xf32> -> vector<188x128xf32>
    %85 = arith.addf %80, %84 : vector<188x128xf32>
    %c0_72 = arith.constant 0 : index
    %c50 = arith.constant 50 : index
    %c0_73 = arith.constant 0 : index
    %86 = vector.load %arg1[%c0_72, %c50, %c0_73] : memref<1x256x8xf32, #tpu.memory_space<vmem>>, vector<1x188x8xf32>
    %87 = vector.shape_cast %86 : vector<1x188x8xf32> to vector<188x8xf32>
    %c136 = arith.constant 136 : index
    %c0_74 = arith.constant 0 : index
    %88 = vector.load %arg2[%c136, %c0_74] : memref<200x128xf32, #tpu.memory_space<vmem>>, vector<8x128xf32>
    %cst_75 = arith.constant dense<0.000000e+00> : vector<188x128xf32>
    %89 = tpu.matmul %87, %88, %cst_75 {dimension_numbers = #tpu.dot_dimension_numbers<[1], [0], [0], [1], [0, 0, 1, 1], [], []>} : vector<188x8xf32>, vector<8x128xf32>, vector<188x128xf32> -> vector<188x128xf32>
    %90 = arith.addf %85, %89 : vector<188x128xf32>
    %c0_76 = arith.constant 0 : index
    %c51 = arith.constant 51 : index
    %c0_77 = arith.constant 0 : index
    %91 = vector.load %arg1[%c0_76, %c51, %c0_77] : memref<1x256x8xf32, #tpu.memory_space<vmem>>, vector<1x188x8xf32>
    %92 = vector.shape_cast %91 : vector<1x188x8xf32> to vector<188x8xf32>
    %c144 = arith.constant 144 : index
    %c0_78 = arith.constant 0 : index
    %93 = vector.load %arg2[%c144, %c0_78] : memref<200x128xf32, #tpu.memory_space<vmem>>, vector<8x128xf32>
    %cst_79 = arith.constant dense<0.000000e+00> : vector<188x128xf32>
    %94 = tpu.matmul %92, %93, %cst_79 {dimension_numbers = #tpu.dot_dimension_numbers<[1], [0], [0], [1], [0, 0, 1, 1], [], []>} : vector<188x8xf32>, vector<8x128xf32>, vector<188x128xf32> -> vector<188x128xf32>
    %95 = arith.addf %90, %94 : vector<188x128xf32>
    %c0_80 = arith.constant 0 : index
    %c52 = arith.constant 52 : index
    %c0_81 = arith.constant 0 : index
    %96 = vector.load %arg1[%c0_80, %c52, %c0_81] : memref<1x256x8xf32, #tpu.memory_space<vmem>>, vector<1x188x8xf32>
    %97 = vector.shape_cast %96 : vector<1x188x8xf32> to vector<188x8xf32>
    %c152 = arith.constant 152 : index
    %c0_82 = arith.constant 0 : index
    %98 = vector.load %arg2[%c152, %c0_82] : memref<200x128xf32, #tpu.memory_space<vmem>>, vector<8x128xf32>
    %cst_83 = arith.constant dense<0.000000e+00> : vector<188x128xf32>
    %99 = tpu.matmul %97, %98, %cst_83 {dimension_numbers = #tpu.dot_dimension_numbers<[1], [0], [0], [1], [0, 0, 1, 1], [], []>} : vector<188x8xf32>, vector<8x128xf32>, vector<188x128xf32> -> vector<188x128xf32>
    %100 = arith.addf %95, %99 : vector<188x128xf32>
    %c0_84 = arith.constant 0 : index
    %c64_85 = arith.constant 64 : index
    %c0_86 = arith.constant 0 : index
    %101 = vector.load %arg1[%c0_84, %c64_85, %c0_86] : memref<1x256x8xf32, #tpu.memory_space<vmem>>, vector<1x188x8xf32>
    %102 = vector.shape_cast %101 : vector<1x188x8xf32> to vector<188x8xf32>
    %c160 = arith.constant 160 : index
    %c0_87 = arith.constant 0 : index
    %103 = vector.load %arg2[%c160, %c0_87] : memref<200x128xf32, #tpu.memory_space<vmem>>, vector<8x128xf32>
    %cst_88 = arith.constant dense<0.000000e+00> : vector<188x128xf32>
    %104 = tpu.matmul %102, %103, %cst_88 {dimension_numbers = #tpu.dot_dimension_numbers<[1], [0], [0], [1], [0, 0, 1, 1], [], []>} : vector<188x8xf32>, vector<8x128xf32>, vector<188x128xf32> -> vector<188x128xf32>
    %105 = arith.addf %100, %104 : vector<188x128xf32>
    %c0_89 = arith.constant 0 : index
    %c65 = arith.constant 65 : index
    %c0_90 = arith.constant 0 : index
    %106 = vector.load %arg1[%c0_89, %c65, %c0_90] : memref<1x256x8xf32, #tpu.memory_space<vmem>>, vector<1x188x8xf32>
    %107 = vector.shape_cast %106 : vector<1x188x8xf32> to vector<188x8xf32>
    %c168 = arith.constant 168 : index
    %c0_91 = arith.constant 0 : index
    %108 = vector.load %arg2[%c168, %c0_91] : memref<200x128xf32, #tpu.memory_space<vmem>>, vector<8x128xf32>
    %cst_92 = arith.constant dense<0.000000e+00> : vector<188x128xf32>
    %109 = tpu.matmul %107, %108, %cst_92 {dimension_numbers = #tpu.dot_dimension_numbers<[1], [0], [0], [1], [0, 0, 1, 1], [], []>} : vector<188x8xf32>, vector<8x128xf32>, vector<188x128xf32> -> vector<188x128xf32>
    %110 = arith.addf %105, %109 : vector<188x128xf32>
    %c0_93 = arith.constant 0 : index
    %c66 = arith.constant 66 : index
    %c0_94 = arith.constant 0 : index
    %111 = vector.load %arg1[%c0_93, %c66, %c0_94] : memref<1x256x8xf32, #tpu.memory_space<vmem>>, vector<1x188x8xf32>
    %112 = vector.shape_cast %111 : vector<1x188x8xf32> to vector<188x8xf32>
    %c176 = arith.constant 176 : index
    %c0_95 = arith.constant 0 : index
    %113 = vector.load %arg2[%c176, %c0_95] : memref<200x128xf32, #tpu.memory_space<vmem>>, vector<8x128xf32>
    %cst_96 = arith.constant dense<0.000000e+00> : vector<188x128xf32>
    %114 = tpu.matmul %112, %113, %cst_96 {dimension_numbers = #tpu.dot_dimension_numbers<[1], [0], [0], [1], [0, 0, 1, 1], [], []>} : vector<188x8xf32>, vector<8x128xf32>, vector<188x128xf32> -> vector<188x128xf32>
    %115 = arith.addf %110, %114 : vector<188x128xf32>
    %c0_97 = arith.constant 0 : index
    %c67 = arith.constant 67 : index
    %c0_98 = arith.constant 0 : index
    %116 = vector.load %arg1[%c0_97, %c67, %c0_98] : memref<1x256x8xf32, #tpu.memory_space<vmem>>, vector<1x188x8xf32>
    %117 = vector.shape_cast %116 : vector<1x188x8xf32> to vector<188x8xf32>
    %c184 = arith.constant 184 : index
    %c0_99 = arith.constant 0 : index
    %118 = vector.load %arg2[%c184, %c0_99] : memref<200x128xf32, #tpu.memory_space<vmem>>, vector<8x128xf32>
    %cst_100 = arith.constant dense<0.000000e+00> : vector<188x128xf32>
    %119 = tpu.matmul %117, %118, %cst_100 {dimension_numbers = #tpu.dot_dimension_numbers<[1], [0], [0], [1], [0, 0, 1, 1], [], []>} : vector<188x8xf32>, vector<8x128xf32>, vector<188x128xf32> -> vector<188x128xf32>
    %120 = arith.addf %115, %119 : vector<188x128xf32>
    %c0_101 = arith.constant 0 : index
    %c68 = arith.constant 68 : index
    %c0_102 = arith.constant 0 : index
    %121 = vector.load %arg1[%c0_101, %c68, %c0_102] : memref<1x256x8xf32, #tpu.memory_space<vmem>>, vector<1x188x8xf32>
    %122 = vector.shape_cast %121 : vector<1x188x8xf32> to vector<188x8xf32>
    %c192 = arith.constant 192 : index
    %c0_103 = arith.constant 0 : index
    %123 = vector.load %arg2[%c192, %c0_103] : memref<200x128xf32, #tpu.memory_space<vmem>>, vector<8x128xf32>
    %cst_104 = arith.constant dense<0.000000e+00> : vector<188x128xf32>
    %124 = tpu.matmul %122, %123, %cst_104 {dimension_numbers = #tpu.dot_dimension_numbers<[1], [0], [0], [1], [0, 0, 1, 1], [], []>} : vector<188x8xf32>, vector<8x128xf32>, vector<188x128xf32> -> vector<188x128xf32>
    %125 = arith.addf %120, %124 : vector<188x128xf32>
    %c0_105 = arith.constant 0 : index
    %c0_106 = arith.constant 0 : index
    %126 = vector.load %arg3[%c0_105, %c0_106] : memref<1x128xf32, #tpu.memory_space<vmem>>, vector<1x128xf32>
    %127 = vector.broadcast %126 : vector<1x128xf32> to vector<188x128xf32>
    %128 = arith.addf %125, %127 : vector<188x128xf32>
    %cst_107 = arith.constant 0.000000e+00 : f32
    %129 = vector.broadcast %cst_107 : f32 to vector<188x128xf32>
    %130 = arith.maximumf %128, %129 : vector<188x128xf32>
    %131 = vector.extract_strided_slice %130 {offsets = [0, 0], sizes = [187, 128], strides = [1, 1]} : vector<188x128xf32> to vector<187x128xf32>
    %132 = vector.extract_strided_slice %130 {offsets = [1, 0], sizes = [187, 128], strides = [1, 1]} : vector<188x128xf32> to vector<187x128xf32>
    %133 = arith.maximumf %131, %132 : vector<187x128xf32>
    %134 = vector.extract_strided_slice %133 {offsets = [0, 0], sizes = [171, 128], strides = [1, 1]} : vector<187x128xf32> to vector<171x128xf32>
    %135 = vector.extract_strided_slice %133 {offsets = [16, 0], sizes = [171, 128], strides = [1, 1]} : vector<187x128xf32> to vector<171x128xf32>
    %136 = arith.maximumf %134, %135 : vector<171x128xf32>
    %c0_108 = arith.constant 0 : index
    %c0_109 = arith.constant 0 : index
    %137 = vector.load %arg4[%c0_108, %c0_109] : memref<36x171xf32, #tpu.memory_space<vmem>>, vector<36x171xf32>
    %cst_110 = arith.constant dense<0.000000e+00> : vector<36x128xf32>
    %138 = tpu.matmul %137, %136, %cst_110 {dimension_numbers = #tpu.dot_dimension_numbers<[1], [0], [0], [1], [0, 0, 1, 1], [], []>} : vector<36x171xf32>, vector<171x128xf32>, vector<36x128xf32> -> vector<36x128xf32>
    %c0_111 = arith.constant 0 : index
    %c0_112 = arith.constant 0 : index
    %c0_113 = arith.constant 0 : index
    %139 = vector.load %arg5[%c0_111, %c0_112, %c0_113] : memref<1x36x128xf32, #tpu.memory_space<vmem>>, vector<1x36x128xf32>
    %140 = vector.shape_cast %139 : vector<1x36x128xf32> to vector<36x128xf32>
    %141 = vector.shape_cast %138 : vector<36x128xf32> to vector<1x36x128xf32>
    tpu.vector_store %arg5[%c0_111, %c0_112, %c0_113], %141 {strides = array<i32>} : memref<1x36x128xf32, #tpu.memory_space<vmem>>, vector<1x36x128xf32>,
    return
  }
  func.func @transform_0(%arg0: i32) -> (i32, i32, i32) {
    %c0_i32 = arith.constant 0 : i32
    %c0_i32_0 = arith.constant 0 : i32
    %c0_i32_1 = arith.constant 0 : i32
    return %arg0, %c0_i32, %c0_i32_0 : i32, i32, i32
  }
  func.func @transform_1(%arg0: i32) -> (i32, i32) {
    %c0_i32 = arith.constant 0 : i32
    %c0_i32_0 = arith.constant 0 : i32
    %c0_i32_1 = arith.constant 0 : i32
    return %c0_i32, %c0_i32_0 : i32, i32
  }
  func.func @transform_2(%arg0: i32) -> (i32, i32) {
    %c0_i32 = arith.constant 0 : i32
    %c0_i32_0 = arith.constant 0 : i32
    %c0_i32_1 = arith.constant 0 : i32
    return %c0_i32, %c0_i32_0 : i32, i32
  }
  func.func @transform_3(%arg0: i32) -> (i32, i32) {
    %c0_i32 = arith.constant 0 : i32
    %c0_i32_0 = arith.constant 0 : i32
    %c0_i32_1 = arith.constant 0 : i32
    return %c0_i32, %c0_i32_0 : i32, i32
  }
  func.func @transform_4(%arg0: i32) -> (i32, i32, i32) {
    %c0_i32 = arith.constant 0 : i32
    %c0_i32_0 = arith.constant 0 : i32
    %c0_i32_1 = arith.constant 0 : i32
    return %arg0, %c0_i32, %c0_i32_0 : i32, i32, i32
  }
}

module attributes {stable_mosaic.version = 11 : i64} {
  func.func @_conv_relu_pool_kernel(%arg0: i32, %arg1: memref<1x36x128xf32, #tpu.memory_space<vmem>>, %arg2: memref<3200x128xf32, #tpu.memory_space<vmem>>, %arg3: memref<1x128xf32, #tpu.memory_space<vmem>>, %arg4: memref<1x1xf32, #tpu.memory_space<vmem>>, %arg5: memref<1x1x128xf32, #tpu.memory_space<vmem>>) attributes {dimension_semantics = [#tpu.dimension_semantics<parallel>], iteration_bounds = array<i64: 2>, scalar_prefetch = 0 : i64, scratch_operands = 0 : i64, tpu.core_type = #tpu.core_type<tc>, window_params = [{transform_indices = @transform_0, window_bounds = array<i64: 1, 36, 128>}, {pipeline_mode = #tpu.pipeline_mode<synchronous>, transform_indices = @transform_1, window_bounds = array<i64: 3200, 128>}, {pipeline_mode = #tpu.pipeline_mode<synchronous>, transform_indices = @transform_2, window_bounds = array<i64: 1, 128>}, {pipeline_mode = #tpu.pipeline_mode<synchronous>, transform_indices = @transform_3, window_bounds = array<i64: 1, 1>}, {transform_indices = @transform_4, window_bounds = array<i64: 1, 1, 128>}]} {
    %cst = arith.constant 0.000000e+00 : f32
    %0 = vector.broadcast %cst : f32 to vector<8x128xf32>
    %c0 = arith.constant 0 : index
    %c0_0 = arith.constant 0 : index
    %c0_1 = arith.constant 0 : index
    %1 = vector.load %arg1[%c0, %c0_0, %c0_1] : memref<1x36x128xf32, #tpu.memory_space<vmem>>, vector<1x8x128xf32>
    %2 = vector.shape_cast %1 : vector<1x8x128xf32> to vector<8x128xf32>
    %c0_2 = arith.constant 0 : index
    %c0_3 = arith.constant 0 : index
    %3 = vector.load %arg2[%c0_2, %c0_3] : memref<3200x128xf32, #tpu.memory_space<vmem>>, vector<128x128xf32>
    %cst_4 = arith.constant dense<0.000000e+00> : vector<8x128xf32>
    %4 = tpu.matmul %2, %3, %cst_4 {dimension_numbers = #tpu.dot_dimension_numbers<[1], [0], [0], [1], [0, 0, 1, 1], [], []>} : vector<8x128xf32>, vector<128x128xf32>, vector<8x128xf32> -> vector<8x128xf32>
    %5 = arith.addf %0, %4 : vector<8x128xf32>
    %c0_5 = arith.constant 0 : index
    %c1 = arith.constant 1 : index
    %c0_6 = arith.constant 0 : index
    %6 = vector.load %arg1[%c0_5, %c1, %c0_6] : memref<1x36x128xf32, #tpu.memory_space<vmem>>, vector<1x8x128xf32>
    %7 = vector.shape_cast %6 : vector<1x8x128xf32> to vector<8x128xf32>
    %c128 = arith.constant 128 : index
    %c0_7 = arith.constant 0 : index
    %8 = vector.load %arg2[%c128, %c0_7] : memref<3200x128xf32, #tpu.memory_space<vmem>>, vector<128x128xf32>
    %cst_8 = arith.constant dense<0.000000e+00> : vector<8x128xf32>
    %9 = tpu.matmul %7, %8, %cst_8 {dimension_numbers = #tpu.dot_dimension_numbers<[1], [0], [0], [1], [0, 0, 1, 1], [], []>} : vector<8x128xf32>, vector<128x128xf32>, vector<8x128xf32> -> vector<8x128xf32>
    %10 = arith.addf %5, %9 : vector<8x128xf32>
    %c0_9 = arith.constant 0 : index
    %c2 = arith.constant 2 : index
    %c0_10 = arith.constant 0 : index
    %11 = vector.load %arg1[%c0_9, %c2, %c0_10] : memref<1x36x128xf32, #tpu.memory_space<vmem>>, vector<1x8x128xf32>
    %12 = vector.shape_cast %11 : vector<1x8x128xf32> to vector<8x128xf32>
    %c256 = arith.constant 256 : index
    %c0_11 = arith.constant 0 : index
    %13 = vector.load %arg2[%c256, %c0_11] : memref<3200x128xf32, #tpu.memory_space<vmem>>, vector<128x128xf32>
    %cst_12 = arith.constant dense<0.000000e+00> : vector<8x128xf32>
    %14 = tpu.matmul %12, %13, %cst_12 {dimension_numbers = #tpu.dot_dimension_numbers<[1], [0], [0], [1], [0, 0, 1, 1], [], []>} : vector<8x128xf32>, vector<128x128xf32>, vector<8x128xf32> -> vector<8x128xf32>
    %15 = arith.addf %10, %14 : vector<8x128xf32>
    %c0_13 = arith.constant 0 : index
    %c3 = arith.constant 3 : index
    %c0_14 = arith.constant 0 : index
    %16 = vector.load %arg1[%c0_13, %c3, %c0_14] : memref<1x36x128xf32, #tpu.memory_space<vmem>>, vector<1x8x128xf32>
    %17 = vector.shape_cast %16 : vector<1x8x128xf32> to vector<8x128xf32>
    %c384 = arith.constant 384 : index
    %c0_15 = arith.constant 0 : index
    %18 = vector.load %arg2[%c384, %c0_15] : memref<3200x128xf32, #tpu.memory_space<vmem>>, vector<128x128xf32>
    %cst_16 = arith.constant dense<0.000000e+00> : vector<8x128xf32>
    %19 = tpu.matmul %17, %18, %cst_16 {dimension_numbers = #tpu.dot_dimension_numbers<[1], [0], [0], [1], [0, 0, 1, 1], [], []>} : vector<8x128xf32>, vector<128x128xf32>, vector<8x128xf32> -> vector<8x128xf32>
    %20 = arith.addf %15, %19 : vector<8x128xf32>
    %c0_17 = arith.constant 0 : index
    %c4 = arith.constant 4 : index
    %c0_18 = arith.constant 0 : index
    %21 = vector.load %arg1[%c0_17, %c4, %c0_18] : memref<1x36x128xf32, #tpu.memory_space<vmem>>, vector<1x8x128xf32>
    %22 = vector.shape_cast %21 : vector<1x8x128xf32> to vector<8x128xf32>
    %c512 = arith.constant 512 : index
    %c0_19 = arith.constant 0 : index
    %23 = vector.load %arg2[%c512, %c0_19] : memref<3200x128xf32, #tpu.memory_space<vmem>>, vector<128x128xf32>
    %cst_20 = arith.constant dense<0.000000e+00> : vector<8x128xf32>
    %24 = tpu.matmul %22, %23, %cst_20 {dimension_numbers = #tpu.dot_dimension_numbers<[1], [0], [0], [1], [0, 0, 1, 1], [], []>} : vector<8x128xf32>, vector<128x128xf32>, vector<8x128xf32> -> vector<8x128xf32>
    %25 = arith.addf %20, %24 : vector<8x128xf32>
    %c0_21 = arith.constant 0 : index
    %c6 = arith.constant 6 : index
    %c0_22 = arith.constant 0 : index
    %26 = vector.load %arg1[%c0_21, %c6, %c0_22] : memref<1x36x128xf32, #tpu.memory_space<vmem>>, vector<1x8x128xf32>
    %27 = vector.shape_cast %26 : vector<1x8x128xf32> to vector<8x128xf32>
    %c640 = arith.constant 640 : index
    %c0_23 = arith.constant 0 : index
    %28 = vector.load %arg2[%c640, %c0_23] : memref<3200x128xf32, #tpu.memory_space<vmem>>, vector<128x128xf32>
    %cst_24 = arith.constant dense<0.000000e+00> : vector<8x128xf32>
    %29 = tpu.matmul %27, %28, %cst_24 {dimension_numbers = #tpu.dot_dimension_numbers<[1], [0], [0], [1], [0, 0, 1, 1], [], []>} : vector<8x128xf32>, vector<128x128xf32>, vector<8x128xf32> -> vector<8x128xf32>
    %30 = arith.addf %25, %29 : vector<8x128xf32>
    %c0_25 = arith.constant 0 : index
    %c7 = arith.constant 7 : index
    %c0_26 = arith.constant 0 : index
    %31 = vector.load %arg1[%c0_25, %c7, %c0_26] : memref<1x36x128xf32, #tpu.memory_space<vmem>>, vector<1x8x128xf32>
    %32 = vector.shape_cast %31 : vector<1x8x128xf32> to vector<8x128xf32>
    %c768 = arith.constant 768 : index
    %c0_27 = arith.constant 0 : index
    %33 = vector.load %arg2[%c768, %c0_27] : memref<3200x128xf32, #tpu.memory_space<vmem>>, vector<128x128xf32>
    %cst_28 = arith.constant dense<0.000000e+00> : vector<8x128xf32>
    %34 = tpu.matmul %32, %33, %cst_28 {dimension_numbers = #tpu.dot_dimension_numbers<[1], [0], [0], [1], [0, 0, 1, 1], [], []>} : vector<8x128xf32>, vector<128x128xf32>, vector<8x128xf32> -> vector<8x128xf32>
    %35 = arith.addf %30, %34 : vector<8x128xf32>
    %c0_29 = arith.constant 0 : index
    %c8 = arith.constant 8 : index
    %c0_30 = arith.constant 0 : index
    %36 = vector.load %arg1[%c0_29, %c8, %c0_30] : memref<1x36x128xf32, #tpu.memory_space<vmem>>, vector<1x8x128xf32>
    %37 = vector.shape_cast %36 : vector<1x8x128xf32> to vector<8x128xf32>
    %c896 = arith.constant 896 : index
    %c0_31 = arith.constant 0 : index
    %38 = vector.load %arg2[%c896, %c0_31] : memref<3200x128xf32, #tpu.memory_space<vmem>>, vector<128x128xf32>
    %cst_32 = arith.constant dense<0.000000e+00> : vector<8x128xf32>
    %39 = tpu.matmul %37, %38, %cst_32 {dimension_numbers = #tpu.dot_dimension_numbers<[1], [0], [0], [1], [0, 0, 1, 1], [], []>} : vector<8x128xf32>, vector<128x128xf32>, vector<8x128xf32> -> vector<8x128xf32>
    %40 = arith.addf %35, %39 : vector<8x128xf32>
    %c0_33 = arith.constant 0 : index
    %c9 = arith.constant 9 : index
    %c0_34 = arith.constant 0 : index
    %41 = vector.load %arg1[%c0_33, %c9, %c0_34] : memref<1x36x128xf32, #tpu.memory_space<vmem>>, vector<1x8x128xf32>
    %42 = vector.shape_cast %41 : vector<1x8x128xf32> to vector<8x128xf32>
    %c1024 = arith.constant 1024 : index
    %c0_35 = arith.constant 0 : index
    %43 = vector.load %arg2[%c1024, %c0_35] : memref<3200x128xf32, #tpu.memory_space<vmem>>, vector<128x128xf32>
    %cst_36 = arith.constant dense<0.000000e+00> : vector<8x128xf32>
    %44 = tpu.matmul %42, %43, %cst_36 {dimension_numbers = #tpu.dot_dimension_numbers<[1], [0], [0], [1], [0, 0, 1, 1], [], []>} : vector<8x128xf32>, vector<128x128xf32>, vector<8x128xf32> -> vector<8x128xf32>
    %45 = arith.addf %40, %44 : vector<8x128xf32>
    %c0_37 = arith.constant 0 : index
    %c10 = arith.constant 10 : index
    %c0_38 = arith.constant 0 : index
    %46 = vector.load %arg1[%c0_37, %c10, %c0_38] : memref<1x36x128xf32, #tpu.memory_space<vmem>>, vector<1x8x128xf32>
    %47 = vector.shape_cast %46 : vector<1x8x128xf32> to vector<8x128xf32>
    %c1152 = arith.constant 1152 : index
    %c0_39 = arith.constant 0 : index
    %48 = vector.load %arg2[%c1152, %c0_39] : memref<3200x128xf32, #tpu.memory_space<vmem>>, vector<128x128xf32>
    %cst_40 = arith.constant dense<0.000000e+00> : vector<8x128xf32>
    %49 = tpu.matmul %47, %48, %cst_40 {dimension_numbers = #tpu.dot_dimension_numbers<[1], [0], [0], [1], [0, 0, 1, 1], [], []>} : vector<8x128xf32>, vector<128x128xf32>, vector<8x128xf32> -> vector<8x128xf32>
    %50 = arith.addf %45, %49 : vector<8x128xf32>
    %c0_41 = arith.constant 0 : index
    %c12 = arith.constant 12 : index
    %c0_42 = arith.constant 0 : index
    %51 = vector.load %arg1[%c0_41, %c12, %c0_42] : memref<1x36x128xf32, #tpu.memory_space<vmem>>, vector<1x8x128xf32>
    %52 = vector.shape_cast %51 : vector<1x8x128xf32> to vector<8x128xf32>
    %c1280 = arith.constant 1280 : index
    %c0_43 = arith.constant 0 : index
    %53 = vector.load %arg2[%c1280, %c0_43] : memref<3200x128xf32, #tpu.memory_space<vmem>>, vector<128x128xf32>
    %cst_44 = arith.constant dense<0.000000e+00> : vector<8x128xf32>
    %54 = tpu.matmul %52, %53, %cst_44 {dimension_numbers = #tpu.dot_dimension_numbers<[1], [0], [0], [1], [0, 0, 1, 1], [], []>} : vector<8x128xf32>, vector<128x128xf32>, vector<8x128xf32> -> vector<8x128xf32>
    %55 = arith.addf %50, %54 : vector<8x128xf32>
    %c0_45 = arith.constant 0 : index
    %c13 = arith.constant 13 : index
    %c0_46 = arith.constant 0 : index
    %56 = vector.load %arg1[%c0_45, %c13, %c0_46] : memref<1x36x128xf32, #tpu.memory_space<vmem>>, vector<1x8x128xf32>
    %57 = vector.shape_cast %56 : vector<1x8x128xf32> to vector<8x128xf32>
    %c1408 = arith.constant 1408 : index
    %c0_47 = arith.constant 0 : index
    %58 = vector.load %arg2[%c1408, %c0_47] : memref<3200x128xf32, #tpu.memory_space<vmem>>, vector<128x128xf32>
    %cst_48 = arith.constant dense<0.000000e+00> : vector<8x128xf32>
    %59 = tpu.matmul %57, %58, %cst_48 {dimension_numbers = #tpu.dot_dimension_numbers<[1], [0], [0], [1], [0, 0, 1, 1], [], []>} : vector<8x128xf32>, vector<128x128xf32>, vector<8x128xf32> -> vector<8x128xf32>
    %60 = arith.addf %55, %59 : vector<8x128xf32>
    %c0_49 = arith.constant 0 : index
    %c14 = arith.constant 14 : index
    %c0_50 = arith.constant 0 : index
    %61 = vector.load %arg1[%c0_49, %c14, %c0_50] : memref<1x36x128xf32, #tpu.memory_space<vmem>>, vector<1x8x128xf32>
    %62 = vector.shape_cast %61 : vector<1x8x128xf32> to vector<8x128xf32>
    %c1536 = arith.constant 1536 : index
    %c0_51 = arith.constant 0 : index
    %63 = vector.load %arg2[%c1536, %c0_51] : memref<3200x128xf32, #tpu.memory_space<vmem>>, vector<128x128xf32>
    %cst_52 = arith.constant dense<0.000000e+00> : vector<8x128xf32>
    %64 = tpu.matmul %62, %63, %cst_52 {dimension_numbers = #tpu.dot_dimension_numbers<[1], [0], [0], [1], [0, 0, 1, 1], [], []>} : vector<8x128xf32>, vector<128x128xf32>, vector<8x128xf32> -> vector<8x128xf32>
    %65 = arith.addf %60, %64 : vector<8x128xf32>
    %c0_53 = arith.constant 0 : index
    %c15 = arith.constant 15 : index
    %c0_54 = arith.constant 0 : index
    %66 = vector.load %arg1[%c0_53, %c15, %c0_54] : memref<1x36x128xf32, #tpu.memory_space<vmem>>, vector<1x8x128xf32>
    %67 = vector.shape_cast %66 : vector<1x8x128xf32> to vector<8x128xf32>
    %c1664 = arith.constant 1664 : index
    %c0_55 = arith.constant 0 : index
    %68 = vector.load %arg2[%c1664, %c0_55] : memref<3200x128xf32, #tpu.memory_space<vmem>>, vector<128x128xf32>
    %cst_56 = arith.constant dense<0.000000e+00> : vector<8x128xf32>
    %69 = tpu.matmul %67, %68, %cst_56 {dimension_numbers = #tpu.dot_dimension_numbers<[1], [0], [0], [1], [0, 0, 1, 1], [], []>} : vector<8x128xf32>, vector<128x128xf32>, vector<8x128xf32> -> vector<8x128xf32>
    %70 = arith.addf %65, %69 : vector<8x128xf32>
    %c0_57 = arith.constant 0 : index
    %c16 = arith.constant 16 : index
    %c0_58 = arith.constant 0 : index
    %71 = vector.load %arg1[%c0_57, %c16, %c0_58] : memref<1x36x128xf32, #tpu.memory_space<vmem>>, vector<1x8x128xf32>
    %72 = vector.shape_cast %71 : vector<1x8x128xf32> to vector<8x128xf32>
    %c1792 = arith.constant 1792 : index
    %c0_59 = arith.constant 0 : index
    %73 = vector.load %arg2[%c1792, %c0_59] : memref<3200x128xf32, #tpu.memory_space<vmem>>, vector<128x128xf32>
    %cst_60 = arith.constant dense<0.000000e+00> : vector<8x128xf32>
    %74 = tpu.matmul %72, %73, %cst_60 {dimension_numbers = #tpu.dot_dimension_numbers<[1], [0], [0], [1], [0, 0, 1, 1], [], []>} : vector<8x128xf32>, vector<128x128xf32>, vector<8x128xf32> -> vector<8x128xf32>
    %75 = arith.addf %70, %74 : vector<8x128xf32>
    %c0_61 = arith.constant 0 : index
    %c18 = arith.constant 18 : index
    %c0_62 = arith.constant 0 : index
    %76 = vector.load %arg1[%c0_61, %c18, %c0_62] : memref<1x36x128xf32, #tpu.memory_space<vmem>>, vector<1x8x128xf32>
    %77 = vector.shape_cast %76 : vector<1x8x128xf32> to vector<8x128xf32>
    %c1920 = arith.constant 1920 : index
    %c0_63 = arith.constant 0 : index
    %78 = vector.load %arg2[%c1920, %c0_63] : memref<3200x128xf32, #tpu.memory_space<vmem>>, vector<128x128xf32>
    %cst_64 = arith.constant dense<0.000000e+00> : vector<8x128xf32>
    %79 = tpu.matmul %77, %78, %cst_64 {dimension_numbers = #tpu.dot_dimension_numbers<[1], [0], [0], [1], [0, 0, 1, 1], [], []>} : vector<8x128xf32>, vector<128x128xf32>, vector<8x128xf32> -> vector<8x128xf32>
    %80 = arith.addf %75, %79 : vector<8x128xf32>
    %c0_65 = arith.constant 0 : index
    %c19 = arith.constant 19 : index
    %c0_66 = arith.constant 0 : index
    %81 = vector.load %arg1[%c0_65, %c19, %c0_66] : memref<1x36x128xf32, #tpu.memory_space<vmem>>, vector<1x8x128xf32>
    %82 = vector.shape_cast %81 : vector<1x8x128xf32> to vector<8x128xf32>
    %c2048 = arith.constant 2048 : index
    %c0_67 = arith.constant 0 : index
    %83 = vector.load %arg2[%c2048, %c0_67] : memref<3200x128xf32, #tpu.memory_space<vmem>>, vector<128x128xf32>
    %cst_68 = arith.constant dense<0.000000e+00> : vector<8x128xf32>
    %84 = tpu.matmul %82, %83, %cst_68 {dimension_numbers = #tpu.dot_dimension_numbers<[1], [0], [0], [1], [0, 0, 1, 1], [], []>} : vector<8x128xf32>, vector<128x128xf32>, vector<8x128xf32> -> vector<8x128xf32>
    %85 = arith.addf %80, %84 : vector<8x128xf32>
    %c0_69 = arith.constant 0 : index
    %c20 = arith.constant 20 : index
    %c0_70 = arith.constant 0 : index
    %86 = vector.load %arg1[%c0_69, %c20, %c0_70] : memref<1x36x128xf32, #tpu.memory_space<vmem>>, vector<1x8x128xf32>
    %87 = vector.shape_cast %86 : vector<1x8x128xf32> to vector<8x128xf32>
    %c2176 = arith.constant 2176 : index
    %c0_71 = arith.constant 0 : index
    %88 = vector.load %arg2[%c2176, %c0_71] : memref<3200x128xf32, #tpu.memory_space<vmem>>, vector<128x128xf32>
    %cst_72 = arith.constant dense<0.000000e+00> : vector<8x128xf32>
    %89 = tpu.matmul %87, %88, %cst_72 {dimension_numbers = #tpu.dot_dimension_numbers<[1], [0], [0], [1], [0, 0, 1, 1], [], []>} : vector<8x128xf32>, vector<128x128xf32>, vector<8x128xf32> -> vector<8x128xf32>
    %90 = arith.addf %85, %89 : vector<8x128xf32>
    %c0_73 = arith.constant 0 : index
    %c21 = arith.constant 21 : index
    %c0_74 = arith.constant 0 : index
    %91 = vector.load %arg1[%c0_73, %c21, %c0_74] : memref<1x36x128xf32, #tpu.memory_space<vmem>>, vector<1x8x128xf32>
    %92 = vector.shape_cast %91 : vector<1x8x128xf32> to vector<8x128xf32>
    %c2304 = arith.constant 2304 : index
    %c0_75 = arith.constant 0 : index
    %93 = vector.load %arg2[%c2304, %c0_75] : memref<3200x128xf32, #tpu.memory_space<vmem>>, vector<128x128xf32>
    %cst_76 = arith.constant dense<0.000000e+00> : vector<8x128xf32>
    %94 = tpu.matmul %92, %93, %cst_76 {dimension_numbers = #tpu.dot_dimension_numbers<[1], [0], [0], [1], [0, 0, 1, 1], [], []>} : vector<8x128xf32>, vector<128x128xf32>, vector<8x128xf32> -> vector<8x128xf32>
    %95 = arith.addf %90, %94 : vector<8x128xf32>
    %c0_77 = arith.constant 0 : index
    %c22 = arith.constant 22 : index
    %c0_78 = arith.constant 0 : index
    %96 = vector.load %arg1[%c0_77, %c22, %c0_78] : memref<1x36x128xf32, #tpu.memory_space<vmem>>, vector<1x8x128xf32>
    %97 = vector.shape_cast %96 : vector<1x8x128xf32> to vector<8x128xf32>
    %c2432 = arith.constant 2432 : index
    %c0_79 = arith.constant 0 : index
    %98 = vector.load %arg2[%c2432, %c0_79] : memref<3200x128xf32, #tpu.memory_space<vmem>>, vector<128x128xf32>
    %cst_80 = arith.constant dense<0.000000e+00> : vector<8x128xf32>
    %99 = tpu.matmul %97, %98, %cst_80 {dimension_numbers = #tpu.dot_dimension_numbers<[1], [0], [0], [1], [0, 0, 1, 1], [], []>} : vector<8x128xf32>, vector<128x128xf32>, vector<8x128xf32> -> vector<8x128xf32>
    %100 = arith.addf %95, %99 : vector<8x128xf32>
    %c0_81 = arith.constant 0 : index
    %c24 = arith.constant 24 : index
    %c0_82 = arith.constant 0 : index
    %101 = vector.load %arg1[%c0_81, %c24, %c0_82] : memref<1x36x128xf32, #tpu.memory_space<vmem>>, vector<1x8x128xf32>
    %102 = vector.shape_cast %101 : vector<1x8x128xf32> to vector<8x128xf32>
    %c2560 = arith.constant 2560 : index
    %c0_83 = arith.constant 0 : index
    %103 = vector.load %arg2[%c2560, %c0_83] : memref<3200x128xf32, #tpu.memory_space<vmem>>, vector<128x128xf32>
    %cst_84 = arith.constant dense<0.000000e+00> : vector<8x128xf32>
    %104 = tpu.matmul %102, %103, %cst_84 {dimension_numbers = #tpu.dot_dimension_numbers<[1], [0], [0], [1], [0, 0, 1, 1], [], []>} : vector<8x128xf32>, vector<128x128xf32>, vector<8x128xf32> -> vector<8x128xf32>
    %105 = arith.addf %100, %104 : vector<8x128xf32>
    %c0_85 = arith.constant 0 : index
    %c25 = arith.constant 25 : index
    %c0_86 = arith.constant 0 : index
    %106 = vector.load %arg1[%c0_85, %c25, %c0_86] : memref<1x36x128xf32, #tpu.memory_space<vmem>>, vector<1x8x128xf32>
    %107 = vector.shape_cast %106 : vector<1x8x128xf32> to vector<8x128xf32>
    %c2688 = arith.constant 2688 : index
    %c0_87 = arith.constant 0 : index
    %108 = vector.load %arg2[%c2688, %c0_87] : memref<3200x128xf32, #tpu.memory_space<vmem>>, vector<128x128xf32>
    %cst_88 = arith.constant dense<0.000000e+00> : vector<8x128xf32>
    %109 = tpu.matmul %107, %108, %cst_88 {dimension_numbers = #tpu.dot_dimension_numbers<[1], [0], [0], [1], [0, 0, 1, 1], [], []>} : vector<8x128xf32>, vector<128x128xf32>, vector<8x128xf32> -> vector<8x128xf32>
    %110 = arith.addf %105, %109 : vector<8x128xf32>
    %c0_89 = arith.constant 0 : index
    %c26 = arith.constant 26 : index
    %c0_90 = arith.constant 0 : index
    %111 = vector.load %arg1[%c0_89, %c26, %c0_90] : memref<1x36x128xf32, #tpu.memory_space<vmem>>, vector<1x8x128xf32>
    %112 = vector.shape_cast %111 : vector<1x8x128xf32> to vector<8x128xf32>
    %c2816 = arith.constant 2816 : index
    %c0_91 = arith.constant 0 : index
    %113 = vector.load %arg2[%c2816, %c0_91] : memref<3200x128xf32, #tpu.memory_space<vmem>>, vector<128x128xf32>
    %cst_92 = arith.constant dense<0.000000e+00> : vector<8x128xf32>
    %114 = tpu.matmul %112, %113, %cst_92 {dimension_numbers = #tpu.dot_dimension_numbers<[1], [0], [0], [1], [0, 0, 1, 1], [], []>} : vector<8x128xf32>, vector<128x128xf32>, vector<8x128xf32> -> vector<8x128xf32>
    %115 = arith.addf %110, %114 : vector<8x128xf32>
    %c0_93 = arith.constant 0 : index
    %c27 = arith.constant 27 : index
    %c0_94 = arith.constant 0 : index
    %116 = vector.load %arg1[%c0_93, %c27, %c0_94] : memref<1x36x128xf32, #tpu.memory_space<vmem>>, vector<1x8x128xf32>
    %117 = vector.shape_cast %116 : vector<1x8x128xf32> to vector<8x128xf32>
    %c2944 = arith.constant 2944 : index
    %c0_95 = arith.constant 0 : index
    %118 = vector.load %arg2[%c2944, %c0_95] : memref<3200x128xf32, #tpu.memory_space<vmem>>, vector<128x128xf32>
    %cst_96 = arith.constant dense<0.000000e+00> : vector<8x128xf32>
    %119 = tpu.matmul %117, %118, %cst_96 {dimension_numbers = #tpu.dot_dimension_numbers<[1], [0], [0], [1], [0, 0, 1, 1], [], []>} : vector<8x128xf32>, vector<128x128xf32>, vector<8x128xf32> -> vector<8x128xf32>
    %120 = arith.addf %115, %119 : vector<8x128xf32>
    %c0_97 = arith.constant 0 : index
    %c28 = arith.constant 28 : index
    %c0_98 = arith.constant 0 : index
    %121 = vector.load %arg1[%c0_97, %c28, %c0_98] : memref<1x36x128xf32, #tpu.memory_space<vmem>>, vector<1x8x128xf32>
    %122 = vector.shape_cast %121 : vector<1x8x128xf32> to vector<8x128xf32>
    %c3072 = arith.constant 3072 : index
    %c0_99 = arith.constant 0 : index
    %123 = vector.load %arg2[%c3072, %c0_99] : memref<3200x128xf32, #tpu.memory_space<vmem>>, vector<128x128xf32>
    %cst_100 = arith.constant dense<0.000000e+00> : vector<8x128xf32>
    %124 = tpu.matmul %122, %123, %cst_100 {dimension_numbers = #tpu.dot_dimension_numbers<[1], [0], [0], [1], [0, 0, 1, 1], [], []>} : vector<8x128xf32>, vector<128x128xf32>, vector<8x128xf32> -> vector<8x128xf32>
    %125 = arith.addf %120, %124 : vector<8x128xf32>
    %c0_101 = arith.constant 0 : index
    %c0_102 = arith.constant 0 : index
    %126 = vector.load %arg3[%c0_101, %c0_102] : memref<1x128xf32, #tpu.memory_space<vmem>>, vector<1x128xf32>
    %127 = vector.broadcast %126 : vector<1x128xf32> to vector<8x128xf32>
    %128 = arith.addf %125, %127 : vector<8x128xf32>
    %cst_103 = arith.constant 0.000000e+00 : f32
    %129 = vector.broadcast %cst_103 : f32 to vector<8x128xf32>
    %130 = arith.maximumf %128, %129 : vector<8x128xf32>
    %131 = vector.extract_strided_slice %130 {offsets = [0, 0], sizes = [7, 128], strides = [1, 1]} : vector<8x128xf32> to vector<7x128xf32>
    %132 = vector.extract_strided_slice %130 {offsets = [1, 0], sizes = [7, 128], strides = [1, 1]} : vector<8x128xf32> to vector<7x128xf32>
    %133 = arith.maximumf %131, %132 : vector<7x128xf32>
    %134 = vector.extract_strided_slice %133 {offsets = [0, 0], sizes = [1, 128], strides = [1, 1]} : vector<7x128xf32> to vector<1x128xf32>
    %135 = vector.extract_strided_slice %133 {offsets = [6, 0], sizes = [1, 128], strides = [1, 1]} : vector<7x128xf32> to vector<1x128xf32>
    %136 = arith.maximumf %134, %135 : vector<1x128xf32>
    %c0_104 = arith.constant 0 : index
    %c0_105 = arith.constant 0 : index
    %137 = vector.load %arg4[%c0_104, %c0_105] : memref<1x1xf32, #tpu.memory_space<vmem>>, vector<1x1xf32>
    %cst_106 = arith.constant dense<0.000000e+00> : vector<1x128xf32>
    %138 = tpu.matmul %137, %136, %cst_106 {dimension_numbers = #tpu.dot_dimension_numbers<[1], [0], [0], [1], [0, 0, 1, 1], [], []>} : vector<1x1xf32>, vector<1x128xf32>, vector<1x128xf32> -> vector<1x128xf32>
    %c0_107 = arith.constant 0 : index
    %c0_108 = arith.constant 0 : index
    %c0_109 = arith.constant 0 : index
    %139 = vector.load %arg5[%c0_107, %c0_108, %c0_109] : memref<1x1x128xf32, #tpu.memory_space<vmem>>, vector<1x1x128xf32>
    %140 = vector.shape_cast %139 : vector<1x1x128xf32> to vector<1x128xf32>
    %141 = vector.shape_cast %138 : vector<1x128xf32> to vector<1x1x128xf32>
    tpu.vector_store %arg5[%c0_107, %c0_108, %c0_109], %141 {strides = array<i32>} : memref<1x1x128xf32, #tpu.memory_space<vmem>>, vector<1x1x128xf32>,
    return
  }
  func.func @transform_0(%arg0: i32) -> (i32, i32, i32) {
    %c0_i32 = arith.constant 0 : i32
    %c0_i32_0 = arith.constant 0 : i32
    %c0_i32_1 = arith.constant 0 : i32
    return %arg0, %c0_i32, %c0_i32_0 : i32, i32, i32
  }
  func.func @transform_1(%arg0: i32) -> (i32, i32) {
    %c0_i32 = arith.constant 0 : i32
    %c0_i32_0 = arith.constant 0 : i32
    %c0_i32_1 = arith.constant 0 : i32
    return %c0_i32, %c0_i32_0 : i32, i32
  }
  func.func @transform_2(%arg0: i32) -> (i32, i32) {
    %c0_i32 = arith.constant 0 : i32
    %c0_i32_0 = arith.constant 0 : i32
    %c0_i32_1 = arith.constant 0 : i32
    return %c0_i32, %c0_i32_0 : i32, i32
  }
  func.func @transform_3(%arg0: i32) -> (i32, i32) {
    %c0_i32 = arith.constant 0 : i32
    %c0_i32_0 = arith.constant 0 : i32
    %c0_i32_1 = arith.constant 0 : i32
    return %c0_i32, %c0_i32_0 : i32, i32
  }
  func.func @transform_4(%arg0: i32) -> (i32, i32, i32) {
    %c0_i32 = arith.constant 0 : i32
    %c0_i32_0 = arith.constant 0 : i32
    %c0_i32_1 = arith.constant 0 : i32
    return %arg0, %c0_i32, %c0_i32_0 : i32, i32, i32
  }
}

module attributes {stable_mosaic.version = 11 : i64} {
  func.func @_mlp_kernel(%arg0: i32, %arg1: memref<2x128xf32, #tpu.memory_space<vmem>>, %arg2: memref<128x128xf32, #tpu.memory_space<vmem>>, %arg3: memref<1x128xf32, #tpu.memory_space<vmem>>, %arg4: memref<128x128xf32, #tpu.memory_space<vmem>>, %arg5: memref<1x128xf32, #tpu.memory_space<vmem>>, %arg6: memref<128x128xf32, #tpu.memory_space<vmem>>, %arg7: memref<1x128xf32, #tpu.memory_space<vmem>>, %arg8: memref<2x128xf32, #tpu.memory_space<vmem>>) attributes {dimension_semantics = [#tpu.dimension_semantics<parallel>], iteration_bounds = array<i64: 1>, scalar_prefetch = 0 : i64, scratch_operands = 0 : i64, tpu.core_type = #tpu.core_type<tc>, window_params = [{transform_indices = @transform_0, window_bounds = array<i64: 2, 128>}, {pipeline_mode = #tpu.pipeline_mode<synchronous>, transform_indices = @transform_1, window_bounds = array<i64: 128, 128>}, {pipeline_mode = #tpu.pipeline_mode<synchronous>, transform_indices = @transform_2, window_bounds = array<i64: 1, 128>}, {pipeline_mode = #tpu.pipeline_mode<synchronous>, transform_indices = @transform_3, window_bounds = array<i64: 128, 128>}, {pipeline_mode = #tpu.pipeline_mode<synchronous>, transform_indices = @transform_4, window_bounds = array<i64: 1, 128>}, {pipeline_mode = #tpu.pipeline_mode<synchronous>, transform_indices = @transform_5, window_bounds = array<i64: 128, 128>}, {pipeline_mode = #tpu.pipeline_mode<synchronous>, transform_indices = @transform_6, window_bounds = array<i64: 1, 128>}, {transform_indices = @transform_7, window_bounds = array<i64: 2, 128>}]} {
    %c0 = arith.constant 0 : index
    %c0_0 = arith.constant 0 : index
    %0 = vector.load %arg1[%c0, %c0_0] : memref<2x128xf32, #tpu.memory_space<vmem>>, vector<2x128xf32>
    %c0_1 = arith.constant 0 : index
    %c0_2 = arith.constant 0 : index
    %1 = vector.load %arg2[%c0_1, %c0_2] : memref<128x128xf32, #tpu.memory_space<vmem>>, vector<128x128xf32>
    %c0_3 = arith.constant 0 : index
    %c0_4 = arith.constant 0 : index
    %2 = vector.load %arg3[%c0_3, %c0_4] : memref<1x128xf32, #tpu.memory_space<vmem>>, vector<1x128xf32>
    %cst = arith.constant dense<0.000000e+00> : vector<2x128xf32>
    %3 = tpu.matmul %0, %1, %cst {dimension_numbers = #tpu.dot_dimension_numbers<[1], [0], [0], [1], [0, 0, 1, 1], [], []>} : vector<2x128xf32>, vector<128x128xf32>, vector<2x128xf32> -> vector<2x128xf32>
    %4 = vector.broadcast %2 : vector<1x128xf32> to vector<2x128xf32>
    %5 = arith.addf %3, %4 : vector<2x128xf32>
    %cst_5 = arith.constant 0.000000e+00 : f32
    %6 = vector.broadcast %cst_5 : f32 to vector<2x128xf32>
    %7 = arith.maximumf %5, %6 : vector<2x128xf32>
    %c0_6 = arith.constant 0 : index
    %c0_7 = arith.constant 0 : index
    %8 = vector.load %arg4[%c0_6, %c0_7] : memref<128x128xf32, #tpu.memory_space<vmem>>, vector<128x128xf32>
    %c0_8 = arith.constant 0 : index
    %c0_9 = arith.constant 0 : index
    %9 = vector.load %arg5[%c0_8, %c0_9] : memref<1x128xf32, #tpu.memory_space<vmem>>, vector<1x128xf32>
    %cst_10 = arith.constant dense<0.000000e+00> : vector<2x128xf32>
    %10 = tpu.matmul %7, %8, %cst_10 {dimension_numbers = #tpu.dot_dimension_numbers<[1], [0], [0], [1], [0, 0, 1, 1], [], []>} : vector<2x128xf32>, vector<128x128xf32>, vector<2x128xf32> -> vector<2x128xf32>
    %11 = vector.broadcast %9 : vector<1x128xf32> to vector<2x128xf32>
    %12 = arith.addf %10, %11 : vector<2x128xf32>
    %cst_11 = arith.constant 0.000000e+00 : f32
    %13 = vector.broadcast %cst_11 : f32 to vector<2x128xf32>
    %14 = arith.maximumf %12, %13 : vector<2x128xf32>
    %c0_12 = arith.constant 0 : index
    %c0_13 = arith.constant 0 : index
    %15 = vector.load %arg6[%c0_12, %c0_13] : memref<128x128xf32, #tpu.memory_space<vmem>>, vector<128x128xf32>
    %c0_14 = arith.constant 0 : index
    %c0_15 = arith.constant 0 : index
    %16 = vector.load %arg7[%c0_14, %c0_15] : memref<1x128xf32, #tpu.memory_space<vmem>>, vector<1x128xf32>
    %cst_16 = arith.constant dense<0.000000e+00> : vector<2x128xf32>
    %17 = tpu.matmul %14, %15, %cst_16 {dimension_numbers = #tpu.dot_dimension_numbers<[1], [0], [0], [1], [0, 0, 1, 1], [], []>} : vector<2x128xf32>, vector<128x128xf32>, vector<2x128xf32> -> vector<2x128xf32>
    %18 = vector.broadcast %16 : vector<1x128xf32> to vector<2x128xf32>
    %19 = arith.addf %17, %18 : vector<2x128xf32>
    %c0_17 = arith.constant 0 : index
    %c0_18 = arith.constant 0 : index
    %20 = vector.load %arg8[%c0_17, %c0_18] : memref<2x128xf32, #tpu.memory_space<vmem>>, vector<2x128xf32>
    tpu.vector_store %arg8[%c0_17, %c0_18], %19 {strides = array<i32>} : memref<2x128xf32, #tpu.memory_space<vmem>>, vector<2x128xf32>,
    return
  }
  func.func @transform_0(%arg0: i32) -> (i32, i32) {
    %c0_i32 = arith.constant 0 : i32
    %c0_i32_0 = arith.constant 0 : i32
    return %arg0, %c0_i32 : i32, i32
  }
  func.func @transform_1(%arg0: i32) -> (i32, i32) {
    %c0_i32 = arith.constant 0 : i32
    %c0_i32_0 = arith.constant 0 : i32
    %c0_i32_1 = arith.constant 0 : i32
    return %c0_i32, %c0_i32_0 : i32, i32
  }
  func.func @transform_2(%arg0: i32) -> (i32, i32) {
    %c0_i32 = arith.constant 0 : i32
    %c0_i32_0 = arith.constant 0 : i32
    %c0_i32_1 = arith.constant 0 : i32
    return %c0_i32, %c0_i32_0 : i32, i32
  }
  func.func @transform_3(%arg0: i32) -> (i32, i32) {
    %c0_i32 = arith.constant 0 : i32
    %c0_i32_0 = arith.constant 0 : i32
    %c0_i32_1 = arith.constant 0 : i32
    return %c0_i32, %c0_i32_0 : i32, i32
  }
  func.func @transform_4(%arg0: i32) -> (i32, i32) {
    %c0_i32 = arith.constant 0 : i32
    %c0_i32_0 = arith.constant 0 : i32
    %c0_i32_1 = arith.constant 0 : i32
    return %c0_i32, %c0_i32_0 : i32, i32
  }
  func.func @transform_5(%arg0: i32) -> (i32, i32) {
    %c0_i32 = arith.constant 0 : i32
    %c0_i32_0 = arith.constant 0 : i32
    %c0_i32_1 = arith.constant 0 : i32
    return %c0_i32, %c0_i32_0 : i32, i32
  }
  func.func @transform_6(%arg0: i32) -> (i32, i32) {
    %c0_i32 = arith.constant 0 : i32
    %c0_i32_0 = arith.constant 0 : i32
    %c0_i32_1 = arith.constant 0 : i32
    return %c0_i32, %c0_i32_0 : i32, i32
  }
  func.func @transform_7(%arg0: i32) -> (i32, i32) {
    %c0_i32 = arith.constant 0 : i32
    %c0_i32_0 = arith.constant 0 : i32
    return %arg0, %c0_i32 : i32, i32
  }
}

</mosaic_0001>

<llo_original>
// kernel: cnn_forward.5
$region0: #{cnn_forward.5}
  #allocation0 [shape = 'u32[]', space=smem, size = 0x4, offset = 0x4, fixed_abs, tag = 'smem constant byte address 0x4 - core index']
  #allocation1 [shape = 'u32[144,128]{1,0:T(1,128)}', space=vmem, size = 0x12000, scoped, tag = 'internal scratch']
  %s0 = inlined_call_operand.vmem [shape: f32[2,128], index: 0, kind: input, shape index: {}]
  %s1 = inlined_call_operand.vmem [shape: f32[128,128], index: 1, kind: input, shape index: {}]
  %s2 = inlined_call_operand.vmem [shape: f32[1,128], index: 2, kind: input, shape index: {}]
  %s3 = inlined_call_operand.vmem [shape: f32[128,128], index: 3, kind: input, shape index: {}]
  %s4 = inlined_call_operand.vmem [shape: f32[1,128], index: 4, kind: input, shape index: {}]
  %s5 = inlined_call_operand.vmem [shape: f32[128,128], index: 5, kind: input, shape index: {}]
  %s6 = inlined_call_operand.vmem [shape: f32[1,128], index: 6, kind: input, shape index: {}]
  %s7 = inlined_call_operand.hbm [shape: f32[2,128], index: 7, kind: output, shape index: {}]
  %s8 = sld [smem:[#allocation0]]
  $region38: #{cnn_forward.5} parent=0
    _
  %s10 = ssub.s32 1, %s8
  %s11 = scalar_select 0, %s10, %s8
  $region1: #{cnn_forward.5} parent=0
    #allocation2 [shape = 'u8[1024]{0}', space=vmem, size = 0x400, scoped, tag = 'output window, operand 0, single buffered']
    #allocation3 [shape = 's32[1]{0}', space=sflag, size = 0x4, scoped, tag = 'scoped memory for cnn_forward.5']
    %12 = vsyncpa [#allocation3], 0
    // Predicated region
    $region2: #{cnn_forward.5} parent=1 // pred_check
      _
    $region3: #{cnn_forward.5} parent=1 // pred_check_branch
      %14 = sbr.rel (0) target = $region5
    $region4: #{cnn_forward.5} parent=1 // pred_region
      _
    $region5: #{cnn_forward.5} parent=1 // pred_fallthru
      _
    // Predicated region
    $region6: #{cnn_forward.5} parent=1 // pred_check
      _
    $region7: #{cnn_forward.5} parent=1 // pred_check_branch
      %16 = sbr.rel (0) target = $region9
    $region8: #{cnn_forward.5} parent=1 // pred_region
      _
    $region9: #{cnn_forward.5} parent=1 // pred_fallthru
      _
    // Predicated region
    $region10: #{cnn_forward.5} parent=1 // pred_check
      _
    $region11: #{cnn_forward.5} parent=1 // pred_check_branch
      %18 = sbr.rel (0) target = $region13
    $region12: #{cnn_forward.5} parent=1 // pred_region
      _
    $region13: #{cnn_forward.5} parent=1 // pred_fallthru
      _
    // Predicated region
    $region14: #{cnn_forward.5} parent=1 // pred_check
      _
    $region15: #{cnn_forward.5} parent=1 // pred_check_branch
      %20 = sbr.rel (0) target = $region17
    $region16: #{cnn_forward.5} parent=1 // pred_region
      _
    $region17: #{cnn_forward.5} parent=1 // pred_fallthru
      _
    // Predicated region
    $region18: #{cnn_forward.5} parent=1 // pred_check
      _
    $region19: #{cnn_forward.5} parent=1 // pred_check_branch
      %22 = sbr.rel (0) target = $region21
    $region20: #{cnn_forward.5} parent=1 // pred_region
      _
    $region21: #{cnn_forward.5} parent=1 // pred_fallthru
      _
    // Predicated region
    $region22: #{cnn_forward.5} parent=1 // pred_check
      _
    $region23: #{cnn_forward.5} parent=1 // pred_check_branch
      %24 = sbr.rel (0) target = $region25
    $region24: #{cnn_forward.5} parent=1 // pred_region
      _
    $region25: #{cnn_forward.5} parent=1 // pred_fallthru
      _
    // Predicated region
    $region26: #{cnn_forward.5} parent=1 // pred_check
      _
    $region27: #{cnn_forward.5} parent=1 // pred_check_branch
      %26 = sbr.rel (0) target = $region29
    $region28: #{cnn_forward.5} parent=1 // pred_region
      _
    $region29: #{cnn_forward.5} parent=1 // pred_fallthru
      _
    %v27 = vld [vmem:[%s0] sm:$0x3]
    %v28 = vld [vmem:[%s1] sm:$0xff]
    %v29 = vld [vmem:[%s1 + $0x8] sm:$0xff]
    %v30 = vld [vmem:[%s1 + $0x10] sm:$0xff]
    %v31 = vld [vmem:[%s1 + $0x18] sm:$0xff]
    %v32 = vld [vmem:[%s1 + $0x20] sm:$0xff]
    %v33 = vld [vmem:[%s1 + $0x28] sm:$0xff]
    %v34 = vld [vmem:[%s1 + $0x30] sm:$0xff]
    %v35 = vld [vmem:[%s1 + $0x38] sm:$0xff]
    %v36 = vld [vmem:[%s1 + $0x40] sm:$0xff]
    %v37 = vld [vmem:[%s1 + $0x48] sm:$0xff]
    %v38 = vld [vmem:[%s1 + $0x50] sm:$0xff]
    %v39 = vld [vmem:[%s1 + $0x58] sm:$0xff]
    %v40 = vld [vmem:[%s1 + $0x60] sm:$0xff]
    %v41 = vld [vmem:[%s1 + $0x68] sm:$0xff]
    %v42 = vld [vmem:[%s1 + $0x70] sm:$0xff]
    %v43 = vld [vmem:[%s1 + $0x78] sm:$0xff]
    %v44 = vld [vmem:[%s2] sm:$0x1]
    %v46 = vlaneseq
    %v47 = vshrl.u32 %v46, 7
    %v48 = vsub.s32 0, %v47
    %v49 = vrot.slane %v44, %v48
    %51 = vmatprep.subr.mxu0 0.0
    %52 = vmatpush1.msra.mxu0 %v28
    %53 = vmatprep.subr.mxu0 0.0
    %54 = vmatpush1.msra.mxu0 %v29
    %55 = vmatprep.subr.mxu0 0.0
    %56 = vmatpush1.msra.mxu0 %v30
    %57 = vmatprep.subr.mxu0 0.0
    %58 = vmatpush1.msra.mxu0 %v31
    %59 = vmatprep.subr.mxu0 0.0
    %60 = vmatpush1.msra.mxu0 %v32
    %61 = vmatprep.subr.mxu0 0.0
    %62 = vmatpush1.msra.mxu0 %v33
    %63 = vmatprep.subr.mxu0 0.0
    %64 = vmatpush1.msra.mxu0 %v34
    %65 = vmatprep.subr.mxu0 0.0
    %66 = vmatpush1.msra.mxu0 %v35
    %67 = vmatprep.subr.mxu0 0.0
    %68 = vmatpush1.msra.mxu0 %v36
    %69 = vmatprep.subr.mxu0 0.0
    %70 = vmatpush1.msra.mxu0 %v37
    %71 = vmatprep.subr.mxu0 0.0
    %72 = vmatpush1.msra.mxu0 %v38
    %73 = vmatprep.subr.mxu0 0.0
    %74 = vmatpush1.msra.mxu0 %v39
    %75 = vmatprep.subr.mxu0 0.0
    %76 = vmatpush1.msra.mxu0 %v40
    %77 = vmatprep.subr.mxu0 0.0
    %78 = vmatpush1.msra.mxu0 %v41
    %79 = vmatprep.subr.mxu0 0.0
    %80 = vmatpush1.msra.mxu0 %v42
    %81 = vmatprep.subr.mxu0 0.0
    %82 = vmatpush1.msra.mxu0 %v43
    %83 = vmatprep.subr.mxu0 0.0
    %84 = vmatpush1.msra.mxu0 0.0
    %85 = vmatprep.subr.mxu0 0.0
    %86 = vmatpush1.msra.mxu0 0.0
    %87 = vmatprep.subr.mxu0 0.0
    %88 = vmatpush1.msra.mxu0 0.0
    %89 = vmatprep.subr.mxu0 0.0
    %90 = vmatpush1.msra.mxu0 0.0
    %91 = vmatprep.subr.mxu0 0.0
    %92 = vmatpush1.msra.mxu0 0.0
    %93 = vmatprep.subr.mxu0 0.0
    %94 = vmatpush1.msra.mxu0 0.0
    %95 = vmatprep.subr.mxu0 0.0
    %96 = vmatpush1.msra.mxu0 0.0
    %97 = vmatprep.subr.mxu0 0.0
    %98 = vmatpush1.msra.mxu0 0.0
    %99 = vmatprep.subr.mxu0 0.0
    %100 = vmatpush1.msra.mxu0 0.0
    %101 = vmatprep.subr.mxu0 0.0
    %102 = vmatpush1.msra.mxu0 0.0
    %103 = vmatprep.subr.mxu0 0.0
    %104 = vmatpush1.msra.mxu0 0.0
    %105 = vmatprep.subr.mxu0 0.0
    %106 = vmatpush1.msra.mxu0 0.0
    %107 = vmatprep.subr.mxu0 0.0
    %108 = vmatpush1.msra.mxu0 0.0
    %109 = vmatprep.subr.mxu0 0.0
    %110 = vmatpush1.msra.mxu0 0.0
    %111 = vmatprep.subr.mxu0 0.0
    %112 = vmatpush1.msra.mxu0 0.0
    %113 = vmatprep.subr.mxu0 0.0
    %114 = vmatpush1.msra.mxu0 0.0
    %115 = vmatprep.mubr.f32.mxu0 0.0
    %116 = vmatmul.mubr.f32.gmra.mrb[0].mxu0 %v27
    %v117 = vpop.f32.mrb[0].mxu0
    %v118 = vadd.f32 %v49, %v117
    %v119 = vpop.f32.mrb[0].mxu0
    %120 = vdwg.mxu0
    %v121 = vmax.f32 %v118, 0.0
    %v122 = vld [vmem:[%s3] sm:$0xff]
    %v123 = vld [vmem:[%s3 + $0x8] sm:$0xff]
    %v124 = vld [vmem:[%s3 + $0x10] sm:$0xff]
    %v125 = vld [vmem:[%s3 + $0x18] sm:$0xff]
    %v126 = vld [vmem:[%s3 + $0x20] sm:$0xff]
    %v127 = vld [vmem:[%s3 + $0x28] sm:$0xff]
    %v128 = vld [vmem:[%s3 + $0x30] sm:$0xff]
    %v129 = vld [vmem:[%s3 + $0x38] sm:$0xff]
    %v130 = vld [vmem:[%s3 + $0x40] sm:$0xff]
    %v131 = vld [vmem:[%s3 + $0x48] sm:$0xff]
    %v132 = vld [vmem:[%s3 + $0x50] sm:$0xff]
    %v133 = vld [vmem:[%s3 + $0x58] sm:$0xff]
    %v134 = vld [vmem:[%s3 + $0x60] sm:$0xff]
    %v135 = vld [vmem:[%s3 + $0x68] sm:$0xff]
    %v136 = vld [vmem:[%s3 + $0x70] sm:$0xff]
    %v137 = vld [vmem:[%s3 + $0x78] sm:$0xff]
    %v138 = vld [vmem:[%s4] sm:$0x1]
    %v140 = vlaneseq
    %v141 = vshrl.u32 %v140, 7
    %v142 = vsub.s32 0, %v141
    %v143 = vrot.slane %v138, %v142
    %145 = vmatprep.subr.mxu0 0.0
    %146 = vmatpush1.msra.mxu0 %v122
    %147 = vmatprep.subr.mxu0 0.0
    %148 = vmatpush1.msra.mxu0 %v123
    %149 = vmatprep.subr.mxu0 0.0
    %150 = vmatpush1.msra.mxu0 %v124
    %151 = vmatprep.subr.mxu0 0.0
    %152 = vmatpush1.msra.mxu0 %v125
    %153 = vmatprep.subr.mxu0 0.0
    %154 = vmatpush1.msra.mxu0 %v126
    %155 = vmatprep.subr.mxu0 0.0
    %156 = vmatpush1.msra.mxu0 %v127
    %157 = vmatprep.subr.mxu0 0.0
    %158 = vmatpush1.msra.mxu0 %v128
    %159 = vmatprep.subr.mxu0 0.0
    %160 = vmatpush1.msra.mxu0 %v129
    %161 = vmatprep.subr.mxu0 0.0
    %162 = vmatpush1.msra.mxu0 %v130
    %163 = vmatprep.subr.mxu0 0.0
    %164 = vmatpush1.msra.mxu0 %v131
    %165 = vmatprep.subr.mxu0 0.0
    %166 = vmatpush1.msra.mxu0 %v132
    %167 = vmatprep.subr.mxu0 0.0
    %168 = vmatpush1.msra.mxu0 %v133
    %169 = vmatprep.subr.mxu0 0.0
    %170 = vmatpush1.msra.mxu0 %v134
    %171 = vmatprep.subr.mxu0 0.0
    %172 = vmatpush1.msra.mxu0 %v135
    %173 = vmatprep.subr.mxu0 0.0
    %174 = vmatpush1.msra.mxu0 %v136
    %175 = vmatprep.subr.mxu0 0.0
    %176 = vmatpush1.msra.mxu0 %v137
    %177 = vmatprep.subr.mxu0 0.0
    %178 = vmatpush1.msra.mxu0 0.0
    %179 = vmatprep.subr.mxu0 0.0
    %180 = vmatpush1.msra.mxu0 0.0
    %181 = vmatprep.subr.mxu0 0.0
    %182 = vmatpush1.msra.mxu0 0.0
    %183 = vmatprep.subr.mxu0 0.0
    %184 = vmatpush1.msra.mxu0 0.0
    %185 = vmatprep.subr.mxu0 0.0
    %186 = vmatpush1.msra.mxu0 0.0
    %187 = vmatprep.subr.mxu0 0.0
    %188 = vmatpush1.msra.mxu0 0.0
    %189 = vmatprep.subr.mxu0 0.0
    %190 = vmatpush1.msra.mxu0 0.0
    %191 = vmatprep.subr.mxu0 0.0
    %192 = vmatpush1.msra.mxu0 0.0
    %193 = vmatprep.subr.mxu0 0.0
    %194 = vmatpush1.msra.mxu0 0.0
    %195 = vmatprep.subr.mxu0 0.0
    %196 = vmatpush1.msra.mxu0 0.0
    %197 = vmatprep.subr.mxu0 0.0
    %198 = vmatpush1.msra.mxu0 0.0
    %199 = vmatprep.subr.mxu0 0.0
    %200 = vmatpush1.msra.mxu0 0.0
    %201 = vmatprep.subr.mxu0 0.0
    %202 = vmatpush1.msra.mxu0 0.0
    %203 = vmatprep.subr.mxu0 0.0
    %204 = vmatpush1.msra.mxu0 0.0
    %205 = vmatprep.subr.mxu0 0.0
    %206 = vmatpush1.msra.mxu0 0.0
    %207 = vmatprep.subr.mxu0 0.0
    %208 = vmatpush1.msra.mxu0 0.0
    %209 = vmatprep.mubr.f32.mxu0 0.0
    %210 = vmatmul.mubr.f32.gmra.mrb[0].mxu0 %v121
    %v211 = vpop.f32.mrb[0].mxu0
    %v212 = vadd.f32 %v143, %v211
    %v213 = vpop.f32.mrb[0].mxu0
    %214 = vdwg.mxu0
    %v215 = vmax.f32 %v212, 0.0
    %v216 = vld [vmem:[%s5] sm:$0xff]
    %v217 = vld [vmem:[%s5 + $0x8] sm:$0xff]
    %v218 = vld [vmem:[%s5 + $0x10] sm:$0xff]
    %v219 = vld [vmem:[%s5 + $0x18] sm:$0xff]
    %v220 = vld [vmem:[%s5 + $0x20] sm:$0xff]
    %v221 = vld [vmem:[%s5 + $0x28] sm:$0xff]
    %v222 = vld [vmem:[%s5 + $0x30] sm:$0xff]
    %v223 = vld [vmem:[%s5 + $0x38] sm:$0xff]
    %v224 = vld [vmem:[%s5 + $0x40] sm:$0xff]
    %v225 = vld [vmem:[%s5 + $0x48] sm:$0xff]
    %v226 = vld [vmem:[%s5 + $0x50] sm:$0xff]
    %v227 = vld [vmem:[%s5 + $0x58] sm:$0xff]
    %v228 = vld [vmem:[%s5 + $0x60] sm:$0xff]
    %v229 = vld [vmem:[%s5 + $0x68] sm:$0xff]
    %v230 = vld [vmem:[%s5 + $0x70] sm:$0xff]
    %v231 = vld [vmem:[%s5 + $0x78] sm:$0xff]
    %v232 = vld [vmem:[%s6] sm:$0x1]
    %v234 = vlaneseq
    %v235 = vshrl.u32 %v234, 7
    %v236 = vsub.s32 0, %v235
    %v237 = vrot.slane %v232, %v236
    %239 = vmatprep.subr.mxu0 0.0
    %240 = vmatpush1.msra.mxu0 %v216
    %241 = vmatprep.subr.mxu0 0.0
    %242 = vmatpush1.msra.mxu0 %v217
    %243 = vmatprep.subr.mxu0 0.0
    %244 = vmatpush1.msra.mxu0 %v218
    %245 = vmatprep.subr.mxu0 0.0
    %246 = vmatpush1.msra.mxu0 %v219
    %247 = vmatprep.subr.mxu0 0.0
    %248 = vmatpush1.msra.mxu0 %v220
    %249 = vmatprep.subr.mxu0 0.0
    %250 = vmatpush1.msra.mxu0 %v221
    %251 = vmatprep.subr.mxu0 0.0
    %252 = vmatpush1.msra.mxu0 %v222
    %253 = vmatprep.subr.mxu0 0.0
    %254 = vmatpush1.msra.mxu0 %v223
    %255 = vmatprep.subr.mxu0 0.0
    %256 = vmatpush1.msra.mxu0 %v224
    %257 = vmatprep.subr.mxu0 0.0
    %258 = vmatpush1.msra.mxu0 %v225
    %259 = vmatprep.subr.mxu0 0.0
    %260 = vmatpush1.msra.mxu0 %v226
    %261 = vmatprep.subr.mxu0 0.0
    %262 = vmatpush1.msra.mxu0 %v227
    %263 = vmatprep.subr.mxu0 0.0
    %264 = vmatpush1.msra.mxu0 %v228
    %265 = vmatprep.subr.mxu0 0.0
    %266 = vmatpush1.msra.mxu0 %v229
    %267 = vmatprep.subr.mxu0 0.0
    %268 = vmatpush1.msra.mxu0 %v230
    %269 = vmatprep.subr.mxu0 0.0
    %270 = vmatpush1.msra.mxu0 %v231
    %271 = vmatprep.subr.mxu0 0.0
    %272 = vmatpush1.msra.mxu0 0.0
    %273 = vmatprep.subr.mxu0 0.0
    %274 = vmatpush1.msra.mxu0 0.0
    %275 = vmatprep.subr.mxu0 0.0
    %276 = vmatpush1.msra.mxu0 0.0
    %277 = vmatprep.subr.mxu0 0.0
    %278 = vmatpush1.msra.mxu0 0.0
    %279 = vmatprep.subr.mxu0 0.0
    %280 = vmatpush1.msra.mxu0 0.0
    %281 = vmatprep.subr.mxu0 0.0
    %282 = vmatpush1.msra.mxu0 0.0
    %283 = vmatprep.subr.mxu0 0.0
    %284 = vmatpush1.msra.mxu0 0.0
    %285 = vmatprep.subr.mxu0 0.0
    %286 = vmatpush1.msra.mxu0 0.0
    %287 = vmatprep.subr.mxu0 0.0
    %288 = vmatpush1.msra.mxu0 0.0
    %289 = vmatprep.subr.mxu0 0.0
    %290 = vmatpush1.msra.mxu0 0.0
    %291 = vmatprep.subr.mxu0 0.0
    %292 = vmatpush1.msra.mxu0 0.0
    %293 = vmatprep.subr.mxu0 0.0
    %294 = vmatpush1.msra.mxu0 0.0
    %295 = vmatprep.subr.mxu0 0.0
    %296 = vmatpush1.msra.mxu0 0.0
    %297 = vmatprep.subr.mxu0 0.0
    %298 = vmatpush1.msra.mxu0 0.0
    %299 = vmatprep.subr.mxu0 0.0
    %300 = vmatpush1.msra.mxu0 0.0
    %301 = vmatprep.subr.mxu0 0.0
    %302 = vmatpush1.msra.mxu0 0.0
    %303 = vmatprep.mubr.f32.mxu0 0.0
    %304 = vmatmul.mubr.f32.gmra.mrb[0].mxu0 %v215
    %v305 = vpop.f32.mrb[0].mxu0
    %v306 = vadd.f32 %v237, %v305
    %v307 = vpop.f32.mrb[0].mxu0
    %308 = vdwg.mxu0
    %309 = vst [vmem:[#allocation2] sm:$0x3] %v306
    // Predicated region
    $region30: #{cnn_forward.5} parent=1 // pred_check
      _
    $region31: #{cnn_forward.5} parent=1 // pred_check_branch
      %311 = sbr.rel (0) target = $region33
    $region32: #{cnn_forward.5} parent=1 // pred_region
      %s313 = ssub.s32 32, 32
      %314 = vsyncadd [#allocation3], %s313
      %s316 = sshll.u32 [#allocation2], 4
      %s317 = int_to_ptr.vmem [resolvable:$true] %s316
      %319 = dma.vmem_to_hbm [thread:$0]  %s317, 32, %s7, [#allocation3]
    $region33: #{cnn_forward.5} parent=1 // pred_fallthru
      _
    // Predicated region
    $region34: #{cnn_forward.5} parent=1 // pred_check
      _
    $region35: #{cnn_forward.5} parent=1 // pred_check_branch
      %321 = sbr.rel (0) target = $region37
    $region36: #{cnn_forward.5} parent=1 // pred_region
      %322 = dma.done [#allocation3], 32
    $region37: #{cnn_forward.5} parent=1 // pred_fallthru
      _
    %323 = vsyncpa [#allocation3], 1

// kernel: cnn_forward.4
$region0: #{cnn_forward.4}
  #allocation0 [shape = 'u32[]', space=smem, size = 0x4, offset = 0x4, fixed_abs, tag = 'smem constant byte address 0x4 - core index']
  #allocation1 [shape = 'u32[144,128]{1,0:T(1,128)}', space=vmem, size = 0x12000, scoped, tag = 'internal scratch']
  #allocation2 [shape = 'f32[1,1]{1,0:T(1,128)S(1)}', space=vmem, size = 0x200, scoped, tag = 'scoped memory for cnn_forward.4']
  %s0 = inlined_call_operand.vmem [shape: f32[2,36,128], index: 0, kind: input, shape index: {}]
  %s1 = inlined_call_operand.hbm [shape: f32[3200,128], index: 1, kind: input, shape index: {}]
  %s2 = inlined_call_operand.hbm [shape: f32[1,128], index: 2, kind: input, shape index: {}]
  %s3 = inlined_call_operand.<no memory space> [shape: f32[1,1], index: 3, kind: input, shape index: {}]
  %s4 = inlined_call_operand.vmem [shape: f32[2,1,128], index: 4, kind: output, shape index: {}]
  %s5 = sld [smem:[#allocation0]]
  $region57: #{cnn_forward.4} parent=0
    _
  %s7 = ssub.s32 1, %s5
  %s8 = scalar_select 0, %s7, %s5
  %v9 = vstv %s3
  %10 = vst [vmem:[#allocation2] sm:$0x1] %v9
  $region1: #{cnn_forward.4} parent=0
    #allocation3 [shape = 'u8[1638400]{0}', space=vmem, size = 0x190000, scoped, tag = 'input window, operand 1, single buffered']
    #allocation4 [shape = 's32[2]{0}', space=sflag, size = 0x8, scoped, tag = 'scoped memory for cnn_forward.4']
    #allocation5 [shape = 'u8[512]{0}', space=vmem, size = 0x400, scoped, tag = 'input window, operand 2, single buffered']
    #allocation6 [shape = 's32[1]{0}', space=sflag, size = 0x4, scoped, tag = 'scoped memory for cnn_forward.4']
    %11 = vsyncpa [#allocation4], 0
    %12 = vsyncpa [#allocation6], 0
    loop: start=0, step=1, limit=4
    $region2: #{cnn_forward.4} parent=1 // loop_pre_header
      _
    $region3: #{cnn_forward.4} parent=1 // loop_header
      %s14 = sphi 0, %s18
      %p15 = scmp.ge.s32.totalorder %s14, 4
      %s24 = sphi 0, %s26
      %s27 = sphi 0, %s24
      %s28 = sphi 0, %s27
      %s44 = sphi 0, %s28
      %s48 = sphi 0, %s48
      %s50 = sphi 0, %s48
      %s51 = sphi 0, %s50
      %s65 = sphi 0, %s51
      %s69 = sphi 0, %s69
      %s71 = sphi 0, %s69
      %s72 = sphi 0, %s71
      %s86 = sphi 0, %s72
      %s90 = sphi 0, %s90
      %s92 = sphi 0, %s90
      %s93 = sphi 0, %s92
      %s107 = sphi 0, %s93
      %s113 = sphi 0, %s115
      %s116 = sphi 0, %s113
      %s117 = sphi 0, %s116
      %s133 = sphi 0, %s117
    $region4: #{cnn_forward.4} parent=1 // loop_header_branch
      %17 = sbr.rel (%p15) target = $region8
    $region5: #{cnn_forward.4} parent=1 // loop_body
      %s19 = ssub.s32 %s14, 1
      %s20 = ssub.s32 %s14, 2
      %s21 = sadd.s32 %s14, 1
      %s22 = ssub.s32 %s14, %s21
      %p23 = scmp.eq.s32.totalorder %s22, 0
      %s25 = sadd.s32 %s24, 1
      %s26 = scalar_select %p23, %s24, %s25
      %p29 = pneg %p23
      %p30 = scmp.eq.s32.totalorder %s14, 1
      %p31 = por %p29, %p30
      %p32 = scmp.ne.s32.totalorder %s24, %s27
      %p33 = scmp.eq.s32.totalorder %s14, 0
      %p34 = por %p32, %p33
      %p35 = scmp.ne.s32.totalorder %s24, %s27
      %p36 = scmp.eq.s32.totalorder %s19, 1
      %p37 = por %p35, %p36
      %p38 = scmp.ne.s32.totalorder %s27, %s28
      %p39 = scmp.eq.s32.totalorder %s19, 0
      %p40 = por %p38, %p39
      %p41 = scmp.ne.s32.totalorder %s27, %s28
      %p42 = scmp.eq.s32.totalorder %s20, 1
      %p43 = por %p41, %p42
      %p45 = scmp.ne.s32.totalorder %s28, %s44
      %p46 = scmp.eq.s32.totalorder %s20, 0
      %p47 = por %p45, %p46
      %s49 = sadd.s32 %s48, 1
      %p52 = scmp.eq.s32.totalorder %s14, 1
      %p53 = scmp.ne.s32.totalorder %s48, %s50
      %p54 = scmp.eq.s32.totalorder %s14, 0
      %p55 = por %p53, %p54
      %p56 = scmp.ne.s32.totalorder %s48, %s50
      %p57 = scmp.eq.s32.totalorder %s19, 1
      %p58 = por %p56, %p57
      %p59 = scmp.ne.s32.totalorder %s50, %s51
      %p60 = scmp.eq.s32.totalorder %s19, 0
      %p61 = por %p59, %p60
      %p62 = scmp.ne.s32.totalorder %s50, %s51
      %p63 = scmp.eq.s32.totalorder %s20, 1
      %p64 = por %p62, %p63
      %p66 = scmp.ne.s32.totalorder %s51, %s65
      %p67 = scmp.eq.s32.totalorder %s20, 0
      %p68 = por %p66, %p67
      %s70 = sadd.s32 %s69, 1
      %p73 = scmp.eq.s32.totalorder %s14, 1
      %p74 = scmp.ne.s32.totalorder %s69, %s71
      %p75 = scmp.eq.s32.totalorder %s14, 0
      %p76 = por %p74, %p75
      %p77 = scmp.ne.s32.totalorder %s69, %s71
      %p78 = scmp.eq.s32.totalorder %s19, 1
      %p79 = por %p77, %p78
      %p80 = scmp.ne.s32.totalorder %s71, %s72
      %p81 = scmp.eq.s32.totalorder %s19, 0
      %p82 = por %p80, %p81
      %p83 = scmp.ne.s32.totalorder %s71, %s72
      %p84 = scmp.eq.s32.totalorder %s20, 1
      %p85 = por %p83, %p84
      %p87 = scmp.ne.s32.totalorder %s72, %s86
      %p88 = scmp.eq.s32.totalorder %s20, 0
      %p89 = por %p87, %p88
      %s91 = sadd.s32 %s90, 1
      %p94 = scmp.eq.s32.totalorder %s14, 1
      %p95 = scmp.ne.s32.totalorder %s90, %s92
      %p96 = scmp.eq.s32.totalorder %s14, 0
      %p97 = por %p95, %p96
      %p98 = scmp.ne.s32.totalorder %s90, %s92
      %p99 = scmp.eq.s32.totalorder %s19, 1
      %p100 = por %p98, %p99
      %p101 = scmp.ne.s32.totalorder %s92, %s93
      %p102 = scmp.eq.s32.totalorder %s19, 0
      %p103 = por %p101, %p102
      %p104 = scmp.ne.s32.totalorder %s92, %s93
      %p105 = scmp.eq.s32.totalorder %s20, 1
      %p106 = por %p104, %p105
      %p108 = scmp.ne.s32.totalorder %s93, %s107
      %p109 = scmp.eq.s32.totalorder %s20, 0
      %p110 = por %p108, %p109
      %s111 = ssub.s32 %s14, %s21
      %p112 = scmp.eq.s32.totalorder %s111, 0
      %s114 = sadd.s32 %s113, 1
      %s115 = scalar_select %p112, %s113, %s114
      %p118 = pneg %p112
      %p119 = scmp.eq.s32.totalorder %s14, 1
      %p120 = por %p118, %p119
      %p121 = scmp.ne.s32.totalorder %s113, %s116
      %p122 = scmp.eq.s32.totalorder %s14, 0
      %p123 = por %p121, %p122
      %p124 = scmp.ne.s32.totalorder %s113, %s116
      %p125 = scmp.eq.s32.totalorder %s19, 1
      %p126 = por %p124, %p125
      %p127 = scmp.ne.s32.totalorder %s116, %s117
      %p128 = scmp.eq.s32.totalorder %s19, 0
      %p129 = por %p127, %p128
      %p130 = scmp.ne.s32.totalorder %s116, %s117
      %p131 = scmp.eq.s32.totalorder %s20, 1
      %p132 = por %p130, %p131
      %p134 = scmp.ne.s32.totalorder %s117, %s133
      %p135 = scmp.eq.s32.totalorder %s20, 0
      %p136 = por %p134, %p135
      %p137 = scmp.le.s32.totalorder 1, %s14
      %p138 = scmp.lt.s32.totalorder %s14, 3
      %p139 = pnand %p137, %p138
      %p140 = pneg %p139
      // Predicated region
      $region9: #{cnn_forward.4} parent=5 // pred_check
        _
      $region10: #{cnn_forward.4} parent=5 // pred_check_branch
        %142 = sbr.rel (%p139) target = $region12
      $region11: #{cnn_forward.4} parent=5 // pred_region
        %s143 = ssub.s32 %s14, 1
        // Predicated region
        $region13: #{cnn_forward.4} parent=11 // pred_check
          %p144 = pneg %p61
        $region14: #{cnn_forward.4} parent=11 // pred_check_branch
          %146 = sbr.rel (%p144) target = $region16
        $region15: #{cnn_forward.4} parent=11 // pred_region
          %s148 = ssub.s32 51200, 51200
          %149 = vsyncadd [#allocation4], %s148
          %s150 = sshll.u32 [#allocation3], 4
          %s151 = int_to_ptr.vmem [resolvable:$true] %s150
          %156 = dma.hbm_to_vmem [thread:$0]  %s1, 51200, %s151, [#allocation4], 128, 128, 8
        $region16: #{cnn_forward.4} parent=11 // pred_fallthru
          _
        // Predicated region
        $region17: #{cnn_forward.4} parent=11 // pred_check
          %p157 = pneg %p82
        $region18: #{cnn_forward.4} parent=11 // pred_check_branch
          %159 = sbr.rel (%p157) target = $region20
        $region19: #{cnn_forward.4} parent=11 // pred_region
          %s161 = ssub.s32 16, 16
          %162 = vsyncadd [#allocation6], %s161
          %s164 = sshll.u32 [#allocation5], 4
          %s165 = int_to_ptr.vmem [resolvable:$true] %s164
          %167 = dma.hbm_to_vmem [thread:$0]  %s2, 16, %s165, [#allocation6]
        $region20: #{cnn_forward.4} parent=11 // pred_fallthru
          _
        // Predicated region
        $region21: #{cnn_forward.4} parent=11 // pred_check
          %p168 = pneg %p103
        $region22: #{cnn_forward.4} parent=11 // pred_check_branch
          %170 = sbr.rel (%p168) target = $region24
        $region23: #{cnn_forward.4} parent=11 // pred_region
          _
        $region24: #{cnn_forward.4} parent=11 // pred_fallthru
          _
      $region12: #{cnn_forward.4} parent=5 // pred_fallthru
        _
      %p171 = scmp.lt.s32.totalorder %s14, 2
      // Predicated region
      $region25: #{cnn_forward.4} parent=5 // pred_check
        %p172 = pneg %p171
      $region26: #{cnn_forward.4} parent=5 // pred_check_branch
        %174 = sbr.rel (%p172) target = $region28
      $region27: #{cnn_forward.4} parent=5 // pred_region
        // Predicated region
        $region29: #{cnn_forward.4} parent=27 // pred_check
          %p175 = pneg %p34
        $region30: #{cnn_forward.4} parent=27 // pred_check_branch
          %177 = sbr.rel (%p175) target = $region32
        $region31: #{cnn_forward.4} parent=27 // pred_region
          %p178 = scmp.lt.s32.totalorder %s14, 1
          %s179 = scalar_select %p178, %s14, 1
          %s180 = smul.addr %s179, 5
          %s181 = smul.addr %s180, 8
          %s182 = scalar_lea.vmem %s0, %s181
        $region32: #{cnn_forward.4} parent=27 // pred_fallthru
          _
      $region28: #{cnn_forward.4} parent=5 // pred_fallthru
        _
      %p183 = scmp.le.s32.totalorder 1, %s14
      %p184 = scmp.lt.s32.totalorder %s14, 3
      %p185 = pnand %p183, %p184
      %p186 = pneg %p185
      // Predicated region
      $region33: #{cnn_forward.4} parent=5 // pred_check
        _
      $region34: #{cnn_forward.4} parent=5 // pred_check_branch
        %188 = sbr.rel (%p185) target = $region36
      $region35: #{cnn_forward.4} parent=5 // pred_region
        %s189 = ssub.s32 %s14, 1
        // Predicated region
        $region37: #{cnn_forward.4} parent=35 // pred_check
          %p190 = pneg %p61
        $region38: #{cnn_forward.4} parent=35 // pred_check_branch
          %192 = sbr.rel (%p190) target = $region40
        $region39: #{cnn_forward.4} parent=35 // pred_region
          %193 = dma.done [#allocation4], 51200
        $region40: #{cnn_forward.4} parent=35 // pred_fallthru
          _
        // Predicated region
        $region41: #{cnn_forward.4} parent=35 // pred_check
          %p194 = pneg %p82
        $region42: #{cnn_forward.4} parent=35 // pred_check_branch
          %196 = sbr.rel (%p194) target = $region44
        $region43: #{cnn_forward.4} parent=35 // pred_region
          %197 = dma.done [#allocation6], 16
        $region44: #{cnn_forward.4} parent=35 // pred_fallthru
          _
        %p198 = scmp.lt.s32.totalorder %s19, 1
        %s199 = scalar_select %p198, %s19, 1
        %s200 = smul.addr %s199, 5
        %s201 = smul.addr %s200, 8
        %s202 = scalar_lea.vmem %s0, %s201
        %p203 = pneg %p40
        %p204 = pneg %p37
        %p205 = pneg %p61
        %p206 = pneg %p58
        %p207 = pneg %p82
        %p208 = pneg %p79
        %p209 = pneg %p103
        %p210 = pneg %p100
        %p211 = pneg %p129
        %p212 = pneg %p126
        %p213 = scmp.lt.s32.totalorder %s19, 1
        %s214 = scalar_select %p213, %s19, 1
        %s215 = scalar_lea.vmem %s4, %s214
        %p216 = scmp.lt.s32.totalorder %s19, 1
        %s217 = scalar_select %p216, %s19, 1
        %s218 = smul.addr %s217, 5
        %s219 = smul.addr %s218, 8
        %s220 = scalar_lea.vmem %s0, %s219
        %p221 = scmp.lt.s32.totalorder %s19, 1
        %s222 = scalar_select %p221, %s19, 1
        %s223 = scalar_lea.vmem %s4, %s222
        %v224 = vld [vmem:[%s220] sm:$0xff]
        %v225 = vld [vmem:[#allocation3] sm:$0xff]
        %v226 = vld [vmem:[#allocation3 + $0x8] sm:$0xff]
        %v227 = vld [vmem:[#allocation3 + $0x10] sm:$0xff]
        %v228 = vld [vmem:[#allocation3 + $0x18] sm:$0xff]
        %v229 = vld [vmem:[#allocation3 + $0x20] sm:$0xff]
        %v230 = vld [vmem:[#allocation3 + $0x28] sm:$0xff]
        %v231 = vld [vmem:[#allocation3 + $0x30] sm:$0xff]
        %v232 = vld [vmem:[#allocation3 + $0x38] sm:$0xff]
        %v233 = vld [vmem:[#allocation3 + $0x40] sm:$0xff]
        %v234 = vld [vmem:[#allocation3 + $0x48] sm:$0xff]
        %v235 = vld [vmem:[#allocation3 + $0x50] sm:$0xff]
        %v236 = vld [vmem:[#allocation3 + $0x58] sm:$0xff]
        %v237 = vld [vmem:[#allocation3 + $0x60] sm:$0xff]
        %v238 = vld [vmem:[#allocation3 + $0x68] sm:$0xff]
        %v239 = vld [vmem:[#allocation3 + $0x70] sm:$0xff]
        %v240 = vld [vmem:[#allocation3 + $0x78] sm:$0xff]
        %v241 = vld [vmem:[%s220 + $0x1] sm:$0xff]
        %v242 = vld [vmem:[#allocation3 + $0x80] sm:$0xff]
        %v243 = vld [vmem:[#allocation3 + $0x88] sm:$0xff]
        %v244 = vld [vmem:[#allocation3 + $0x90] sm:$0xff]
        %v245 = vld [vmem:[#allocation3 + $0x98] sm:$0xff]
        %v246 = vld [vmem:[#allocation3 + $0xa0] sm:$0xff]
        %v247 = vld [vmem:[#allocation3 + $0xa8] sm:$0xff]
        %v248 = vld [vmem:[#allocation3 + $0xb0] sm:$0xff]
        %v249 = vld [vmem:[#allocation3 + $0xb8] sm:$0xff]
        %v250 = vld [vmem:[#allocation3 + $0xc0] sm:$0xff]
        %v251 = vld [vmem:[#allocation3 + $0xc8] sm:$0xff]
        %v252 = vld [vmem:[#allocation3 + $0xd0] sm:$0xff]
        %v253 = vld [vmem:[#allocation3 + $0xd8] sm:$0xff]
        %v254 = vld [vmem:[#allocation3 + $0xe0] sm:$0xff]
        %v255 = vld [vmem:[#allocation3 + $0xe8] sm:$0xff]
        %v256 = vld [vmem:[#allocation3 + $0xf0] sm:$0xff]
        %v257 = vld [vmem:[#allocation3 + $0xf8] sm:$0xff]
        %258 = vmatprep.subr.mxu0 0.0
        %259 = vmatpush1.msra.mxu0 %v242
        %260 = vmatprep.subr.mxu0 0.0
        %261 = vmatpush1.msra.mxu0 %v243
        %262 = vmatprep.subr.mxu0 0.0
        %263 = vmatpush1.msra.mxu0 %v244
        %264 = vmatprep.subr.mxu0 0.0
        %265 = vmatpush1.msra.mxu0 %v245
        %266 = vmatprep.subr.mxu0 0.0
        %267 = vmatpush1.msra.mxu0 %v246
        %268 = vmatprep.subr.mxu0 0.0
        %269 = vmatpush1.msra.mxu0 %v247
        %270 = vmatprep.subr.mxu0 0.0
        %271 = vmatpush1.msra.mxu0 %v248
        %272 = vmatprep.subr.mxu0 0.0
        %273 = vmatpush1.msra.mxu0 %v249
        %274 = vmatprep.subr.mxu0 0.0
        %275 = vmatpush1.msra.mxu0 %v250
        %276 = vmatprep.subr.mxu0 0.0
        %277 = vmatpush1.msra.mxu0 %v251
        %278 = vmatprep.subr.mxu0 0.0
        %279 = vmatpush1.msra.mxu0 %v252
        %280 = vmatprep.subr.mxu0 0.0
        %281 = vmatpush1.msra.mxu0 %v253
        %282 = vmatprep.subr.mxu0 0.0
        %283 = vmatpush1.msra.mxu0 %v254
        %284 = vmatprep.subr.mxu0 0.0
        %285 = vmatpush1.msra.mxu0 %v255
        %286 = vmatprep.subr.mxu0 0.0
        %287 = vmatpush1.msra.mxu0 %v256
        %288 = vmatprep.subr.mxu0 0.0
        %289 = vmatpush1.msra.mxu0 %v257
        %290 = vmatprep.subr.mxu0 0.0
        %291 = vmatpush1.msra.mxu0 0.0
        %292 = vmatprep.subr.mxu0 0.0
        %293 = vmatpush1.msra.mxu0 0.0
        %294 = vmatprep.subr.mxu0 0.0
        %295 = vmatpush1.msra.mxu0 0.0
        %296 = vmatprep.subr.mxu0 0.0
        %297 = vmatpush1.msra.mxu0 0.0
        %298 = vmatprep.subr.mxu0 0.0
        %299 = vmatpush1.msra.mxu0 0.0
        %300 = vmatprep.subr.mxu0 0.0
        %301 = vmatpush1.msra.mxu0 0.0
        %302 = vmatprep.subr.mxu0 0.0
        %303 = vmatpush1.msra.mxu0 0.0
        %304 = vmatprep.subr.mxu0 0.0
        %305 = vmatpush1.msra.mxu0 0.0
        %306 = vmatprep.subr.mxu0 0.0
        %307 = vmatpush1.msra.mxu0 0.0
        %308 = vmatprep.subr.mxu0 0.0
        %309 = vmatpush1.msra.mxu0 0.0
        %310 = vmatprep.subr.mxu0 0.0
        %311 = vmatpush1.msra.mxu0 0.0
        %312 = vmatprep.subr.mxu0 0.0
        %313 = vmatpush1.msra.mxu0 0.0
        %314 = vmatprep.subr.mxu0 0.0
        %315 = vmatpush1.msra.mxu0 0.0
        %316 = vmatprep.subr.mxu0 0.0
        %317 = vmatpush1.msra.mxu0 0.0
        %318 = vmatprep.subr.mxu0 0.0
        %319 = vmatpush1.msra.mxu0 0.0
        %320 = vmatprep.subr.mxu0 0.0
        %321 = vmatpush1.msra.mxu0 0.0
        %322 = vmatprep.mubr.f32.mxu0 0.0
        %323 = vmatmul.mubr.f32.gmra.mrb[0].mxu0 %v241
        %v324 = vpop.f32.mrb[0].mxu0
        %v325 = vadd.f32 0.0, %v324
        %v326 = vpop.f32.mrb[0].mxu0
        %327 = vdwg.mxu0
        %328 = vmatprep.subr.mxu0 0.0
        %329 = vmatpush1.msra.mxu0 %v225
        %330 = vmatprep.subr.mxu0 0.0
        %331 = vmatpush1.msra.mxu0 %v226
        %332 = vmatprep.subr.mxu0 0.0
        %333 = vmatpush1.msra.mxu0 %v227
        %334 = vmatprep.subr.mxu0 0.0
        %335 = vmatpush1.msra.mxu0 %v228
        %336 = vmatprep.subr.mxu0 0.0
        %337 = vmatpush1.msra.mxu0 %v229
        %338 = vmatprep.subr.mxu0 0.0
        %339 = vmatpush1.msra.mxu0 %v230
        %340 = vmatprep.subr.mxu0 0.0
        %341 = vmatpush1.msra.mxu0 %v231
        %342 = vmatprep.subr.mxu0 0.0
        %343 = vmatpush1.msra.mxu0 %v232
        %344 = vmatprep.subr.mxu0 0.0
        %345 = vmatpush1.msra.mxu0 %v233
        %346 = vmatprep.subr.mxu0 0.0
        %347 = vmatpush1.msra.mxu0 %v234
        %348 = vmatprep.subr.mxu0 0.0
        %349 = vmatpush1.msra.mxu0 %v235
        %350 = vmatprep.subr.mxu0 0.0
        %351 = vmatpush1.msra.mxu0 %v236
        %352 = vmatprep.subr.mxu0 0.0
        %353 = vmatpush1.msra.mxu0 %v237
        %354 = vmatprep.subr.mxu0 0.0
        %355 = vmatpush1.msra.mxu0 %v238
        %356 = vmatprep.subr.mxu0 0.0
        %357 = vmatpush1.msra.mxu0 %v239
        %358 = vmatprep.subr.mxu0 0.0
        %359 = vmatpush1.msra.mxu0 %v240
        %360 = vmatprep.subr.mxu0 0.0
        %361 = vmatpush1.msra.mxu0 0.0
        %362 = vmatprep.subr.mxu0 0.0
        %363 = vmatpush1.msra.mxu0 0.0
        %364 = vmatprep.subr.mxu0 0.0
        %365 = vmatpush1.msra.mxu0 0.0
        %366 = vmatprep.subr.mxu0 0.0
        %367 = vmatpush1.msra.mxu0 0.0
        %368 = vmatprep.subr.mxu0 0.0
        %369 = vmatpush1.msra.mxu0 0.0
        %370 = vmatprep.subr.mxu0 0.0
        %371 = vmatpush1.msra.mxu0 0.0
        %372 = vmatprep.subr.mxu0 0.0
        %373 = vmatpush1.msra.mxu0 0.0
        %374 = vmatprep.subr.mxu0 0.0
        %375 = vmatpush1.msra.mxu0 0.0
        %376 = vmatprep.subr.mxu0 0.0
        %377 = vmatpush1.msra.mxu0 0.0
        %378 = vmatprep.subr.mxu0 0.0
        %379 = vmatpush1.msra.mxu0 0.0
        %380 = vmatprep.subr.mxu0 0.0
        %381 = vmatpush1.msra.mxu0 0.0
        %382 = vmatprep.subr.mxu0 0.0
        %383 = vmatpush1.msra.mxu0 0.0
        %384 = vmatprep.subr.mxu0 0.0
        %385 = vmatpush1.msra.mxu0 0.0
        %386 = vmatprep.subr.mxu0 0.0
        %387 = vmatpush1.msra.mxu0 0.0
        %388 = vmatprep.subr.mxu0 0.0
        %389 = vmatpush1.msra.mxu0 0.0
        %390 = vmatprep.subr.mxu0 0.0
        %391 = vmatpush1.msra.mxu0 0.0
        %392 = vmatprep.mubr.f32.mxu0 0.0
        %393 = vmatmul.mubr.f32.gmra.mrb[0].mxu0 %v224
        %v394 = vpop.f32.mrb[0].mxu0
        %v395 = vadd.f32 %v325, %v394
        %v396 = vpop.f32.mrb[0].mxu0
        %397 = vdwg.mxu0
        %v398 = vld [vmem:[%s220 + $0x2] sm:$0xff]
        %v399 = vld [vmem:[#allocation3 + $0x100] sm:$0xff]
        %v400 = vld [vmem:[#allocation3 + $0x108] sm:$0xff]
        %v401 = vld [vmem:[#allocation3 + $0x110] sm:$0xff]
        %v402 = vld [vmem:[#allocation3 + $0x118] sm:$0xff]
        %v403 = vld [vmem:[#allocation3 + $0x120] sm:$0xff]
        %v404 = vld [vmem:[#allocation3 + $0x128] sm:$0xff]
        %v405 = vld [vmem:[#allocation3 + $0x130] sm:$0xff]
        %v406 = vld [vmem:[#allocation3 + $0x138] sm:$0xff]
        %v407 = vld [vmem:[#allocation3 + $0x140] sm:$0xff]
        %v408 = vld [vmem:[#allocation3 + $0x148] sm:$0xff]
        %v409 = vld [vmem:[#allocation3 + $0x150] sm:$0xff]
        %v410 = vld [vmem:[#allocation3 + $0x158] sm:$0xff]
        %v411 = vld [vmem:[#allocation3 + $0x160] sm:$0xff]
        %v412 = vld [vmem:[#allocation3 + $0x168] sm:$0xff]
        %v413 = vld [vmem:[#allocation3 + $0x170] sm:$0xff]
        %v414 = vld [vmem:[#allocation3 + $0x178] sm:$0xff]
        %415 = vmatprep.subr.mxu0 0.0
        %416 = vmatpush1.msra.mxu0 %v399
        %417 = vmatprep.subr.mxu0 0.0
        %418 = vmatpush1.msra.mxu0 %v400
        %419 = vmatprep.subr.mxu0 0.0
        %420 = vmatpush1.msra.mxu0 %v401
        %421 = vmatprep.subr.mxu0 0.0
        %422 = vmatpush1.msra.mxu0 %v402
        %423 = vmatprep.subr.mxu0 0.0
        %424 = vmatpush1.msra.mxu0 %v403
        %425 = vmatprep.subr.mxu0 0.0
        %426 = vmatpush1.msra.mxu0 %v404
        %427 = vmatprep.subr.mxu0 0.0
        %428 = vmatpush1.msra.mxu0 %v405
        %429 = vmatprep.subr.mxu0 0.0
        %430 = vmatpush1.msra.mxu0 %v406
        %431 = vmatprep.subr.mxu0 0.0
        %432 = vmatpush1.msra.mxu0 %v407
        %433 = vmatprep.subr.mxu0 0.0
        %434 = vmatpush1.msra.mxu0 %v408
        %435 = vmatprep.subr.mxu0 0.0
        %436 = vmatpush1.msra.mxu0 %v409
        %437 = vmatprep.subr.mxu0 0.0
        %438 = vmatpush1.msra.mxu0 %v410
        %439 = vmatprep.subr.mxu0 0.0
        %440 = vmatpush1.msra.mxu0 %v411
        %441 = vmatprep.subr.mxu0 0.0
        %442 = vmatpush1.msra.mxu0 %v412
        %443 = vmatprep.subr.mxu0 0.0
        %444 = vmatpush1.msra.mxu0 %v413
        %445 = vmatprep.subr.mxu0 0.0
        %446 = vmatpush1.msra.mxu0 %v414
        %447 = vmatprep.subr.mxu0 0.0
        %448 = vmatpush1.msra.mxu0 0.0
        %449 = vmatprep.subr.mxu0 0.0
        %450 = vmatpush1.msra.mxu0 0.0
        %451 = vmatprep.subr.mxu0 0.0
        %452 = vmatpush1.msra.mxu0 0.0
        %453 = vmatprep.subr.mxu0 0.0
        %454 = vmatpush1.msra.mxu0 0.0
        %455 = vmatprep.subr.mxu0 0.0
        %456 = vmatpush1.msra.mxu0 0.0
        %457 = vmatprep.subr.mxu0 0.0
        %458 = vmatpush1.msra.mxu0 0.0
        %459 = vmatprep.subr.mxu0 0.0
        %460 = vmatpush1.msra.mxu0 0.0
        %461 = vmatprep.subr.mxu0 0.0
        %462 = vmatpush1.msra.mxu0 0.0
        %463 = vmatprep.subr.mxu0 0.0
        %464 = vmatpush1.msra.mxu0 0.0
        %465 = vmatprep.subr.mxu0 0.0
        %466 = vmatpush1.msra.mxu0 0.0
        %467 = vmatprep.subr.mxu0 0.0
        %468 = vmatpush1.msra.mxu0 0.0
        %469 = vmatprep.subr.mxu0 0.0
        %470 = vmatpush1.msra.mxu0 0.0
        %471 = vmatprep.subr.mxu0 0.0
        %472 = vmatpush1.msra.mxu0 0.0
        %473 = vmatprep.subr.mxu0 0.0
        %474 = vmatpush1.msra.mxu0 0.0
        %475 = vmatprep.subr.mxu0 0.0
        %476 = vmatpush1.msra.mxu0 0.0
        %477 = vmatprep.subr.mxu0 0.0
        %478 = vmatpush1.msra.mxu0 0.0
        %479 = vmatprep.mubr.f32.mxu0 0.0
        %480 = vmatmul.mubr.f32.gmra.mrb[0].mxu0 %v398
        %v481 = vpop.f32.mrb[0].mxu0
        %v482 = vadd.f32 0.0, %v481
        %v483 = vpop.f32.mrb[0].mxu0
        %484 = vdwg.mxu0
        %v485 = vadd.f32 %v395, %v482
        %v486 = vld [vmem:[%s220 + $0x3] sm:$0xff]
        %v487 = vld [vmem:[#allocation3 + $0x180] sm:$0xff]
        %v488 = vld [vmem:[#allocation3 + $0x188] sm:$0xff]
        %v489 = vld [vmem:[#allocation3 + $0x190] sm:$0xff]
        %v490 = vld [vmem:[#allocation3 + $0x198] sm:$0xff]
        %v491 = vld [vmem:[#allocation3 + $0x1a0] sm:$0xff]
        %v492 = vld [vmem:[#allocation3 + $0x1a8] sm:$0xff]
        %v493 = vld [vmem:[#allocation3 + $0x1b0] sm:$0xff]
        %v494 = vld [vmem:[#allocation3 + $0x1b8] sm:$0xff]
        %v495 = vld [vmem:[#allocation3 + $0x1c0] sm:$0xff]
        %v496 = vld [vmem:[#allocation3 + $0x1c8] sm:$0xff]
        %v497 = vld [vmem:[#allocation3 + $0x1d0] sm:$0xff]
        %v498 = vld [vmem:[#allocation3 + $0x1d8] sm:$0xff]
        %v499 = vld [vmem:[#allocation3 + $0x1e0] sm:$0xff]
        %v500 = vld [vmem:[#allocation3 + $0x1e8] sm:$0xff]
        %v501 = vld [vmem:[#allocation3 + $0x1f0] sm:$0xff]
        %v502 = vld [vmem:[#allocation3 + $0x1f8] sm:$0xff]
        %503 = vmatprep.subr.mxu0 0.0
        %504 = vmatpush1.msra.mxu0 %v487
        %505 = vmatprep.subr.mxu0 0.0
        %506 = vmatpush1.msra.mxu0 %v488
        %507 = vmatprep.subr.mxu0 0.0
        %508 = vmatpush1.msra.mxu0 %v489
        %509 = vmatprep.subr.mxu0 0.0
        %510 = vmatpush1.msra.mxu0 %v490
        %511 = vmatprep.subr.mxu0 0.0
        %512 = vmatpush1.msra.mxu0 %v491
        %513 = vmatprep.subr.mxu0 0.0
        %514 = vmatpush1.msra.mxu0 %v492
        %515 = vmatprep.subr.mxu0 0.0
        %516 = vmatpush1.msra.mxu0 %v493
        %517 = vmatprep.subr.mxu0 0.0
        %518 = vmatpush1.msra.mxu0 %v494
        %519 = vmatprep.subr.mxu0 0.0
        %520 = vmatpush1.msra.mxu0 %v495
        %521 = vmatprep.subr.mxu0 0.0
        %522 = vmatpush1.msra.mxu0 %v496
        %523 = vmatprep.subr.mxu0 0.0
        %524 = vmatpush1.msra.mxu0 %v497
        %525 = vmatprep.subr.mxu0 0.0
        %526 = vmatpush1.msra.mxu0 %v498
        %527 = vmatprep.subr.mxu0 0.0
        %528 = vmatpush1.msra.mxu0 %v499
        %529 = vmatprep.subr.mxu0 0.0
        %530 = vmatpush1.msra.mxu0 %v500
        %531 = vmatprep.subr.mxu0 0.0
        %532 = vmatpush1.msra.mxu0 %v501
        %533 = vmatprep.subr.mxu0 0.0
        %534 = vmatpush1.msra.mxu0 %v502
        %535 = vmatprep.subr.mxu0 0.0
        %536 = vmatpush1.msra.mxu0 0.0
        %537 = vmatprep.subr.mxu0 0.0
        %538 = vmatpush1.msra.mxu0 0.0
        %539 = vmatprep.subr.mxu0 0.0
        %540 = vmatpush1.msra.mxu0 0.0
        %541 = vmatprep.subr.mxu0 0.0
        %542 = vmatpush1.msra.mxu0 0.0
        %543 = vmatprep.subr.mxu0 0.0
        %544 = vmatpush1.msra.mxu0 0.0
        %545 = vmatprep.subr.mxu0 0.0
        %546 = vmatpush1.msra.mxu0 0.0
        %547 = vmatprep.subr.mxu0 0.0
        %548 = vmatpush1.msra.mxu0 0.0
        %549 = vmatprep.subr.mxu0 0.0
        %550 = vmatpush1.msra.mxu0 0.0
        %551 = vmatprep.subr.mxu0 0.0
        %552 = vmatpush1.msra.mxu0 0.0
        %553 = vmatprep.subr.mxu0 0.0
        %554 = vmatpush1.msra.mxu0 0.0
        %555 = vmatprep.subr.mxu0 0.0
        %556 = vmatpush1.msra.mxu0 0.0
        %557 = vmatprep.subr.mxu0 0.0
        %558 = vmatpush1.msra.mxu0 0.0
        %559 = vmatprep.subr.mxu0 0.0
        %560 = vmatpush1.msra.mxu0 0.0
        %561 = vmatprep.subr.mxu0 0.0
        %562 = vmatpush1.msra.mxu0 0.0
        %563 = vmatprep.subr.mxu0 0.0
        %564 = vmatpush1.msra.mxu0 0.0
        %565 = vmatprep.subr.mxu0 0.0
        %566 = vmatpush1.msra.mxu0 0.0
        %567 = vmatprep.mubr.f32.mxu0 0.0
        %568 = vmatmul.mubr.f32.gmra.mrb[0].mxu0 %v486
        %v569 = vpop.f32.mrb[0].mxu0
        %v570 = vadd.f32 0.0, %v569
        %v571 = vpop.f32.mrb[0].mxu0
        %572 = vdwg.mxu0
        %v573 = vadd.f32 %v485, %v570
        %v574 = vld [vmem:[%s220 + $0x4] sm:$0xff]
        %v575 = vld [vmem:[#allocation3 + $0x200] sm:$0xff]
        %v576 = vld [vmem:[#allocation3 + $0x208] sm:$0xff]
        %v577 = vld [vmem:[#allocation3 + $0x210] sm:$0xff]
        %v578 = vld [vmem:[#allocation3 + $0x218] sm:$0xff]
        %v579 = vld [vmem:[#allocation3 + $0x220] sm:$0xff]
        %v580 = vld [vmem:[#allocation3 + $0x228] sm:$0xff]
        %v581 = vld [vmem:[#allocation3 + $0x230] sm:$0xff]
        %v582 = vld [vmem:[#allocation3 + $0x238] sm:$0xff]
        %v583 = vld [vmem:[#allocation3 + $0x240] sm:$0xff]
        %v584 = vld [vmem:[#allocation3 + $0x248] sm:$0xff]
        %v585 = vld [vmem:[#allocation3 + $0x250] sm:$0xff]
        %v586 = vld [vmem:[#allocation3 + $0x258] sm:$0xff]
        %v587 = vld [vmem:[#allocation3 + $0x260] sm:$0xff]
        %v588 = vld [vmem:[#allocation3 + $0x268] sm:$0xff]
        %v589 = vld [vmem:[#allocation3 + $0x270] sm:$0xff]
        %v590 = vld [vmem:[#allocation3 + $0x278] sm:$0xff]
        %591 = vmatprep.subr.mxu0 0.0
        %592 = vmatpush1.msra.mxu0 %v575
        %593 = vmatprep.subr.mxu0 0.0
        %594 = vmatpush1.msra.mxu0 %v576
        %595 = vmatprep.subr.mxu0 0.0
        %596 = vmatpush1.msra.mxu0 %v577
        %597 = vmatprep.subr.mxu0 0.0
        %598 = vmatpush1.msra.mxu0 %v578
        %599 = vmatprep.subr.mxu0 0.0
        %600 = vmatpush1.msra.mxu0 %v579
        %601 = vmatprep.subr.mxu0 0.0
        %602 = vmatpush1.msra.mxu0 %v580
        %603 = vmatprep.subr.mxu0 0.0
        %604 = vmatpush1.msra.mxu0 %v581
        %605 = vmatprep.subr.mxu0 0.0
        %606 = vmatpush1.msra.mxu0 %v582
        %607 = vmatprep.subr.mxu0 0.0
        %608 = vmatpush1.msra.mxu0 %v583
        %609 = vmatprep.subr.mxu0 0.0
        %610 = vmatpush1.msra.mxu0 %v584
        %611 = vmatprep.subr.mxu0 0.0
        %612 = vmatpush1.msra.mxu0 %v585
        %613 = vmatprep.subr.mxu0 0.0
        %614 = vmatpush1.msra.mxu0 %v586
        %615 = vmatprep.subr.mxu0 0.0
        %616 = vmatpush1.msra.mxu0 %v587
        %617 = vmatprep.subr.mxu0 0.0
        %618 = vmatpush1.msra.mxu0 %v588
        %619 = vmatprep.subr.mxu0 0.0
        %620 = vmatpush1.msra.mxu0 %v589
        %621 = vmatprep.subr.mxu0 0.0
        %622 = vmatpush1.msra.mxu0 %v590
        %623 = vmatprep.subr.mxu0 0.0
        %624 = vmatpush1.msra.mxu0 0.0
        %625 = vmatprep.subr.mxu0 0.0
        %626 = vmatpush1.msra.mxu0 0.0
        %627 = vmatprep.subr.mxu0 0.0
        %628 = vmatpush1.msra.mxu0 0.0
        %629 = vmatprep.subr.mxu0 0.0
        %630 = vmatpush1.msra.mxu0 0.0
        %631 = vmatprep.subr.mxu0 0.0
        %632 = vmatpush1.msra.mxu0 0.0
        %633 = vmatprep.subr.mxu0 0.0
        %634 = vmatpush1.msra.mxu0 0.0
        %635 = vmatprep.subr.mxu0 0.0
        %636 = vmatpush1.msra.mxu0 0.0
        %637 = vmatprep.subr.mxu0 0.0
        %638 = vmatpush1.msra.mxu0 0.0
        %639 = vmatprep.subr.mxu0 0.0
        %640 = vmatpush1.msra.mxu0 0.0
        %641 = vmatprep.subr.mxu0 0.0
        %642 = vmatpush1.msra.mxu0 0.0
        %643 = vmatprep.subr.mxu0 0.0
        %644 = vmatpush1.msra.mxu0 0.0
        %645 = vmatprep.subr.mxu0 0.0
        %646 = vmatpush1.msra.mxu0 0.0
        %647 = vmatprep.subr.mxu0 0.0
        %648 = vmatpush1.msra.mxu0 0.0
        %649 = vmatprep.subr.mxu0 0.0
        %650 = vmatpush1.msra.mxu0 0.0
        %651 = vmatprep.subr.mxu0 0.0
        %652 = vmatpush1.msra.mxu0 0.0
        %653 = vmatprep.subr.mxu0 0.0
        %654 = vmatpush1.msra.mxu0 0.0
        %655 = vmatprep.mubr.f32.mxu0 0.0
        %656 = vmatmul.mubr.f32.gmra.mrb[0].mxu0 %v574
        %v657 = vpop.f32.mrb[0].mxu0
        %v658 = vadd.f32 0.0, %v657
        %v659 = vpop.f32.mrb[0].mxu0
        %660 = vdwg.mxu0
        %v661 = vadd.f32 %v573, %v658
        %v662 = vld [vmem:[%s220 + $0x6] sm:$0xff]
        %v663 = vld [vmem:[#allocation3 + $0x280] sm:$0xff]
        %v664 = vld [vmem:[#allocation3 + $0x288] sm:$0xff]
        %v665 = vld [vmem:[#allocation3 + $0x290] sm:$0xff]
        %v666 = vld [vmem:[#allocation3 + $0x298] sm:$0xff]
        %v667 = vld [vmem:[#allocation3 + $0x2a0] sm:$0xff]
        %v668 = vld [vmem:[#allocation3 + $0x2a8] sm:$0xff]
        %v669 = vld [vmem:[#allocation3 + $0x2b0] sm:$0xff]
        %v670 = vld [vmem:[#allocation3 + $0x2b8] sm:$0xff]
        %v671 = vld [vmem:[#allocation3 + $0x2c0] sm:$0xff]
        %v672 = vld [vmem:[#allocation3 + $0x2c8] sm:$0xff]
        %v673 = vld [vmem:[#allocation3 + $0x2d0] sm:$0xff]
        %v674 = vld [vmem:[#allocation3 + $0x2d8] sm:$0xff]
        %v675 = vld [vmem:[#allocation3 + $0x2e0] sm:$0xff]
        %v676 = vld [vmem:[#allocation3 + $0x2e8] sm:$0xff]
        %v677 = vld [vmem:[#allocation3 + $0x2f0] sm:$0xff]
        %v678 = vld [vmem:[#allocation3 + $0x2f8] sm:$0xff]
        %679 = vmatprep.subr.mxu0 0.0
        %680 = vmatpush1.msra.mxu0 %v663
        %681 = vmatprep.subr.mxu0 0.0
        %682 = vmatpush1.msra.mxu0 %v664
        %683 = vmatprep.subr.mxu0 0.0
        %684 = vmatpush1.msra.mxu0 %v665
        %685 = vmatprep.subr.mxu0 0.0
        %686 = vmatpush1.msra.mxu0 %v666
        %687 = vmatprep.subr.mxu0 0.0
        %688 = vmatpush1.msra.mxu0 %v667
        %689 = vmatprep.subr.mxu0 0.0
        %690 = vmatpush1.msra.mxu0 %v668
        %691 = vmatprep.subr.mxu0 0.0
        %692 = vmatpush1.msra.mxu0 %v669
        %693 = vmatprep.subr.mxu0 0.0
        %694 = vmatpush1.msra.mxu0 %v670
        %695 = vmatprep.subr.mxu0 0.0
        %696 = vmatpush1.msra.mxu0 %v671
        %697 = vmatprep.subr.mxu0 0.0
        %698 = vmatpush1.msra.mxu0 %v672
        %699 = vmatprep.subr.mxu0 0.0
        %700 = vmatpush1.msra.mxu0 %v673
        %701 = vmatprep.subr.mxu0 0.0
        %702 = vmatpush1.msra.mxu0 %v674
        %703 = vmatprep.subr.mxu0 0.0
        %704 = vmatpush1.msra.mxu0 %v675
        %705 = vmatprep.subr.mxu0 0.0
        %706 = vmatpush1.msra.mxu0 %v676
        %707 = vmatprep.subr.mxu0 0.0
        %708 = vmatpush1.msra.mxu0 %v677
        %709 = vmatprep.subr.mxu0 0.0
        %710 = vmatpush1.msra.mxu0 %v678
        %711 = vmatprep.subr.mxu0 0.0
        %712 = vmatpush1.msra.mxu0 0.0
        %713 = vmatprep.subr.mxu0 0.0
        %714 = vmatpush1.msra.mxu0 0.0
        %715 = vmatprep.subr.mxu0 0.0
        %716 = vmatpush1.msra.mxu0 0.0
        %717 = vmatprep.subr.mxu0 0.0
        %718 = vmatpush1.msra.mxu0 0.0
        %719 = vmatprep.subr.mxu0 0.0
        %720 = vmatpush1.msra.mxu0 0.0
        %721 = vmatprep.subr.mxu0 0.0
        %722 = vmatpush1.msra.mxu0 0.0
        %723 = vmatprep.subr.mxu0 0.0
        %724 = vmatpush1.msra.mxu0 0.0
        %725 = vmatprep.subr.mxu0 0.0
        %726 = vmatpush1.msra.mxu0 0.0
        %727 = vmatprep.subr.mxu0 0.0
        %728 = vmatpush1.msra.mxu0 0.0
        %729 = vmatprep.subr.mxu0 0.0
        %730 = vmatpush1.msra.mxu0 0.0
        %731 = vmatprep.subr.mxu0 0.0
        %732 = vmatpush1.msra.mxu0 0.0
        %733 = vmatprep.subr.mxu0 0.0
        %734 = vmatpush1.msra.mxu0 0.0
        %735 = vmatprep.subr.mxu0 0.0
        %736 = vmatpush1.msra.mxu0 0.0
        %737 = vmatprep.subr.mxu0 0.0
        %738 = vmatpush1.msra.mxu0 0.0
        %739 = vmatprep.subr.mxu0 0.0
        %740 = vmatpush1.msra.mxu0 0.0
        %741 = vmatprep.subr.mxu0 0.0
        %742 = vmatpush1.msra.mxu0 0.0
        %743 = vmatprep.mubr.f32.mxu0 0.0
        %744 = vmatmul.mubr.f32.gmra.mrb[0].mxu0 %v662
        %v745 = vpop.f32.mrb[0].mxu0
        %v746 = vadd.f32 0.0, %v745
        %v747 = vpop.f32.mrb[0].mxu0
        %748 = vdwg.mxu0
        %v749 = vadd.f32 %v661, %v746
        %v750 = vld [vmem:[%s220 + $0x7] sm:$0xff]
        %v751 = vld [vmem:[#allocation3 + $0x300] sm:$0xff]
        %v752 = vld [vmem:[#allocation3 + $0x308] sm:$0xff]
        %v753 = vld [vmem:[#allocation3 + $0x310] sm:$0xff]
        %v754 = vld [vmem:[#allocation3 + $0x318] sm:$0xff]
        %v755 = vld [vmem:[#allocation3 + $0x320] sm:$0xff]
        %v756 = vld [vmem:[#allocation3 + $0x328] sm:$0xff]
        %v757 = vld [vmem:[#allocation3 + $0x330] sm:$0xff]
        %v758 = vld [vmem:[#allocation3 + $0x338] sm:$0xff]
        %v759 = vld [vmem:[#allocation3 + $0x340] sm:$0xff]
        %v760 = vld [vmem:[#allocation3 + $0x348] sm:$0xff]
        %v761 = vld [vmem:[#allocation3 + $0x350] sm:$0xff]
        %v762 = vld [vmem:[#allocation3 + $0x358] sm:$0xff]
        %v763 = vld [vmem:[#allocation3 + $0x360] sm:$0xff]
        %v764 = vld [vmem:[#allocation3 + $0x368] sm:$0xff]
        %v765 = vld [vmem:[#allocation3 + $0x370] sm:$0xff]
        %v766 = vld [vmem:[#allocation3 + $0x378] sm:$0xff]
        %767 = vmatprep.subr.mxu0 0.0
        %768 = vmatpush1.msra.mxu0 %v751
        %769 = vmatprep.subr.mxu0 0.0
        %770 = vmatpush1.msra.mxu0 %v752
        %771 = vmatprep.subr.mxu0 0.0
        %772 = vmatpush1.msra.mxu0 %v753
        %773 = vmatprep.subr.mxu0 0.0
        %774 = vmatpush1.msra.mxu0 %v754
        %775 = vmatprep.subr.mxu0 0.0
        %776 = vmatpush1.msra.mxu0 %v755
        %777 = vmatprep.subr.mxu0 0.0
        %778 = vmatpush1.msra.mxu0 %v756
        %779 = vmatprep.subr.mxu0 0.0
        %780 = vmatpush1.msra.mxu0 %v757
        %781 = vmatprep.subr.mxu0 0.0
        %782 = vmatpush1.msra.mxu0 %v758
        %783 = vmatprep.subr.mxu0 0.0
        %784 = vmatpush1.msra.mxu0 %v759
        %785 = vmatprep.subr.mxu0 0.0
        %786 = vmatpush1.msra.mxu0 %v760
        %787 = vmatprep.subr.mxu0 0.0
        %788 = vmatpush1.msra.mxu0 %v761
        %789 = vmatprep.subr.mxu0 0.0
        %790 = vmatpush1.msra.mxu0 %v762
        %791 = vmatprep.subr.mxu0 0.0
        %792 = vmatpush1.msra.mxu0 %v763
        %793 = vmatprep.subr.mxu0 0.0
        %794 = vmatpush1.msra.mxu0 %v764
        %795 = vmatprep.subr.mxu0 0.0
        %796 = vmatpush1.msra.mxu0 %v765
        %797 = vmatprep.subr.mxu0 0.0
        %798 = vmatpush1.msra.mxu0 %v766
        %799 = vmatprep.subr.mxu0 0.0
        %800 = vmatpush1.msra.mxu0 0.0
        %801 = vmatprep.subr.mxu0 0.0
        %802 = vmatpush1.msra.mxu0 0.0
        %803 = vmatprep.subr.mxu0 0.0
        %804 = vmatpush1.msra.mxu0 0.0
        %805 = vmatprep.subr.mxu0 0.0
        %806 = vmatpush1.msra.mxu0 0.0
        %807 = vmatprep.subr.mxu0 0.0
        %808 = vmatpush1.msra.mxu0 0.0
        %809 = vmatprep.subr.mxu0 0.0
        %810 = vmatpush1.msra.mxu0 0.0
        %811 = vmatprep.subr.mxu0 0.0
        %812 = vmatpush1.msra.mxu0 0.0
        %813 = vmatprep.subr.mxu0 0.0
        %814 = vmatpush1.msra.mxu0 0.0
        %815 = vmatprep.subr.mxu0 0.0
        %816 = vmatpush1.msra.mxu0 0.0
        %817 = vmatprep.subr.mxu0 0.0
        %818 = vmatpush1.msra.mxu0 0.0
        %819 = vmatprep.subr.mxu0 0.0
        %820 = vmatpush1.msra.mxu0 0.0
        %821 = vmatprep.subr.mxu0 0.0
        %822 = vmatpush1.msra.mxu0 0.0
        %823 = vmatprep.subr.mxu0 0.0
        %824 = vmatpush1.msra.mxu0 0.0
        %825 = vmatprep.subr.mxu0 0.0
        %826 = vmatpush1.msra.mxu0 0.0
        %827 = vmatprep.subr.mxu0 0.0
        %828 = vmatpush1.msra.mxu0 0.0
        %829 = vmatprep.subr.mxu0 0.0
        %830 = vmatpush1.msra.mxu0 0.0
        %831 = vmatprep.mubr.f32.mxu0 0.0
        %832 = vmatmul.mubr.f32.gmra.mrb[0].mxu0 %v750
        %v833 = vpop.f32.mrb[0].mxu0
        %v834 = vadd.f32 0.0, %v833
        %v835 = vpop.f32.mrb[0].mxu0
        %836 = vdwg.mxu0
        %v837 = vadd.f32 %v749, %v834
        %v838 = vld [vmem:[%s220 + $0x8] sm:$0xff]
        %v839 = vld [vmem:[#allocation3 + $0x380] sm:$0xff]
        %v840 = vld [vmem:[#allocation3 + $0x388] sm:$0xff]
        %v841 = vld [vmem:[#allocation3 + $0x390] sm:$0xff]
        %v842 = vld [vmem:[#allocation3 + $0x398] sm:$0xff]
        %v843 = vld [vmem:[#allocation3 + $0x3a0] sm:$0xff]
        %v844 = vld [vmem:[#allocation3 + $0x3a8] sm:$0xff]
        %v845 = vld [vmem:[#allocation3 + $0x3b0] sm:$0xff]
        %v846 = vld [vmem:[#allocation3 + $0x3b8] sm:$0xff]
        %v847 = vld [vmem:[#allocation3 + $0x3c0] sm:$0xff]
        %v848 = vld [vmem:[#allocation3 + $0x3c8] sm:$0xff]
        %v849 = vld [vmem:[#allocation3 + $0x3d0] sm:$0xff]
        %v850 = vld [vmem:[#allocation3 + $0x3d8] sm:$0xff]
        %v851 = vld [vmem:[#allocation3 + $0x3e0] sm:$0xff]
        %v852 = vld [vmem:[#allocation3 + $0x3e8] sm:$0xff]
        %v853 = vld [vmem:[#allocation3 + $0x3f0] sm:$0xff]
        %v854 = vld [vmem:[#allocation3 + $0x3f8] sm:$0xff]
        %855 = vmatprep.subr.mxu0 0.0
        %856 = vmatpush1.msra.mxu0 %v839
        %857 = vmatprep.subr.mxu0 0.0
        %858 = vmatpush1.msra.mxu0 %v840
        %859 = vmatprep.subr.mxu0 0.0
        %860 = vmatpush1.msra.mxu0 %v841
        %861 = vmatprep.subr.mxu0 0.0
        %862 = vmatpush1.msra.mxu0 %v842
        %863 = vmatprep.subr.mxu0 0.0
        %864 = vmatpush1.msra.mxu0 %v843
        %865 = vmatprep.subr.mxu0 0.0
        %866 = vmatpush1.msra.mxu0 %v844
        %867 = vmatprep.subr.mxu0 0.0
        %868 = vmatpush1.msra.mxu0 %v845
        %869 = vmatprep.subr.mxu0 0.0
        %870 = vmatpush1.msra.mxu0 %v846
        %871 = vmatprep.subr.mxu0 0.0
        %872 = vmatpush1.msra.mxu0 %v847
        %873 = vmatprep.subr.mxu0 0.0
        %874 = vmatpush1.msra.mxu0 %v848
        %875 = vmatprep.subr.mxu0 0.0
        %876 = vmatpush1.msra.mxu0 %v849
        %877 = vmatprep.subr.mxu0 0.0
        %878 = vmatpush1.msra.mxu0 %v850
        %879 = vmatprep.subr.mxu0 0.0
        %880 = vmatpush1.msra.mxu0 %v851
        %881 = vmatprep.subr.mxu0 0.0
        %882 = vmatpush1.msra.mxu0 %v852
        %883 = vmatprep.subr.mxu0 0.0
        %884 = vmatpush1.msra.mxu0 %v853
        %885 = vmatprep.subr.mxu0 0.0
        %886 = vmatpush1.msra.mxu0 %v854
        %887 = vmatprep.subr.mxu0 0.0
        %888 = vmatpush1.msra.mxu0 0.0
        %889 = vmatprep.subr.mxu0 0.0
        %890 = vmatpush1.msra.mxu0 0.0
        %891 = vmatprep.subr.mxu0 0.0
        %892 = vmatpush1.msra.mxu0 0.0
        %893 = vmatprep.subr.mxu0 0.0
        %894 = vmatpush1.msra.mxu0 0.0
        %895 = vmatprep.subr.mxu0 0.0
        %896 = vmatpush1.msra.mxu0 0.0
        %897 = vmatprep.subr.mxu0 0.0
        %898 = vmatpush1.msra.mxu0 0.0
        %899 = vmatprep.subr.mxu0 0.0
        %900 = vmatpush1.msra.mxu0 0.0
        %901 = vmatprep.subr.mxu0 0.0
        %902 = vmatpush1.msra.mxu0 0.0
        %903 = vmatprep.subr.mxu0 0.0
        %904 = vmatpush1.msra.mxu0 0.0
        %905 = vmatprep.subr.mxu0 0.0
        %906 = vmatpush1.msra.mxu0 0.0
        %907 = vmatprep.subr.mxu0 0.0
        %908 = vmatpush1.msra.mxu0 0.0
        %909 = vmatprep.subr.mxu0 0.0
        %910 = vmatpush1.msra.mxu0 0.0
        %911 = vmatprep.subr.mxu0 0.0
        %912 = vmatpush1.msra.mxu0 0.0
        %913 = vmatprep.subr.mxu0 0.0
        %914 = vmatpush1.msra.mxu0 0.0
        %915 = vmatprep.subr.mxu0 0.0
        %916 = vmatpush1.msra.mxu0 0.0
        %917 = vmatprep.subr.mxu0 0.0
        %918 = vmatpush1.msra.mxu0 0.0
        %919 = vmatprep.mubr.f32.mxu0 0.0
        %920 = vmatmul.mubr.f32.gmra.mrb[0].mxu0 %v838
        %v921 = vpop.f32.mrb[0].mxu0
        %v922 = vadd.f32 0.0, %v921
        %v923 = vpop.f32.mrb[0].mxu0
        %924 = vdwg.mxu0
        %v925 = vadd.f32 %v837, %v922
        %v926 = vld [vmem:[%s220 + $0x9] sm:$0xff]
        %v927 = vld [vmem:[#allocation3 + $0x400] sm:$0xff]
        %v928 = vld [vmem:[#allocation3 + $0x408] sm:$0xff]
        %v929 = vld [vmem:[#allocation3 + $0x410] sm:$0xff]
        %v930 = vld [vmem:[#allocation3 + $0x418] sm:$0xff]
        %v931 = vld [vmem:[#allocation3 + $0x420] sm:$0xff]
        %v932 = vld [vmem:[#allocation3 + $0x428] sm:$0xff]
        %v933 = vld [vmem:[#allocation3 + $0x430] sm:$0xff]
        %v934 = vld [vmem:[#allocation3 + $0x438] sm:$0xff]
        %v935 = vld [vmem:[#allocation3 + $0x440] sm:$0xff]
        %v936 = vld [vmem:[#allocation3 + $0x448] sm:$0xff]
        %v937 = vld [vmem:[#allocation3 + $0x450] sm:$0xff]
        %v938 = vld [vmem:[#allocation3 + $0x458] sm:$0xff]
        %v939 = vld [vmem:[#allocation3 + $0x460] sm:$0xff]
        %v940 = vld [vmem:[#allocation3 + $0x468] sm:$0xff]
        %v941 = vld [vmem:[#allocation3 + $0x470] sm:$0xff]
        %v942 = vld [vmem:[#allocation3 + $0x478] sm:$0xff]
        %943 = vmatprep.subr.mxu0 0.0
        %944 = vmatpush1.msra.mxu0 %v927
        %945 = vmatprep.subr.mxu0 0.0
        %946 = vmatpush1.msra.mxu0 %v928
        %947 = vmatprep.subr.mxu0 0.0
        %948 = vmatpush1.msra.mxu0 %v929
        %949 = vmatprep.subr.mxu0 0.0
        %950 = vmatpush1.msra.mxu0 %v930
        %951 = vmatprep.subr.mxu0 0.0
        %952 = vmatpush1.msra.mxu0 %v931
        %953 = vmatprep.subr.mxu0 0.0
        %954 = vmatpush1.msra.mxu0 %v932
        %955 = vmatprep.subr.mxu0 0.0
        %956 = vmatpush1.msra.mxu0 %v933
        %957 = vmatprep.subr.mxu0 0.0
        %958 = vmatpush1.msra.mxu0 %v934
        %959 = vmatprep.subr.mxu0 0.0
        %960 = vmatpush1.msra.mxu0 %v935
        %961 = vmatprep.subr.mxu0 0.0
        %962 = vmatpush1.msra.mxu0 %v936
        %963 = vmatprep.subr.mxu0 0.0
        %964 = vmatpush1.msra.mxu0 %v937
        %965 = vmatprep.subr.mxu0 0.0
        %966 = vmatpush1.msra.mxu0 %v938
        %967 = vmatprep.subr.mxu0 0.0
        %968 = vmatpush1.msra.mxu0 %v939
        %969 = vmatprep.subr.mxu0 0.0
        %970 = vmatpush1.msra.mxu0 %v940
        %971 = vmatprep.subr.mxu0 0.0
        %972 = vmatpush1.msra.mxu0 %v941
        %973 = vmatprep.subr.mxu0 0.0
        %974 = vmatpush1.msra.mxu0 %v942
        %975 = vmatprep.subr.mxu0 0.0
        %976 = vmatpush1.msra.mxu0 0.0
        %977 = vmatprep.subr.mxu0 0.0
        %978 = vmatpush1.msra.mxu0 0.0
        %979 = vmatprep.subr.mxu0 0.0
        %980 = vmatpush1.msra.mxu0 0.0
        %981 = vmatprep.subr.mxu0 0.0
        %982 = vmatpush1.msra.mxu0 0.0
        %983 = vmatprep.subr.mxu0 0.0
        %984 = vmatpush1.msra.mxu0 0.0
        %985 = vmatprep.subr.mxu0 0.0
        %986 = vmatpush1.msra.mxu0 0.0
        %987 = vmatprep.subr.mxu0 0.0
        %988 = vmatpush1.msra.mxu0 0.0
        %989 = vmatprep.subr.mxu0 0.0
        %990 = vmatpush1.msra.mxu0 0.0
        %991 = vmatprep.subr.mxu0 0.0
        %992 = vmatpush1.msra.mxu0 0.0
        %993 = vmatprep.subr.mxu0 0.0
        %994 = vmatpush1.msra.mxu0 0.0
        %995 = vmatprep.subr.mxu0 0.0
        %996 = vmatpush1.msra.mxu0 0.0
        %997 = vmatprep.subr.mxu0 0.0
        %998 = vmatpush1.msra.mxu0 0.0
        %999 = vmatprep.subr.mxu0 0.0
        %1000 = vmatpush1.msra.mxu0 0.0
        %1001 = vmatprep.subr.mxu0 0.0
        %1002 = vmatpush1.msra.mxu0 0.0
        %1003 = vmatprep.subr.mxu0 0.0
        %1004 = vmatpush1.msra.mxu0 0.0
        %1005 = vmatprep.subr.mxu0 0.0
        %1006 = vmatpush1.msra.mxu0 0.0
        %1007 = vmatprep.mubr.f32.mxu0 0.0
        %1008 = vmatmul.mubr.f32.gmra.mrb[0].mxu0 %v926
        %v1009 = vpop.f32.mrb[0].mxu0
        %v1010 = vadd.f32 0.0, %v1009
        %v1011 = vpop.f32.mrb[0].mxu0
        %1012 = vdwg.mxu0
        %v1013 = vadd.f32 %v925, %v1010
        %v1014 = vld [vmem:[%s220 + $0xa] sm:$0xff]
        %v1015 = vld [vmem:[#allocation3 + $0x480] sm:$0xff]
        %v1016 = vld [vmem:[#allocation3 + $0x488] sm:$0xff]
        %v1017 = vld [vmem:[#allocation3 + $0x490] sm:$0xff]
        %v1018 = vld [vmem:[#allocation3 + $0x498] sm:$0xff]
        %v1019 = vld [vmem:[#allocation3 + $0x4a0] sm:$0xff]
        %v1020 = vld [vmem:[#allocation3 + $0x4a8] sm:$0xff]
        %v1021 = vld [vmem:[#allocation3 + $0x4b0] sm:$0xff]
        %v1022 = vld [vmem:[#allocation3 + $0x4b8] sm:$0xff]
        %v1023 = vld [vmem:[#allocation3 + $0x4c0] sm:$0xff]
        %v1024 = vld [vmem:[#allocation3 + $0x4c8] sm:$0xff]
        %v1025 = vld [vmem:[#allocation3 + $0x4d0] sm:$0xff]
        %v1026 = vld [vmem:[#allocation3 + $0x4d8] sm:$0xff]
        %v1027 = vld [vmem:[#allocation3 + $0x4e0] sm:$0xff]
        %v1028 = vld [vmem:[#allocation3 + $0x4e8] sm:$0xff]
        %v1029 = vld [vmem:[#allocation3 + $0x4f0] sm:$0xff]
        %v1030 = vld [vmem:[#allocation3 + $0x4f8] sm:$0xff]
        %1031 = vmatprep.subr.mxu0 0.0
        %1032 = vmatpush1.msra.mxu0 %v1015
        %1033 = vmatprep.subr.mxu0 0.0
        %1034 = vmatpush1.msra.mxu0 %v1016
        %1035 = vmatprep.subr.mxu0 0.0
        %1036 = vmatpush1.msra.mxu0 %v1017
        %1037 = vmatprep.subr.mxu0 0.0
        %1038 = vmatpush1.msra.mxu0 %v1018
        %1039 = vmatprep.subr.mxu0 0.0
        %1040 = vmatpush1.msra.mxu0 %v1019
        %1041 = vmatprep.subr.mxu0 0.0
        %1042 = vmatpush1.msra.mxu0 %v1020
        %1043 = vmatprep.subr.mxu0 0.0
        %1044 = vmatpush1.msra.mxu0 %v1021
        %1045 = vmatprep.subr.mxu0 0.0
        %1046 = vmatpush1.msra.mxu0 %v1022
        %1047 = vmatprep.subr.mxu0 0.0
        %1048 = vmatpush1.msra.mxu0 %v1023
        %1049 = vmatprep.subr.mxu0 0.0
        %1050 = vmatpush1.msra.mxu0 %v1024
        %1051 = vmatprep.subr.mxu0 0.0
        %1052 = vmatpush1.msra.mxu0 %v1025
        %1053 = vmatprep.subr.mxu0 0.0
        %1054 = vmatpush1.msra.mxu0 %v1026
        %1055 = vmatprep.subr.mxu0 0.0
        %1056 = vmatpush1.msra.mxu0 %v1027
        %1057 = vmatprep.subr.mxu0 0.0
        %1058 = vmatpush1.msra.mxu0 %v1028
        %1059 = vmatprep.subr.mxu0 0.0
        %1060 = vmatpush1.msra.mxu0 %v1029
        %1061 = vmatprep.subr.mxu0 0.0
        %1062 = vmatpush1.msra.mxu0 %v1030
        %1063 = vmatprep.subr.mxu0 0.0
        %1064 = vmatpush1.msra.mxu0 0.0
        %1065 = vmatprep.subr.mxu0 0.0
        %1066 = vmatpush1.msra.mxu0 0.0
        %1067 = vmatprep.subr.mxu0 0.0
        %1068 = vmatpush1.msra.mxu0 0.0
        %1069 = vmatprep.subr.mxu0 0.0
        %1070 = vmatpush1.msra.mxu0 0.0
        %1071 = vmatprep.subr.mxu0 0.0
        %1072 = vmatpush1.msra.mxu0 0.0
        %1073 = vmatprep.subr.mxu0 0.0
        %1074 = vmatpush1.msra.mxu0 0.0
        %1075 = vmatprep.subr.mxu0 0.0
        %1076 = vmatpush1.msra.mxu0 0.0
        %1077 = vmatprep.subr.mxu0 0.0
        %1078 = vmatpush1.msra.mxu0 0.0
        %1079 = vmatprep.subr.mxu0 0.0
        %1080 = vmatpush1.msra.mxu0 0.0
        %1081 = vmatprep.subr.mxu0 0.0
        %1082 = vmatpush1.msra.mxu0 0.0
        %1083 = vmatprep.subr.mxu0 0.0
        %1084 = vmatpush1.msra.mxu0 0.0
        %1085 = vmatprep.subr.mxu0 0.0
        %1086 = vmatpush1.msra.mxu0 0.0
        %1087 = vmatprep.subr.mxu0 0.0
        %1088 = vmatpush1.msra.mxu0 0.0
        %1089 = vmatprep.subr.mxu0 0.0
        %1090 = vmatpush1.msra.mxu0 0.0
        %1091 = vmatprep.subr.mxu0 0.0
        %1092 = vmatpush1.msra.mxu0 0.0
        %1093 = vmatprep.subr.mxu0 0.0
        %1094 = vmatpush1.msra.mxu0 0.0
        %1095 = vmatprep.mubr.f32.mxu0 0.0
        %1096 = vmatmul.mubr.f32.gmra.mrb[0].mxu0 %v1014
        %v1097 = vpop.f32.mrb[0].mxu0
        %v1098 = vadd.f32 0.0, %v1097
        %v1099 = vpop.f32.mrb[0].mxu0
        %1100 = vdwg.mxu0
        %v1101 = vadd.f32 %v1013, %v1098
        %v1102 = vld [vmem:[%s220 + $0xc] sm:$0xff]
        %v1103 = vld [vmem:[#allocation3 + $0x500] sm:$0xff]
        %v1104 = vld [vmem:[#allocation3 + $0x508] sm:$0xff]
        %v1105 = vld [vmem:[#allocation3 + $0x510] sm:$0xff]
        %v1106 = vld [vmem:[#allocation3 + $0x518] sm:$0xff]
        %v1107 = vld [vmem:[#allocation3 + $0x520] sm:$0xff]
        %v1108 = vld [vmem:[#allocation3 + $0x528] sm:$0xff]
        %v1109 = vld [vmem:[#allocation3 + $0x530] sm:$0xff]
        %v1110 = vld [vmem:[#allocation3 + $0x538] sm:$0xff]
        %v1111 = vld [vmem:[#allocation3 + $0x540] sm:$0xff]
        %v1112 = vld [vmem:[#allocation3 + $0x548] sm:$0xff]
        %v1113 = vld [vmem:[#allocation3 + $0x550] sm:$0xff]
        %v1114 = vld [vmem:[#allocation3 + $0x558] sm:$0xff]
        %v1115 = vld [vmem:[#allocation3 + $0x560] sm:$0xff]
        %v1116 = vld [vmem:[#allocation3 + $0x568] sm:$0xff]
        %v1117 = vld [vmem:[#allocation3 + $0x570] sm:$0xff]
        %v1118 = vld [vmem:[#allocation3 + $0x578] sm:$0xff]
        %1119 = vmatprep.subr.mxu0 0.0
        %1120 = vmatpush1.msra.mxu0 %v1103
        %1121 = vmatprep.subr.mxu0 0.0
        %1122 = vmatpush1.msra.mxu0 %v1104
        %1123 = vmatprep.subr.mxu0 0.0
        %1124 = vmatpush1.msra.mxu0 %v1105
        %1125 = vmatprep.subr.mxu0 0.0
        %1126 = vmatpush1.msra.mxu0 %v1106
        %1127 = vmatprep.subr.mxu0 0.0
        %1128 = vmatpush1.msra.mxu0 %v1107
        %1129 = vmatprep.subr.mxu0 0.0
        %1130 = vmatpush1.msra.mxu0 %v1108
        %1131 = vmatprep.subr.mxu0 0.0
        %1132 = vmatpush1.msra.mxu0 %v1109
        %1133 = vmatprep.subr.mxu0 0.0
        %1134 = vmatpush1.msra.mxu0 %v1110
        %1135 = vmatprep.subr.mxu0 0.0
        %1136 = vmatpush1.msra.mxu0 %v1111
        %1137 = vmatprep.subr.mxu0 0.0
        %1138 = vmatpush1.msra.mxu0 %v1112
        %1139 = vmatprep.subr.mxu0 0.0
        %1140 = vmatpush1.msra.mxu0 %v1113
        %1141 = vmatprep.subr.mxu0 0.0
        %1142 = vmatpush1.msra.mxu0 %v1114
        %1143 = vmatprep.subr.mxu0 0.0
        %1144 = vmatpush1.msra.mxu0 %v1115
        %1145 = vmatprep.subr.mxu0 0.0
        %1146 = vmatpush1.msra.mxu0 %v1116
        %1147 = vmatprep.subr.mxu0 0.0
        %1148 = vmatpush1.msra.mxu0 %v1117
        %1149 = vmatprep.subr.mxu0 0.0
        %1150 = vmatpush1.msra.mxu0 %v1118
        %1151 = vmatprep.subr.mxu0 0.0
        %1152 = vmatpush1.msra.mxu0 0.0
        %1153 = vmatprep.subr.mxu0 0.0
        %1154 = vmatpush1.msra.mxu0 0.0
        %1155 = vmatprep.subr.mxu0 0.0
        %1156 = vmatpush1.msra.mxu0 0.0
        %1157 = vmatprep.subr.mxu0 0.0
        %1158 = vmatpush1.msra.mxu0 0.0
        %1159 = vmatprep.subr.mxu0 0.0
        %1160 = vmatpush1.msra.mxu0 0.0
        %1161 = vmatprep.subr.mxu0 0.0
        %1162 = vmatpush1.msra.mxu0 0.0
        %1163 = vmatprep.subr.mxu0 0.0
        %1164 = vmatpush1.msra.mxu0 0.0
        %1165 = vmatprep.subr.mxu0 0.0
        %1166 = vmatpush1.msra.mxu0 0.0
        %1167 = vmatprep.subr.mxu0 0.0
        %1168 = vmatpush1.msra.mxu0 0.0
        %1169 = vmatprep.subr.mxu0 0.0
        %1170 = vmatpush1.msra.mxu0 0.0
        %1171 = vmatprep.subr.mxu0 0.0
        %1172 = vmatpush1.msra.mxu0 0.0
        %1173 = vmatprep.subr.mxu0 0.0
        %1174 = vmatpush1.msra.mxu0 0.0
        %1175 = vmatprep.subr.mxu0 0.0
        %1176 = vmatpush1.msra.mxu0 0.0
        %1177 = vmatprep.subr.mxu0 0.0
        %1178 = vmatpush1.msra.mxu0 0.0
        %1179 = vmatprep.subr.mxu0 0.0
        %1180 = vmatpush1.msra.mxu0 0.0
        %1181 = vmatprep.subr.mxu0 0.0
        %1182 = vmatpush1.msra.mxu0 0.0
        %1183 = vmatprep.mubr.f32.mxu0 0.0
        %1184 = vmatmul.mubr.f32.gmra.mrb[0].mxu0 %v1102
        %v1185 = vpop.f32.mrb[0].mxu0
        %v1186 = vadd.f32 0.0, %v1185
        %v1187 = vpop.f32.mrb[0].mxu0
        %1188 = vdwg.mxu0
        %v1189 = vadd.f32 %v1101, %v1186
        %v1190 = vld [vmem:[%s220 + $0xd] sm:$0xff]
        %v1191 = vld [vmem:[#allocation3 + $0x580] sm:$0xff]
        %v1192 = vld [vmem:[#allocation3 + $0x588] sm:$0xff]
        %v1193 = vld [vmem:[#allocation3 + $0x590] sm:$0xff]
        %v1194 = vld [vmem:[#allocation3 + $0x598] sm:$0xff]
        %v1195 = vld [vmem:[#allocation3 + $0x5a0] sm:$0xff]
        %v1196 = vld [vmem:[#allocation3 + $0x5a8] sm:$0xff]
        %v1197 = vld [vmem:[#allocation3 + $0x5b0] sm:$0xff]
        %v1198 = vld [vmem:[#allocation3 + $0x5b8] sm:$0xff]
        %v1199 = vld [vmem:[#allocation3 + $0x5c0] sm:$0xff]
        %v1200 = vld [vmem:[#allocation3 + $0x5c8] sm:$0xff]
        %v1201 = vld [vmem:[#allocation3 + $0x5d0] sm:$0xff]
        %v1202 = vld [vmem:[#allocation3 + $0x5d8] sm:$0xff]
        %v1203 = vld [vmem:[#allocation3 + $0x5e0] sm:$0xff]
        %v1204 = vld [vmem:[#allocation3 + $0x5e8] sm:$0xff]
        %v1205 = vld [vmem:[#allocation3 + $0x5f0] sm:$0xff]
        %v1206 = vld [vmem:[#allocation3 + $0x5f8] sm:$0xff]
        %1207 = vmatprep.subr.mxu0 0.0
        %1208 = vmatpush1.msra.mxu0 %v1191
        %1209 = vmatprep.subr.mxu0 0.0
        %1210 = vmatpush1.msra.mxu0 %v1192
        %1211 = vmatprep.subr.mxu0 0.0
        %1212 = vmatpush1.msra.mxu0 %v1193
        %1213 = vmatprep.subr.mxu0 0.0
        %1214 = vmatpush1.msra.mxu0 %v1194
        %1215 = vmatprep.subr.mxu0 0.0
        %1216 = vmatpush1.msra.mxu0 %v1195
        %1217 = vmatprep.subr.mxu0 0.0
        %1218 = vmatpush1.msra.mxu0 %v1196
        %1219 = vmatprep.subr.mxu0 0.0
        %1220 = vmatpush1.msra.mxu0 %v1197
        %1221 = vmatprep.subr.mxu0 0.0
        %1222 = vmatpush1.msra.mxu0 %v1198
        %1223 = vmatprep.subr.mxu0 0.0
        %1224 = vmatpush1.msra.mxu0 %v1199
        %1225 = vmatprep.subr.mxu0 0.0
        %1226 = vmatpush1.msra.mxu0 %v1200
        %1227 = vmatprep.subr.mxu0 0.0
        %1228 = vmatpush1.msra.mxu0 %v1201
        %1229 = vmatprep.subr.mxu0 0.0
        %1230 = vmatpush1.msra.mxu0 %v1202
        %1231 = vmatprep.subr.mxu0 0.0
        %1232 = vmatpush1.msra.mxu0 %v1203
        %1233 = vmatprep.subr.mxu0 0.0
        %1234 = vmatpush1.msra.mxu0 %v1204
        %1235 = vmatprep.subr.mxu0 0.0
        %1236 = vmatpush1.msra.mxu0 %v1205
        %1237 = vmatprep.subr.mxu0 0.0
        %1238 = vmatpush1.msra.mxu0 %v1206
        %1239 = vmatprep.subr.mxu0 0.0
        %1240 = vmatpush1.msra.mxu0 0.0
        %1241 = vmatprep.subr.mxu0 0.0
        %1242 = vmatpush1.msra.mxu0 0.0
        %1243 = vmatprep.subr.mxu0 0.0
        %1244 = vmatpush1.msra.mxu0 0.0
        %1245 = vmatprep.subr.mxu0 0.0
        %1246 = vmatpush1.msra.mxu0 0.0
        %1247 = vmatprep.subr.mxu0 0.0
        %1248 = vmatpush1.msra.mxu0 0.0
        %1249 = vmatprep.subr.mxu0 0.0
        %1250 = vmatpush1.msra.mxu0 0.0
        %1251 = vmatprep.subr.mxu0 0.0
        %1252 = vmatpush1.msra.mxu0 0.0
        %1253 = vmatprep.subr.mxu0 0.0
        %1254 = vmatpush1.msra.mxu0 0.0
        %1255 = vmatprep.subr.mxu0 0.0
        %1256 = vmatpush1.msra.mxu0 0.0
        %1257 = vmatprep.subr.mxu0 0.0
        %1258 = vmatpush1.msra.mxu0 0.0
        %1259 = vmatprep.subr.mxu0 0.0
        %1260 = vmatpush1.msra.mxu0 0.0
        %1261 = vmatprep.subr.mxu0 0.0
        %1262 = vmatpush1.msra.mxu0 0.0
        %1263 = vmatprep.subr.mxu0 0.0
        %1264 = vmatpush1.msra.mxu0 0.0
        %1265 = vmatprep.subr.mxu0 0.0
        %1266 = vmatpush1.msra.mxu0 0.0
        %1267 = vmatprep.subr.mxu0 0.0
        %1268 = vmatpush1.msra.mxu0 0.0
        %1269 = vmatprep.subr.mxu0 0.0
        %1270 = vmatpush1.msra.mxu0 0.0
        %1271 = vmatprep.mubr.f32.mxu0 0.0
        %1272 = vmatmul.mubr.f32.gmra.mrb[0].mxu0 %v1190
        %v1273 = vpop.f32.mrb[0].mxu0
        %v1274 = vadd.f32 0.0, %v1273
        %v1275 = vpop.f32.mrb[0].mxu0
        %1276 = vdwg.mxu0
        %v1277 = vadd.f32 %v1189, %v1274
        %v1278 = vld [vmem:[%s220 + $0xe] sm:$0xff]
        %v1279 = vld [vmem:[#allocation3 + $0x600] sm:$0xff]
        %v1280 = vld [vmem:[#allocation3 + $0x608] sm:$0xff]
        %v1281 = vld [vmem:[#allocation3 + $0x610] sm:$0xff]
        %v1282 = vld [vmem:[#allocation3 + $0x618] sm:$0xff]
        %v1283 = vld [vmem:[#allocation3 + $0x620] sm:$0xff]
        %v1284 = vld [vmem:[#allocation3 + $0x628] sm:$0xff]
        %v1285 = vld [vmem:[#allocation3 + $0x630] sm:$0xff]
        %v1286 = vld [vmem:[#allocation3 + $0x638] sm:$0xff]
        %v1287 = vld [vmem:[#allocation3 + $0x640] sm:$0xff]
        %v1288 = vld [vmem:[#allocation3 + $0x648] sm:$0xff]
        %v1289 = vld [vmem:[#allocation3 + $0x650] sm:$0xff]
        %v1290 = vld [vmem:[#allocation3 + $0x658] sm:$0xff]
        %v1291 = vld [vmem:[#allocation3 + $0x660] sm:$0xff]
        %v1292 = vld [vmem:[#allocation3 + $0x668] sm:$0xff]
        %v1293 = vld [vmem:[#allocation3 + $0x670] sm:$0xff]
        %v1294 = vld [vmem:[#allocation3 + $0x678] sm:$0xff]
        %1295 = vmatprep.subr.mxu0 0.0
        %1296 = vmatpush1.msra.mxu0 %v1279
        %1297 = vmatprep.subr.mxu0 0.0
        %1298 = vmatpush1.msra.mxu0 %v1280
        %1299 = vmatprep.subr.mxu0 0.0
        %1300 = vmatpush1.msra.mxu0 %v1281
        %1301 = vmatprep.subr.mxu0 0.0
        %1302 = vmatpush1.msra.mxu0 %v1282
        %1303 = vmatprep.subr.mxu0 0.0
        %1304 = vmatpush1.msra.mxu0 %v1283
        %1305 = vmatprep.subr.mxu0 0.0
        %1306 = vmatpush1.msra.mxu0 %v1284
        %1307 = vmatprep.subr.mxu0 0.0
        %1308 = vmatpush1.msra.mxu0 %v1285
        %1309 = vmatprep.subr.mxu0 0.0
        %1310 = vmatpush1.msra.mxu0 %v1286
        %1311 = vmatprep.subr.mxu0 0.0
        %1312 = vmatpush1.msra.mxu0 %v1287
        %1313 = vmatprep.subr.mxu0 0.0
        %1314 = vmatpush1.msra.mxu0 %v1288
        %1315 = vmatprep.subr.mxu0 0.0
        %1316 = vmatpush1.msra.mxu0 %v1289
        %1317 = vmatprep.subr.mxu0 0.0
        %1318 = vmatpush1.msra.mxu0 %v1290
        %1319 = vmatprep.subr.mxu0 0.0
        %1320 = vmatpush1.msra.mxu0 %v1291
        %1321 = vmatprep.subr.mxu0 0.0
        %1322 = vmatpush1.msra.mxu0 %v1292
        %1323 = vmatprep.subr.mxu0 0.0
        %1324 = vmatpush1.msra.mxu0 %v1293
        %1325 = vmatprep.subr.mxu0 0.0
        %1326 = vmatpush1.msra.mxu0 %v1294
        %1327 = vmatprep.subr.mxu0 0.0
        %1328 = vmatpush1.msra.mxu0 0.0
        %1329 = vmatprep.subr.mxu0 0.0
        %1330 = vmatpush1.msra.mxu0 0.0
        %1331 = vmatprep.subr.mxu0 0.0
        %1332 = vmatpush1.msra.mxu0 0.0
        %1333 = vmatprep.subr.mxu0 0.0
        %1334 = vmatpush1.msra.mxu0 0.0
        %1335 = vmatprep.subr.mxu0 0.0
        %1336 = vmatpush1.msra.mxu0 0.0
        %1337 = vmatprep.subr.mxu0 0.0
        %1338 = vmatpush1.msra.mxu0 0.0
        %1339 = vmatprep.subr.mxu0 0.0
        %1340 = vmatpush1.msra.mxu0 0.0
        %1341 = vmatprep.subr.mxu0 0.0
        %1342 = vmatpush1.msra.mxu0 0.0
        %1343 = vmatprep.subr.mxu0 0.0
        %1344 = vmatpush1.msra.mxu0 0.0
        %1345 = vmatprep.subr.mxu0 0.0
        %1346 = vmatpush1.msra.mxu0 0.0
        %1347 = vmatprep.subr.mxu0 0.0
        %1348 = vmatpush1.msra.mxu0 0.0
        %1349 = vmatprep.subr.mxu0 0.0
        %1350 = vmatpush1.msra.mxu0 0.0
        %1351 = vmatprep.subr.mxu0 0.0
        %1352 = vmatpush1.msra.mxu0 0.0
        %1353 = vmatprep.subr.mxu0 0.0
        %1354 = vmatpush1.msra.mxu0 0.0
        %1355 = vmatprep.subr.mxu0 0.0
        %1356 = vmatpush1.msra.mxu0 0.0
        %1357 = vmatprep.subr.mxu0 0.0
        %1358 = vmatpush1.msra.mxu0 0.0
        %1359 = vmatprep.mubr.f32.mxu0 0.0
        %1360 = vmatmul.mubr.f32.gmra.mrb[0].mxu0 %v1278
        %v1361 = vpop.f32.mrb[0].mxu0
        %v1362 = vadd.f32 0.0, %v1361
        %v1363 = vpop.f32.mrb[0].mxu0
        %1364 = vdwg.mxu0
        %v1365 = vadd.f32 %v1277, %v1362
        %v1366 = vld [vmem:[%s220 + $0xf] sm:$0xff]
        %v1367 = vld [vmem:[#allocation3 + $0x680] sm:$0xff]
        %v1368 = vld [vmem:[#allocation3 + $0x688] sm:$0xff]
        %v1369 = vld [vmem:[#allocation3 + $0x690] sm:$0xff]
        %v1370 = vld [vmem:[#allocation3 + $0x698] sm:$0xff]
        %v1371 = vld [vmem:[#allocation3 + $0x6a0] sm:$0xff]
        %v1372 = vld [vmem:[#allocation3 + $0x6a8] sm:$0xff]
        %v1373 = vld [vmem:[#allocation3 + $0x6b0] sm:$0xff]
        %v1374 = vld [vmem:[#allocation3 + $0x6b8] sm:$0xff]
        %v1375 = vld [vmem:[#allocation3 + $0x6c0] sm:$0xff]
        %v1376 = vld [vmem:[#allocation3 + $0x6c8] sm:$0xff]
        %v1377 = vld [vmem:[#allocation3 + $0x6d0] sm:$0xff]
        %v1378 = vld [vmem:[#allocation3 + $0x6d8] sm:$0xff]
        %v1379 = vld [vmem:[#allocation3 + $0x6e0] sm:$0xff]
        %v1380 = vld [vmem:[#allocation3 + $0x6e8] sm:$0xff]
        %v1381 = vld [vmem:[#allocation3 + $0x6f0] sm:$0xff]
        %v1382 = vld [vmem:[#allocation3 + $0x6f8] sm:$0xff]
        %1383 = vmatprep.subr.mxu0 0.0
        %1384 = vmatpush1.msra.mxu0 %v1367
        %1385 = vmatprep.subr.mxu0 0.0
        %1386 = vmatpush1.msra.mxu0 %v1368
        %1387 = vmatprep.subr.mxu0 0.0
        %1388 = vmatpush1.msra.mxu0 %v1369
        %1389 = vmatprep.subr.mxu0 0.0
        %1390 = vmatpush1.msra.mxu0 %v1370
        %1391 = vmatprep.subr.mxu0 0.0
        %1392 = vmatpush1.msra.mxu0 %v1371
        %1393 = vmatprep.subr.mxu0 0.0
        %1394 = vmatpush1.msra.mxu0 %v1372
        %1395 = vmatprep.subr.mxu0 0.0
        %1396 = vmatpush1.msra.mxu0 %v1373
        %1397 = vmatprep.subr.mxu0 0.0
        %1398 = vmatpush1.msra.mxu0 %v1374
        %1399 = vmatprep.subr.mxu0 0.0
        %1400 = vmatpush1.msra.mxu0 %v1375
        %1401 = vmatprep.subr.mxu0 0.0
        %1402 = vmatpush1.msra.mxu0 %v1376
        %1403 = vmatprep.subr.mxu0 0.0
        %1404 = vmatpush1.msra.mxu0 %v1377
        %1405 = vmatprep.subr.mxu0 0.0
        %1406 = vmatpush1.msra.mxu0 %v1378
        %1407 = vmatprep.subr.mxu0 0.0
        %1408 = vmatpush1.msra.mxu0 %v1379
        %1409 = vmatprep.subr.mxu0 0.0
        %1410 = vmatpush1.msra.mxu0 %v1380
        %1411 = vmatprep.subr.mxu0 0.0
        %1412 = vmatpush1.msra.mxu0 %v1381
        %1413 = vmatprep.subr.mxu0 0.0
        %1414 = vmatpush1.msra.mxu0 %v1382
        %1415 = vmatprep.subr.mxu0 0.0
        %1416 = vmatpush1.msra.mxu0 0.0
        %1417 = vmatprep.subr.mxu0 0.0
        %1418 = vmatpush1.msra.mxu0 0.0
        %1419 = vmatprep.subr.mxu0 0.0
        %1420 = vmatpush1.msra.mxu0 0.0
        %1421 = vmatprep.subr.mxu0 0.0
        %1422 = vmatpush1.msra.mxu0 0.0
        %1423 = vmatprep.subr.mxu0 0.0
        %1424 = vmatpush1.msra.mxu0 0.0
        %1425 = vmatprep.subr.mxu0 0.0
        %1426 = vmatpush1.msra.mxu0 0.0
        %1427 = vmatprep.subr.mxu0 0.0
        %1428 = vmatpush1.msra.mxu0 0.0
        %1429 = vmatprep.subr.mxu0 0.0
        %1430 = vmatpush1.msra.mxu0 0.0
        %1431 = vmatprep.subr.mxu0 0.0
        %1432 = vmatpush1.msra.mxu0 0.0
        %1433 = vmatprep.subr.mxu0 0.0
        %1434 = vmatpush1.msra.mxu0 0.0
        %1435 = vmatprep.subr.mxu0 0.0
        %1436 = vmatpush1.msra.mxu0 0.0
        %1437 = vmatprep.subr.mxu0 0.0
        %1438 = vmatpush1.msra.mxu0 0.0
        %1439 = vmatprep.subr.mxu0 0.0
        %1440 = vmatpush1.msra.mxu0 0.0
        %1441 = vmatprep.subr.mxu0 0.0
        %1442 = vmatpush1.msra.mxu0 0.0
        %1443 = vmatprep.subr.mxu0 0.0
        %1444 = vmatpush1.msra.mxu0 0.0
        %1445 = vmatprep.subr.mxu0 0.0
        %1446 = vmatpush1.msra.mxu0 0.0
        %1447 = vmatprep.mubr.f32.mxu0 0.0
        %1448 = vmatmul.mubr.f32.gmra.mrb[0].mxu0 %v1366
        %v1449 = vpop.f32.mrb[0].mxu0
        %v1450 = vadd.f32 0.0, %v1449
        %v1451 = vpop.f32.mrb[0].mxu0
        %1452 = vdwg.mxu0
        %v1453 = vadd.f32 %v1365, %v1450
        %v1454 = vld [vmem:[%s220 + $0x10] sm:$0xff]
        %v1455 = vld [vmem:[#allocation3 + $0x700] sm:$0xff]
        %v1456 = vld [vmem:[#allocation3 + $0x708] sm:$0xff]
        %v1457 = vld [vmem:[#allocation3 + $0x710] sm:$0xff]
        %v1458 = vld [vmem:[#allocation3 + $0x718] sm:$0xff]
        %v1459 = vld [vmem:[#allocation3 + $0x720] sm:$0xff]
        %v1460 = vld [vmem:[#allocation3 + $0x728] sm:$0xff]
        %v1461 = vld [vmem:[#allocation3 + $0x730] sm:$0xff]
        %v1462 = vld [vmem:[#allocation3 + $0x738] sm:$0xff]
        %v1463 = vld [vmem:[#allocation3 + $0x740] sm:$0xff]
        %v1464 = vld [vmem:[#allocation3 + $0x748] sm:$0xff]
        %v1465 = vld [vmem:[#allocation3 + $0x750] sm:$0xff]
        %v1466 = vld [vmem:[#allocation3 + $0x758] sm:$0xff]
        %v1467 = vld [vmem:[#allocation3 + $0x760] sm:$0xff]
        %v1468 = vld [vmem:[#allocation3 + $0x768] sm:$0xff]
        %v1469 = vld [vmem:[#allocation3 + $0x770] sm:$0xff]
        %v1470 = vld [vmem:[#allocation3 + $0x778] sm:$0xff]
        %1471 = vmatprep.subr.mxu0 0.0
        %1472 = vmatpush1.msra.mxu0 %v1455
        %1473 = vmatprep.subr.mxu0 0.0
        %1474 = vmatpush1.msra.mxu0 %v1456
        %1475 = vmatprep.subr.mxu0 0.0
        %1476 = vmatpush1.msra.mxu0 %v1457
        %1477 = vmatprep.subr.mxu0 0.0
        %1478 = vmatpush1.msra.mxu0 %v1458
        %1479 = vmatprep.subr.mxu0 0.0
        %1480 = vmatpush1.msra.mxu0 %v1459
        %1481 = vmatprep.subr.mxu0 0.0
        %1482 = vmatpush1.msra.mxu0 %v1460
        %1483 = vmatprep.subr.mxu0 0.0
        %1484 = vmatpush1.msra.mxu0 %v1461
        %1485 = vmatprep.subr.mxu0 0.0
        %1486 = vmatpush1.msra.mxu0 %v1462
        %1487 = vmatprep.subr.mxu0 0.0
        %1488 = vmatpush1.msra.mxu0 %v1463
        %1489 = vmatprep.subr.mxu0 0.0
        %1490 = vmatpush1.msra.mxu0 %v1464
        %1491 = vmatprep.subr.mxu0 0.0
        %1492 = vmatpush1.msra.mxu0 %v1465
        %1493 = vmatprep.subr.mxu0 0.0
        %1494 = vmatpush1.msra.mxu0 %v1466
        %1495 = vmatprep.subr.mxu0 0.0
        %1496 = vmatpush1.msra.mxu0 %v1467
        %1497 = vmatprep.subr.mxu0 0.0
        %1498 = vmatpush1.msra.mxu0 %v1468
        %1499 = vmatprep.subr.mxu0 0.0
        %1500 = vmatpush1.msra.mxu0 %v1469
        %1501 = vmatprep.subr.mxu0 0.0
        %1502 = vmatpush1.msra.mxu0 %v1470
        %1503 = vmatprep.subr.mxu0 0.0
        %1504 = vmatpush1.msra.mxu0 0.0
        %1505 = vmatprep.subr.mxu0 0.0
        %1506 = vmatpush1.msra.mxu0 0.0
        %1507 = vmatprep.subr.mxu0 0.0
        %1508 = vmatpush1.msra.mxu0 0.0
        %1509 = vmatprep.subr.mxu0 0.0
        %1510 = vmatpush1.msra.mxu0 0.0
        %1511 = vmatprep.subr.mxu0 0.0
        %1512 = vmatpush1.msra.mxu0 0.0
        %1513 = vmatprep.subr.mxu0 0.0
        %1514 = vmatpush1.msra.mxu0 0.0
        %1515 = vmatprep.subr.mxu0 0.0
        %1516 = vmatpush1.msra.mxu0 0.0
        %1517 = vmatprep.subr.mxu0 0.0
        %1518 = vmatpush1.msra.mxu0 0.0
        %1519 = vmatprep.subr.mxu0 0.0
        %1520 = vmatpush1.msra.mxu0 0.0
        %1521 = vmatprep.subr.mxu0 0.0
        %1522 = vmatpush1.msra.mxu0 0.0
        %1523 = vmatprep.subr.mxu0 0.0
        %1524 = vmatpush1.msra.mxu0 0.0
        %1525 = vmatprep.subr.mxu0 0.0
        %1526 = vmatpush1.msra.mxu0 0.0
        %1527 = vmatprep.subr.mxu0 0.0
        %1528 = vmatpush1.msra.mxu0 0.0
        %1529 = vmatprep.subr.mxu0 0.0
        %1530 = vmatpush1.msra.mxu0 0.0
        %1531 = vmatprep.subr.mxu0 0.0
        %1532 = vmatpush1.msra.mxu0 0.0
        %1533 = vmatprep.subr.mxu0 0.0
        %1534 = vmatpush1.msra.mxu0 0.0
        %1535 = vmatprep.mubr.f32.mxu0 0.0
        %1536 = vmatmul.mubr.f32.gmra.mrb[0].mxu0 %v1454
        %v1537 = vpop.f32.mrb[0].mxu0
        %v1538 = vadd.f32 0.0, %v1537
        %v1539 = vpop.f32.mrb[0].mxu0
        %1540 = vdwg.mxu0
        %v1541 = vadd.f32 %v1453, %v1538
        %v1542 = vld [vmem:[%s220 + $0x12] sm:$0xff]
        %v1543 = vld [vmem:[#allocation3 + $0x780] sm:$0xff]
        %v1544 = vld [vmem:[#allocation3 + $0x788] sm:$0xff]
        %v1545 = vld [vmem:[#allocation3 + $0x790] sm:$0xff]
        %v1546 = vld [vmem:[#allocation3 + $0x798] sm:$0xff]
        %v1547 = vld [vmem:[#allocation3 + $0x7a0] sm:$0xff]
        %v1548 = vld [vmem:[#allocation3 + $0x7a8] sm:$0xff]
        %v1549 = vld [vmem:[#allocation3 + $0x7b0] sm:$0xff]
        %v1550 = vld [vmem:[#allocation3 + $0x7b8] sm:$0xff]
        %v1551 = vld [vmem:[#allocation3 + $0x7c0] sm:$0xff]
        %v1552 = vld [vmem:[#allocation3 + $0x7c8] sm:$0xff]
        %v1553 = vld [vmem:[#allocation3 + $0x7d0] sm:$0xff]
        %v1554 = vld [vmem:[#allocation3 + $0x7d8] sm:$0xff]
        %v1555 = vld [vmem:[#allocation3 + $0x7e0] sm:$0xff]
        %v1556 = vld [vmem:[#allocation3 + $0x7e8] sm:$0xff]
        %v1557 = vld [vmem:[#allocation3 + $0x7f0] sm:$0xff]
        %v1558 = vld [vmem:[#allocation3 + $0x7f8] sm:$0xff]
        %1559 = vmatprep.subr.mxu0 0.0
        %1560 = vmatpush1.msra.mxu0 %v1543
        %1561 = vmatprep.subr.mxu0 0.0
        %1562 = vmatpush1.msra.mxu0 %v1544
        %1563 = vmatprep.subr.mxu0 0.0
        %1564 = vmatpush1.msra.mxu0 %v1545
        %1565 = vmatprep.subr.mxu0 0.0
        %1566 = vmatpush1.msra.mxu0 %v1546
        %1567 = vmatprep.subr.mxu0 0.0
        %1568 = vmatpush1.msra.mxu0 %v1547
        %1569 = vmatprep.subr.mxu0 0.0
        %1570 = vmatpush1.msra.mxu0 %v1548
        %1571 = vmatprep.subr.mxu0 0.0
        %1572 = vmatpush1.msra.mxu0 %v1549
        %1573 = vmatprep.subr.mxu0 0.0
        %1574 = vmatpush1.msra.mxu0 %v1550
        %1575 = vmatprep.subr.mxu0 0.0
        %1576 = vmatpush1.msra.mxu0 %v1551
        %1577 = vmatprep.subr.mxu0 0.0
        %1578 = vmatpush1.msra.mxu0 %v1552
        %1579 = vmatprep.subr.mxu0 0.0
        %1580 = vmatpush1.msra.mxu0 %v1553
        %1581 = vmatprep.subr.mxu0 0.0
        %1582 = vmatpush1.msra.mxu0 %v1554
        %1583 = vmatprep.subr.mxu0 0.0
        %1584 = vmatpush1.msra.mxu0 %v1555
        %1585 = vmatprep.subr.mxu0 0.0
        %1586 = vmatpush1.msra.mxu0 %v1556
        %1587 = vmatprep.subr.mxu0 0.0
        %1588 = vmatpush1.msra.mxu0 %v1557
        %1589 = vmatprep.subr.mxu0 0.0
        %1590 = vmatpush1.msra.mxu0 %v1558
        %1591 = vmatprep.subr.mxu0 0.0
        %1592 = vmatpush1.msra.mxu0 0.0
        %1593 = vmatprep.subr.mxu0 0.0
        %1594 = vmatpush1.msra.mxu0 0.0
        %1595 = vmatprep.subr.mxu0 0.0
        %1596 = vmatpush1.msra.mxu0 0.0
        %1597 = vmatprep.subr.mxu0 0.0
        %1598 = vmatpush1.msra.mxu0 0.0
        %1599 = vmatprep.subr.mxu0 0.0
        %1600 = vmatpush1.msra.mxu0 0.0
        %1601 = vmatprep.subr.mxu0 0.0
        %1602 = vmatpush1.msra.mxu0 0.0
        %1603 = vmatprep.subr.mxu0 0.0
        %1604 = vmatpush1.msra.mxu0 0.0
        %1605 = vmatprep.subr.mxu0 0.0
        %1606 = vmatpush1.msra.mxu0 0.0
        %1607 = vmatprep.subr.mxu0 0.0
        %1608 = vmatpush1.msra.mxu0 0.0
        %1609 = vmatprep.subr.mxu0 0.0
        %1610 = vmatpush1.msra.mxu0 0.0
        %1611 = vmatprep.subr.mxu0 0.0
        %1612 = vmatpush1.msra.mxu0 0.0
        %1613 = vmatprep.subr.mxu0 0.0
        %1614 = vmatpush1.msra.mxu0 0.0
        %1615 = vmatprep.subr.mxu0 0.0
        %1616 = vmatpush1.msra.mxu0 0.0
        %1617 = vmatprep.subr.mxu0 0.0
        %1618 = vmatpush1.msra.mxu0 0.0
        %1619 = vmatprep.subr.mxu0 0.0
        %1620 = vmatpush1.msra.mxu0 0.0
        %1621 = vmatprep.subr.mxu0 0.0
        %1622 = vmatpush1.msra.mxu0 0.0
        %1623 = vmatprep.mubr.f32.mxu0 0.0
        %1624 = vmatmul.mubr.f32.gmra.mrb[0].mxu0 %v1542
        %v1625 = vpop.f32.mrb[0].mxu0
        %v1626 = vadd.f32 0.0, %v1625
        %v1627 = vpop.f32.mrb[0].mxu0
        %1628 = vdwg.mxu0
        %v1629 = vadd.f32 %v1541, %v1626
        %v1630 = vld [vmem:[%s220 + $0x13] sm:$0xff]
        %v1631 = vld [vmem:[#allocation3 + $0x800] sm:$0xff]
        %v1632 = vld [vmem:[#allocation3 + $0x808] sm:$0xff]
        %v1633 = vld [vmem:[#allocation3 + $0x810] sm:$0xff]
        %v1634 = vld [vmem:[#allocation3 + $0x818] sm:$0xff]
        %v1635 = vld [vmem:[#allocation3 + $0x820] sm:$0xff]
        %v1636 = vld [vmem:[#allocation3 + $0x828] sm:$0xff]
        %v1637 = vld [vmem:[#allocation3 + $0x830] sm:$0xff]
        %v1638 = vld [vmem:[#allocation3 + $0x838] sm:$0xff]
        %v1639 = vld [vmem:[#allocation3 + $0x840] sm:$0xff]
        %v1640 = vld [vmem:[#allocation3 + $0x848] sm:$0xff]
        %v1641 = vld [vmem:[#allocation3 + $0x850] sm:$0xff]
        %v1642 = vld [vmem:[#allocation3 + $0x858] sm:$0xff]
        %v1643 = vld [vmem:[#allocation3 + $0x860] sm:$0xff]
        %v1644 = vld [vmem:[#allocation3 + $0x868] sm:$0xff]
        %v1645 = vld [vmem:[#allocation3 + $0x870] sm:$0xff]
        %v1646 = vld [vmem:[#allocation3 + $0x878] sm:$0xff]
        %1647 = vmatprep.subr.mxu0 0.0
        %1648 = vmatpush1.msra.mxu0 %v1631
        %1649 = vmatprep.subr.mxu0 0.0
        %1650 = vmatpush1.msra.mxu0 %v1632
        %1651 = vmatprep.subr.mxu0 0.0
        %1652 = vmatpush1.msra.mxu0 %v1633
        %1653 = vmatprep.subr.mxu0 0.0
        %1654 = vmatpush1.msra.mxu0 %v1634
        %1655 = vmatprep.subr.mxu0 0.0
        %1656 = vmatpush1.msra.mxu0 %v1635
        %1657 = vmatprep.subr.mxu0 0.0
        %1658 = vmatpush1.msra.mxu0 %v1636
        %1659 = vmatprep.subr.mxu0 0.0
        %1660 = vmatpush1.msra.mxu0 %v1637
        %1661 = vmatprep.subr.mxu0 0.0
        %1662 = vmatpush1.msra.mxu0 %v1638
        %1663 = vmatprep.subr.mxu0 0.0
        %1664 = vmatpush1.msra.mxu0 %v1639
        %1665 = vmatprep.subr.mxu0 0.0
        %1666 = vmatpush1.msra.mxu0 %v1640
        %1667 = vmatprep.subr.mxu0 0.0
        %1668 = vmatpush1.msra.mxu0 %v1641
        %1669 = vmatprep.subr.mxu0 0.0
        %1670 = vmatpush1.msra.mxu0 %v1642
        %1671 = vmatprep.subr.mxu0 0.0
        %1672 = vmatpush1.msra.mxu0 %v1643
        %1673 = vmatprep.subr.mxu0 0.0
        %1674 = vmatpush1.msra.mxu0 %v1644
        %1675 = vmatprep.subr.mxu0 0.0
        %1676 = vmatpush1.msra.mxu0 %v1645
        %1677 = vmatprep.subr.mxu0 0.0
        %1678 = vmatpush1.msra.mxu0 %v1646
        %1679 = vmatprep.subr.mxu0 0.0
        %1680 = vmatpush1.msra.mxu0 0.0
        %1681 = vmatprep.subr.mxu0 0.0
        %1682 = vmatpush1.msra.mxu0 0.0
        %1683 = vmatprep.subr.mxu0 0.0
        %1684 = vmatpush1.msra.mxu0 0.0
        %1685 = vmatprep.subr.mxu0 0.0
        %1686 = vmatpush1.msra.mxu0 0.0
        %1687 = vmatprep.subr.mxu0 0.0
        %1688 = vmatpush1.msra.mxu0 0.0
        %1689 = vmatprep.subr.mxu0 0.0
        %1690 = vmatpush1.msra.mxu0 0.0
        %1691 = vmatprep.subr.mxu0 0.0
        %1692 = vmatpush1.msra.mxu0 0.0
        %1693 = vmatprep.subr.mxu0 0.0
        %1694 = vmatpush1.msra.mxu0 0.0
        %1695 = vmatprep.subr.mxu0 0.0
        %1696 = vmatpush1.msra.mxu0 0.0
        %1697 = vmatprep.subr.mxu0 0.0
        %1698 = vmatpush1.msra.mxu0 0.0
        %1699 = vmatprep.subr.mxu0 0.0
        %1700 = vmatpush1.msra.mxu0 0.0
        %1701 = vmatprep.subr.mxu0 0.0
        %1702 = vmatpush1.msra.mxu0 0.0
        %1703 = vmatprep.subr.mxu0 0.0
        %1704 = vmatpush1.msra.mxu0 0.0
        %1705 = vmatprep.subr.mxu0 0.0
        %1706 = vmatpush1.msra.mxu0 0.0
        %1707 = vmatprep.subr.mxu0 0.0
        %1708 = vmatpush1.msra.mxu0 0.0
        %1709 = vmatprep.subr.mxu0 0.0
        %1710 = vmatpush1.msra.mxu0 0.0
        %1711 = vmatprep.mubr.f32.mxu0 0.0
        %1712 = vmatmul.mubr.f32.gmra.mrb[0].mxu0 %v1630
        %v1713 = vpop.f32.mrb[0].mxu0
        %v1714 = vadd.f32 0.0, %v1713
        %v1715 = vpop.f32.mrb[0].mxu0
        %1716 = vdwg.mxu0
        %v1717 = vadd.f32 %v1629, %v1714
        %v1718 = vld [vmem:[%s220 + $0x14] sm:$0xff]
        %v1719 = vld [vmem:[#allocation3 + $0x880] sm:$0xff]
        %v1720 = vld [vmem:[#allocation3 + $0x888] sm:$0xff]
        %v1721 = vld [vmem:[#allocation3 + $0x890] sm:$0xff]
        %v1722 = vld [vmem:[#allocation3 + $0x898] sm:$0xff]
        %v1723 = vld [vmem:[#allocation3 + $0x8a0] sm:$0xff]
        %v1724 = vld [vmem:[#allocation3 + $0x8a8] sm:$0xff]
        %v1725 = vld [vmem:[#allocation3 + $0x8b0] sm:$0xff]
        %v1726 = vld [vmem:[#allocation3 + $0x8b8] sm:$0xff]
        %v1727 = vld [vmem:[#allocation3 + $0x8c0] sm:$0xff]
        %v1728 = vld [vmem:[#allocation3 + $0x8c8] sm:$0xff]
        %v1729 = vld [vmem:[#allocation3 + $0x8d0] sm:$0xff]
        %v1730 = vld [vmem:[#allocation3 + $0x8d8] sm:$0xff]
        %v1731 = vld [vmem:[#allocation3 + $0x8e0] sm:$0xff]
        %v1732 = vld [vmem:[#allocation3 + $0x8e8] sm:$0xff]
        %v1733 = vld [vmem:[#allocation3 + $0x8f0] sm:$0xff]
        %v1734 = vld [vmem:[#allocation3 + $0x8f8] sm:$0xff]
        %1735 = vmatprep.subr.mxu0 0.0
        %1736 = vmatpush1.msra.mxu0 %v1719
        %1737 = vmatprep.subr.mxu0 0.0
        %1738 = vmatpush1.msra.mxu0 %v1720
        %1739 = vmatprep.subr.mxu0 0.0
        %1740 = vmatpush1.msra.mxu0 %v1721
        %1741 = vmatprep.subr.mxu0 0.0
        %1742 = vmatpush1.msra.mxu0 %v1722
        %1743 = vmatprep.subr.mxu0 0.0
        %1744 = vmatpush1.msra.mxu0 %v1723
        %1745 = vmatprep.subr.mxu0 0.0
        %1746 = vmatpush1.msra.mxu0 %v1724
        %1747 = vmatprep.subr.mxu0 0.0
        %1748 = vmatpush1.msra.mxu0 %v1725
        %1749 = vmatprep.subr.mxu0 0.0
        %1750 = vmatpush1.msra.mxu0 %v1726
        %1751 = vmatprep.subr.mxu0 0.0
        %1752 = vmatpush1.msra.mxu0 %v1727
        %1753 = vmatprep.subr.mxu0 0.0
        %1754 = vmatpush1.msra.mxu0 %v1728
        %1755 = vmatprep.subr.mxu0 0.0
        %1756 = vmatpush1.msra.mxu0 %v1729
        %1757 = vmatprep.subr.mxu0 0.0
        %1758 = vmatpush1.msra.mxu0 %v1730
        %1759 = vmatprep.subr.mxu0 0.0
        %1760 = vmatpush1.msra.mxu0 %v1731
        %1761 = vmatprep.subr.mxu0 0.0
        %1762 = vmatpush1.msra.mxu0 %v1732
        %1763 = vmatprep.subr.mxu0 0.0
        %1764 = vmatpush1.msra.mxu0 %v1733
        %1765 = vmatprep.subr.mxu0 0.0
        %1766 = vmatpush1.msra.mxu0 %v1734
        %1767 = vmatprep.subr.mxu0 0.0
        %1768 = vmatpush1.msra.mxu0 0.0
        %1769 = vmatprep.subr.mxu0 0.0
        %1770 = vmatpush1.msra.mxu0 0.0
        %1771 = vmatprep.subr.mxu0 0.0
        %1772 = vmatpush1.msra.mxu0 0.0
        %1773 = vmatprep.subr.mxu0 0.0
        %1774 = vmatpush1.msra.mxu0 0.0
        %1775 = vmatprep.subr.mxu0 0.0
        %1776 = vmatpush1.msra.mxu0 0.0
        %1777 = vmatprep.subr.mxu0 0.0
        %1778 = vmatpush1.msra.mxu0 0.0
        %1779 = vmatprep.subr.mxu0 0.0
        %1780 = vmatpush1.msra.mxu0 0.0
        %1781 = vmatprep.subr.mxu0 0.0
        %1782 = vmatpush1.msra.mxu0 0.0
        %1783 = vmatprep.subr.mxu0 0.0
        %1784 = vmatpush1.msra.mxu0 0.0
        %1785 = vmatprep.subr.mxu0 0.0
        %1786 = vmatpush1.msra.mxu0 0.0
        %1787 = vmatprep.subr.mxu0 0.0
        %1788 = vmatpush1.msra.mxu0 0.0
        %1789 = vmatprep.subr.mxu0 0.0
        %1790 = vmatpush1.msra.mxu0 0.0
        %1791 = vmatprep.subr.mxu0 0.0
        %1792 = vmatpush1.msra.mxu0 0.0
        %1793 = vmatprep.subr.mxu0 0.0
        %1794 = vmatpush1.msra.mxu0 0.0
        %1795 = vmatprep.subr.mxu0 0.0
        %1796 = vmatpush1.msra.mxu0 0.0
        %1797 = vmatprep.subr.mxu0 0.0
        %1798 = vmatpush1.msra.mxu0 0.0
        %1799 = vmatprep.mubr.f32.mxu0 0.0
        %1800 = vmatmul.mubr.f32.gmra.mrb[0].mxu0 %v1718
        %v1801 = vpop.f32.mrb[0].mxu0
        %v1802 = vadd.f32 0.0, %v1801
        %v1803 = vpop.f32.mrb[0].mxu0
        %1804 = vdwg.mxu0
        %v1805 = vadd.f32 %v1717, %v1802
        %v1806 = vld [vmem:[%s220 + $0x15] sm:$0xff]
        %v1807 = vld [vmem:[#allocation3 + $0x900] sm:$0xff]
        %v1808 = vld [vmem:[#allocation3 + $0x908] sm:$0xff]
        %v1809 = vld [vmem:[#allocation3 + $0x910] sm:$0xff]
        %v1810 = vld [vmem:[#allocation3 + $0x918] sm:$0xff]
        %v1811 = vld [vmem:[#allocation3 + $0x920] sm:$0xff]
        %v1812 = vld [vmem:[#allocation3 + $0x928] sm:$0xff]
        %v1813 = vld [vmem:[#allocation3 + $0x930] sm:$0xff]
        %v1814 = vld [vmem:[#allocation3 + $0x938] sm:$0xff]
        %v1815 = vld [vmem:[#allocation3 + $0x940] sm:$0xff]
        %v1816 = vld [vmem:[#allocation3 + $0x948] sm:$0xff]
        %v1817 = vld [vmem:[#allocation3 + $0x950] sm:$0xff]
        %v1818 = vld [vmem:[#allocation3 + $0x958] sm:$0xff]
        %v1819 = vld [vmem:[#allocation3 + $0x960] sm:$0xff]
        %v1820 = vld [vmem:[#allocation3 + $0x968] sm:$0xff]
        %v1821 = vld [vmem:[#allocation3 + $0x970] sm:$0xff]
        %v1822 = vld [vmem:[#allocation3 + $0x978] sm:$0xff]
        %1823 = vmatprep.subr.mxu0 0.0
        %1824 = vmatpush1.msra.mxu0 %v1807
        %1825 = vmatprep.subr.mxu0 0.0
        %1826 = vmatpush1.msra.mxu0 %v1808
        %1827 = vmatprep.subr.mxu0 0.0
        %1828 = vmatpush1.msra.mxu0 %v1809
        %1829 = vmatprep.subr.mxu0 0.0
        %1830 = vmatpush1.msra.mxu0 %v1810
        %1831 = vmatprep.subr.mxu0 0.0
        %1832 = vmatpush1.msra.mxu0 %v1811
        %1833 = vmatprep.subr.mxu0 0.0
        %1834 = vmatpush1.msra.mxu0 %v1812
        %1835 = vmatprep.subr.mxu0 0.0
        %1836 = vmatpush1.msra.mxu0 %v1813
        %1837 = vmatprep.subr.mxu0 0.0
        %1838 = vmatpush1.msra.mxu0 %v1814
        %1839 = vmatprep.subr.mxu0 0.0
        %1840 = vmatpush1.msra.mxu0 %v1815
        %1841 = vmatprep.subr.mxu0 0.0
        %1842 = vmatpush1.msra.mxu0 %v1816
        %1843 = vmatprep.subr.mxu0 0.0
        %1844 = vmatpush1.msra.mxu0 %v1817
        %1845 = vmatprep.subr.mxu0 0.0
        %1846 = vmatpush1.msra.mxu0 %v1818
        %1847 = vmatprep.subr.mxu0 0.0
        %1848 = vmatpush1.msra.mxu0 %v1819
        %1849 = vmatprep.subr.mxu0 0.0
        %1850 = vmatpush1.msra.mxu0 %v1820
        %1851 = vmatprep.subr.mxu0 0.0
        %1852 = vmatpush1.msra.mxu0 %v1821
        %1853 = vmatprep.subr.mxu0 0.0
        %1854 = vmatpush1.msra.mxu0 %v1822
        %1855 = vmatprep.subr.mxu0 0.0
        %1856 = vmatpush1.msra.mxu0 0.0
        %1857 = vmatprep.subr.mxu0 0.0
        %1858 = vmatpush1.msra.mxu0 0.0
        %1859 = vmatprep.subr.mxu0 0.0
        %1860 = vmatpush1.msra.mxu0 0.0
        %1861 = vmatprep.subr.mxu0 0.0
        %1862 = vmatpush1.msra.mxu0 0.0
        %1863 = vmatprep.subr.mxu0 0.0
        %1864 = vmatpush1.msra.mxu0 0.0
        %1865 = vmatprep.subr.mxu0 0.0
        %1866 = vmatpush1.msra.mxu0 0.0
        %1867 = vmatprep.subr.mxu0 0.0
        %1868 = vmatpush1.msra.mxu0 0.0
        %1869 = vmatprep.subr.mxu0 0.0
        %1870 = vmatpush1.msra.mxu0 0.0
        %1871 = vmatprep.subr.mxu0 0.0
        %1872 = vmatpush1.msra.mxu0 0.0
        %1873 = vmatprep.subr.mxu0 0.0
        %1874 = vmatpush1.msra.mxu0 0.0
        %1875 = vmatprep.subr.mxu0 0.0
        %1876 = vmatpush1.msra.mxu0 0.0
        %1877 = vmatprep.subr.mxu0 0.0
        %1878 = vmatpush1.msra.mxu0 0.0
        %1879 = vmatprep.subr.mxu0 0.0
        %1880 = vmatpush1.msra.mxu0 0.0
        %1881 = vmatprep.subr.mxu0 0.0
        %1882 = vmatpush1.msra.mxu0 0.0
        %1883 = vmatprep.subr.mxu0 0.0
        %1884 = vmatpush1.msra.mxu0 0.0
        %1885 = vmatprep.subr.mxu0 0.0
        %1886 = vmatpush1.msra.mxu0 0.0
        %1887 = vmatprep.mubr.f32.mxu0 0.0
        %1888 = vmatmul.mubr.f32.gmra.mrb[0].mxu0 %v1806
        %v1889 = vpop.f32.mrb[0].mxu0
        %v1890 = vadd.f32 0.0, %v1889
        %v1891 = vpop.f32.mrb[0].mxu0
        %1892 = vdwg.mxu0
        %v1893 = vadd.f32 %v1805, %v1890
        %v1894 = vld [vmem:[%s220 + $0x16] sm:$0xff]
        %v1895 = vld [vmem:[#allocation3 + $0x980] sm:$0xff]
        %v1896 = vld [vmem:[#allocation3 + $0x988] sm:$0xff]
        %v1897 = vld [vmem:[#allocation3 + $0x990] sm:$0xff]
        %v1898 = vld [vmem:[#allocation3 + $0x998] sm:$0xff]
        %v1899 = vld [vmem:[#allocation3 + $0x9a0] sm:$0xff]
        %v1900 = vld [vmem:[#allocation3 + $0x9a8] sm:$0xff]
        %v1901 = vld [vmem:[#allocation3 + $0x9b0] sm:$0xff]
        %v1902 = vld [vmem:[#allocation3 + $0x9b8] sm:$0xff]
        %v1903 = vld [vmem:[#allocation3 + $0x9c0] sm:$0xff]
        %v1904 = vld [vmem:[#allocation3 + $0x9c8] sm:$0xff]
        %v1905 = vld [vmem:[#allocation3 + $0x9d0] sm:$0xff]
        %v1906 = vld [vmem:[#allocation3 + $0x9d8] sm:$0xff]
        %v1907 = vld [vmem:[#allocation3 + $0x9e0] sm:$0xff]
        %v1908 = vld [vmem:[#allocation3 + $0x9e8] sm:$0xff]
        %v1909 = vld [vmem:[#allocation3 + $0x9f0] sm:$0xff]
        %v1910 = vld [vmem:[#allocation3 + $0x9f8] sm:$0xff]
        %1911 = vmatprep.subr.mxu0 0.0
        %1912 = vmatpush1.msra.mxu0 %v1895
        %1913 = vmatprep.subr.mxu0 0.0
        %1914 = vmatpush1.msra.mxu0 %v1896
        %1915 = vmatprep.subr.mxu0 0.0
        %1916 = vmatpush1.msra.mxu0 %v1897
        %1917 = vmatprep.subr.mxu0 0.0
        %1918 = vmatpush1.msra.mxu0 %v1898
        %1919 = vmatprep.subr.mxu0 0.0
        %1920 = vmatpush1.msra.mxu0 %v1899
        %1921 = vmatprep.subr.mxu0 0.0
        %1922 = vmatpush1.msra.mxu0 %v1900
        %1923 = vmatprep.subr.mxu0 0.0
        %1924 = vmatpush1.msra.mxu0 %v1901
        %1925 = vmatprep.subr.mxu0 0.0
        %1926 = vmatpush1.msra.mxu0 %v1902
        %1927 = vmatprep.subr.mxu0 0.0
        %1928 = vmatpush1.msra.mxu0 %v1903
        %1929 = vmatprep.subr.mxu0 0.0
        %1930 = vmatpush1.msra.mxu0 %v1904
        %1931 = vmatprep.subr.mxu0 0.0
        %1932 = vmatpush1.msra.mxu0 %v1905
        %1933 = vmatprep.subr.mxu0 0.0
        %1934 = vmatpush1.msra.mxu0 %v1906
        %1935 = vmatprep.subr.mxu0 0.0
        %1936 = vmatpush1.msra.mxu0 %v1907
        %1937 = vmatprep.subr.mxu0 0.0
        %1938 = vmatpush1.msra.mxu0 %v1908
        %1939 = vmatprep.subr.mxu0 0.0
        %1940 = vmatpush1.msra.mxu0 %v1909
        %1941 = vmatprep.subr.mxu0 0.0
        %1942 = vmatpush1.msra.mxu0 %v1910
        %1943 = vmatprep.subr.mxu0 0.0
        %1944 = vmatpush1.msra.mxu0 0.0
        %1945 = vmatprep.subr.mxu0 0.0
        %1946 = vmatpush1.msra.mxu0 0.0
        %1947 = vmatprep.subr.mxu0 0.0
        %1948 = vmatpush1.msra.mxu0 0.0
        %1949 = vmatprep.subr.mxu0 0.0
        %1950 = vmatpush1.msra.mxu0 0.0
        %1951 = vmatprep.subr.mxu0 0.0
        %1952 = vmatpush1.msra.mxu0 0.0
        %1953 = vmatprep.subr.mxu0 0.0
        %1954 = vmatpush1.msra.mxu0 0.0
        %1955 = vmatprep.subr.mxu0 0.0
        %1956 = vmatpush1.msra.mxu0 0.0
        %1957 = vmatprep.subr.mxu0 0.0
        %1958 = vmatpush1.msra.mxu0 0.0
        %1959 = vmatprep.subr.mxu0 0.0
        %1960 = vmatpush1.msra.mxu0 0.0
        %1961 = vmatprep.subr.mxu0 0.0
        %1962 = vmatpush1.msra.mxu0 0.0
        %1963 = vmatprep.subr.mxu0 0.0
        %1964 = vmatpush1.msra.mxu0 0.0
        %1965 = vmatprep.subr.mxu0 0.0
        %1966 = vmatpush1.msra.mxu0 0.0
        %1967 = vmatprep.subr.mxu0 0.0
        %1968 = vmatpush1.msra.mxu0 0.0
        %1969 = vmatprep.subr.mxu0 0.0
        %1970 = vmatpush1.msra.mxu0 0.0
        %1971 = vmatprep.subr.mxu0 0.0
        %1972 = vmatpush1.msra.mxu0 0.0
        %1973 = vmatprep.subr.mxu0 0.0
        %1974 = vmatpush1.msra.mxu0 0.0
        %1975 = vmatprep.mubr.f32.mxu0 0.0
        %1976 = vmatmul.mubr.f32.gmra.mrb[0].mxu0 %v1894
        %v1977 = vpop.f32.mrb[0].mxu0
        %v1978 = vadd.f32 0.0, %v1977
        %v1979 = vpop.f32.mrb[0].mxu0
        %1980 = vdwg.mxu0
        %v1981 = vadd.f32 %v1893, %v1978
        %v1982 = vld [vmem:[%s220 + $0x18] sm:$0xff]
        %v1983 = vld [vmem:[#allocation3 + $0xa00] sm:$0xff]
        %v1984 = vld [vmem:[#allocation3 + $0xa08] sm:$0xff]
        %v1985 = vld [vmem:[#allocation3 + $0xa10] sm:$0xff]
        %v1986 = vld [vmem:[#allocation3 + $0xa18] sm:$0xff]
        %v1987 = vld [vmem:[#allocation3 + $0xa20] sm:$0xff]
        %v1988 = vld [vmem:[#allocation3 + $0xa28] sm:$0xff]
        %v1989 = vld [vmem:[#allocation3 + $0xa30] sm:$0xff]
        %v1990 = vld [vmem:[#allocation3 + $0xa38] sm:$0xff]
        %v1991 = vld [vmem:[#allocation3 + $0xa40] sm:$0xff]
        %v1992 = vld [vmem:[#allocation3 + $0xa48] sm:$0xff]
        %v1993 = vld [vmem:[#allocation3 + $0xa50] sm:$0xff]
        %v1994 = vld [vmem:[#allocation3 + $0xa58] sm:$0xff]
        %v1995 = vld [vmem:[#allocation3 + $0xa60] sm:$0xff]
        %v1996 = vld [vmem:[#allocation3 + $0xa68] sm:$0xff]
        %v1997 = vld [vmem:[#allocation3 + $0xa70] sm:$0xff]
        %v1998 = vld [vmem:[#allocation3 + $0xa78] sm:$0xff]
        %1999 = vmatprep.subr.mxu0 0.0
        %2000 = vmatpush1.msra.mxu0 %v1983
        %2001 = vmatprep.subr.mxu0 0.0
        %2002 = vmatpush1.msra.mxu0 %v1984
        %2003 = vmatprep.subr.mxu0 0.0
        %2004 = vmatpush1.msra.mxu0 %v1985
        %2005 = vmatprep.subr.mxu0 0.0
        %2006 = vmatpush1.msra.mxu0 %v1986
        %2007 = vmatprep.subr.mxu0 0.0
        %2008 = vmatpush1.msra.mxu0 %v1987
        %2009 = vmatprep.subr.mxu0 0.0
        %2010 = vmatpush1.msra.mxu0 %v1988
        %2011 = vmatprep.subr.mxu0 0.0
        %2012 = vmatpush1.msra.mxu0 %v1989
        %2013 = vmatprep.subr.mxu0 0.0
        %2014 = vmatpush1.msra.mxu0 %v1990
        %2015 = vmatprep.subr.mxu0 0.0
        %2016 = vmatpush1.msra.mxu0 %v1991
        %2017 = vmatprep.subr.mxu0 0.0
        %2018 = vmatpush1.msra.mxu0 %v1992
        %2019 = vmatprep.subr.mxu0 0.0
        %2020 = vmatpush1.msra.mxu0 %v1993
        %2021 = vmatprep.subr.mxu0 0.0
        %2022 = vmatpush1.msra.mxu0 %v1994
        %2023 = vmatprep.subr.mxu0 0.0
        %2024 = vmatpush1.msra.mxu0 %v1995
        %2025 = vmatprep.subr.mxu0 0.0
        %2026 = vmatpush1.msra.mxu0 %v1996
        %2027 = vmatprep.subr.mxu0 0.0
        %2028 = vmatpush1.msra.mxu0 %v1997
        %2029 = vmatprep.subr.mxu0 0.0
        %2030 = vmatpush1.msra.mxu0 %v1998
        %2031 = vmatprep.subr.mxu0 0.0
        %2032 = vmatpush1.msra.mxu0 0.0
        %2033 = vmatprep.subr.mxu0 0.0
        %2034 = vmatpush1.msra.mxu0 0.0
        %2035 = vmatprep.subr.mxu0 0.0
        %2036 = vmatpush1.msra.mxu0 0.0
        %2037 = vmatprep.subr.mxu0 0.0
        %2038 = vmatpush1.msra.mxu0 0.0
        %2039 = vmatprep.subr.mxu0 0.0
        %2040 = vmatpush1.msra.mxu0 0.0
        %2041 = vmatprep.subr.mxu0 0.0
        %2042 = vmatpush1.msra.mxu0 0.0
        %2043 = vmatprep.subr.mxu0 0.0
        %2044 = vmatpush1.msra.mxu0 0.0
        %2045 = vmatprep.subr.mxu0 0.0
        %2046 = vmatpush1.msra.mxu0 0.0
        %2047 = vmatprep.subr.mxu0 0.0
        %2048 = vmatpush1.msra.mxu0 0.0
        %2049 = vmatprep.subr.mxu0 0.0
        %2050 = vmatpush1.msra.mxu0 0.0
        %2051 = vmatprep.subr.mxu0 0.0
        %2052 = vmatpush1.msra.mxu0 0.0
        %2053 = vmatprep.subr.mxu0 0.0
        %2054 = vmatpush1.msra.mxu0 0.0
        %2055 = vmatprep.subr.mxu0 0.0
        %2056 = vmatpush1.msra.mxu0 0.0
        %2057 = vmatprep.subr.mxu0 0.0
        %2058 = vmatpush1.msra.mxu0 0.0
        %2059 = vmatprep.subr.mxu0 0.0
        %2060 = vmatpush1.msra.mxu0 0.0
        %2061 = vmatprep.subr.mxu0 0.0
        %2062 = vmatpush1.msra.mxu0 0.0
        %2063 = vmatprep.mubr.f32.mxu0 0.0
        %2064 = vmatmul.mubr.f32.gmra.mrb[0].mxu0 %v1982
        %v2065 = vpop.f32.mrb[0].mxu0
        %v2066 = vadd.f32 0.0, %v2065
        %v2067 = vpop.f32.mrb[0].mxu0
        %2068 = vdwg.mxu0
        %v2069 = vadd.f32 %v1981, %v2066
        %v2070 = vld [vmem:[%s220 + $0x19] sm:$0xff]
        %v2071 = vld [vmem:[#allocation3 + $0xa80] sm:$0xff]
        %v2072 = vld [vmem:[#allocation3 + $0xa88] sm:$0xff]
        %v2073 = vld [vmem:[#allocation3 + $0xa90] sm:$0xff]
        %v2074 = vld [vmem:[#allocation3 + $0xa98] sm:$0xff]
        %v2075 = vld [vmem:[#allocation3 + $0xaa0] sm:$0xff]
        %v2076 = vld [vmem:[#allocation3 + $0xaa8] sm:$0xff]
        %v2077 = vld [vmem:[#allocation3 + $0xab0] sm:$0xff]
        %v2078 = vld [vmem:[#allocation3 + $0xab8] sm:$0xff]
        %v2079 = vld [vmem:[#allocation3 + $0xac0] sm:$0xff]
        %v2080 = vld [vmem:[#allocation3 + $0xac8] sm:$0xff]
        %v2081 = vld [vmem:[#allocation3 + $0xad0] sm:$0xff]
        %v2082 = vld [vmem:[#allocation3 + $0xad8] sm:$0xff]
        %v2083 = vld [vmem:[#allocation3 + $0xae0] sm:$0xff]
        %v2084 = vld [vmem:[#allocation3 + $0xae8] sm:$0xff]
        %v2085 = vld [vmem:[#allocation3 + $0xaf0] sm:$0xff]
        %v2086 = vld [vmem:[#allocation3 + $0xaf8] sm:$0xff]
        %2087 = vmatprep.subr.mxu0 0.0
        %2088 = vmatpush1.msra.mxu0 %v2071
        %2089 = vmatprep.subr.mxu0 0.0
        %2090 = vmatpush1.msra.mxu0 %v2072
        %2091 = vmatprep.subr.mxu0 0.0
        %2092 = vmatpush1.msra.mxu0 %v2073
        %2093 = vmatprep.subr.mxu0 0.0
        %2094 = vmatpush1.msra.mxu0 %v2074
        %2095 = vmatprep.subr.mxu0 0.0
        %2096 = vmatpush1.msra.mxu0 %v2075
        %2097 = vmatprep.subr.mxu0 0.0
        %2098 = vmatpush1.msra.mxu0 %v2076
        %2099 = vmatprep.subr.mxu0 0.0
        %2100 = vmatpush1.msra.mxu0 %v2077
        %2101 = vmatprep.subr.mxu0 0.0
        %2102 = vmatpush1.msra.mxu0 %v2078
        %2103 = vmatprep.subr.mxu0 0.0
        %2104 = vmatpush1.msra.mxu0 %v2079
        %2105 = vmatprep.subr.mxu0 0.0
        %2106 = vmatpush1.msra.mxu0 %v2080
        %2107 = vmatprep.subr.mxu0 0.0
        %2108 = vmatpush1.msra.mxu0 %v2081
        %2109 = vmatprep.subr.mxu0 0.0
        %2110 = vmatpush1.msra.mxu0 %v2082
        %2111 = vmatprep.subr.mxu0 0.0
        %2112 = vmatpush1.msra.mxu0 %v2083
        %2113 = vmatprep.subr.mxu0 0.0
        %2114 = vmatpush1.msra.mxu0 %v2084
        %2115 = vmatprep.subr.mxu0 0.0
        %2116 = vmatpush1.msra.mxu0 %v2085
        %2117 = vmatprep.subr.mxu0 0.0
        %2118 = vmatpush1.msra.mxu0 %v2086
        %2119 = vmatprep.subr.mxu0 0.0
        %2120 = vmatpush1.msra.mxu0 0.0
        %2121 = vmatprep.subr.mxu0 0.0
        %2122 = vmatpush1.msra.mxu0 0.0
        %2123 = vmatprep.subr.mxu0 0.0
        %2124 = vmatpush1.msra.mxu0 0.0
        %2125 = vmatprep.subr.mxu0 0.0
        %2126 = vmatpush1.msra.mxu0 0.0
        %2127 = vmatprep.subr.mxu0 0.0
        %2128 = vmatpush1.msra.mxu0 0.0
        %2129 = vmatprep.subr.mxu0 0.0
        %2130 = vmatpush1.msra.mxu0 0.0
        %2131 = vmatprep.subr.mxu0 0.0
        %2132 = vmatpush1.msra.mxu0 0.0
        %2133 = vmatprep.subr.mxu0 0.0
        %2134 = vmatpush1.msra.mxu0 0.0
        %2135 = vmatprep.subr.mxu0 0.0
        %2136 = vmatpush1.msra.mxu0 0.0
        %2137 = vmatprep.subr.mxu0 0.0
        %2138 = vmatpush1.msra.mxu0 0.0
        %2139 = vmatprep.subr.mxu0 0.0
        %2140 = vmatpush1.msra.mxu0 0.0
        %2141 = vmatprep.subr.mxu0 0.0
        %2142 = vmatpush1.msra.mxu0 0.0
        %2143 = vmatprep.subr.mxu0 0.0
        %2144 = vmatpush1.msra.mxu0 0.0
        %2145 = vmatprep.subr.mxu0 0.0
        %2146 = vmatpush1.msra.mxu0 0.0
        %2147 = vmatprep.subr.mxu0 0.0
        %2148 = vmatpush1.msra.mxu0 0.0
        %2149 = vmatprep.subr.mxu0 0.0
        %2150 = vmatpush1.msra.mxu0 0.0
        %2151 = vmatprep.mubr.f32.mxu0 0.0
        %2152 = vmatmul.mubr.f32.gmra.mrb[0].mxu0 %v2070
        %v2153 = vpop.f32.mrb[0].mxu0
        %v2154 = vadd.f32 0.0, %v2153
        %v2155 = vpop.f32.mrb[0].mxu0
        %2156 = vdwg.mxu0
        %v2157 = vadd.f32 %v2069, %v2154
        %v2158 = vld [vmem:[%s220 + $0x1a] sm:$0xff]
        %v2159 = vld [vmem:[#allocation3 + $0xb00] sm:$0xff]
        %v2160 = vld [vmem:[#allocation3 + $0xb08] sm:$0xff]
        %v2161 = vld [vmem:[#allocation3 + $0xb10] sm:$0xff]
        %v2162 = vld [vmem:[#allocation3 + $0xb18] sm:$0xff]
        %v2163 = vld [vmem:[#allocation3 + $0xb20] sm:$0xff]
        %v2164 = vld [vmem:[#allocation3 + $0xb28] sm:$0xff]
        %v2165 = vld [vmem:[#allocation3 + $0xb30] sm:$0xff]
        %v2166 = vld [vmem:[#allocation3 + $0xb38] sm:$0xff]
        %v2167 = vld [vmem:[#allocation3 + $0xb40] sm:$0xff]
        %v2168 = vld [vmem:[#allocation3 + $0xb48] sm:$0xff]
        %v2169 = vld [vmem:[#allocation3 + $0xb50] sm:$0xff]
        %v2170 = vld [vmem:[#allocation3 + $0xb58] sm:$0xff]
        %v2171 = vld [vmem:[#allocation3 + $0xb60] sm:$0xff]
        %v2172 = vld [vmem:[#allocation3 + $0xb68] sm:$0xff]
        %v2173 = vld [vmem:[#allocation3 + $0xb70] sm:$0xff]
        %v2174 = vld [vmem:[#allocation3 + $0xb78] sm:$0xff]
        %2175 = vmatprep.subr.mxu0 0.0
        %2176 = vmatpush1.msra.mxu0 %v2159
        %2177 = vmatprep.subr.mxu0 0.0
        %2178 = vmatpush1.msra.mxu0 %v2160
        %2179 = vmatprep.subr.mxu0 0.0
        %2180 = vmatpush1.msra.mxu0 %v2161
        %2181 = vmatprep.subr.mxu0 0.0
        %2182 = vmatpush1.msra.mxu0 %v2162
        %2183 = vmatprep.subr.mxu0 0.0
        %2184 = vmatpush1.msra.mxu0 %v2163
        %2185 = vmatprep.subr.mxu0 0.0
        %2186 = vmatpush1.msra.mxu0 %v2164
        %2187 = vmatprep.subr.mxu0 0.0
        %2188 = vmatpush1.msra.mxu0 %v2165
        %2189 = vmatprep.subr.mxu0 0.0
        %2190 = vmatpush1.msra.mxu0 %v2166
        %2191 = vmatprep.subr.mxu0 0.0
        %2192 = vmatpush1.msra.mxu0 %v2167
        %2193 = vmatprep.subr.mxu0 0.0
        %2194 = vmatpush1.msra.mxu0 %v2168
        %2195 = vmatprep.subr.mxu0 0.0
        %2196 = vmatpush1.msra.mxu0 %v2169
        %2197 = vmatprep.subr.mxu0 0.0
        %2198 = vmatpush1.msra.mxu0 %v2170
        %2199 = vmatprep.subr.mxu0 0.0
        %2200 = vmatpush1.msra.mxu0 %v2171
        %2201 = vmatprep.subr.mxu0 0.0
        %2202 = vmatpush1.msra.mxu0 %v2172
        %2203 = vmatprep.subr.mxu0 0.0
        %2204 = vmatpush1.msra.mxu0 %v2173
        %2205 = vmatprep.subr.mxu0 0.0
        %2206 = vmatpush1.msra.mxu0 %v2174
        %2207 = vmatprep.subr.mxu0 0.0
        %2208 = vmatpush1.msra.mxu0 0.0
        %2209 = vmatprep.subr.mxu0 0.0
        %2210 = vmatpush1.msra.mxu0 0.0
        %2211 = vmatprep.subr.mxu0 0.0
        %2212 = vmatpush1.msra.mxu0 0.0
        %2213 = vmatprep.subr.mxu0 0.0
        %2214 = vmatpush1.msra.mxu0 0.0
        %2215 = vmatprep.subr.mxu0 0.0
        %2216 = vmatpush1.msra.mxu0 0.0
        %2217 = vmatprep.subr.mxu0 0.0
        %2218 = vmatpush1.msra.mxu0 0.0
        %2219 = vmatprep.subr.mxu0 0.0
        %2220 = vmatpush1.msra.mxu0 0.0
        %2221 = vmatprep.subr.mxu0 0.0
        %2222 = vmatpush1.msra.mxu0 0.0
        %2223 = vmatprep.subr.mxu0 0.0
        %2224 = vmatpush1.msra.mxu0 0.0
        %2225 = vmatprep.subr.mxu0 0.0
        %2226 = vmatpush1.msra.mxu0 0.0
        %2227 = vmatprep.subr.mxu0 0.0
        %2228 = vmatpush1.msra.mxu0 0.0
        %2229 = vmatprep.subr.mxu0 0.0
        %2230 = vmatpush1.msra.mxu0 0.0
        %2231 = vmatprep.subr.mxu0 0.0
        %2232 = vmatpush1.msra.mxu0 0.0
        %2233 = vmatprep.subr.mxu0 0.0
        %2234 = vmatpush1.msra.mxu0 0.0
        %2235 = vmatprep.subr.mxu0 0.0
        %2236 = vmatpush1.msra.mxu0 0.0
        %2237 = vmatprep.subr.mxu0 0.0
        %2238 = vmatpush1.msra.mxu0 0.0
        %2239 = vmatprep.mubr.f32.mxu0 0.0
        %2240 = vmatmul.mubr.f32.gmra.mrb[0].mxu0 %v2158
        %v2241 = vpop.f32.mrb[0].mxu0
        %v2242 = vadd.f32 0.0, %v2241
        %v2243 = vpop.f32.mrb[0].mxu0
        %2244 = vdwg.mxu0
        %v2245 = vadd.f32 %v2157, %v2242
        %v2246 = vld [vmem:[%s220 + $0x1b] sm:$0xff]
        %v2247 = vld [vmem:[#allocation3 + $0xb80] sm:$0xff]
        %v2248 = vld [vmem:[#allocation3 + $0xb88] sm:$0xff]
        %v2249 = vld [vmem:[#allocation3 + $0xb90] sm:$0xff]
        %v2250 = vld [vmem:[#allocation3 + $0xb98] sm:$0xff]
        %v2251 = vld [vmem:[#allocation3 + $0xba0] sm:$0xff]
        %v2252 = vld [vmem:[#allocation3 + $0xba8] sm:$0xff]
        %v2253 = vld [vmem:[#allocation3 + $0xbb0] sm:$0xff]
        %v2254 = vld [vmem:[#allocation3 + $0xbb8] sm:$0xff]
        %v2255 = vld [vmem:[#allocation3 + $0xbc0] sm:$0xff]
        %v2256 = vld [vmem:[#allocation3 + $0xbc8] sm:$0xff]
        %v2257 = vld [vmem:[#allocation3 + $0xbd0] sm:$0xff]
        %v2258 = vld [vmem:[#allocation3 + $0xbd8] sm:$0xff]
        %v2259 = vld [vmem:[#allocation3 + $0xbe0] sm:$0xff]
        %v2260 = vld [vmem:[#allocation3 + $0xbe8] sm:$0xff]
        %v2261 = vld [vmem:[#allocation3 + $0xbf0] sm:$0xff]
        %v2262 = vld [vmem:[#allocation3 + $0xbf8] sm:$0xff]
        %2263 = vmatprep.subr.mxu0 0.0
        %2264 = vmatpush1.msra.mxu0 %v2247
        %2265 = vmatprep.subr.mxu0 0.0
        %2266 = vmatpush1.msra.mxu0 %v2248
        %2267 = vmatprep.subr.mxu0 0.0
        %2268 = vmatpush1.msra.mxu0 %v2249
        %2269 = vmatprep.subr.mxu0 0.0
        %2270 = vmatpush1.msra.mxu0 %v2250
        %2271 = vmatprep.subr.mxu0 0.0
        %2272 = vmatpush1.msra.mxu0 %v2251
        %2273 = vmatprep.subr.mxu0 0.0
        %2274 = vmatpush1.msra.mxu0 %v2252
        %2275 = vmatprep.subr.mxu0 0.0
        %2276 = vmatpush1.msra.mxu0 %v2253
        %2277 = vmatprep.subr.mxu0 0.0
        %2278 = vmatpush1.msra.mxu0 %v2254
        %2279 = vmatprep.subr.mxu0 0.0
        %2280 = vmatpush1.msra.mxu0 %v2255
        %2281 = vmatprep.subr.mxu0 0.0
        %2282 = vmatpush1.msra.mxu0 %v2256
        %2283 = vmatprep.subr.mxu0 0.0
        %2284 = vmatpush1.msra.mxu0 %v2257
        %2285 = vmatprep.subr.mxu0 0.0
        %2286 = vmatpush1.msra.mxu0 %v2258
        %2287 = vmatprep.subr.mxu0 0.0
        %2288 = vmatpush1.msra.mxu0 %v2259
        %2289 = vmatprep.subr.mxu0 0.0
        %2290 = vmatpush1.msra.mxu0 %v2260
        %2291 = vmatprep.subr.mxu0 0.0
        %2292 = vmatpush1.msra.mxu0 %v2261
        %2293 = vmatprep.subr.mxu0 0.0
        %2294 = vmatpush1.msra.mxu0 %v2262
        %2295 = vmatprep.subr.mxu0 0.0
        %2296 = vmatpush1.msra.mxu0 0.0
        %2297 = vmatprep.subr.mxu0 0.0
        %2298 = vmatpush1.msra.mxu0 0.0
        %2299 = vmatprep.subr.mxu0 0.0
        %2300 = vmatpush1.msra.mxu0 0.0
        %2301 = vmatprep.subr.mxu0 0.0
        %2302 = vmatpush1.msra.mxu0 0.0
        %2303 = vmatprep.subr.mxu0 0.0
        %2304 = vmatpush1.msra.mxu0 0.0
        %2305 = vmatprep.subr.mxu0 0.0
        %2306 = vmatpush1.msra.mxu0 0.0
        %2307 = vmatprep.subr.mxu0 0.0
        %2308 = vmatpush1.msra.mxu0 0.0
        %2309 = vmatprep.subr.mxu0 0.0
        %2310 = vmatpush1.msra.mxu0 0.0
        %2311 = vmatprep.subr.mxu0 0.0
        %2312 = vmatpush1.msra.mxu0 0.0
        %2313 = vmatprep.subr.mxu0 0.0
        %2314 = vmatpush1.msra.mxu0 0.0
        %2315 = vmatprep.subr.mxu0 0.0
        %2316 = vmatpush1.msra.mxu0 0.0
        %2317 = vmatprep.subr.mxu0 0.0
        %2318 = vmatpush1.msra.mxu0 0.0
        %2319 = vmatprep.subr.mxu0 0.0
        %2320 = vmatpush1.msra.mxu0 0.0
        %2321 = vmatprep.subr.mxu0 0.0
        %2322 = vmatpush1.msra.mxu0 0.0
        %2323 = vmatprep.subr.mxu0 0.0
        %2324 = vmatpush1.msra.mxu0 0.0
        %2325 = vmatprep.subr.mxu0 0.0
        %2326 = vmatpush1.msra.mxu0 0.0
        %2327 = vmatprep.mubr.f32.mxu0 0.0
        %2328 = vmatmul.mubr.f32.gmra.mrb[0].mxu0 %v2246
        %v2329 = vpop.f32.mrb[0].mxu0
        %v2330 = vadd.f32 0.0, %v2329
        %v2331 = vpop.f32.mrb[0].mxu0
        %2332 = vdwg.mxu0
        %v2333 = vadd.f32 %v2245, %v2330
        %v2334 = vld [vmem:[%s220 + $0x1c] sm:$0xff]
        %v2335 = vld [vmem:[#allocation3 + $0xc00] sm:$0xff]
        %v2336 = vld [vmem:[#allocation3 + $0xc08] sm:$0xff]
        %v2337 = vld [vmem:[#allocation3 + $0xc10] sm:$0xff]
        %v2338 = vld [vmem:[#allocation3 + $0xc18] sm:$0xff]
        %v2339 = vld [vmem:[#allocation3 + $0xc20] sm:$0xff]
        %v2340 = vld [vmem:[#allocation3 + $0xc28] sm:$0xff]
        %v2341 = vld [vmem:[#allocation3 + $0xc30] sm:$0xff]
        %v2342 = vld [vmem:[#allocation3 + $0xc38] sm:$0xff]
        %v2343 = vld [vmem:[#allocation3 + $0xc40] sm:$0xff]
        %v2344 = vld [vmem:[#allocation3 + $0xc48] sm:$0xff]
        %v2345 = vld [vmem:[#allocation3 + $0xc50] sm:$0xff]
        %v2346 = vld [vmem:[#allocation3 + $0xc58] sm:$0xff]
        %v2347 = vld [vmem:[#allocation3 + $0xc60] sm:$0xff]
        %v2348 = vld [vmem:[#allocation3 + $0xc68] sm:$0xff]
        %v2349 = vld [vmem:[#allocation3 + $0xc70] sm:$0xff]
        %v2350 = vld [vmem:[#allocation3 + $0xc78] sm:$0xff]
        %2351 = vmatprep.subr.mxu0 0.0
        %2352 = vmatpush1.msra.mxu0 %v2335
        %2353 = vmatprep.subr.mxu0 0.0
        %2354 = vmatpush1.msra.mxu0 %v2336
        %2355 = vmatprep.subr.mxu0 0.0
        %2356 = vmatpush1.msra.mxu0 %v2337
        %2357 = vmatprep.subr.mxu0 0.0
        %2358 = vmatpush1.msra.mxu0 %v2338
        %2359 = vmatprep.subr.mxu0 0.0
        %2360 = vmatpush1.msra.mxu0 %v2339
        %2361 = vmatprep.subr.mxu0 0.0
        %2362 = vmatpush1.msra.mxu0 %v2340
        %2363 = vmatprep.subr.mxu0 0.0
        %2364 = vmatpush1.msra.mxu0 %v2341
        %2365 = vmatprep.subr.mxu0 0.0
        %2366 = vmatpush1.msra.mxu0 %v2342
        %2367 = vmatprep.subr.mxu0 0.0
        %2368 = vmatpush1.msra.mxu0 %v2343
        %2369 = vmatprep.subr.mxu0 0.0
        %2370 = vmatpush1.msra.mxu0 %v2344
        %2371 = vmatprep.subr.mxu0 0.0
        %2372 = vmatpush1.msra.mxu0 %v2345
        %2373 = vmatprep.subr.mxu0 0.0
        %2374 = vmatpush1.msra.mxu0 %v2346
        %2375 = vmatprep.subr.mxu0 0.0
        %2376 = vmatpush1.msra.mxu0 %v2347
        %2377 = vmatprep.subr.mxu0 0.0
        %2378 = vmatpush1.msra.mxu0 %v2348
        %2379 = vmatprep.subr.mxu0 0.0
        %2380 = vmatpush1.msra.mxu0 %v2349
        %2381 = vmatprep.subr.mxu0 0.0
        %2382 = vmatpush1.msra.mxu0 %v2350
        %2383 = vmatprep.subr.mxu0 0.0
        %2384 = vmatpush1.msra.mxu0 0.0
        %2385 = vmatprep.subr.mxu0 0.0
        %2386 = vmatpush1.msra.mxu0 0.0
        %2387 = vmatprep.subr.mxu0 0.0
        %2388 = vmatpush1.msra.mxu0 0.0
        %2389 = vmatprep.subr.mxu0 0.0
        %2390 = vmatpush1.msra.mxu0 0.0
        %2391 = vmatprep.subr.mxu0 0.0
        %2392 = vmatpush1.msra.mxu0 0.0
        %2393 = vmatprep.subr.mxu0 0.0
        %2394 = vmatpush1.msra.mxu0 0.0
        %2395 = vmatprep.subr.mxu0 0.0
        %2396 = vmatpush1.msra.mxu0 0.0
        %2397 = vmatprep.subr.mxu0 0.0
        %2398 = vmatpush1.msra.mxu0 0.0
        %2399 = vmatprep.subr.mxu0 0.0
        %2400 = vmatpush1.msra.mxu0 0.0
        %2401 = vmatprep.subr.mxu0 0.0
        %2402 = vmatpush1.msra.mxu0 0.0
        %2403 = vmatprep.subr.mxu0 0.0
        %2404 = vmatpush1.msra.mxu0 0.0
        %2405 = vmatprep.subr.mxu0 0.0
        %2406 = vmatpush1.msra.mxu0 0.0
        %2407 = vmatprep.subr.mxu0 0.0
        %2408 = vmatpush1.msra.mxu0 0.0
        %2409 = vmatprep.subr.mxu0 0.0
        %2410 = vmatpush1.msra.mxu0 0.0
        %2411 = vmatprep.subr.mxu0 0.0
        %2412 = vmatpush1.msra.mxu0 0.0
        %2413 = vmatprep.subr.mxu0 0.0
        %2414 = vmatpush1.msra.mxu0 0.0
        %2415 = vmatprep.mubr.f32.mxu0 0.0
        %2416 = vmatmul.mubr.f32.gmra.mrb[0].mxu0 %v2334
        %v2417 = vpop.f32.mrb[0].mxu0
        %v2418 = vadd.f32 0.0, %v2417
        %v2419 = vpop.f32.mrb[0].mxu0
        %2420 = vdwg.mxu0
        %v2421 = vadd.f32 %v2333, %v2418
        %v2422 = vld [vmem:[#allocation5] sm:$0x1]
        %v2424 = vlaneseq
        %v2425 = vshrl.u32 %v2424, 7
        %v2426 = vsub.s32 0, %v2425
        %v2427 = vrot.slane %v2422, %v2426
        %v2429 = vadd.f32 %v2421, %v2427
        %v2430 = vmax.f32 %v2429, 0.0
        %v2432 = vrot.slane %v2430, 1
        %v2434 = vmax.f32 %v2430, %v2432
        %v2436 = vrot.slane %v2434, 6
        %v2438 = vmax.f32 %v2434, %v2436
        %v2439 = vld [vmem:[#allocation2] sm:$0x1]
        %vm2440 = vcmask 7168
        %v2442 = vsel %vm2440, %v2439, 0
        %vm2444 = vcmask 1040384
        %v2446 = vsel %vm2444, %v2438, 0
        %2448 = vmatprep.subr.mxu0 0.0
        %2449 = vmatpush1.msra.mxu0 %v2446
        %2450 = vmatprep.subr.mxu0 0.0
        %2451 = vmatpush1.msra.mxu0 0.0
        %2452 = vmatprep.subr.mxu0 0.0
        %2453 = vmatpush1.msra.mxu0 0.0
        %2454 = vmatprep.subr.mxu0 0.0
        %2455 = vmatpush1.msra.mxu0 0.0
        %2456 = vmatprep.subr.mxu0 0.0
        %2457 = vmatpush1.msra.mxu0 0.0
        %2458 = vmatprep.subr.mxu0 0.0
        %2459 = vmatpush1.msra.mxu0 0.0
        %2460 = vmatprep.subr.mxu0 0.0
        %2461 = vmatpush1.msra.mxu0 0.0
        %2462 = vmatprep.subr.mxu0 0.0
        %2463 = vmatpush1.msra.mxu0 0.0
        %2464 = vmatprep.subr.mxu0 0.0
        %2465 = vmatpush1.msra.mxu0 0.0
        %2466 = vmatprep.subr.mxu0 0.0
        %2467 = vmatpush1.msra.mxu0 0.0
        %2468 = vmatprep.subr.mxu0 0.0
        %2469 = vmatpush1.msra.mxu0 0.0
        %2470 = vmatprep.subr.mxu0 0.0
        %2471 = vmatpush1.msra.mxu0 0.0
        %2472 = vmatprep.subr.mxu0 0.0
        %2473 = vmatpush1.msra.mxu0 0.0
        %2474 = vmatprep.subr.mxu0 0.0
        %2475 = vmatpush1.msra.mxu0 0.0
        %2476 = vmatprep.subr.mxu0 0.0
        %2477 = vmatpush1.msra.mxu0 0.0
        %2478 = vmatprep.subr.mxu0 0.0
        %2479 = vmatpush1.msra.mxu0 0.0
        %2480 = vmatprep.subr.mxu0 0.0
        %2481 = vmatpush1.msra.mxu0 0.0
        %2482 = vmatprep.subr.mxu0 0.0
        %2483 = vmatpush1.msra.mxu0 0.0
        %2484 = vmatprep.subr.mxu0 0.0
        %2485 = vmatpush1.msra.mxu0 0.0
        %2486 = vmatprep.subr.mxu0 0.0
        %2487 = vmatpush1.msra.mxu0 0.0
        %2488 = vmatprep.subr.mxu0 0.0
        %2489 = vmatpush1.msra.mxu0 0.0
        %2490 = vmatprep.subr.mxu0 0.0
        %2491 = vmatpush1.msra.mxu0 0.0
        %2492 = vmatprep.subr.mxu0 0.0
        %2493 = vmatpush1.msra.mxu0 0.0
        %2494 = vmatprep.subr.mxu0 0.0
        %2495 = vmatpush1.msra.mxu0 0.0
        %2496 = vmatprep.subr.mxu0 0.0
        %2497 = vmatpush1.msra.mxu0 0.0
        %2498 = vmatprep.subr.mxu0 0.0
        %2499 = vmatpush1.msra.mxu0 0.0
        %2500 = vmatprep.subr.mxu0 0.0
        %2501 = vmatpush1.msra.mxu0 0.0
        %2502 = vmatprep.subr.mxu0 0.0
        %2503 = vmatpush1.msra.mxu0 0.0
        %2504 = vmatprep.subr.mxu0 0.0
        %2505 = vmatpush1.msra.mxu0 0.0
        %2506 = vmatprep.subr.mxu0 0.0
        %2507 = vmatpush1.msra.mxu0 0.0
        %2508 = vmatprep.subr.mxu0 0.0
        %2509 = vmatpush1.msra.mxu0 0.0
        %2510 = vmatprep.subr.mxu0 0.0
        %2511 = vmatpush1.msra.mxu0 0.0
        %2512 = vmatprep.mubr.f32.mxu0 0.0
        %2513 = vmatmul.mubr.f32.gmra.mrb[0].mxu0 %v2442
        %v2514 = vpop.f32.mrb[0].mxu0
        %v2515 = vadd.f32 0.0, %v2514
        %v2516 = vpop.f32.mrb[0].mxu0
        %2517 = vdwg.mxu0
        %2518 = vst [vmem:[%s223] sm:$0x1] %v2515
        %p2519 = scmp.lt.s32.totalorder %s19, 1
        %s2520 = scalar_select %p2519, %s19, 1
        %s2521 = scalar_lea.vmem %s4, %s2520
        // Predicated region
        $region45: #{cnn_forward.4} parent=35 // pred_check
          %p2522 = pneg %p126
        $region46: #{cnn_forward.4} parent=35 // pred_check_branch
          %2524 = sbr.rel (%p2522) target = $region48
        $region47: #{cnn_forward.4} parent=35 // pred_region
          _
        $region48: #{cnn_forward.4} parent=35 // pred_fallthru
          _
      $region36: #{cnn_forward.4} parent=5 // pred_fallthru
        _
      %p2525 = scmp.le.s32.totalorder 2, %s14
      // Predicated region
      $region49: #{cnn_forward.4} parent=5 // pred_check
        %p2526 = pneg %p2525
      $region50: #{cnn_forward.4} parent=5 // pred_check_branch
        %2528 = sbr.rel (%p2526) target = $region52
      $region51: #{cnn_forward.4} parent=5 // pred_region
        %s2529 = ssub.s32 %s14, 2
        // Predicated region
        $region53: #{cnn_forward.4} parent=51 // pred_check
          %p2530 = pneg %p132
        $region54: #{cnn_forward.4} parent=51 // pred_check_branch
          %2532 = sbr.rel (%p2530) target = $region56
        $region55: #{cnn_forward.4} parent=51 // pred_region
          %p2533 = scmp.lt.s32.totalorder %s20, 1
          %s2534 = scalar_select %p2533, %s20, 1
          %s2535 = scalar_lea.vmem %s4, %s2534
        $region56: #{cnn_forward.4} parent=51 // pred_fallthru
          _
      $region52: #{cnn_forward.4} parent=5 // pred_fallthru
        _
    $region6: #{cnn_forward.4} parent=1 // loop_footer
      %s18 = sadd.s32 1, %s14
    $region7: #{cnn_forward.4} parent=1 // loop_footer_branch
      %13 = sbr.rel target = $region3
    $region8: #{cnn_forward.4} parent=1 // loop_exit
      _
    %2536 = vsyncpa [#allocation4], 1
    %s2537 = scalar_lea.sflag [#allocation4], 1
    %2538 = vsyncpa %s2537, 1
    %2539 = vsyncpa [#allocation6], 1

// kernel: cnn_forward.3
$region0: #{cnn_forward.3}
  #allocation0 [shape = 'u32[]', space=smem, size = 0x4, offset = 0x4, fixed_abs, tag = 'smem constant byte address 0x4 - core index']
  #allocation1 [shape = 'u32[144,128]{1,0:T(1,128)}', space=vmem, size = 0x12000, scoped, tag = 'internal scratch']
  %s0 = inlined_call_operand.vmem [shape: f32[2,256,8], index: 0, kind: input, shape index: {}]
  %s1 = inlined_call_operand.hbm [shape: f32[200,128], index: 1, kind: input, shape index: {}]
  %s2 = inlined_call_operand.hbm [shape: f32[1,128], index: 2, kind: input, shape index: {}]
  %s3 = inlined_call_operand.hbm [shape: f32[36,171], index: 3, kind: input, shape index: {}]
  %s4 = inlined_call_operand.vmem [shape: f32[2,36,128], index: 4, kind: output, shape index: {}]
  %s5 = sld [smem:[#allocation0]]
  $region61: #{cnn_forward.3} parent=0
    _
  %s7 = ssub.s32 1, %s5
  %s8 = scalar_select 0, %s7, %s5
  $region1: #{cnn_forward.3} parent=0
    #allocation2 [shape = 'u8[102400]{0}', space=vmem, size = 0x19000, scoped, tag = 'input window, operand 1, single buffered']
    #allocation3 [shape = 's32[2]{0}', space=sflag, size = 0x8, scoped, tag = 'scoped memory for cnn_forward.3']
    #allocation4 [shape = 'u8[512]{0}', space=vmem, size = 0x400, scoped, tag = 'input window, operand 2, single buffered']
    #allocation5 [shape = 's32[1]{0}', space=sflag, size = 0x4, scoped, tag = 'scoped memory for cnn_forward.3']
    #allocation6 [shape = 'u8[40960]{0}', space=vmem, size = 0xa000, scoped, tag = 'input window, operand 3, single buffered']
    %9 = vsyncpa [#allocation3], 0
    %10 = vsyncpa [#allocation5], 0
    loop: start=0, step=1, limit=4
    $region2: #{cnn_forward.3} parent=1 // loop_pre_header
      _
    $region3: #{cnn_forward.3} parent=1 // loop_header
      %s12 = sphi 0, %s16
      %p13 = scmp.ge.s32.totalorder %s12, 4
      %s22 = sphi 0, %s24
      %s25 = sphi 0, %s22
      %s26 = sphi 0, %s25
      %s42 = sphi 0, %s26
      %s46 = sphi 0, %s46
      %s48 = sphi 0, %s46
      %s49 = sphi 0, %s48
      %s63 = sphi 0, %s49
      %s67 = sphi 0, %s67
      %s69 = sphi 0, %s67
      %s70 = sphi 0, %s69
      %s84 = sphi 0, %s70
      %s88 = sphi 0, %s88
      %s90 = sphi 0, %s88
      %s91 = sphi 0, %s90
      %s105 = sphi 0, %s91
      %s111 = sphi 0, %s113
      %s114 = sphi 0, %s111
      %s115 = sphi 0, %s114
      %s131 = sphi 0, %s115
    $region4: #{cnn_forward.3} parent=1 // loop_header_branch
      %15 = sbr.rel (%p13) target = $region8
    $region5: #{cnn_forward.3} parent=1 // loop_body
      %s17 = ssub.s32 %s12, 1
      %s18 = ssub.s32 %s12, 2
      %s19 = sadd.s32 %s12, 1
      %s20 = ssub.s32 %s12, %s19
      %p21 = scmp.eq.s32.totalorder %s20, 0
      %s23 = sadd.s32 %s22, 1
      %s24 = scalar_select %p21, %s22, %s23
      %p27 = pneg %p21
      %p28 = scmp.eq.s32.totalorder %s12, 1
      %p29 = por %p27, %p28
      %p30 = scmp.ne.s32.totalorder %s22, %s25
      %p31 = scmp.eq.s32.totalorder %s12, 0
      %p32 = por %p30, %p31
      %p33 = scmp.ne.s32.totalorder %s22, %s25
      %p34 = scmp.eq.s32.totalorder %s17, 1
      %p35 = por %p33, %p34
      %p36 = scmp.ne.s32.totalorder %s25, %s26
      %p37 = scmp.eq.s32.totalorder %s17, 0
      %p38 = por %p36, %p37
      %p39 = scmp.ne.s32.totalorder %s25, %s26
      %p40 = scmp.eq.s32.totalorder %s18, 1
      %p41 = por %p39, %p40
      %p43 = scmp.ne.s32.totalorder %s26, %s42
      %p44 = scmp.eq.s32.totalorder %s18, 0
      %p45 = por %p43, %p44
      %s47 = sadd.s32 %s46, 1
      %p50 = scmp.eq.s32.totalorder %s12, 1
      %p51 = scmp.ne.s32.totalorder %s46, %s48
      %p52 = scmp.eq.s32.totalorder %s12, 0
      %p53 = por %p51, %p52
      %p54 = scmp.ne.s32.totalorder %s46, %s48
      %p55 = scmp.eq.s32.totalorder %s17, 1
      %p56 = por %p54, %p55
      %p57 = scmp.ne.s32.totalorder %s48, %s49
      %p58 = scmp.eq.s32.totalorder %s17, 0
      %p59 = por %p57, %p58
      %p60 = scmp.ne.s32.totalorder %s48, %s49
      %p61 = scmp.eq.s32.totalorder %s18, 1
      %p62 = por %p60, %p61
      %p64 = scmp.ne.s32.totalorder %s49, %s63
      %p65 = scmp.eq.s32.totalorder %s18, 0
      %p66 = por %p64, %p65
      %s68 = sadd.s32 %s67, 1
      %p71 = scmp.eq.s32.totalorder %s12, 1
      %p72 = scmp.ne.s32.totalorder %s67, %s69
      %p73 = scmp.eq.s32.totalorder %s12, 0
      %p74 = por %p72, %p73
      %p75 = scmp.ne.s32.totalorder %s67, %s69
      %p76 = scmp.eq.s32.totalorder %s17, 1
      %p77 = por %p75, %p76
      %p78 = scmp.ne.s32.totalorder %s69, %s70
      %p79 = scmp.eq.s32.totalorder %s17, 0
      %p80 = por %p78, %p79
      %p81 = scmp.ne.s32.totalorder %s69, %s70
      %p82 = scmp.eq.s32.totalorder %s18, 1
      %p83 = por %p81, %p82
      %p85 = scmp.ne.s32.totalorder %s70, %s84
      %p86 = scmp.eq.s32.totalorder %s18, 0
      %p87 = por %p85, %p86
      %s89 = sadd.s32 %s88, 1
      %p92 = scmp.eq.s32.totalorder %s12, 1
      %p93 = scmp.ne.s32.totalorder %s88, %s90
      %p94 = scmp.eq.s32.totalorder %s12, 0
      %p95 = por %p93, %p94
      %p96 = scmp.ne.s32.totalorder %s88, %s90
      %p97 = scmp.eq.s32.totalorder %s17, 1
      %p98 = por %p96, %p97
      %p99 = scmp.ne.s32.totalorder %s90, %s91
      %p100 = scmp.eq.s32.totalorder %s17, 0
      %p101 = por %p99, %p100
      %p102 = scmp.ne.s32.totalorder %s90, %s91
      %p103 = scmp.eq.s32.totalorder %s18, 1
      %p104 = por %p102, %p103
      %p106 = scmp.ne.s32.totalorder %s91, %s105
      %p107 = scmp.eq.s32.totalorder %s18, 0
      %p108 = por %p106, %p107
      %s109 = ssub.s32 %s12, %s19
      %p110 = scmp.eq.s32.totalorder %s109, 0
      %s112 = sadd.s32 %s111, 1
      %s113 = scalar_select %p110, %s111, %s112
      %p116 = pneg %p110
      %p117 = scmp.eq.s32.totalorder %s12, 1
      %p118 = por %p116, %p117
      %p119 = scmp.ne.s32.totalorder %s111, %s114
      %p120 = scmp.eq.s32.totalorder %s12, 0
      %p121 = por %p119, %p120
      %p122 = scmp.ne.s32.totalorder %s111, %s114
      %p123 = scmp.eq.s32.totalorder %s17, 1
      %p124 = por %p122, %p123
      %p125 = scmp.ne.s32.totalorder %s114, %s115
      %p126 = scmp.eq.s32.totalorder %s17, 0
      %p127 = por %p125, %p126
      %p128 = scmp.ne.s32.totalorder %s114, %s115
      %p129 = scmp.eq.s32.totalorder %s18, 1
      %p130 = por %p128, %p129
      %p132 = scmp.ne.s32.totalorder %s115, %s131
      %p133 = scmp.eq.s32.totalorder %s18, 0
      %p134 = por %p132, %p133
      %p135 = scmp.le.s32.totalorder 1, %s12
      %p136 = scmp.lt.s32.totalorder %s12, 3
      %p137 = pnand %p135, %p136
      %p138 = pneg %p137
      // Predicated region
      $region9: #{cnn_forward.3} parent=5 // pred_check
        _
      $region10: #{cnn_forward.3} parent=5 // pred_check_branch
        %140 = sbr.rel (%p137) target = $region12
      $region11: #{cnn_forward.3} parent=5 // pred_region
        %s141 = ssub.s32 %s12, 1
        // Predicated region
        $region13: #{cnn_forward.3} parent=11 // pred_check
          %p142 = pneg %p59
        $region14: #{cnn_forward.3} parent=11 // pred_check_branch
          %144 = sbr.rel (%p142) target = $region16
        $region15: #{cnn_forward.3} parent=11 // pred_region
          %s146 = ssub.s32 3200, 3200
          %147 = vsyncadd [#allocation3], %s146
          %s148 = sshll.u32 [#allocation2], 4
          %s149 = int_to_ptr.vmem [resolvable:$true] %s148
          %154 = dma.hbm_to_vmem [thread:$0]  %s1, 3200, %s149, [#allocation3], 128, 128, 8
        $region16: #{cnn_forward.3} parent=11 // pred_fallthru
          _
        // Predicated region
        $region17: #{cnn_forward.3} parent=11 // pred_check
          %p155 = pneg %p80
        $region18: #{cnn_forward.3} parent=11 // pred_check_branch
          %157 = sbr.rel (%p155) target = $region20
        $region19: #{cnn_forward.3} parent=11 // pred_region
          %s159 = ssub.s32 16, 16
          %160 = vsyncadd [#allocation5], %s159
          %s162 = sshll.u32 [#allocation4], 4
          %s163 = int_to_ptr.vmem [resolvable:$true] %s162
          %165 = dma.hbm_to_vmem [thread:$0]  %s2, 16, %s163, [#allocation5]
        $region20: #{cnn_forward.3} parent=11 // pred_fallthru
          _
        // Predicated region
        $region21: #{cnn_forward.3} parent=11 // pred_check
          %p166 = pneg %p101
        $region22: #{cnn_forward.3} parent=11 // pred_check_branch
          %168 = sbr.rel (%p166) target = $region24
        $region23: #{cnn_forward.3} parent=11 // pred_region
          %s170 = ssub.s32 1280, 1280
          %171 = vsyncadd [#allocation5], %s170
          %s172 = sshll.u32 [#allocation6], 4
          %s173 = int_to_ptr.vmem [resolvable:$true] %s172
          %178 = dma.hbm_to_vmem [thread:$0]  %s3, 1280, %s173, [#allocation5], 256, 256, 16
        $region24: #{cnn_forward.3} parent=11 // pred_fallthru
          _
      $region12: #{cnn_forward.3} parent=5 // pred_fallthru
        _
      %p179 = scmp.lt.s32.totalorder %s12, 2
      // Predicated region
      $region25: #{cnn_forward.3} parent=5 // pred_check
        %p180 = pneg %p179
      $region26: #{cnn_forward.3} parent=5 // pred_check_branch
        %182 = sbr.rel (%p180) target = $region28
      $region27: #{cnn_forward.3} parent=5 // pred_region
        // Predicated region
        $region29: #{cnn_forward.3} parent=27 // pred_check
          %p183 = pneg %p32
        $region30: #{cnn_forward.3} parent=27 // pred_check_branch
          %185 = sbr.rel (%p183) target = $region32
        $region31: #{cnn_forward.3} parent=27 // pred_region
          %p186 = scmp.lt.s32.totalorder %s12, 1
          %s187 = scalar_select %p186, %s12, 1
          %s188 = smul.addr %s187, 32
          %s189 = smul.addr %s188, 8
          %s190 = scalar_lea.vmem %s0, %s189
        $region32: #{cnn_forward.3} parent=27 // pred_fallthru
          _
      $region28: #{cnn_forward.3} parent=5 // pred_fallthru
        _
      %p191 = scmp.le.s32.totalorder 1, %s12
      %p192 = scmp.lt.s32.totalorder %s12, 3
      %p193 = pnand %p191, %p192
      %p194 = pneg %p193
      // Predicated region
      $region33: #{cnn_forward.3} parent=5 // pred_check
        _
      $region34: #{cnn_forward.3} parent=5 // pred_check_branch
        %196 = sbr.rel (%p193) target = $region36
      $region35: #{cnn_forward.3} parent=5 // pred_region
        %s197 = ssub.s32 %s12, 1
        // Predicated region
        $region37: #{cnn_forward.3} parent=35 // pred_check
          %p198 = pneg %p59
        $region38: #{cnn_forward.3} parent=35 // pred_check_branch
          %200 = sbr.rel (%p198) target = $region40
        $region39: #{cnn_forward.3} parent=35 // pred_region
          %201 = dma.done [#allocation3], 3200
        $region40: #{cnn_forward.3} parent=35 // pred_fallthru
          _
        // Predicated region
        $region41: #{cnn_forward.3} parent=35 // pred_check
          %p202 = pneg %p80
        $region42: #{cnn_forward.3} parent=35 // pred_check_branch
          %204 = sbr.rel (%p202) target = $region44
        $region43: #{cnn_forward.3} parent=35 // pred_region
          %205 = dma.done [#allocation5], 16
        $region44: #{cnn_forward.3} parent=35 // pred_fallthru
          _
        // Predicated region
        $region45: #{cnn_forward.3} parent=35 // pred_check
          %p206 = pneg %p101
        $region46: #{cnn_forward.3} parent=35 // pred_check_branch
          %208 = sbr.rel (%p206) target = $region48
        $region47: #{cnn_forward.3} parent=35 // pred_region
          %209 = dma.done [#allocation5], 1280
        $region48: #{cnn_forward.3} parent=35 // pred_fallthru
          _
        %p210 = scmp.lt.s32.totalorder %s17, 1
        %s211 = scalar_select %p210, %s17, 1
        %s212 = smul.addr %s211, 32
        %s213 = smul.addr %s212, 8
        %s214 = scalar_lea.vmem %s0, %s213
        %p215 = pneg %p38
        %p216 = pneg %p35
        %p217 = pneg %p59
        %p218 = pneg %p56
        %p219 = pneg %p80
        %p220 = pneg %p77
        %p221 = pneg %p101
        %p222 = pneg %p98
        %p223 = pneg %p127
        %p224 = pneg %p124
        %p225 = scmp.lt.s32.totalorder %s17, 1
        %s226 = scalar_select %p225, %s17, 1
        %s227 = smul.addr %s226, 5
        %s228 = smul.addr %s227, 8
        %s229 = scalar_lea.vmem %s4, %s228
        %p230 = scmp.lt.s32.totalorder %s17, 1
        %s231 = scalar_select %p230, %s17, 1
        %s232 = smul.addr %s231, 32
        %s233 = smul.addr %s232, 8
        %s234 = scalar_lea.vmem %s0, %s233
        %p235 = scmp.lt.s32.totalorder %s17, 1
        %s236 = scalar_select %p235, %s17, 1
        %s237 = smul.addr %s236, 5
        %s238 = smul.addr %s237, 8
        %s239 = scalar_lea.vmem %s4, %s238
        %v240 = vld [vmem:[%s234] sm:$0xff]
        %v241 = vld [vmem:[%s234 + $0x8] sm:$0xff]
        %v242 = vld [vmem:[%s234 + $0x10] sm:$0xff]
        %v243 = vld [vmem:[%s234 + $0x18] sm:$0xff]
        %v244 = vld [vmem:[%s234 + $0x20] sm:$0xff]
        %v245 = vld [vmem:[%s234 + $0x28] sm:$0xff]
        %v246 = vld [vmem:[%s234 + $0x30] sm:$0xff]
        %v247 = vld [vmem:[%s234 + $0x38] sm:$0xff]
        %v248 = vld [vmem:[%s234 + $0x40] sm:$0xff]
        %v249 = vld [vmem:[%s234 + $0x48] sm:$0xff]
        %v250 = vld [vmem:[%s234 + $0x50] sm:$0xff]
        %v251 = vld [vmem:[%s234 + $0x58] sm:$0xff]
        %v252 = vld [vmem:[%s234 + $0x60] sm:$0xff]
        %v253 = vld [vmem:[%s234 + $0x68] sm:$0xff]
        %v254 = vld [vmem:[%s234 + $0x70] sm:$0xff]
        %v255 = vld [vmem:[%s234 + $0x78] sm:$0xff]
        %v256 = vld [vmem:[%s234 + $0x80] sm:$0xff]
        %v257 = vld [vmem:[%s234 + $0x88] sm:$0xff]
        %v258 = vld [vmem:[%s234 + $0x90] sm:$0xff]
        %v259 = vld [vmem:[%s234 + $0x98] sm:$0xff]
        %v260 = vld [vmem:[%s234 + $0xa0] sm:$0xff]
        %v261 = vld [vmem:[%s234 + $0xa8] sm:$0xff]
        %v262 = vld [vmem:[%s234 + $0xb0] sm:$0xff]
        %v263 = vld [vmem:[%s234 + $0xb8] sm:$0xf]
        %v264 = vld [vmem:[#allocation2] sm:$0xff]
        %v265 = vld [vmem:[%s234 + $0x1] sm:$0xff]
        %v266 = vld [vmem:[%s234 + $0x9] sm:$0xff]
        %v267 = vld [vmem:[%s234 + $0x11] sm:$0xff]
        %v268 = vld [vmem:[%s234 + $0x19] sm:$0xff]
        %v269 = vld [vmem:[%s234 + $0x21] sm:$0xff]
        %v270 = vld [vmem:[%s234 + $0x29] sm:$0xff]
        %v271 = vld [vmem:[%s234 + $0x31] sm:$0xff]
        %v272 = vld [vmem:[%s234 + $0x39] sm:$0xff]
        %v273 = vld [vmem:[%s234 + $0x41] sm:$0xff]
        %v274 = vld [vmem:[%s234 + $0x49] sm:$0xff]
        %v275 = vld [vmem:[%s234 + $0x51] sm:$0xff]
        %v276 = vld [vmem:[%s234 + $0x59] sm:$0xff]
        %v277 = vld [vmem:[%s234 + $0x61] sm:$0xff]
        %v278 = vld [vmem:[%s234 + $0x69] sm:$0xff]
        %v279 = vld [vmem:[%s234 + $0x71] sm:$0xff]
        %v280 = vld [vmem:[%s234 + $0x79] sm:$0xff]
        %v281 = vld [vmem:[%s234 + $0x81] sm:$0xff]
        %v282 = vld [vmem:[%s234 + $0x89] sm:$0xff]
        %v283 = vld [vmem:[%s234 + $0x91] sm:$0xff]
        %v284 = vld [vmem:[%s234 + $0x99] sm:$0xff]
        %v285 = vld [vmem:[%s234 + $0xa1] sm:$0xff]
        %v286 = vld [vmem:[%s234 + $0xa9] sm:$0xff]
        %v287 = vld [vmem:[%s234 + $0xb1] sm:$0xff]
        %v288 = vld [vmem:[%s234 + $0xb9] sm:$0xf]
        %v289 = vld [vmem:[#allocation2 + $0x8] sm:$0xff]
        %vm290 = vcmask 64512
        %v292 = vsel %vm290, %v265, 0
        %v295 = vsel %vm290, %v266, 0
        %v298 = vsel %vm290, %v267, 0
        %v301 = vsel %vm290, %v268, 0
        %v304 = vsel %vm290, %v269, 0
        %v307 = vsel %vm290, %v270, 0
        %v310 = vsel %vm290, %v271, 0
        %v313 = vsel %vm290, %v272, 0
        %v316 = vsel %vm290, %v273, 0
        %v319 = vsel %vm290, %v274, 0
        %v322 = vsel %vm290, %v275, 0
        %v325 = vsel %vm290, %v276, 0
        %v328 = vsel %vm290, %v277, 0
        %v331 = vsel %vm290, %v278, 0
        %v334 = vsel %vm290, %v279, 0
        %v337 = vsel %vm290, %v280, 0
        %v340 = vsel %vm290, %v281, 0
        %v343 = vsel %vm290, %v282, 0
        %v346 = vsel %vm290, %v283, 0
        %v349 = vsel %vm290, %v284, 0
        %v352 = vsel %vm290, %v285, 0
        %v355 = vsel %vm290, %v286, 0
        %v358 = vsel %vm290, %v287, 0
        %v361 = vsel %vm290, %v288, 0
        %363 = vmatprep.subr.mxu0 0.0
        %364 = vmatpush1.msra.mxu0 %v289
        %365 = vmatprep.subr.mxu0 0.0
        %366 = vmatpush1.msra.mxu0 0.0
        %367 = vmatprep.subr.mxu0 0.0
        %368 = vmatpush1.msra.mxu0 0.0
        %369 = vmatprep.subr.mxu0 0.0
        %370 = vmatpush1.msra.mxu0 0.0
        %371 = vmatprep.subr.mxu0 0.0
        %372 = vmatpush1.msra.mxu0 0.0
        %373 = vmatprep.subr.mxu0 0.0
        %374 = vmatpush1.msra.mxu0 0.0
        %375 = vmatprep.subr.mxu0 0.0
        %376 = vmatpush1.msra.mxu0 0.0
        %377 = vmatprep.subr.mxu0 0.0
        %378 = vmatpush1.msra.mxu0 0.0
        %379 = vmatprep.subr.mxu0 0.0
        %380 = vmatpush1.msra.mxu0 0.0
        %381 = vmatprep.subr.mxu0 0.0
        %382 = vmatpush1.msra.mxu0 0.0
        %383 = vmatprep.subr.mxu0 0.0
        %384 = vmatpush1.msra.mxu0 0.0
        %385 = vmatprep.subr.mxu0 0.0
        %386 = vmatpush1.msra.mxu0 0.0
        %387 = vmatprep.subr.mxu0 0.0
        %388 = vmatpush1.msra.mxu0 0.0
        %389 = vmatprep.subr.mxu0 0.0
        %390 = vmatpush1.msra.mxu0 0.0
        %391 = vmatprep.subr.mxu0 0.0
        %392 = vmatpush1.msra.mxu0 0.0
        %393 = vmatprep.subr.mxu0 0.0
        %394 = vmatpush1.msra.mxu0 0.0
        %395 = vmatprep.subr.mxu0 0.0
        %396 = vmatpush1.msra.mxu0 0.0
        %397 = vmatprep.subr.mxu0 0.0
        %398 = vmatpush1.msra.mxu0 0.0
        %399 = vmatprep.subr.mxu0 0.0
        %400 = vmatpush1.msra.mxu0 0.0
        %401 = vmatprep.subr.mxu0 0.0
        %402 = vmatpush1.msra.mxu0 0.0
        %403 = vmatprep.subr.mxu0 0.0
        %404 = vmatpush1.msra.mxu0 0.0
        %405 = vmatprep.subr.mxu0 0.0
        %406 = vmatpush1.msra.mxu0 0.0
        %407 = vmatprep.subr.mxu0 0.0
        %408 = vmatpush1.msra.mxu0 0.0
        %409 = vmatprep.subr.mxu0 0.0
        %410 = vmatpush1.msra.mxu0 0.0
        %411 = vmatprep.subr.mxu0 0.0
        %412 = vmatpush1.msra.mxu0 0.0
        %413 = vmatprep.subr.mxu0 0.0
        %414 = vmatpush1.msra.mxu0 0.0
        %415 = vmatprep.subr.mxu0 0.0
        %416 = vmatpush1.msra.mxu0 0.0
        %417 = vmatprep.subr.mxu0 0.0
        %418 = vmatpush1.msra.mxu0 0.0
        %419 = vmatprep.subr.mxu0 0.0
        %420 = vmatpush1.msra.mxu0 0.0
        %421 = vmatprep.subr.mxu0 0.0
        %422 = vmatpush1.msra.mxu0 0.0
        %423 = vmatprep.subr.mxu0 0.0
        %424 = vmatpush1.msra.mxu0 0.0
        %425 = vmatprep.subr.mxu0 0.0
        %426 = vmatpush1.msra.mxu0 0.0
        %427 = vmatprep.mubr.f32.mxu0 0.0
        %428 = vmatmul.mubr.f32.gmra.mrb[0].mxu0 %v292
        %v429 = vpop.f32.mrb[0].mxu0
        %v430 = vadd.f32 0.0, %v429
        %v431 = vpop.f32.mrb[0].mxu0
        %432 = vmatprep.mubr.f32.mxu0 0.0
        %433 = vmatmul.mubr.f32.gmra.mrb[0].mxu0 %v295
        %v434 = vpop.f32.mrb[0].mxu0
        %v435 = vadd.f32 0.0, %v434
        %v436 = vpop.f32.mrb[0].mxu0
        %437 = vmatprep.mubr.f32.mxu0 0.0
        %438 = vmatmul.mubr.f32.gmra.mrb[0].mxu0 %v298
        %v439 = vpop.f32.mrb[0].mxu0
        %v440 = vadd.f32 0.0, %v439
        %v441 = vpop.f32.mrb[0].mxu0
        %442 = vmatprep.mubr.f32.mxu0 0.0
        %443 = vmatmul.mubr.f32.gmra.mrb[0].mxu0 %v301
        %v444 = vpop.f32.mrb[0].mxu0
        %v445 = vadd.f32 0.0, %v444
        %v446 = vpop.f32.mrb[0].mxu0
        %447 = vmatprep.mubr.f32.mxu0 0.0
        %448 = vmatmul.mubr.f32.gmra.mrb[0].mxu0 %v304
        %v449 = vpop.f32.mrb[0].mxu0
        %v450 = vadd.f32 0.0, %v449
        %v451 = vpop.f32.mrb[0].mxu0
        %452 = vmatprep.mubr.f32.mxu0 0.0
        %453 = vmatmul.mubr.f32.gmra.mrb[0].mxu0 %v307
        %v454 = vpop.f32.mrb[0].mxu0
        %v455 = vadd.f32 0.0, %v454
        %v456 = vpop.f32.mrb[0].mxu0
        %457 = vmatprep.mubr.f32.mxu0 0.0
        %458 = vmatmul.mubr.f32.gmra.mrb[0].mxu0 %v310
        %v459 = vpop.f32.mrb[0].mxu0
        %v460 = vadd.f32 0.0, %v459
        %v461 = vpop.f32.mrb[0].mxu0
        %462 = vmatprep.mubr.f32.mxu0 0.0
        %463 = vmatmul.mubr.f32.gmra.mrb[0].mxu0 %v313
        %v464 = vpop.f32.mrb[0].mxu0
        %v465 = vadd.f32 0.0, %v464
        %v466 = vpop.f32.mrb[0].mxu0
        %467 = vmatprep.mubr.f32.mxu0 0.0
        %468 = vmatmul.mubr.f32.gmra.mrb[0].mxu0 %v316
        %v469 = vpop.f32.mrb[0].mxu0
        %v470 = vadd.f32 0.0, %v469
        %v471 = vpop.f32.mrb[0].mxu0
        %472 = vmatprep.mubr.f32.mxu0 0.0
        %473 = vmatmul.mubr.f32.gmra.mrb[0].mxu0 %v319
        %v474 = vpop.f32.mrb[0].mxu0
        %v475 = vadd.f32 0.0, %v474
        %v476 = vpop.f32.mrb[0].mxu0
        %477 = vmatprep.mubr.f32.mxu0 0.0
        %478 = vmatmul.mubr.f32.gmra.mrb[0].mxu0 %v322
        %v479 = vpop.f32.mrb[0].mxu0
        %v480 = vadd.f32 0.0, %v479
        %v481 = vpop.f32.mrb[0].mxu0
        %482 = vmatprep.mubr.f32.mxu0 0.0
        %483 = vmatmul.mubr.f32.gmra.mrb[0].mxu0 %v325
        %v484 = vpop.f32.mrb[0].mxu0
        %v485 = vadd.f32 0.0, %v484
        %v486 = vpop.f32.mrb[0].mxu0
        %487 = vmatprep.mubr.f32.mxu0 0.0
        %488 = vmatmul.mubr.f32.gmra.mrb[0].mxu0 %v328
        %v489 = vpop.f32.mrb[0].mxu0
        %v490 = vadd.f32 0.0, %v489
        %v491 = vpop.f32.mrb[0].mxu0
        %492 = vmatprep.mubr.f32.mxu0 0.0
        %493 = vmatmul.mubr.f32.gmra.mrb[0].mxu0 %v331
        %v494 = vpop.f32.mrb[0].mxu0
        %v495 = vadd.f32 0.0, %v494
        %v496 = vpop.f32.mrb[0].mxu0
        %497 = vmatprep.mubr.f32.mxu0 0.0
        %498 = vmatmul.mubr.f32.gmra.mrb[0].mxu0 %v334
        %v499 = vpop.f32.mrb[0].mxu0
        %v500 = vadd.f32 0.0, %v499
        %v501 = vpop.f32.mrb[0].mxu0
        %502 = vmatprep.mubr.f32.mxu0 0.0
        %503 = vmatmul.mubr.f32.gmra.mrb[0].mxu0 %v337
        %v504 = vpop.f32.mrb[0].mxu0
        %v505 = vadd.f32 0.0, %v504
        %v506 = vpop.f32.mrb[0].mxu0
        %507 = vmatprep.mubr.f32.mxu0 0.0
        %508 = vmatmul.mubr.f32.gmra.mrb[0].mxu0 %v340
        %v509 = vpop.f32.mrb[0].mxu0
        %v510 = vadd.f32 0.0, %v509
        %v511 = vpop.f32.mrb[0].mxu0
        %512 = vmatprep.mubr.f32.mxu0 0.0
        %513 = vmatmul.mubr.f32.gmra.mrb[0].mxu0 %v343
        %v514 = vpop.f32.mrb[0].mxu0
        %v515 = vadd.f32 0.0, %v514
        %v516 = vpop.f32.mrb[0].mxu0
        %517 = vmatprep.mubr.f32.mxu0 0.0
        %518 = vmatmul.mubr.f32.gmra.mrb[0].mxu0 %v346
        %v519 = vpop.f32.mrb[0].mxu0
        %v520 = vadd.f32 0.0, %v519
        %v521 = vpop.f32.mrb[0].mxu0
        %522 = vmatprep.mubr.f32.mxu0 0.0
        %523 = vmatmul.mubr.f32.gmra.mrb[0].mxu0 %v349
        %v524 = vpop.f32.mrb[0].mxu0
        %v525 = vadd.f32 0.0, %v524
        %v526 = vpop.f32.mrb[0].mxu0
        %527 = vmatprep.mubr.f32.mxu0 0.0
        %528 = vmatmul.mubr.f32.gmra.mrb[0].mxu0 %v352
        %v529 = vpop.f32.mrb[0].mxu0
        %v530 = vadd.f32 0.0, %v529
        %v531 = vpop.f32.mrb[0].mxu0
        %532 = vmatprep.mubr.f32.mxu0 0.0
        %533 = vmatmul.mubr.f32.gmra.mrb[0].mxu0 %v355
        %v534 = vpop.f32.mrb[0].mxu0
        %v535 = vadd.f32 0.0, %v534
        %v536 = vpop.f32.mrb[0].mxu0
        %537 = vmatprep.mubr.f32.mxu0 0.0
        %538 = vmatmul.mubr.f32.gmra.mrb[0].mxu0 %v358
        %v539 = vpop.f32.mrb[0].mxu0
        %v540 = vadd.f32 0.0, %v539
        %v541 = vpop.f32.mrb[0].mxu0
        %542 = vmatprep.mubr.f32.mxu0 0.0
        %543 = vmatmul.mubr.f32.gmra.mrb[0].mxu0 %v361
        %v544 = vpop.f32.mrb[0].mxu0
        %v545 = vadd.f32 0.0, %v544
        %v546 = vpop.f32.mrb[0].mxu0
        %547 = vdwg.mxu0
        %v549 = vsel %vm290, %v240, 0
        %v552 = vsel %vm290, %v241, 0
        %v555 = vsel %vm290, %v242, 0
        %v558 = vsel %vm290, %v243, 0
        %v561 = vsel %vm290, %v244, 0
        %v564 = vsel %vm290, %v245, 0
        %v567 = vsel %vm290, %v246, 0
        %v570 = vsel %vm290, %v247, 0
        %v573 = vsel %vm290, %v248, 0
        %v576 = vsel %vm290, %v249, 0
        %v579 = vsel %vm290, %v250, 0
        %v582 = vsel %vm290, %v251, 0
        %v585 = vsel %vm290, %v252, 0
        %v588 = vsel %vm290, %v253, 0
        %v591 = vsel %vm290, %v254, 0
        %v594 = vsel %vm290, %v255, 0
        %v597 = vsel %vm290, %v256, 0
        %v600 = vsel %vm290, %v257, 0
        %v603 = vsel %vm290, %v258, 0
        %v606 = vsel %vm290, %v259, 0
        %v609 = vsel %vm290, %v260, 0
        %v612 = vsel %vm290, %v261, 0
        %v615 = vsel %vm290, %v262, 0
        %v618 = vsel %vm290, %v263, 0
        %620 = vmatprep.subr.mxu0 0.0
        %621 = vmatpush1.msra.mxu0 %v264
        %622 = vmatprep.subr.mxu0 0.0
        %623 = vmatpush1.msra.mxu0 0.0
        %624 = vmatprep.subr.mxu0 0.0
        %625 = vmatpush1.msra.mxu0 0.0
        %626 = vmatprep.subr.mxu0 0.0
        %627 = vmatpush1.msra.mxu0 0.0
        %628 = vmatprep.subr.mxu0 0.0
        %629 = vmatpush1.msra.mxu0 0.0
        %630 = vmatprep.subr.mxu0 0.0
        %631 = vmatpush1.msra.mxu0 0.0
        %632 = vmatprep.subr.mxu0 0.0
        %633 = vmatpush1.msra.mxu0 0.0
        %634 = vmatprep.subr.mxu0 0.0
        %635 = vmatpush1.msra.mxu0 0.0
        %636 = vmatprep.subr.mxu0 0.0
        %637 = vmatpush1.msra.mxu0 0.0
        %638 = vmatprep.subr.mxu0 0.0
        %639 = vmatpush1.msra.mxu0 0.0
        %640 = vmatprep.subr.mxu0 0.0
        %641 = vmatpush1.msra.mxu0 0.0
        %642 = vmatprep.subr.mxu0 0.0
        %643 = vmatpush1.msra.mxu0 0.0
        %644 = vmatprep.subr.mxu0 0.0
        %645 = vmatpush1.msra.mxu0 0.0
        %646 = vmatprep.subr.mxu0 0.0
        %647 = vmatpush1.msra.mxu0 0.0
        %648 = vmatprep.subr.mxu0 0.0
        %649 = vmatpush1.msra.mxu0 0.0
        %650 = vmatprep.subr.mxu0 0.0
        %651 = vmatpush1.msra.mxu0 0.0
        %652 = vmatprep.subr.mxu0 0.0
        %653 = vmatpush1.msra.mxu0 0.0
        %654 = vmatprep.subr.mxu0 0.0
        %655 = vmatpush1.msra.mxu0 0.0
        %656 = vmatprep.subr.mxu0 0.0
        %657 = vmatpush1.msra.mxu0 0.0
        %658 = vmatprep.subr.mxu0 0.0
        %659 = vmatpush1.msra.mxu0 0.0
        %660 = vmatprep.subr.mxu0 0.0
        %661 = vmatpush1.msra.mxu0 0.0
        %662 = vmatprep.subr.mxu0 0.0
        %663 = vmatpush1.msra.mxu0 0.0
        %664 = vmatprep.subr.mxu0 0.0
        %665 = vmatpush1.msra.mxu0 0.0
        %666 = vmatprep.subr.mxu0 0.0
        %667 = vmatpush1.msra.mxu0 0.0
        %668 = vmatprep.subr.mxu0 0.0
        %669 = vmatpush1.msra.mxu0 0.0
        %670 = vmatprep.subr.mxu0 0.0
        %671 = vmatpush1.msra.mxu0 0.0
        %672 = vmatprep.subr.mxu0 0.0
        %673 = vmatpush1.msra.mxu0 0.0
        %674 = vmatprep.subr.mxu0 0.0
        %675 = vmatpush1.msra.mxu0 0.0
        %676 = vmatprep.subr.mxu0 0.0
        %677 = vmatpush1.msra.mxu0 0.0
        %678 = vmatprep.subr.mxu0 0.0
        %679 = vmatpush1.msra.mxu0 0.0
        %680 = vmatprep.subr.mxu0 0.0
        %681 = vmatpush1.msra.mxu0 0.0
        %682 = vmatprep.subr.mxu0 0.0
        %683 = vmatpush1.msra.mxu0 0.0
        %684 = vmatprep.mubr.f32.mxu0 0.0
        %685 = vmatmul.mubr.f32.gmra.mrb[0].mxu0 %v549
        %v686 = vpop.f32.mrb[0].mxu0
        %v687 = vadd.f32 %v430, %v686
        %v688 = vpop.f32.mrb[0].mxu0
        %689 = vmatprep.mubr.f32.mxu0 0.0
        %690 = vmatmul.mubr.f32.gmra.mrb[0].mxu0 %v552
        %v691 = vpop.f32.mrb[0].mxu0
        %v692 = vadd.f32 %v435, %v691
        %v693 = vpop.f32.mrb[0].mxu0
        %694 = vmatprep.mubr.f32.mxu0 0.0
        %695 = vmatmul.mubr.f32.gmra.mrb[0].mxu0 %v555
        %v696 = vpop.f32.mrb[0].mxu0
        %v697 = vadd.f32 %v440, %v696
        %v698 = vpop.f32.mrb[0].mxu0
        %699 = vmatprep.mubr.f32.mxu0 0.0
        %700 = vmatmul.mubr.f32.gmra.mrb[0].mxu0 %v558
        %v701 = vpop.f32.mrb[0].mxu0
        %v702 = vadd.f32 %v445, %v701
        %v703 = vpop.f32.mrb[0].mxu0
        %704 = vmatprep.mubr.f32.mxu0 0.0
        %705 = vmatmul.mubr.f32.gmra.mrb[0].mxu0 %v561
        %v706 = vpop.f32.mrb[0].mxu0
        %v707 = vadd.f32 %v450, %v706
        %v708 = vpop.f32.mrb[0].mxu0
        %709 = vmatprep.mubr.f32.mxu0 0.0
        %710 = vmatmul.mubr.f32.gmra.mrb[0].mxu0 %v564
        %v711 = vpop.f32.mrb[0].mxu0
        %v712 = vadd.f32 %v455, %v711
        %v713 = vpop.f32.mrb[0].mxu0
        %714 = vmatprep.mubr.f32.mxu0 0.0
        %715 = vmatmul.mubr.f32.gmra.mrb[0].mxu0 %v567
        %v716 = vpop.f32.mrb[0].mxu0
        %v717 = vadd.f32 %v460, %v716
        %v718 = vpop.f32.mrb[0].mxu0
        %719 = vmatprep.mubr.f32.mxu0 0.0
        %720 = vmatmul.mubr.f32.gmra.mrb[0].mxu0 %v570
        %v721 = vpop.f32.mrb[0].mxu0
        %v722 = vadd.f32 %v465, %v721
        %v723 = vpop.f32.mrb[0].mxu0
        %724 = vmatprep.mubr.f32.mxu0 0.0
        %725 = vmatmul.mubr.f32.gmra.mrb[0].mxu0 %v573
        %v726 = vpop.f32.mrb[0].mxu0
        %v727 = vadd.f32 %v470, %v726
        %v728 = vpop.f32.mrb[0].mxu0
        %729 = vmatprep.mubr.f32.mxu0 0.0
        %730 = vmatmul.mubr.f32.gmra.mrb[0].mxu0 %v576
        %v731 = vpop.f32.mrb[0].mxu0
        %v732 = vadd.f32 %v475, %v731
        %v733 = vpop.f32.mrb[0].mxu0
        %734 = vmatprep.mubr.f32.mxu0 0.0
        %735 = vmatmul.mubr.f32.gmra.mrb[0].mxu0 %v579
        %v736 = vpop.f32.mrb[0].mxu0
        %v737 = vadd.f32 %v480, %v736
        %v738 = vpop.f32.mrb[0].mxu0
        %739 = vmatprep.mubr.f32.mxu0 0.0
        %740 = vmatmul.mubr.f32.gmra.mrb[0].mxu0 %v582
        %v741 = vpop.f32.mrb[0].mxu0
        %v742 = vadd.f32 %v485, %v741
        %v743 = vpop.f32.mrb[0].mxu0
        %744 = vmatprep.mubr.f32.mxu0 0.0
        %745 = vmatmul.mubr.f32.gmra.mrb[0].mxu0 %v585
        %v746 = vpop.f32.mrb[0].mxu0
        %v747 = vadd.f32 %v490, %v746
        %v748 = vpop.f32.mrb[0].mxu0
        %749 = vmatprep.mubr.f32.mxu0 0.0
        %750 = vmatmul.mubr.f32.gmra.mrb[0].mxu0 %v588
        %v751 = vpop.f32.mrb[0].mxu0
        %v752 = vadd.f32 %v495, %v751
        %v753 = vpop.f32.mrb[0].mxu0
        %754 = vmatprep.mubr.f32.mxu0 0.0
        %755 = vmatmul.mubr.f32.gmra.mrb[0].mxu0 %v591
        %v756 = vpop.f32.mrb[0].mxu0
        %v757 = vadd.f32 %v500, %v756
        %v758 = vpop.f32.mrb[0].mxu0
        %759 = vmatprep.mubr.f32.mxu0 0.0
        %760 = vmatmul.mubr.f32.gmra.mrb[0].mxu0 %v594
        %v761 = vpop.f32.mrb[0].mxu0
        %v762 = vadd.f32 %v505, %v761
        %v763 = vpop.f32.mrb[0].mxu0
        %764 = vmatprep.mubr.f32.mxu0 0.0
        %765 = vmatmul.mubr.f32.gmra.mrb[0].mxu0 %v597
        %v766 = vpop.f32.mrb[0].mxu0
        %v767 = vadd.f32 %v510, %v766
        %v768 = vpop.f32.mrb[0].mxu0
        %769 = vmatprep.mubr.f32.mxu0 0.0
        %770 = vmatmul.mubr.f32.gmra.mrb[0].mxu0 %v600
        %v771 = vpop.f32.mrb[0].mxu0
        %v772 = vadd.f32 %v515, %v771
        %v773 = vpop.f32.mrb[0].mxu0
        %774 = vmatprep.mubr.f32.mxu0 0.0
        %775 = vmatmul.mubr.f32.gmra.mrb[0].mxu0 %v603
        %v776 = vpop.f32.mrb[0].mxu0
        %v777 = vadd.f32 %v520, %v776
        %v778 = vpop.f32.mrb[0].mxu0
        %779 = vmatprep.mubr.f32.mxu0 0.0
        %780 = vmatmul.mubr.f32.gmra.mrb[0].mxu0 %v606
        %v781 = vpop.f32.mrb[0].mxu0
        %v782 = vadd.f32 %v525, %v781
        %v783 = vpop.f32.mrb[0].mxu0
        %784 = vmatprep.mubr.f32.mxu0 0.0
        %785 = vmatmul.mubr.f32.gmra.mrb[0].mxu0 %v609
        %v786 = vpop.f32.mrb[0].mxu0
        %v787 = vadd.f32 %v530, %v786
        %v788 = vpop.f32.mrb[0].mxu0
        %789 = vmatprep.mubr.f32.mxu0 0.0
        %790 = vmatmul.mubr.f32.gmra.mrb[0].mxu0 %v612
        %v791 = vpop.f32.mrb[0].mxu0
        %v792 = vadd.f32 %v535, %v791
        %v793 = vpop.f32.mrb[0].mxu0
        %794 = vmatprep.mubr.f32.mxu0 0.0
        %795 = vmatmul.mubr.f32.gmra.mrb[0].mxu0 %v615
        %v796 = vpop.f32.mrb[0].mxu0
        %v797 = vadd.f32 %v540, %v796
        %v798 = vpop.f32.mrb[0].mxu0
        %799 = vmatprep.mubr.f32.mxu0 0.0
        %800 = vmatmul.mubr.f32.gmra.mrb[0].mxu0 %v618
        %v801 = vpop.f32.mrb[0].mxu0
        %v802 = vadd.f32 %v545, %v801
        %v803 = vpop.f32.mrb[0].mxu0
        %804 = vdwg.mxu0
        %v805 = vld [vmem:[%s234 + $0x2] sm:$0xff]
        %v806 = vld [vmem:[%s234 + $0xa] sm:$0xff]
        %v807 = vld [vmem:[%s234 + $0x12] sm:$0xff]
        %v808 = vld [vmem:[%s234 + $0x1a] sm:$0xff]
        %v809 = vld [vmem:[%s234 + $0x22] sm:$0xff]
        %v810 = vld [vmem:[%s234 + $0x2a] sm:$0xff]
        %v811 = vld [vmem:[%s234 + $0x32] sm:$0xff]
        %v812 = vld [vmem:[%s234 + $0x3a] sm:$0xff]
        %v813 = vld [vmem:[%s234 + $0x42] sm:$0xff]
        %v814 = vld [vmem:[%s234 + $0x4a] sm:$0xff]
        %v815 = vld [vmem:[%s234 + $0x52] sm:$0xff]
        %v816 = vld [vmem:[%s234 + $0x5a] sm:$0xff]
        %v817 = vld [vmem:[%s234 + $0x62] sm:$0xff]
        %v818 = vld [vmem:[%s234 + $0x6a] sm:$0xff]
        %v819 = vld [vmem:[%s234 + $0x72] sm:$0xff]
        %v820 = vld [vmem:[%s234 + $0x7a] sm:$0xff]
        %v821 = vld [vmem:[%s234 + $0x82] sm:$0xff]
        %v822 = vld [vmem:[%s234 + $0x8a] sm:$0xff]
        %v823 = vld [vmem:[%s234 + $0x92] sm:$0xff]
        %v824 = vld [vmem:[%s234 + $0x9a] sm:$0xff]
        %v825 = vld [vmem:[%s234 + $0xa2] sm:$0xff]
        %v826 = vld [vmem:[%s234 + $0xaa] sm:$0xff]
        %v827 = vld [vmem:[%s234 + $0xb2] sm:$0xff]
        %v828 = vld [vmem:[%s234 + $0xba] sm:$0xf]
        %v829 = vld [vmem:[#allocation2 + $0x10] sm:$0xff]
        %v831 = vsel %vm290, %v805, 0
        %v834 = vsel %vm290, %v806, 0
        %v837 = vsel %vm290, %v807, 0
        %v840 = vsel %vm290, %v808, 0
        %v843 = vsel %vm290, %v809, 0
        %v846 = vsel %vm290, %v810, 0
        %v849 = vsel %vm290, %v811, 0
        %v852 = vsel %vm290, %v812, 0
        %v855 = vsel %vm290, %v813, 0
        %v858 = vsel %vm290, %v814, 0
        %v861 = vsel %vm290, %v815, 0
        %v864 = vsel %vm290, %v816, 0
        %v867 = vsel %vm290, %v817, 0
        %v870 = vsel %vm290, %v818, 0
        %v873 = vsel %vm290, %v819, 0
        %v876 = vsel %vm290, %v820, 0
        %v879 = vsel %vm290, %v821, 0
        %v882 = vsel %vm290, %v822, 0
        %v885 = vsel %vm290, %v823, 0
        %v888 = vsel %vm290, %v824, 0
        %v891 = vsel %vm290, %v825, 0
        %v894 = vsel %vm290, %v826, 0
        %v897 = vsel %vm290, %v827, 0
        %v900 = vsel %vm290, %v828, 0
        %902 = vmatprep.subr.mxu0 0.0
        %903 = vmatpush1.msra.mxu0 %v829
        %904 = vmatprep.subr.mxu0 0.0
        %905 = vmatpush1.msra.mxu0 0.0
        %906 = vmatprep.subr.mxu0 0.0
        %907 = vmatpush1.msra.mxu0 0.0
        %908 = vmatprep.subr.mxu0 0.0
        %909 = vmatpush1.msra.mxu0 0.0
        %910 = vmatprep.subr.mxu0 0.0
        %911 = vmatpush1.msra.mxu0 0.0
        %912 = vmatprep.subr.mxu0 0.0
        %913 = vmatpush1.msra.mxu0 0.0
        %914 = vmatprep.subr.mxu0 0.0
        %915 = vmatpush1.msra.mxu0 0.0
        %916 = vmatprep.subr.mxu0 0.0
        %917 = vmatpush1.msra.mxu0 0.0
        %918 = vmatprep.subr.mxu0 0.0
        %919 = vmatpush1.msra.mxu0 0.0
        %920 = vmatprep.subr.mxu0 0.0
        %921 = vmatpush1.msra.mxu0 0.0
        %922 = vmatprep.subr.mxu0 0.0
        %923 = vmatpush1.msra.mxu0 0.0
        %924 = vmatprep.subr.mxu0 0.0
        %925 = vmatpush1.msra.mxu0 0.0
        %926 = vmatprep.subr.mxu0 0.0
        %927 = vmatpush1.msra.mxu0 0.0
        %928 = vmatprep.subr.mxu0 0.0
        %929 = vmatpush1.msra.mxu0 0.0
        %930 = vmatprep.subr.mxu0 0.0
        %931 = vmatpush1.msra.mxu0 0.0
        %932 = vmatprep.subr.mxu0 0.0
        %933 = vmatpush1.msra.mxu0 0.0
        %934 = vmatprep.subr.mxu0 0.0
        %935 = vmatpush1.msra.mxu0 0.0
        %936 = vmatprep.subr.mxu0 0.0
        %937 = vmatpush1.msra.mxu0 0.0
        %938 = vmatprep.subr.mxu0 0.0
        %939 = vmatpush1.msra.mxu0 0.0
        %940 = vmatprep.subr.mxu0 0.0
        %941 = vmatpush1.msra.mxu0 0.0
        %942 = vmatprep.subr.mxu0 0.0
        %943 = vmatpush1.msra.mxu0 0.0
        %944 = vmatprep.subr.mxu0 0.0
        %945 = vmatpush1.msra.mxu0 0.0
        %946 = vmatprep.subr.mxu0 0.0
        %947 = vmatpush1.msra.mxu0 0.0
        %948 = vmatprep.subr.mxu0 0.0
        %949 = vmatpush1.msra.mxu0 0.0
        %950 = vmatprep.subr.mxu0 0.0
        %951 = vmatpush1.msra.mxu0 0.0
        %952 = vmatprep.subr.mxu0 0.0
        %953 = vmatpush1.msra.mxu0 0.0
        %954 = vmatprep.subr.mxu0 0.0
        %955 = vmatpush1.msra.mxu0 0.0
        %956 = vmatprep.subr.mxu0 0.0
        %957 = vmatpush1.msra.mxu0 0.0
        %958 = vmatprep.subr.mxu0 0.0
        %959 = vmatpush1.msra.mxu0 0.0
        %960 = vmatprep.subr.mxu0 0.0
        %961 = vmatpush1.msra.mxu0 0.0
        %962 = vmatprep.subr.mxu0 0.0
        %963 = vmatpush1.msra.mxu0 0.0
        %964 = vmatprep.subr.mxu0 0.0
        %965 = vmatpush1.msra.mxu0 0.0
        %966 = vmatprep.mubr.f32.mxu0 0.0
        %967 = vmatmul.mubr.f32.gmra.mrb[0].mxu0 %v831
        %v968 = vpop.f32.mrb[0].mxu0
        %v969 = vadd.f32 0.0, %v968
        %v970 = vpop.f32.mrb[0].mxu0
        %971 = vmatprep.mubr.f32.mxu0 0.0
        %972 = vmatmul.mubr.f32.gmra.mrb[0].mxu0 %v834
        %v973 = vpop.f32.mrb[0].mxu0
        %v974 = vadd.f32 0.0, %v973
        %v975 = vpop.f32.mrb[0].mxu0
        %976 = vmatprep.mubr.f32.mxu0 0.0
        %977 = vmatmul.mubr.f32.gmra.mrb[0].mxu0 %v837
        %v978 = vpop.f32.mrb[0].mxu0
        %v979 = vadd.f32 0.0, %v978
        %v980 = vpop.f32.mrb[0].mxu0
        %981 = vmatprep.mubr.f32.mxu0 0.0
        %982 = vmatmul.mubr.f32.gmra.mrb[0].mxu0 %v840
        %v983 = vpop.f32.mrb[0].mxu0
        %v984 = vadd.f32 0.0, %v983
        %v985 = vpop.f32.mrb[0].mxu0
        %986 = vmatprep.mubr.f32.mxu0 0.0
        %987 = vmatmul.mubr.f32.gmra.mrb[0].mxu0 %v843
        %v988 = vpop.f32.mrb[0].mxu0
        %v989 = vadd.f32 0.0, %v988
        %v990 = vpop.f32.mrb[0].mxu0
        %991 = vmatprep.mubr.f32.mxu0 0.0
        %992 = vmatmul.mubr.f32.gmra.mrb[0].mxu0 %v846
        %v993 = vpop.f32.mrb[0].mxu0
        %v994 = vadd.f32 0.0, %v993
        %v995 = vpop.f32.mrb[0].mxu0
        %996 = vmatprep.mubr.f32.mxu0 0.0
        %997 = vmatmul.mubr.f32.gmra.mrb[0].mxu0 %v849
        %v998 = vpop.f32.mrb[0].mxu0
        %v999 = vadd.f32 0.0, %v998
        %v1000 = vpop.f32.mrb[0].mxu0
        %1001 = vmatprep.mubr.f32.mxu0 0.0
        %1002 = vmatmul.mubr.f32.gmra.mrb[0].mxu0 %v852
        %v1003 = vpop.f32.mrb[0].mxu0
        %v1004 = vadd.f32 0.0, %v1003
        %v1005 = vpop.f32.mrb[0].mxu0
        %1006 = vmatprep.mubr.f32.mxu0 0.0
        %1007 = vmatmul.mubr.f32.gmra.mrb[0].mxu0 %v855
        %v1008 = vpop.f32.mrb[0].mxu0
        %v1009 = vadd.f32 0.0, %v1008
        %v1010 = vpop.f32.mrb[0].mxu0
        %1011 = vmatprep.mubr.f32.mxu0 0.0
        %1012 = vmatmul.mubr.f32.gmra.mrb[0].mxu0 %v858
        %v1013 = vpop.f32.mrb[0].mxu0
        %v1014 = vadd.f32 0.0, %v1013
        %v1015 = vpop.f32.mrb[0].mxu0
        %1016 = vmatprep.mubr.f32.mxu0 0.0
        %1017 = vmatmul.mubr.f32.gmra.mrb[0].mxu0 %v861
        %v1018 = vpop.f32.mrb[0].mxu0
        %v1019 = vadd.f32 0.0, %v1018
        %v1020 = vpop.f32.mrb[0].mxu0
        %1021 = vmatprep.mubr.f32.mxu0 0.0
        %1022 = vmatmul.mubr.f32.gmra.mrb[0].mxu0 %v864
        %v1023 = vpop.f32.mrb[0].mxu0
        %v1024 = vadd.f32 0.0, %v1023
        %v1025 = vpop.f32.mrb[0].mxu0
        %1026 = vmatprep.mubr.f32.mxu0 0.0
        %1027 = vmatmul.mubr.f32.gmra.mrb[0].mxu0 %v867
        %v1028 = vpop.f32.mrb[0].mxu0
        %v1029 = vadd.f32 0.0, %v1028
        %v1030 = vpop.f32.mrb[0].mxu0
        %1031 = vmatprep.mubr.f32.mxu0 0.0
        %1032 = vmatmul.mubr.f32.gmra.mrb[0].mxu0 %v870
        %v1033 = vpop.f32.mrb[0].mxu0
        %v1034 = vadd.f32 0.0, %v1033
        %v1035 = vpop.f32.mrb[0].mxu0
        %1036 = vmatprep.mubr.f32.mxu0 0.0
        %1037 = vmatmul.mubr.f32.gmra.mrb[0].mxu0 %v873
        %v1038 = vpop.f32.mrb[0].mxu0
        %v1039 = vadd.f32 0.0, %v1038
        %v1040 = vpop.f32.mrb[0].mxu0
        %1041 = vmatprep.mubr.f32.mxu0 0.0
        %1042 = vmatmul.mubr.f32.gmra.mrb[0].mxu0 %v876
        %v1043 = vpop.f32.mrb[0].mxu0
        %v1044 = vadd.f32 0.0, %v1043
        %v1045 = vpop.f32.mrb[0].mxu0
        %1046 = vmatprep.mubr.f32.mxu0 0.0
        %1047 = vmatmul.mubr.f32.gmra.mrb[0].mxu0 %v879
        %v1048 = vpop.f32.mrb[0].mxu0
        %v1049 = vadd.f32 0.0, %v1048
        %v1050 = vpop.f32.mrb[0].mxu0
        %1051 = vmatprep.mubr.f32.mxu0 0.0
        %1052 = vmatmul.mubr.f32.gmra.mrb[0].mxu0 %v882
        %v1053 = vpop.f32.mrb[0].mxu0
        %v1054 = vadd.f32 0.0, %v1053
        %v1055 = vpop.f32.mrb[0].mxu0
        %1056 = vmatprep.mubr.f32.mxu0 0.0
        %1057 = vmatmul.mubr.f32.gmra.mrb[0].mxu0 %v885
        %v1058 = vpop.f32.mrb[0].mxu0
        %v1059 = vadd.f32 0.0, %v1058
        %v1060 = vpop.f32.mrb[0].mxu0
        %1061 = vmatprep.mubr.f32.mxu0 0.0
        %1062 = vmatmul.mubr.f32.gmra.mrb[0].mxu0 %v888
        %v1063 = vpop.f32.mrb[0].mxu0
        %v1064 = vadd.f32 0.0, %v1063
        %v1065 = vpop.f32.mrb[0].mxu0
        %1066 = vmatprep.mubr.f32.mxu0 0.0
        %1067 = vmatmul.mubr.f32.gmra.mrb[0].mxu0 %v891
        %v1068 = vpop.f32.mrb[0].mxu0
        %v1069 = vadd.f32 0.0, %v1068
        %v1070 = vpop.f32.mrb[0].mxu0
        %1071 = vmatprep.mubr.f32.mxu0 0.0
        %1072 = vmatmul.mubr.f32.gmra.mrb[0].mxu0 %v894
        %v1073 = vpop.f32.mrb[0].mxu0
        %v1074 = vadd.f32 0.0, %v1073
        %v1075 = vpop.f32.mrb[0].mxu0
        %1076 = vmatprep.mubr.f32.mxu0 0.0
        %1077 = vmatmul.mubr.f32.gmra.mrb[0].mxu0 %v897
        %v1078 = vpop.f32.mrb[0].mxu0
        %v1079 = vadd.f32 0.0, %v1078
        %v1080 = vpop.f32.mrb[0].mxu0
        %1081 = vmatprep.mubr.f32.mxu0 0.0
        %1082 = vmatmul.mubr.f32.gmra.mrb[0].mxu0 %v900
        %v1083 = vpop.f32.mrb[0].mxu0
        %v1084 = vadd.f32 0.0, %v1083
        %v1085 = vpop.f32.mrb[0].mxu0
        %1086 = vdwg.mxu0
        %v1087 = vadd.f32 %v687, %v969
        %v1088 = vadd.f32 %v692, %v974
        %v1089 = vadd.f32 %v697, %v979
        %v1090 = vadd.f32 %v702, %v984
        %v1091 = vadd.f32 %v707, %v989
        %v1092 = vadd.f32 %v712, %v994
        %v1093 = vadd.f32 %v717, %v999
        %v1094 = vadd.f32 %v722, %v1004
        %v1095 = vadd.f32 %v727, %v1009
        %v1096 = vadd.f32 %v732, %v1014
        %v1097 = vadd.f32 %v737, %v1019
        %v1098 = vadd.f32 %v742, %v1024
        %v1099 = vadd.f32 %v747, %v1029
        %v1100 = vadd.f32 %v752, %v1034
        %v1101 = vadd.f32 %v757, %v1039
        %v1102 = vadd.f32 %v762, %v1044
        %v1103 = vadd.f32 %v767, %v1049
        %v1104 = vadd.f32 %v772, %v1054
        %v1105 = vadd.f32 %v777, %v1059
        %v1106 = vadd.f32 %v782, %v1064
        %v1107 = vadd.f32 %v787, %v1069
        %v1108 = vadd.f32 %v792, %v1074
        %v1109 = vadd.f32 %v797, %v1079
        %v1110 = vadd.f32 %v802, %v1084
        %v1111 = vld [vmem:[%s234 + $0x3] sm:$0xff]
        %v1112 = vld [vmem:[%s234 + $0xb] sm:$0xff]
        %v1113 = vld [vmem:[%s234 + $0x13] sm:$0xff]
        %v1114 = vld [vmem:[%s234 + $0x1b] sm:$0xff]
        %v1115 = vld [vmem:[%s234 + $0x23] sm:$0xff]
        %v1116 = vld [vmem:[%s234 + $0x2b] sm:$0xff]
        %v1117 = vld [vmem:[%s234 + $0x33] sm:$0xff]
        %v1118 = vld [vmem:[%s234 + $0x3b] sm:$0xff]
        %v1119 = vld [vmem:[%s234 + $0x43] sm:$0xff]
        %v1120 = vld [vmem:[%s234 + $0x4b] sm:$0xff]
        %v1121 = vld [vmem:[%s234 + $0x53] sm:$0xff]
        %v1122 = vld [vmem:[%s234 + $0x5b] sm:$0xff]
        %v1123 = vld [vmem:[%s234 + $0x63] sm:$0xff]
        %v1124 = vld [vmem:[%s234 + $0x6b] sm:$0xff]
        %v1125 = vld [vmem:[%s234 + $0x73] sm:$0xff]
        %v1126 = vld [vmem:[%s234 + $0x7b] sm:$0xff]
        %v1127 = vld [vmem:[%s234 + $0x83] sm:$0xff]
        %v1128 = vld [vmem:[%s234 + $0x8b] sm:$0xff]
        %v1129 = vld [vmem:[%s234 + $0x93] sm:$0xff]
        %v1130 = vld [vmem:[%s234 + $0x9b] sm:$0xff]
        %v1131 = vld [vmem:[%s234 + $0xa3] sm:$0xff]
        %v1132 = vld [vmem:[%s234 + $0xab] sm:$0xff]
        %v1133 = vld [vmem:[%s234 + $0xb3] sm:$0xff]
        %v1134 = vld [vmem:[%s234 + $0xbb] sm:$0xf]
        %v1135 = vld [vmem:[#allocation2 + $0x18] sm:$0xff]
        %v1137 = vsel %vm290, %v1111, 0
        %v1140 = vsel %vm290, %v1112, 0
        %v1143 = vsel %vm290, %v1113, 0
        %v1146 = vsel %vm290, %v1114, 0
        %v1149 = vsel %vm290, %v1115, 0
        %v1152 = vsel %vm290, %v1116, 0
        %v1155 = vsel %vm290, %v1117, 0
        %v1158 = vsel %vm290, %v1118, 0
        %v1161 = vsel %vm290, %v1119, 0
        %v1164 = vsel %vm290, %v1120, 0
        %v1167 = vsel %vm290, %v1121, 0
        %v1170 = vsel %vm290, %v1122, 0
        %v1173 = vsel %vm290, %v1123, 0
        %v1176 = vsel %vm290, %v1124, 0
        %v1179 = vsel %vm290, %v1125, 0
        %v1182 = vsel %vm290, %v1126, 0
        %v1185 = vsel %vm290, %v1127, 0
        %v1188 = vsel %vm290, %v1128, 0
        %v1191 = vsel %vm290, %v1129, 0
        %v1194 = vsel %vm290, %v1130, 0
        %v1197 = vsel %vm290, %v1131, 0
        %v1200 = vsel %vm290, %v1132, 0
        %v1203 = vsel %vm290, %v1133, 0
        %v1206 = vsel %vm290, %v1134, 0
        %1208 = vmatprep.subr.mxu0 0.0
        %1209 = vmatpush1.msra.mxu0 %v1135
        %1210 = vmatprep.subr.mxu0 0.0
        %1211 = vmatpush1.msra.mxu0 0.0
        %1212 = vmatprep.subr.mxu0 0.0
        %1213 = vmatpush1.msra.mxu0 0.0
        %1214 = vmatprep.subr.mxu0 0.0
        %1215 = vmatpush1.msra.mxu0 0.0
        %1216 = vmatprep.subr.mxu0 0.0
        %1217 = vmatpush1.msra.mxu0 0.0
        %1218 = vmatprep.subr.mxu0 0.0
        %1219 = vmatpush1.msra.mxu0 0.0
        %1220 = vmatprep.subr.mxu0 0.0
        %1221 = vmatpush1.msra.mxu0 0.0
        %1222 = vmatprep.subr.mxu0 0.0
        %1223 = vmatpush1.msra.mxu0 0.0
        %1224 = vmatprep.subr.mxu0 0.0
        %1225 = vmatpush1.msra.mxu0 0.0
        %1226 = vmatprep.subr.mxu0 0.0
        %1227 = vmatpush1.msra.mxu0 0.0
        %1228 = vmatprep.subr.mxu0 0.0
        %1229 = vmatpush1.msra.mxu0 0.0
        %1230 = vmatprep.subr.mxu0 0.0
        %1231 = vmatpush1.msra.mxu0 0.0
        %1232 = vmatprep.subr.mxu0 0.0
        %1233 = vmatpush1.msra.mxu0 0.0
        %1234 = vmatprep.subr.mxu0 0.0
        %1235 = vmatpush1.msra.mxu0 0.0
        %1236 = vmatprep.subr.mxu0 0.0
        %1237 = vmatpush1.msra.mxu0 0.0
        %1238 = vmatprep.subr.mxu0 0.0
        %1239 = vmatpush1.msra.mxu0 0.0
        %1240 = vmatprep.subr.mxu0 0.0
        %1241 = vmatpush1.msra.mxu0 0.0
        %1242 = vmatprep.subr.mxu0 0.0
        %1243 = vmatpush1.msra.mxu0 0.0
        %1244 = vmatprep.subr.mxu0 0.0
        %1245 = vmatpush1.msra.mxu0 0.0
        %1246 = vmatprep.subr.mxu0 0.0
        %1247 = vmatpush1.msra.mxu0 0.0
        %1248 = vmatprep.subr.mxu0 0.0
        %1249 = vmatpush1.msra.mxu0 0.0
        %1250 = vmatprep.subr.mxu0 0.0
        %1251 = vmatpush1.msra.mxu0 0.0
        %1252 = vmatprep.subr.mxu0 0.0
        %1253 = vmatpush1.msra.mxu0 0.0
        %1254 = vmatprep.subr.mxu0 0.0
        %1255 = vmatpush1.msra.mxu0 0.0
        %1256 = vmatprep.subr.mxu0 0.0
        %1257 = vmatpush1.msra.mxu0 0.0
        %1258 = vmatprep.subr.mxu0 0.0
        %1259 = vmatpush1.msra.mxu0 0.0
        %1260 = vmatprep.subr.mxu0 0.0
        %1261 = vmatpush1.msra.mxu0 0.0
        %1262 = vmatprep.subr.mxu0 0.0
        %1263 = vmatpush1.msra.mxu0 0.0
        %1264 = vmatprep.subr.mxu0 0.0
        %1265 = vmatpush1.msra.mxu0 0.0
        %1266 = vmatprep.subr.mxu0 0.0
        %1267 = vmatpush1.msra.mxu0 0.0
        %1268 = vmatprep.subr.mxu0 0.0
        %1269 = vmatpush1.msra.mxu0 0.0
        %1270 = vmatprep.subr.mxu0 0.0
        %1271 = vmatpush1.msra.mxu0 0.0
        %1272 = vmatprep.mubr.f32.mxu0 0.0
        %1273 = vmatmul.mubr.f32.gmra.mrb[0].mxu0 %v1137
        %v1274 = vpop.f32.mrb[0].mxu0
        %v1275 = vadd.f32 0.0, %v1274
        %v1276 = vpop.f32.mrb[0].mxu0
        %1277 = vmatprep.mubr.f32.mxu0 0.0
        %1278 = vmatmul.mubr.f32.gmra.mrb[0].mxu0 %v1140
        %v1279 = vpop.f32.mrb[0].mxu0
        %v1280 = vadd.f32 0.0, %v1279
        %v1281 = vpop.f32.mrb[0].mxu0
        %1282 = vmatprep.mubr.f32.mxu0 0.0
        %1283 = vmatmul.mubr.f32.gmra.mrb[0].mxu0 %v1143
        %v1284 = vpop.f32.mrb[0].mxu0
        %v1285 = vadd.f32 0.0, %v1284
        %v1286 = vpop.f32.mrb[0].mxu0
        %1287 = vmatprep.mubr.f32.mxu0 0.0
        %1288 = vmatmul.mubr.f32.gmra.mrb[0].mxu0 %v1146
        %v1289 = vpop.f32.mrb[0].mxu0
        %v1290 = vadd.f32 0.0, %v1289
        %v1291 = vpop.f32.mrb[0].mxu0
        %1292 = vmatprep.mubr.f32.mxu0 0.0
        %1293 = vmatmul.mubr.f32.gmra.mrb[0].mxu0 %v1149
        %v1294 = vpop.f32.mrb[0].mxu0
        %v1295 = vadd.f32 0.0, %v1294
        %v1296 = vpop.f32.mrb[0].mxu0
        %1297 = vmatprep.mubr.f32.mxu0 0.0
        %1298 = vmatmul.mubr.f32.gmra.mrb[0].mxu0 %v1152
        %v1299 = vpop.f32.mrb[0].mxu0
        %v1300 = vadd.f32 0.0, %v1299
        %v1301 = vpop.f32.mrb[0].mxu0
        %1302 = vmatprep.mubr.f32.mxu0 0.0
        %1303 = vmatmul.mubr.f32.gmra.mrb[0].mxu0 %v1155
        %v1304 = vpop.f32.mrb[0].mxu0
        %v1305 = vadd.f32 0.0, %v1304
        %v1306 = vpop.f32.mrb[0].mxu0
        %1307 = vmatprep.mubr.f32.mxu0 0.0
        %1308 = vmatmul.mubr.f32.gmra.mrb[0].mxu0 %v1158
        %v1309 = vpop.f32.mrb[0].mxu0
        %v1310 = vadd.f32 0.0, %v1309
        %v1311 = vpop.f32.mrb[0].mxu0
        %1312 = vmatprep.mubr.f32.mxu0 0.0
        %1313 = vmatmul.mubr.f32.gmra.mrb[0].mxu0 %v1161
        %v1314 = vpop.f32.mrb[0].mxu0
        %v1315 = vadd.f32 0.0, %v1314
        %v1316 = vpop.f32.mrb[0].mxu0
        %1317 = vmatprep.mubr.f32.mxu0 0.0
        %1318 = vmatmul.mubr.f32.gmra.mrb[0].mxu0 %v1164
        %v1319 = vpop.f32.mrb[0].mxu0
        %v1320 = vadd.f32 0.0, %v1319
        %v1321 = vpop.f32.mrb[0].mxu0
        %1322 = vmatprep.mubr.f32.mxu0 0.0
        %1323 = vmatmul.mubr.f32.gmra.mrb[0].mxu0 %v1167
        %v1324 = vpop.f32.mrb[0].mxu0
        %v1325 = vadd.f32 0.0, %v1324
        %v1326 = vpop.f32.mrb[0].mxu0
        %1327 = vmatprep.mubr.f32.mxu0 0.0
        %1328 = vmatmul.mubr.f32.gmra.mrb[0].mxu0 %v1170
        %v1329 = vpop.f32.mrb[0].mxu0
        %v1330 = vadd.f32 0.0, %v1329
        %v1331 = vpop.f32.mrb[0].mxu0
        %1332 = vmatprep.mubr.f32.mxu0 0.0
        %1333 = vmatmul.mubr.f32.gmra.mrb[0].mxu0 %v1173
        %v1334 = vpop.f32.mrb[0].mxu0
        %v1335 = vadd.f32 0.0, %v1334
        %v1336 = vpop.f32.mrb[0].mxu0
        %1337 = vmatprep.mubr.f32.mxu0 0.0
        %1338 = vmatmul.mubr.f32.gmra.mrb[0].mxu0 %v1176
        %v1339 = vpop.f32.mrb[0].mxu0
        %v1340 = vadd.f32 0.0, %v1339
        %v1341 = vpop.f32.mrb[0].mxu0
        %1342 = vmatprep.mubr.f32.mxu0 0.0
        %1343 = vmatmul.mubr.f32.gmra.mrb[0].mxu0 %v1179
        %v1344 = vpop.f32.mrb[0].mxu0
        %v1345 = vadd.f32 0.0, %v1344
        %v1346 = vpop.f32.mrb[0].mxu0
        %1347 = vmatprep.mubr.f32.mxu0 0.0
        %1348 = vmatmul.mubr.f32.gmra.mrb[0].mxu0 %v1182
        %v1349 = vpop.f32.mrb[0].mxu0
        %v1350 = vadd.f32 0.0, %v1349
        %v1351 = vpop.f32.mrb[0].mxu0
        %1352 = vmatprep.mubr.f32.mxu0 0.0
        %1353 = vmatmul.mubr.f32.gmra.mrb[0].mxu0 %v1185
        %v1354 = vpop.f32.mrb[0].mxu0
        %v1355 = vadd.f32 0.0, %v1354
        %v1356 = vpop.f32.mrb[0].mxu0
        %1357 = vmatprep.mubr.f32.mxu0 0.0
        %1358 = vmatmul.mubr.f32.gmra.mrb[0].mxu0 %v1188
        %v1359 = vpop.f32.mrb[0].mxu0
        %v1360 = vadd.f32 0.0, %v1359
        %v1361 = vpop.f32.mrb[0].mxu0
        %1362 = vmatprep.mubr.f32.mxu0 0.0
        %1363 = vmatmul.mubr.f32.gmra.mrb[0].mxu0 %v1191
        %v1364 = vpop.f32.mrb[0].mxu0
        %v1365 = vadd.f32 0.0, %v1364
        %v1366 = vpop.f32.mrb[0].mxu0
        %1367 = vmatprep.mubr.f32.mxu0 0.0
        %1368 = vmatmul.mubr.f32.gmra.mrb[0].mxu0 %v1194
        %v1369 = vpop.f32.mrb[0].mxu0
        %v1370 = vadd.f32 0.0, %v1369
        %v1371 = vpop.f32.mrb[0].mxu0
        %1372 = vmatprep.mubr.f32.mxu0 0.0
        %1373 = vmatmul.mubr.f32.gmra.mrb[0].mxu0 %v1197
        %v1374 = vpop.f32.mrb[0].mxu0
        %v1375 = vadd.f32 0.0, %v1374
        %v1376 = vpop.f32.mrb[0].mxu0
        %1377 = vmatprep.mubr.f32.mxu0 0.0
        %1378 = vmatmul.mubr.f32.gmra.mrb[0].mxu0 %v1200
        %v1379 = vpop.f32.mrb[0].mxu0
        %v1380 = vadd.f32 0.0, %v1379
        %v1381 = vpop.f32.mrb[0].mxu0
        %1382 = vmatprep.mubr.f32.mxu0 0.0
        %1383 = vmatmul.mubr.f32.gmra.mrb[0].mxu0 %v1203
        %v1384 = vpop.f32.mrb[0].mxu0
        %v1385 = vadd.f32 0.0, %v1384
        %v1386 = vpop.f32.mrb[0].mxu0
        %1387 = vmatprep.mubr.f32.mxu0 0.0
        %1388 = vmatmul.mubr.f32.gmra.mrb[0].mxu0 %v1206
        %v1389 = vpop.f32.mrb[0].mxu0
        %v1390 = vadd.f32 0.0, %v1389
        %v1391 = vpop.f32.mrb[0].mxu0
        %1392 = vdwg.mxu0
        %v1393 = vadd.f32 %v1087, %v1275
        %v1394 = vadd.f32 %v1088, %v1280
        %v1395 = vadd.f32 %v1089, %v1285
        %v1396 = vadd.f32 %v1090, %v1290
        %v1397 = vadd.f32 %v1091, %v1295
        %v1398 = vadd.f32 %v1092, %v1300
        %v1399 = vadd.f32 %v1093, %v1305
        %v1400 = vadd.f32 %v1094, %v1310
        %v1401 = vadd.f32 %v1095, %v1315
        %v1402 = vadd.f32 %v1096, %v1320
        %v1403 = vadd.f32 %v1097, %v1325
        %v1404 = vadd.f32 %v1098, %v1330
        %v1405 = vadd.f32 %v1099, %v1335
        %v1406 = vadd.f32 %v1100, %v1340
        %v1407 = vadd.f32 %v1101, %v1345
        %v1408 = vadd.f32 %v1102, %v1350
        %v1409 = vadd.f32 %v1103, %v1355
        %v1410 = vadd.f32 %v1104, %v1360
        %v1411 = vadd.f32 %v1105, %v1365
        %v1412 = vadd.f32 %v1106, %v1370
        %v1413 = vadd.f32 %v1107, %v1375
        %v1414 = vadd.f32 %v1108, %v1380
        %v1415 = vadd.f32 %v1109, %v1385
        %v1416 = vadd.f32 %v1110, %v1390
        %v1417 = vld [vmem:[%s234 + $0x4] sm:$0xff]
        %v1418 = vld [vmem:[%s234 + $0xc] sm:$0xff]
        %v1419 = vld [vmem:[%s234 + $0x14] sm:$0xff]
        %v1420 = vld [vmem:[%s234 + $0x1c] sm:$0xff]
        %v1421 = vld [vmem:[%s234 + $0x24] sm:$0xff]
        %v1422 = vld [vmem:[%s234 + $0x2c] sm:$0xff]
        %v1423 = vld [vmem:[%s234 + $0x34] sm:$0xff]
        %v1424 = vld [vmem:[%s234 + $0x3c] sm:$0xff]
        %v1425 = vld [vmem:[%s234 + $0x44] sm:$0xff]
        %v1426 = vld [vmem:[%s234 + $0x4c] sm:$0xff]
        %v1427 = vld [vmem:[%s234 + $0x54] sm:$0xff]
        %v1428 = vld [vmem:[%s234 + $0x5c] sm:$0xff]
        %v1429 = vld [vmem:[%s234 + $0x64] sm:$0xff]
        %v1430 = vld [vmem:[%s234 + $0x6c] sm:$0xff]
        %v1431 = vld [vmem:[%s234 + $0x74] sm:$0xff]
        %v1432 = vld [vmem:[%s234 + $0x7c] sm:$0xff]
        %v1433 = vld [vmem:[%s234 + $0x84] sm:$0xff]
        %v1434 = vld [vmem:[%s234 + $0x8c] sm:$0xff]
        %v1435 = vld [vmem:[%s234 + $0x94] sm:$0xff]
        %v1436 = vld [vmem:[%s234 + $0x9c] sm:$0xff]
        %v1437 = vld [vmem:[%s234 + $0xa4] sm:$0xff]
        %v1438 = vld [vmem:[%s234 + $0xac] sm:$0xff]
        %v1439 = vld [vmem:[%s234 + $0xb4] sm:$0xff]
        %v1440 = vld [vmem:[%s234 + $0xbc] sm:$0xf]
        %v1441 = vld [vmem:[#allocation2 + $0x20] sm:$0xff]
        %v1443 = vsel %vm290, %v1417, 0
        %v1446 = vsel %vm290, %v1418, 0
        %v1449 = vsel %vm290, %v1419, 0
        %v1452 = vsel %vm290, %v1420, 0
        %v1455 = vsel %vm290, %v1421, 0
        %v1458 = vsel %vm290, %v1422, 0
        %v1461 = vsel %vm290, %v1423, 0
        %v1464 = vsel %vm290, %v1424, 0
        %v1467 = vsel %vm290, %v1425, 0
        %v1470 = vsel %vm290, %v1426, 0
        %v1473 = vsel %vm290, %v1427, 0
        %v1476 = vsel %vm290, %v1428, 0
        %v1479 = vsel %vm290, %v1429, 0
        %v1482 = vsel %vm290, %v1430, 0
        %v1485 = vsel %vm290, %v1431, 0
        %v1488 = vsel %vm290, %v1432, 0
        %v1491 = vsel %vm290, %v1433, 0
        %v1494 = vsel %vm290, %v1434, 0
        %v1497 = vsel %vm290, %v1435, 0
        %v1500 = vsel %vm290, %v1436, 0
        %v1503 = vsel %vm290, %v1437, 0
        %v1506 = vsel %vm290, %v1438, 0
        %v1509 = vsel %vm290, %v1439, 0
        %v1512 = vsel %vm290, %v1440, 0
        %1514 = vmatprep.subr.mxu0 0.0
        %1515 = vmatpush1.msra.mxu0 %v1441
        %1516 = vmatprep.subr.mxu0 0.0
        %1517 = vmatpush1.msra.mxu0 0.0
        %1518 = vmatprep.subr.mxu0 0.0
        %1519 = vmatpush1.msra.mxu0 0.0
        %1520 = vmatprep.subr.mxu0 0.0
        %1521 = vmatpush1.msra.mxu0 0.0
        %1522 = vmatprep.subr.mxu0 0.0
        %1523 = vmatpush1.msra.mxu0 0.0
        %1524 = vmatprep.subr.mxu0 0.0
        %1525 = vmatpush1.msra.mxu0 0.0
        %1526 = vmatprep.subr.mxu0 0.0
        %1527 = vmatpush1.msra.mxu0 0.0
        %1528 = vmatprep.subr.mxu0 0.0
        %1529 = vmatpush1.msra.mxu0 0.0
        %1530 = vmatprep.subr.mxu0 0.0
        %1531 = vmatpush1.msra.mxu0 0.0
        %1532 = vmatprep.subr.mxu0 0.0
        %1533 = vmatpush1.msra.mxu0 0.0
        %1534 = vmatprep.subr.mxu0 0.0
        %1535 = vmatpush1.msra.mxu0 0.0
        %1536 = vmatprep.subr.mxu0 0.0
        %1537 = vmatpush1.msra.mxu0 0.0
        %1538 = vmatprep.subr.mxu0 0.0
        %1539 = vmatpush1.msra.mxu0 0.0
        %1540 = vmatprep.subr.mxu0 0.0
        %1541 = vmatpush1.msra.mxu0 0.0
        %1542 = vmatprep.subr.mxu0 0.0
        %1543 = vmatpush1.msra.mxu0 0.0
        %1544 = vmatprep.subr.mxu0 0.0
        %1545 = vmatpush1.msra.mxu0 0.0
        %1546 = vmatprep.subr.mxu0 0.0
        %1547 = vmatpush1.msra.mxu0 0.0
        %1548 = vmatprep.subr.mxu0 0.0
        %1549 = vmatpush1.msra.mxu0 0.0
        %1550 = vmatprep.subr.mxu0 0.0
        %1551 = vmatpush1.msra.mxu0 0.0
        %1552 = vmatprep.subr.mxu0 0.0
        %1553 = vmatpush1.msra.mxu0 0.0
        %1554 = vmatprep.subr.mxu0 0.0
        %1555 = vmatpush1.msra.mxu0 0.0
        %1556 = vmatprep.subr.mxu0 0.0
        %1557 = vmatpush1.msra.mxu0 0.0
        %1558 = vmatprep.subr.mxu0 0.0
        %1559 = vmatpush1.msra.mxu0 0.0
        %1560 = vmatprep.subr.mxu0 0.0
        %1561 = vmatpush1.msra.mxu0 0.0
        %1562 = vmatprep.subr.mxu0 0.0
        %1563 = vmatpush1.msra.mxu0 0.0
        %1564 = vmatprep.subr.mxu0 0.0
        %1565 = vmatpush1.msra.mxu0 0.0
        %1566 = vmatprep.subr.mxu0 0.0
        %1567 = vmatpush1.msra.mxu0 0.0
        %1568 = vmatprep.subr.mxu0 0.0
        %1569 = vmatpush1.msra.mxu0 0.0
        %1570 = vmatprep.subr.mxu0 0.0
        %1571 = vmatpush1.msra.mxu0 0.0
        %1572 = vmatprep.subr.mxu0 0.0
        %1573 = vmatpush1.msra.mxu0 0.0
        %1574 = vmatprep.subr.mxu0 0.0
        %1575 = vmatpush1.msra.mxu0 0.0
        %1576 = vmatprep.subr.mxu0 0.0
        %1577 = vmatpush1.msra.mxu0 0.0
        %1578 = vmatprep.mubr.f32.mxu0 0.0
        %1579 = vmatmul.mubr.f32.gmra.mrb[0].mxu0 %v1443
        %v1580 = vpop.f32.mrb[0].mxu0
        %v1581 = vadd.f32 0.0, %v1580
        %v1582 = vpop.f32.mrb[0].mxu0
        %1583 = vmatprep.mubr.f32.mxu0 0.0
        %1584 = vmatmul.mubr.f32.gmra.mrb[0].mxu0 %v1446
        %v1585 = vpop.f32.mrb[0].mxu0
        %v1586 = vadd.f32 0.0, %v1585
        %v1587 = vpop.f32.mrb[0].mxu0
        %1588 = vmatprep.mubr.f32.mxu0 0.0
        %1589 = vmatmul.mubr.f32.gmra.mrb[0].mxu0 %v1449
        %v1590 = vpop.f32.mrb[0].mxu0
        %v1591 = vadd.f32 0.0, %v1590
        %v1592 = vpop.f32.mrb[0].mxu0
        %1593 = vmatprep.mubr.f32.mxu0 0.0
        %1594 = vmatmul.mubr.f32.gmra.mrb[0].mxu0 %v1452
        %v1595 = vpop.f32.mrb[0].mxu0
        %v1596 = vadd.f32 0.0, %v1595
        %v1597 = vpop.f32.mrb[0].mxu0
        %1598 = vmatprep.mubr.f32.mxu0 0.0
        %1599 = vmatmul.mubr.f32.gmra.mrb[0].mxu0 %v1455
        %v1600 = vpop.f32.mrb[0].mxu0
        %v1601 = vadd.f32 0.0, %v1600
        %v1602 = vpop.f32.mrb[0].mxu0
        %1603 = vmatprep.mubr.f32.mxu0 0.0
        %1604 = vmatmul.mubr.f32.gmra.mrb[0].mxu0 %v1458
        %v1605 = vpop.f32.mrb[0].mxu0
        %v1606 = vadd.f32 0.0, %v1605
        %v1607 = vpop.f32.mrb[0].mxu0
        %1608 = vmatprep.mubr.f32.mxu0 0.0
        %1609 = vmatmul.mubr.f32.gmra.mrb[0].mxu0 %v1461
        %v1610 = vpop.f32.mrb[0].mxu0
        %v1611 = vadd.f32 0.0, %v1610
        %v1612 = vpop.f32.mrb[0].mxu0
        %1613 = vmatprep.mubr.f32.mxu0 0.0
        %1614 = vmatmul.mubr.f32.gmra.mrb[0].mxu0 %v1464
        %v1615 = vpop.f32.mrb[0].mxu0
        %v1616 = vadd.f32 0.0, %v1615
        %v1617 = vpop.f32.mrb[0].mxu0
        %1618 = vmatprep.mubr.f32.mxu0 0.0
        %1619 = vmatmul.mubr.f32.gmra.mrb[0].mxu0 %v1467
        %v1620 = vpop.f32.mrb[0].mxu0
        %v1621 = vadd.f32 0.0, %v1620
        %v1622 = vpop.f32.mrb[0].mxu0
        %1623 = vmatprep.mubr.f32.mxu0 0.0
        %1624 = vmatmul.mubr.f32.gmra.mrb[0].mxu0 %v1470
        %v1625 = vpop.f32.mrb[0].mxu0
        %v1626 = vadd.f32 0.0, %v1625
        %v1627 = vpop.f32.mrb[0].mxu0
        %1628 = vmatprep.mubr.f32.mxu0 0.0
        %1629 = vmatmul.mubr.f32.gmra.mrb[0].mxu0 %v1473
        %v1630 = vpop.f32.mrb[0].mxu0
        %v1631 = vadd.f32 0.0, %v1630
        %v1632 = vpop.f32.mrb[0].mxu0
        %1633 = vmatprep.mubr.f32.mxu0 0.0
        %1634 = vmatmul.mubr.f32.gmra.mrb[0].mxu0 %v1476
        %v1635 = vpop.f32.mrb[0].mxu0
        %v1636 = vadd.f32 0.0, %v1635
        %v1637 = vpop.f32.mrb[0].mxu0
        %1638 = vmatprep.mubr.f32.mxu0 0.0
        %1639 = vmatmul.mubr.f32.gmra.mrb[0].mxu0 %v1479
        %v1640 = vpop.f32.mrb[0].mxu0
        %v1641 = vadd.f32 0.0, %v1640
        %v1642 = vpop.f32.mrb[0].mxu0
        %1643 = vmatprep.mubr.f32.mxu0 0.0
        %1644 = vmatmul.mubr.f32.gmra.mrb[0].mxu0 %v1482
        %v1645 = vpop.f32.mrb[0].mxu0
        %v1646 = vadd.f32 0.0, %v1645
        %v1647 = vpop.f32.mrb[0].mxu0
        %1648 = vmatprep.mubr.f32.mxu0 0.0
        %1649 = vmatmul.mubr.f32.gmra.mrb[0].mxu0 %v1485
        %v1650 = vpop.f32.mrb[0].mxu0
        %v1651 = vadd.f32 0.0, %v1650
        %v1652 = vpop.f32.mrb[0].mxu0
        %1653 = vmatprep.mubr.f32.mxu0 0.0
        %1654 = vmatmul.mubr.f32.gmra.mrb[0].mxu0 %v1488
        %v1655 = vpop.f32.mrb[0].mxu0
        %v1656 = vadd.f32 0.0, %v1655
        %v1657 = vpop.f32.mrb[0].mxu0
        %1658 = vmatprep.mubr.f32.mxu0 0.0
        %1659 = vmatmul.mubr.f32.gmra.mrb[0].mxu0 %v1491
        %v1660 = vpop.f32.mrb[0].mxu0
        %v1661 = vadd.f32 0.0, %v1660
        %v1662 = vpop.f32.mrb[0].mxu0
        %1663 = vmatprep.mubr.f32.mxu0 0.0
        %1664 = vmatmul.mubr.f32.gmra.mrb[0].mxu0 %v1494
        %v1665 = vpop.f32.mrb[0].mxu0
        %v1666 = vadd.f32 0.0, %v1665
        %v1667 = vpop.f32.mrb[0].mxu0
        %1668 = vmatprep.mubr.f32.mxu0 0.0
        %1669 = vmatmul.mubr.f32.gmra.mrb[0].mxu0 %v1497
        %v1670 = vpop.f32.mrb[0].mxu0
        %v1671 = vadd.f32 0.0, %v1670
        %v1672 = vpop.f32.mrb[0].mxu0
        %1673 = vmatprep.mubr.f32.mxu0 0.0
        %1674 = vmatmul.mubr.f32.gmra.mrb[0].mxu0 %v1500
        %v1675 = vpop.f32.mrb[0].mxu0
        %v1676 = vadd.f32 0.0, %v1675
        %v1677 = vpop.f32.mrb[0].mxu0
        %1678 = vmatprep.mubr.f32.mxu0 0.0
        %1679 = vmatmul.mubr.f32.gmra.mrb[0].mxu0 %v1503
        %v1680 = vpop.f32.mrb[0].mxu0
        %v1681 = vadd.f32 0.0, %v1680
        %v1682 = vpop.f32.mrb[0].mxu0
        %1683 = vmatprep.mubr.f32.mxu0 0.0
        %1684 = vmatmul.mubr.f32.gmra.mrb[0].mxu0 %v1506
        %v1685 = vpop.f32.mrb[0].mxu0
        %v1686 = vadd.f32 0.0, %v1685
        %v1687 = vpop.f32.mrb[0].mxu0
        %1688 = vmatprep.mubr.f32.mxu0 0.0
        %1689 = vmatmul.mubr.f32.gmra.mrb[0].mxu0 %v1509
        %v1690 = vpop.f32.mrb[0].mxu0
        %v1691 = vadd.f32 0.0, %v1690
        %v1692 = vpop.f32.mrb[0].mxu0
        %1693 = vmatprep.mubr.f32.mxu0 0.0
        %1694 = vmatmul.mubr.f32.gmra.mrb[0].mxu0 %v1512
        %v1695 = vpop.f32.mrb[0].mxu0
        %v1696 = vadd.f32 0.0, %v1695
        %v1697 = vpop.f32.mrb[0].mxu0
        %1698 = vdwg.mxu0
        %v1699 = vadd.f32 %v1393, %v1581
        %v1700 = vadd.f32 %v1394, %v1586
        %v1701 = vadd.f32 %v1395, %v1591
        %v1702 = vadd.f32 %v1396, %v1596
        %v1703 = vadd.f32 %v1397, %v1601
        %v1704 = vadd.f32 %v1398, %v1606
        %v1705 = vadd.f32 %v1399, %v1611
        %v1706 = vadd.f32 %v1400, %v1616
        %v1707 = vadd.f32 %v1401, %v1621
        %v1708 = vadd.f32 %v1402, %v1626
        %v1709 = vadd.f32 %v1403, %v1631
        %v1710 = vadd.f32 %v1404, %v1636
        %v1711 = vadd.f32 %v1405, %v1641
        %v1712 = vadd.f32 %v1406, %v1646
        %v1713 = vadd.f32 %v1407, %v1651
        %v1714 = vadd.f32 %v1408, %v1656
        %v1715 = vadd.f32 %v1409, %v1661
        %v1716 = vadd.f32 %v1410, %v1666
        %v1717 = vadd.f32 %v1411, %v1671
        %v1718 = vadd.f32 %v1412, %v1676
        %v1719 = vadd.f32 %v1413, %v1681
        %v1720 = vadd.f32 %v1414, %v1686
        %v1721 = vadd.f32 %v1415, %v1691
        %v1722 = vadd.f32 %v1416, %v1696
        %v1723 = vld [vmem:[%s234 + $0x10] sm:$0xff]
        %v1724 = vld [vmem:[%s234 + $0x18] sm:$0xff]
        %v1725 = vld [vmem:[%s234 + $0x20] sm:$0xff]
        %v1726 = vld [vmem:[%s234 + $0x28] sm:$0xff]
        %v1727 = vld [vmem:[%s234 + $0x30] sm:$0xff]
        %v1728 = vld [vmem:[%s234 + $0x38] sm:$0xff]
        %v1729 = vld [vmem:[%s234 + $0x40] sm:$0xff]
        %v1730 = vld [vmem:[%s234 + $0x48] sm:$0xff]
        %v1731 = vld [vmem:[%s234 + $0x50] sm:$0xff]
        %v1732 = vld [vmem:[%s234 + $0x58] sm:$0xff]
        %v1733 = vld [vmem:[%s234 + $0x60] sm:$0xff]
        %v1734 = vld [vmem:[%s234 + $0x68] sm:$0xff]
        %v1735 = vld [vmem:[%s234 + $0x70] sm:$0xff]
        %v1736 = vld [vmem:[%s234 + $0x78] sm:$0xff]
        %v1737 = vld [vmem:[%s234 + $0x80] sm:$0xff]
        %v1738 = vld [vmem:[%s234 + $0x88] sm:$0xff]
        %v1739 = vld [vmem:[%s234 + $0x90] sm:$0xff]
        %v1740 = vld [vmem:[%s234 + $0x98] sm:$0xff]
        %v1741 = vld [vmem:[%s234 + $0xa0] sm:$0xff]
        %v1742 = vld [vmem:[%s234 + $0xa8] sm:$0xff]
        %v1743 = vld [vmem:[%s234 + $0xb0] sm:$0xff]
        %v1744 = vld [vmem:[%s234 + $0xb8] sm:$0xff]
        %v1745 = vld [vmem:[%s234 + $0xc0] sm:$0xff]
        %v1746 = vld [vmem:[%s234 + $0xc8] sm:$0xf]
        %v1747 = vld [vmem:[#allocation2 + $0x28] sm:$0xff]
        %v1749 = vsel %vm290, %v1723, 0
        %v1752 = vsel %vm290, %v1724, 0
        %v1755 = vsel %vm290, %v1725, 0
        %v1758 = vsel %vm290, %v1726, 0
        %v1761 = vsel %vm290, %v1727, 0
        %v1764 = vsel %vm290, %v1728, 0
        %v1767 = vsel %vm290, %v1729, 0
        %v1770 = vsel %vm290, %v1730, 0
        %v1773 = vsel %vm290, %v1731, 0
        %v1776 = vsel %vm290, %v1732, 0
        %v1779 = vsel %vm290, %v1733, 0
        %v1782 = vsel %vm290, %v1734, 0
        %v1785 = vsel %vm290, %v1735, 0
        %v1788 = vsel %vm290, %v1736, 0
        %v1791 = vsel %vm290, %v1737, 0
        %v1794 = vsel %vm290, %v1738, 0
        %v1797 = vsel %vm290, %v1739, 0
        %v1800 = vsel %vm290, %v1740, 0
        %v1803 = vsel %vm290, %v1741, 0
        %v1806 = vsel %vm290, %v1742, 0
        %v1809 = vsel %vm290, %v1743, 0
        %v1812 = vsel %vm290, %v1744, 0
        %v1815 = vsel %vm290, %v1745, 0
        %v1818 = vsel %vm290, %v1746, 0
        %1820 = vmatprep.subr.mxu0 0.0
        %1821 = vmatpush1.msra.mxu0 %v1747
        %1822 = vmatprep.subr.mxu0 0.0
        %1823 = vmatpush1.msra.mxu0 0.0
        %1824 = vmatprep.subr.mxu0 0.0
        %1825 = vmatpush1.msra.mxu0 0.0
        %1826 = vmatprep.subr.mxu0 0.0
        %1827 = vmatpush1.msra.mxu0 0.0
        %1828 = vmatprep.subr.mxu0 0.0
        %1829 = vmatpush1.msra.mxu0 0.0
        %1830 = vmatprep.subr.mxu0 0.0
        %1831 = vmatpush1.msra.mxu0 0.0
        %1832 = vmatprep.subr.mxu0 0.0
        %1833 = vmatpush1.msra.mxu0 0.0
        %1834 = vmatprep.subr.mxu0 0.0
        %1835 = vmatpush1.msra.mxu0 0.0
        %1836 = vmatprep.subr.mxu0 0.0
        %1837 = vmatpush1.msra.mxu0 0.0
        %1838 = vmatprep.subr.mxu0 0.0
        %1839 = vmatpush1.msra.mxu0 0.0
        %1840 = vmatprep.subr.mxu0 0.0
        %1841 = vmatpush1.msra.mxu0 0.0
        %1842 = vmatprep.subr.mxu0 0.0
        %1843 = vmatpush1.msra.mxu0 0.0
        %1844 = vmatprep.subr.mxu0 0.0
        %1845 = vmatpush1.msra.mxu0 0.0
        %1846 = vmatprep.subr.mxu0 0.0
        %1847 = vmatpush1.msra.mxu0 0.0
        %1848 = vmatprep.subr.mxu0 0.0
        %1849 = vmatpush1.msra.mxu0 0.0
        %1850 = vmatprep.subr.mxu0 0.0
        %1851 = vmatpush1.msra.mxu0 0.0
        %1852 = vmatprep.subr.mxu0 0.0
        %1853 = vmatpush1.msra.mxu0 0.0
        %1854 = vmatprep.subr.mxu0 0.0
        %1855 = vmatpush1.msra.mxu0 0.0
        %1856 = vmatprep.subr.mxu0 0.0
        %1857 = vmatpush1.msra.mxu0 0.0
        %1858 = vmatprep.subr.mxu0 0.0
        %1859 = vmatpush1.msra.mxu0 0.0
        %1860 = vmatprep.subr.mxu0 0.0
        %1861 = vmatpush1.msra.mxu0 0.0
        %1862 = vmatprep.subr.mxu0 0.0
        %1863 = vmatpush1.msra.mxu0 0.0
        %1864 = vmatprep.subr.mxu0 0.0
        %1865 = vmatpush1.msra.mxu0 0.0
        %1866 = vmatprep.subr.mxu0 0.0
        %1867 = vmatpush1.msra.mxu0 0.0
        %1868 = vmatprep.subr.mxu0 0.0
        %1869 = vmatpush1.msra.mxu0 0.0
        %1870 = vmatprep.subr.mxu0 0.0
        %1871 = vmatpush1.msra.mxu0 0.0
        %1872 = vmatprep.subr.mxu0 0.0
        %1873 = vmatpush1.msra.mxu0 0.0
        %1874 = vmatprep.subr.mxu0 0.0
        %1875 = vmatpush1.msra.mxu0 0.0
        %1876 = vmatprep.subr.mxu0 0.0
        %1877 = vmatpush1.msra.mxu0 0.0
        %1878 = vmatprep.subr.mxu0 0.0
        %1879 = vmatpush1.msra.mxu0 0.0
        %1880 = vmatprep.subr.mxu0 0.0
        %1881 = vmatpush1.msra.mxu0 0.0
        %1882 = vmatprep.subr.mxu0 0.0
        %1883 = vmatpush1.msra.mxu0 0.0
        %1884 = vmatprep.mubr.f32.mxu0 0.0
        %1885 = vmatmul.mubr.f32.gmra.mrb[0].mxu0 %v1749
        %v1886 = vpop.f32.mrb[0].mxu0
        %v1887 = vadd.f32 0.0, %v1886
        %v1888 = vpop.f32.mrb[0].mxu0
        %1889 = vmatprep.mubr.f32.mxu0 0.0
        %1890 = vmatmul.mubr.f32.gmra.mrb[0].mxu0 %v1752
        %v1891 = vpop.f32.mrb[0].mxu0
        %v1892 = vadd.f32 0.0, %v1891
        %v1893 = vpop.f32.mrb[0].mxu0
        %1894 = vmatprep.mubr.f32.mxu0 0.0
        %1895 = vmatmul.mubr.f32.gmra.mrb[0].mxu0 %v1755
        %v1896 = vpop.f32.mrb[0].mxu0
        %v1897 = vadd.f32 0.0, %v1896
        %v1898 = vpop.f32.mrb[0].mxu0
        %1899 = vmatprep.mubr.f32.mxu0 0.0
        %1900 = vmatmul.mubr.f32.gmra.mrb[0].mxu0 %v1758
        %v1901 = vpop.f32.mrb[0].mxu0
        %v1902 = vadd.f32 0.0, %v1901
        %v1903 = vpop.f32.mrb[0].mxu0
        %1904 = vmatprep.mubr.f32.mxu0 0.0
        %1905 = vmatmul.mubr.f32.gmra.mrb[0].mxu0 %v1761
        %v1906 = vpop.f32.mrb[0].mxu0
        %v1907 = vadd.f32 0.0, %v1906
        %v1908 = vpop.f32.mrb[0].mxu0
        %1909 = vmatprep.mubr.f32.mxu0 0.0
        %1910 = vmatmul.mubr.f32.gmra.mrb[0].mxu0 %v1764
        %v1911 = vpop.f32.mrb[0].mxu0
        %v1912 = vadd.f32 0.0, %v1911
        %v1913 = vpop.f32.mrb[0].mxu0
        %1914 = vmatprep.mubr.f32.mxu0 0.0
        %1915 = vmatmul.mubr.f32.gmra.mrb[0].mxu0 %v1767
        %v1916 = vpop.f32.mrb[0].mxu0
        %v1917 = vadd.f32 0.0, %v1916
        %v1918 = vpop.f32.mrb[0].mxu0
        %1919 = vmatprep.mubr.f32.mxu0 0.0
        %1920 = vmatmul.mubr.f32.gmra.mrb[0].mxu0 %v1770
        %v1921 = vpop.f32.mrb[0].mxu0
        %v1922 = vadd.f32 0.0, %v1921
        %v1923 = vpop.f32.mrb[0].mxu0
        %1924 = vmatprep.mubr.f32.mxu0 0.0
        %1925 = vmatmul.mubr.f32.gmra.mrb[0].mxu0 %v1773
        %v1926 = vpop.f32.mrb[0].mxu0
        %v1927 = vadd.f32 0.0, %v1926
        %v1928 = vpop.f32.mrb[0].mxu0
        %1929 = vmatprep.mubr.f32.mxu0 0.0
        %1930 = vmatmul.mubr.f32.gmra.mrb[0].mxu0 %v1776
        %v1931 = vpop.f32.mrb[0].mxu0
        %v1932 = vadd.f32 0.0, %v1931
        %v1933 = vpop.f32.mrb[0].mxu0
        %1934 = vmatprep.mubr.f32.mxu0 0.0
        %1935 = vmatmul.mubr.f32.gmra.mrb[0].mxu0 %v1779
        %v1936 = vpop.f32.mrb[0].mxu0
        %v1937 = vadd.f32 0.0, %v1936
        %v1938 = vpop.f32.mrb[0].mxu0
        %1939 = vmatprep.mubr.f32.mxu0 0.0
        %1940 = vmatmul.mubr.f32.gmra.mrb[0].mxu0 %v1782
        %v1941 = vpop.f32.mrb[0].mxu0
        %v1942 = vadd.f32 0.0, %v1941
        %v1943 = vpop.f32.mrb[0].mxu0
        %1944 = vmatprep.mubr.f32.mxu0 0.0
        %1945 = vmatmul.mubr.f32.gmra.mrb[0].mxu0 %v1785
        %v1946 = vpop.f32.mrb[0].mxu0
        %v1947 = vadd.f32 0.0, %v1946
        %v1948 = vpop.f32.mrb[0].mxu0
        %1949 = vmatprep.mubr.f32.mxu0 0.0
        %1950 = vmatmul.mubr.f32.gmra.mrb[0].mxu0 %v1788
        %v1951 = vpop.f32.mrb[0].mxu0
        %v1952 = vadd.f32 0.0, %v1951
        %v1953 = vpop.f32.mrb[0].mxu0
        %1954 = vmatprep.mubr.f32.mxu0 0.0
        %1955 = vmatmul.mubr.f32.gmra.mrb[0].mxu0 %v1791
        %v1956 = vpop.f32.mrb[0].mxu0
        %v1957 = vadd.f32 0.0, %v1956
        %v1958 = vpop.f32.mrb[0].mxu0
        %1959 = vmatprep.mubr.f32.mxu0 0.0
        %1960 = vmatmul.mubr.f32.gmra.mrb[0].mxu0 %v1794
        %v1961 = vpop.f32.mrb[0].mxu0
        %v1962 = vadd.f32 0.0, %v1961
        %v1963 = vpop.f32.mrb[0].mxu0
        %1964 = vmatprep.mubr.f32.mxu0 0.0
        %1965 = vmatmul.mubr.f32.gmra.mrb[0].mxu0 %v1797
        %v1966 = vpop.f32.mrb[0].mxu0
        %v1967 = vadd.f32 0.0, %v1966
        %v1968 = vpop.f32.mrb[0].mxu0
        %1969 = vmatprep.mubr.f32.mxu0 0.0
        %1970 = vmatmul.mubr.f32.gmra.mrb[0].mxu0 %v1800
        %v1971 = vpop.f32.mrb[0].mxu0
        %v1972 = vadd.f32 0.0, %v1971
        %v1973 = vpop.f32.mrb[0].mxu0
        %1974 = vmatprep.mubr.f32.mxu0 0.0
        %1975 = vmatmul.mubr.f32.gmra.mrb[0].mxu0 %v1803
        %v1976 = vpop.f32.mrb[0].mxu0
        %v1977 = vadd.f32 0.0, %v1976
        %v1978 = vpop.f32.mrb[0].mxu0
        %1979 = vmatprep.mubr.f32.mxu0 0.0
        %1980 = vmatmul.mubr.f32.gmra.mrb[0].mxu0 %v1806
        %v1981 = vpop.f32.mrb[0].mxu0
        %v1982 = vadd.f32 0.0, %v1981
        %v1983 = vpop.f32.mrb[0].mxu0
        %1984 = vmatprep.mubr.f32.mxu0 0.0
        %1985 = vmatmul.mubr.f32.gmra.mrb[0].mxu0 %v1809
        %v1986 = vpop.f32.mrb[0].mxu0
        %v1987 = vadd.f32 0.0, %v1986
        %v1988 = vpop.f32.mrb[0].mxu0
        %1989 = vmatprep.mubr.f32.mxu0 0.0
        %1990 = vmatmul.mubr.f32.gmra.mrb[0].mxu0 %v1812
        %v1991 = vpop.f32.mrb[0].mxu0
        %v1992 = vadd.f32 0.0, %v1991
        %v1993 = vpop.f32.mrb[0].mxu0
        %1994 = vmatprep.mubr.f32.mxu0 0.0
        %1995 = vmatmul.mubr.f32.gmra.mrb[0].mxu0 %v1815
        %v1996 = vpop.f32.mrb[0].mxu0
        %v1997 = vadd.f32 0.0, %v1996
        %v1998 = vpop.f32.mrb[0].mxu0
        %1999 = vmatprep.mubr.f32.mxu0 0.0
        %2000 = vmatmul.mubr.f32.gmra.mrb[0].mxu0 %v1818
        %v2001 = vpop.f32.mrb[0].mxu0
        %v2002 = vadd.f32 0.0, %v2001
        %v2003 = vpop.f32.mrb[0].mxu0
        %2004 = vdwg.mxu0
        %v2005 = vadd.f32 %v1699, %v1887
        %v2006 = vadd.f32 %v1700, %v1892
        %v2007 = vadd.f32 %v1701, %v1897
        %v2008 = vadd.f32 %v1702, %v1902
        %v2009 = vadd.f32 %v1703, %v1907
        %v2010 = vadd.f32 %v1704, %v1912
        %v2011 = vadd.f32 %v1705, %v1917
        %v2012 = vadd.f32 %v1706, %v1922
        %v2013 = vadd.f32 %v1707, %v1927
        %v2014 = vadd.f32 %v1708, %v1932
        %v2015 = vadd.f32 %v1709, %v1937
        %v2016 = vadd.f32 %v1710, %v1942
        %v2017 = vadd.f32 %v1711, %v1947
        %v2018 = vadd.f32 %v1712, %v1952
        %v2019 = vadd.f32 %v1713, %v1957
        %v2020 = vadd.f32 %v1714, %v1962
        %v2021 = vadd.f32 %v1715, %v1967
        %v2022 = vadd.f32 %v1716, %v1972
        %v2023 = vadd.f32 %v1717, %v1977
        %v2024 = vadd.f32 %v1718, %v1982
        %v2025 = vadd.f32 %v1719, %v1987
        %v2026 = vadd.f32 %v1720, %v1992
        %v2027 = vadd.f32 %v1721, %v1997
        %v2028 = vadd.f32 %v1722, %v2002
        %v2029 = vld [vmem:[%s234 + $0x11] sm:$0xff]
        %v2030 = vld [vmem:[%s234 + $0x19] sm:$0xff]
        %v2031 = vld [vmem:[%s234 + $0x21] sm:$0xff]
        %v2032 = vld [vmem:[%s234 + $0x29] sm:$0xff]
        %v2033 = vld [vmem:[%s234 + $0x31] sm:$0xff]
        %v2034 = vld [vmem:[%s234 + $0x39] sm:$0xff]
        %v2035 = vld [vmem:[%s234 + $0x41] sm:$0xff]
        %v2036 = vld [vmem:[%s234 + $0x49] sm:$0xff]
        %v2037 = vld [vmem:[%s234 + $0x51] sm:$0xff]
        %v2038 = vld [vmem:[%s234 + $0x59] sm:$0xff]
        %v2039 = vld [vmem:[%s234 + $0x61] sm:$0xff]
        %v2040 = vld [vmem:[%s234 + $0x69] sm:$0xff]
        %v2041 = vld [vmem:[%s234 + $0x71] sm:$0xff]
        %v2042 = vld [vmem:[%s234 + $0x79] sm:$0xff]
        %v2043 = vld [vmem:[%s234 + $0x81] sm:$0xff]
        %v2044 = vld [vmem:[%s234 + $0x89] sm:$0xff]
        %v2045 = vld [vmem:[%s234 + $0x91] sm:$0xff]
        %v2046 = vld [vmem:[%s234 + $0x99] sm:$0xff]
        %v2047 = vld [vmem:[%s234 + $0xa1] sm:$0xff]
        %v2048 = vld [vmem:[%s234 + $0xa9] sm:$0xff]
        %v2049 = vld [vmem:[%s234 + $0xb1] sm:$0xff]
        %v2050 = vld [vmem:[%s234 + $0xb9] sm:$0xff]
        %v2051 = vld [vmem:[%s234 + $0xc1] sm:$0xff]
        %v2052 = vld [vmem:[%s234 + $0xc9] sm:$0xf]
        %v2053 = vld [vmem:[#allocation2 + $0x30] sm:$0xff]
        %v2055 = vsel %vm290, %v2029, 0
        %v2058 = vsel %vm290, %v2030, 0
        %v2061 = vsel %vm290, %v2031, 0
        %v2064 = vsel %vm290, %v2032, 0
        %v2067 = vsel %vm290, %v2033, 0
        %v2070 = vsel %vm290, %v2034, 0
        %v2073 = vsel %vm290, %v2035, 0
        %v2076 = vsel %vm290, %v2036, 0
        %v2079 = vsel %vm290, %v2037, 0
        %v2082 = vsel %vm290, %v2038, 0
        %v2085 = vsel %vm290, %v2039, 0
        %v2088 = vsel %vm290, %v2040, 0
        %v2091 = vsel %vm290, %v2041, 0
        %v2094 = vsel %vm290, %v2042, 0
        %v2097 = vsel %vm290, %v2043, 0
        %v2100 = vsel %vm290, %v2044, 0
        %v2103 = vsel %vm290, %v2045, 0
        %v2106 = vsel %vm290, %v2046, 0
        %v2109 = vsel %vm290, %v2047, 0
        %v2112 = vsel %vm290, %v2048, 0
        %v2115 = vsel %vm290, %v2049, 0
        %v2118 = vsel %vm290, %v2050, 0
        %v2121 = vsel %vm290, %v2051, 0
        %v2124 = vsel %vm290, %v2052, 0
        %2126 = vmatprep.subr.mxu0 0.0
        %2127 = vmatpush1.msra.mxu0 %v2053
        %2128 = vmatprep.subr.mxu0 0.0
        %2129 = vmatpush1.msra.mxu0 0.0
        %2130 = vmatprep.subr.mxu0 0.0
        %2131 = vmatpush1.msra.mxu0 0.0
        %2132 = vmatprep.subr.mxu0 0.0
        %2133 = vmatpush1.msra.mxu0 0.0
        %2134 = vmatprep.subr.mxu0 0.0
        %2135 = vmatpush1.msra.mxu0 0.0
        %2136 = vmatprep.subr.mxu0 0.0
        %2137 = vmatpush1.msra.mxu0 0.0
        %2138 = vmatprep.subr.mxu0 0.0
        %2139 = vmatpush1.msra.mxu0 0.0
        %2140 = vmatprep.subr.mxu0 0.0
        %2141 = vmatpush1.msra.mxu0 0.0
        %2142 = vmatprep.subr.mxu0 0.0
        %2143 = vmatpush1.msra.mxu0 0.0
        %2144 = vmatprep.subr.mxu0 0.0
        %2145 = vmatpush1.msra.mxu0 0.0
        %2146 = vmatprep.subr.mxu0 0.0
        %2147 = vmatpush1.msra.mxu0 0.0
        %2148 = vmatprep.subr.mxu0 0.0
        %2149 = vmatpush1.msra.mxu0 0.0
        %2150 = vmatprep.subr.mxu0 0.0
        %2151 = vmatpush1.msra.mxu0 0.0
        %2152 = vmatprep.subr.mxu0 0.0
        %2153 = vmatpush1.msra.mxu0 0.0
        %2154 = vmatprep.subr.mxu0 0.0
        %2155 = vmatpush1.msra.mxu0 0.0
        %2156 = vmatprep.subr.mxu0 0.0
        %2157 = vmatpush1.msra.mxu0 0.0
        %2158 = vmatprep.subr.mxu0 0.0
        %2159 = vmatpush1.msra.mxu0 0.0
        %2160 = vmatprep.subr.mxu0 0.0
        %2161 = vmatpush1.msra.mxu0 0.0
        %2162 = vmatprep.subr.mxu0 0.0
        %2163 = vmatpush1.msra.mxu0 0.0
        %2164 = vmatprep.subr.mxu0 0.0
        %2165 = vmatpush1.msra.mxu0 0.0
        %2166 = vmatprep.subr.mxu0 0.0
        %2167 = vmatpush1.msra.mxu0 0.0
        %2168 = vmatprep.subr.mxu0 0.0
        %2169 = vmatpush1.msra.mxu0 0.0
        %2170 = vmatprep.subr.mxu0 0.0
        %2171 = vmatpush1.msra.mxu0 0.0
        %2172 = vmatprep.subr.mxu0 0.0
        %2173 = vmatpush1.msra.mxu0 0.0
        %2174 = vmatprep.subr.mxu0 0.0
        %2175 = vmatpush1.msra.mxu0 0.0
        %2176 = vmatprep.subr.mxu0 0.0
        %2177 = vmatpush1.msra.mxu0 0.0
        %2178 = vmatprep.subr.mxu0 0.0
        %2179 = vmatpush1.msra.mxu0 0.0
        %2180 = vmatprep.subr.mxu0 0.0
        %2181 = vmatpush1.msra.mxu0 0.0
        %2182 = vmatprep.subr.mxu0 0.0
        %2183 = vmatpush1.msra.mxu0 0.0
        %2184 = vmatprep.subr.mxu0 0.0
        %2185 = vmatpush1.msra.mxu0 0.0
        %2186 = vmatprep.subr.mxu0 0.0
        %2187 = vmatpush1.msra.mxu0 0.0
        %2188 = vmatprep.subr.mxu0 0.0
        %2189 = vmatpush1.msra.mxu0 0.0
        %2190 = vmatprep.mubr.f32.mxu0 0.0
        %2191 = vmatmul.mubr.f32.gmra.mrb[0].mxu0 %v2055
        %v2192 = vpop.f32.mrb[0].mxu0
        %v2193 = vadd.f32 0.0, %v2192
        %v2194 = vpop.f32.mrb[0].mxu0
        %2195 = vmatprep.mubr.f32.mxu0 0.0
        %2196 = vmatmul.mubr.f32.gmra.mrb[0].mxu0 %v2058
        %v2197 = vpop.f32.mrb[0].mxu0
        %v2198 = vadd.f32 0.0, %v2197
        %v2199 = vpop.f32.mrb[0].mxu0
        %2200 = vmatprep.mubr.f32.mxu0 0.0
        %2201 = vmatmul.mubr.f32.gmra.mrb[0].mxu0 %v2061
        %v2202 = vpop.f32.mrb[0].mxu0
        %v2203 = vadd.f32 0.0, %v2202
        %v2204 = vpop.f32.mrb[0].mxu0
        %2205 = vmatprep.mubr.f32.mxu0 0.0
        %2206 = vmatmul.mubr.f32.gmra.mrb[0].mxu0 %v2064
        %v2207 = vpop.f32.mrb[0].mxu0
        %v2208 = vadd.f32 0.0, %v2207
        %v2209 = vpop.f32.mrb[0].mxu0
        %2210 = vmatprep.mubr.f32.mxu0 0.0
        %2211 = vmatmul.mubr.f32.gmra.mrb[0].mxu0 %v2067
        %v2212 = vpop.f32.mrb[0].mxu0
        %v2213 = vadd.f32 0.0, %v2212
        %v2214 = vpop.f32.mrb[0].mxu0
        %2215 = vmatprep.mubr.f32.mxu0 0.0
        %2216 = vmatmul.mubr.f32.gmra.mrb[0].mxu0 %v2070
        %v2217 = vpop.f32.mrb[0].mxu0
        %v2218 = vadd.f32 0.0, %v2217
        %v2219 = vpop.f32.mrb[0].mxu0
        %2220 = vmatprep.mubr.f32.mxu0 0.0
        %2221 = vmatmul.mubr.f32.gmra.mrb[0].mxu0 %v2073
        %v2222 = vpop.f32.mrb[0].mxu0
        %v2223 = vadd.f32 0.0, %v2222
        %v2224 = vpop.f32.mrb[0].mxu0
        %2225 = vmatprep.mubr.f32.mxu0 0.0
        %2226 = vmatmul.mubr.f32.gmra.mrb[0].mxu0 %v2076
        %v2227 = vpop.f32.mrb[0].mxu0
        %v2228 = vadd.f32 0.0, %v2227
        %v2229 = vpop.f32.mrb[0].mxu0
        %2230 = vmatprep.mubr.f32.mxu0 0.0
        %2231 = vmatmul.mubr.f32.gmra.mrb[0].mxu0 %v2079
        %v2232 = vpop.f32.mrb[0].mxu0
        %v2233 = vadd.f32 0.0, %v2232
        %v2234 = vpop.f32.mrb[0].mxu0
        %2235 = vmatprep.mubr.f32.mxu0 0.0
        %2236 = vmatmul.mubr.f32.gmra.mrb[0].mxu0 %v2082
        %v2237 = vpop.f32.mrb[0].mxu0
        %v2238 = vadd.f32 0.0, %v2237
        %v2239 = vpop.f32.mrb[0].mxu0
        %2240 = vmatprep.mubr.f32.mxu0 0.0
        %2241 = vmatmul.mubr.f32.gmra.mrb[0].mxu0 %v2085
        %v2242 = vpop.f32.mrb[0].mxu0
        %v2243 = vadd.f32 0.0, %v2242
        %v2244 = vpop.f32.mrb[0].mxu0
        %2245 = vmatprep.mubr.f32.mxu0 0.0
        %2246 = vmatmul.mubr.f32.gmra.mrb[0].mxu0 %v2088
        %v2247 = vpop.f32.mrb[0].mxu0
        %v2248 = vadd.f32 0.0, %v2247
        %v2249 = vpop.f32.mrb[0].mxu0
        %2250 = vmatprep.mubr.f32.mxu0 0.0
        %2251 = vmatmul.mubr.f32.gmra.mrb[0].mxu0 %v2091
        %v2252 = vpop.f32.mrb[0].mxu0
        %v2253 = vadd.f32 0.0, %v2252
        %v2254 = vpop.f32.mrb[0].mxu0
        %2255 = vmatprep.mubr.f32.mxu0 0.0
        %2256 = vmatmul.mubr.f32.gmra.mrb[0].mxu0 %v2094
        %v2257 = vpop.f32.mrb[0].mxu0
        %v2258 = vadd.f32 0.0, %v2257
        %v2259 = vpop.f32.mrb[0].mxu0
        %2260 = vmatprep.mubr.f32.mxu0 0.0
        %2261 = vmatmul.mubr.f32.gmra.mrb[0].mxu0 %v2097
        %v2262 = vpop.f32.mrb[0].mxu0
        %v2263 = vadd.f32 0.0, %v2262
        %v2264 = vpop.f32.mrb[0].mxu0
        %2265 = vmatprep.mubr.f32.mxu0 0.0
        %2266 = vmatmul.mubr.f32.gmra.mrb[0].mxu0 %v2100
        %v2267 = vpop.f32.mrb[0].mxu0
        %v2268 = vadd.f32 0.0, %v2267
        %v2269 = vpop.f32.mrb[0].mxu0
        %2270 = vmatprep.mubr.f32.mxu0 0.0
        %2271 = vmatmul.mubr.f32.gmra.mrb[0].mxu0 %v2103
        %v2272 = vpop.f32.mrb[0].mxu0
        %v2273 = vadd.f32 0.0, %v2272
        %v2274 = vpop.f32.mrb[0].mxu0
        %2275 = vmatprep.mubr.f32.mxu0 0.0
        %2276 = vmatmul.mubr.f32.gmra.mrb[0].mxu0 %v2106
        %v2277 = vpop.f32.mrb[0].mxu0
        %v2278 = vadd.f32 0.0, %v2277
        %v2279 = vpop.f32.mrb[0].mxu0
        %2280 = vmatprep.mubr.f32.mxu0 0.0
        %2281 = vmatmul.mubr.f32.gmra.mrb[0].mxu0 %v2109
        %v2282 = vpop.f32.mrb[0].mxu0
        %v2283 = vadd.f32 0.0, %v2282
        %v2284 = vpop.f32.mrb[0].mxu0
        %2285 = vmatprep.mubr.f32.mxu0 0.0
        %2286 = vmatmul.mubr.f32.gmra.mrb[0].mxu0 %v2112
        %v2287 = vpop.f32.mrb[0].mxu0
        %v2288 = vadd.f32 0.0, %v2287
        %v2289 = vpop.f32.mrb[0].mxu0
        %2290 = vmatprep.mubr.f32.mxu0 0.0
        %2291 = vmatmul.mubr.f32.gmra.mrb[0].mxu0 %v2115
        %v2292 = vpop.f32.mrb[0].mxu0
        %v2293 = vadd.f32 0.0, %v2292
        %v2294 = vpop.f32.mrb[0].mxu0
        %2295 = vmatprep.mubr.f32.mxu0 0.0
        %2296 = vmatmul.mubr.f32.gmra.mrb[0].mxu0 %v2118
        %v2297 = vpop.f32.mrb[0].mxu0
        %v2298 = vadd.f32 0.0, %v2297
        %v2299 = vpop.f32.mrb[0].mxu0
        %2300 = vmatprep.mubr.f32.mxu0 0.0
        %2301 = vmatmul.mubr.f32.gmra.mrb[0].mxu0 %v2121
        %v2302 = vpop.f32.mrb[0].mxu0
        %v2303 = vadd.f32 0.0, %v2302
        %v2304 = vpop.f32.mrb[0].mxu0
        %2305 = vmatprep.mubr.f32.mxu0 0.0
        %2306 = vmatmul.mubr.f32.gmra.mrb[0].mxu0 %v2124
        %v2307 = vpop.f32.mrb[0].mxu0
        %v2308 = vadd.f32 0.0, %v2307
        %v2309 = vpop.f32.mrb[0].mxu0
        %2310 = vdwg.mxu0
        %v2311 = vadd.f32 %v2005, %v2193
        %v2312 = vadd.f32 %v2006, %v2198
        %v2313 = vadd.f32 %v2007, %v2203
        %v2314 = vadd.f32 %v2008, %v2208
        %v2315 = vadd.f32 %v2009, %v2213
        %v2316 = vadd.f32 %v2010, %v2218
        %v2317 = vadd.f32 %v2011, %v2223
        %v2318 = vadd.f32 %v2012, %v2228
        %v2319 = vadd.f32 %v2013, %v2233
        %v2320 = vadd.f32 %v2014, %v2238
        %v2321 = vadd.f32 %v2015, %v2243
        %v2322 = vadd.f32 %v2016, %v2248
        %v2323 = vadd.f32 %v2017, %v2253
        %v2324 = vadd.f32 %v2018, %v2258
        %v2325 = vadd.f32 %v2019, %v2263
        %v2326 = vadd.f32 %v2020, %v2268
        %v2327 = vadd.f32 %v2021, %v2273
        %v2328 = vadd.f32 %v2022, %v2278
        %v2329 = vadd.f32 %v2023, %v2283
        %v2330 = vadd.f32 %v2024, %v2288
        %v2331 = vadd.f32 %v2025, %v2293
        %v2332 = vadd.f32 %v2026, %v2298
        %v2333 = vadd.f32 %v2027, %v2303
        %v2334 = vadd.f32 %v2028, %v2308
        %v2335 = vld [vmem:[%s234 + $0x12] sm:$0xff]
        %v2336 = vld [vmem:[%s234 + $0x1a] sm:$0xff]
        %v2337 = vld [vmem:[%s234 + $0x22] sm:$0xff]
        %v2338 = vld [vmem:[%s234 + $0x2a] sm:$0xff]
        %v2339 = vld [vmem:[%s234 + $0x32] sm:$0xff]
        %v2340 = vld [vmem:[%s234 + $0x3a] sm:$0xff]
        %v2341 = vld [vmem:[%s234 + $0x42] sm:$0xff]
        %v2342 = vld [vmem:[%s234 + $0x4a] sm:$0xff]
        %v2343 = vld [vmem:[%s234 + $0x52] sm:$0xff]
        %v2344 = vld [vmem:[%s234 + $0x5a] sm:$0xff]
        %v2345 = vld [vmem:[%s234 + $0x62] sm:$0xff]
        %v2346 = vld [vmem:[%s234 + $0x6a] sm:$0xff]
        %v2347 = vld [vmem:[%s234 + $0x72] sm:$0xff]
        %v2348 = vld [vmem:[%s234 + $0x7a] sm:$0xff]
        %v2349 = vld [vmem:[%s234 + $0x82] sm:$0xff]
        %v2350 = vld [vmem:[%s234 + $0x8a] sm:$0xff]
        %v2351 = vld [vmem:[%s234 + $0x92] sm:$0xff]
        %v2352 = vld [vmem:[%s234 + $0x9a] sm:$0xff]
        %v2353 = vld [vmem:[%s234 + $0xa2] sm:$0xff]
        %v2354 = vld [vmem:[%s234 + $0xaa] sm:$0xff]
        %v2355 = vld [vmem:[%s234 + $0xb2] sm:$0xff]
        %v2356 = vld [vmem:[%s234 + $0xba] sm:$0xff]
        %v2357 = vld [vmem:[%s234 + $0xc2] sm:$0xff]
        %v2358 = vld [vmem:[%s234 + $0xca] sm:$0xf]
        %v2359 = vld [vmem:[#allocation2 + $0x38] sm:$0xff]
        %v2361 = vsel %vm290, %v2335, 0
        %v2364 = vsel %vm290, %v2336, 0
        %v2367 = vsel %vm290, %v2337, 0
        %v2370 = vsel %vm290, %v2338, 0
        %v2373 = vsel %vm290, %v2339, 0
        %v2376 = vsel %vm290, %v2340, 0
        %v2379 = vsel %vm290, %v2341, 0
        %v2382 = vsel %vm290, %v2342, 0
        %v2385 = vsel %vm290, %v2343, 0
        %v2388 = vsel %vm290, %v2344, 0
        %v2391 = vsel %vm290, %v2345, 0
        %v2394 = vsel %vm290, %v2346, 0
        %v2397 = vsel %vm290, %v2347, 0
        %v2400 = vsel %vm290, %v2348, 0
        %v2403 = vsel %vm290, %v2349, 0
        %v2406 = vsel %vm290, %v2350, 0
        %v2409 = vsel %vm290, %v2351, 0
        %v2412 = vsel %vm290, %v2352, 0
        %v2415 = vsel %vm290, %v2353, 0
        %v2418 = vsel %vm290, %v2354, 0
        %v2421 = vsel %vm290, %v2355, 0
        %v2424 = vsel %vm290, %v2356, 0
        %v2427 = vsel %vm290, %v2357, 0
        %v2430 = vsel %vm290, %v2358, 0
        %2432 = vmatprep.subr.mxu0 0.0
        %2433 = vmatpush1.msra.mxu0 %v2359
        %2434 = vmatprep.subr.mxu0 0.0
        %2435 = vmatpush1.msra.mxu0 0.0
        %2436 = vmatprep.subr.mxu0 0.0
        %2437 = vmatpush1.msra.mxu0 0.0
        %2438 = vmatprep.subr.mxu0 0.0
        %2439 = vmatpush1.msra.mxu0 0.0
        %2440 = vmatprep.subr.mxu0 0.0
        %2441 = vmatpush1.msra.mxu0 0.0
        %2442 = vmatprep.subr.mxu0 0.0
        %2443 = vmatpush1.msra.mxu0 0.0
        %2444 = vmatprep.subr.mxu0 0.0
        %2445 = vmatpush1.msra.mxu0 0.0
        %2446 = vmatprep.subr.mxu0 0.0
        %2447 = vmatpush1.msra.mxu0 0.0
        %2448 = vmatprep.subr.mxu0 0.0
        %2449 = vmatpush1.msra.mxu0 0.0
        %2450 = vmatprep.subr.mxu0 0.0
        %2451 = vmatpush1.msra.mxu0 0.0
        %2452 = vmatprep.subr.mxu0 0.0
        %2453 = vmatpush1.msra.mxu0 0.0
        %2454 = vmatprep.subr.mxu0 0.0
        %2455 = vmatpush1.msra.mxu0 0.0
        %2456 = vmatprep.subr.mxu0 0.0
        %2457 = vmatpush1.msra.mxu0 0.0
        %2458 = vmatprep.subr.mxu0 0.0
        %2459 = vmatpush1.msra.mxu0 0.0
        %2460 = vmatprep.subr.mxu0 0.0
        %2461 = vmatpush1.msra.mxu0 0.0
        %2462 = vmatprep.subr.mxu0 0.0
        %2463 = vmatpush1.msra.mxu0 0.0
        %2464 = vmatprep.subr.mxu0 0.0
        %2465 = vmatpush1.msra.mxu0 0.0
        %2466 = vmatprep.subr.mxu0 0.0
        %2467 = vmatpush1.msra.mxu0 0.0
        %2468 = vmatprep.subr.mxu0 0.0
        %2469 = vmatpush1.msra.mxu0 0.0
        %2470 = vmatprep.subr.mxu0 0.0
        %2471 = vmatpush1.msra.mxu0 0.0
        %2472 = vmatprep.subr.mxu0 0.0
        %2473 = vmatpush1.msra.mxu0 0.0
        %2474 = vmatprep.subr.mxu0 0.0
        %2475 = vmatpush1.msra.mxu0 0.0
        %2476 = vmatprep.subr.mxu0 0.0
        %2477 = vmatpush1.msra.mxu0 0.0
        %2478 = vmatprep.subr.mxu0 0.0
        %2479 = vmatpush1.msra.mxu0 0.0
        %2480 = vmatprep.subr.mxu0 0.0
        %2481 = vmatpush1.msra.mxu0 0.0
        %2482 = vmatprep.subr.mxu0 0.0
        %2483 = vmatpush1.msra.mxu0 0.0
        %2484 = vmatprep.subr.mxu0 0.0
        %2485 = vmatpush1.msra.mxu0 0.0
        %2486 = vmatprep.subr.mxu0 0.0
        %2487 = vmatpush1.msra.mxu0 0.0
        %2488 = vmatprep.subr.mxu0 0.0
        %2489 = vmatpush1.msra.mxu0 0.0
        %2490 = vmatprep.subr.mxu0 0.0
        %2491 = vmatpush1.msra.mxu0 0.0
        %2492 = vmatprep.subr.mxu0 0.0
        %2493 = vmatpush1.msra.mxu0 0.0
        %2494 = vmatprep.subr.mxu0 0.0
        %2495 = vmatpush1.msra.mxu0 0.0
        %2496 = vmatprep.mubr.f32.mxu0 0.0
        %2497 = vmatmul.mubr.f32.gmra.mrb[0].mxu0 %v2361
        %v2498 = vpop.f32.mrb[0].mxu0
        %v2499 = vadd.f32 0.0, %v2498
        %v2500 = vpop.f32.mrb[0].mxu0
        %2501 = vmatprep.mubr.f32.mxu0 0.0
        %2502 = vmatmul.mubr.f32.gmra.mrb[0].mxu0 %v2364
        %v2503 = vpop.f32.mrb[0].mxu0
        %v2504 = vadd.f32 0.0, %v2503
        %v2505 = vpop.f32.mrb[0].mxu0
        %2506 = vmatprep.mubr.f32.mxu0 0.0
        %2507 = vmatmul.mubr.f32.gmra.mrb[0].mxu0 %v2367
        %v2508 = vpop.f32.mrb[0].mxu0
        %v2509 = vadd.f32 0.0, %v2508
        %v2510 = vpop.f32.mrb[0].mxu0
        %2511 = vmatprep.mubr.f32.mxu0 0.0
        %2512 = vmatmul.mubr.f32.gmra.mrb[0].mxu0 %v2370
        %v2513 = vpop.f32.mrb[0].mxu0
        %v2514 = vadd.f32 0.0, %v2513
        %v2515 = vpop.f32.mrb[0].mxu0
        %2516 = vmatprep.mubr.f32.mxu0 0.0
        %2517 = vmatmul.mubr.f32.gmra.mrb[0].mxu0 %v2373
        %v2518 = vpop.f32.mrb[0].mxu0
        %v2519 = vadd.f32 0.0, %v2518
        %v2520 = vpop.f32.mrb[0].mxu0
        %2521 = vmatprep.mubr.f32.mxu0 0.0
        %2522 = vmatmul.mubr.f32.gmra.mrb[0].mxu0 %v2376
        %v2523 = vpop.f32.mrb[0].mxu0
        %v2524 = vadd.f32 0.0, %v2523
        %v2525 = vpop.f32.mrb[0].mxu0
        %2526 = vmatprep.mubr.f32.mxu0 0.0
        %2527 = vmatmul.mubr.f32.gmra.mrb[0].mxu0 %v2379
        %v2528 = vpop.f32.mrb[0].mxu0
        %v2529 = vadd.f32 0.0, %v2528
        %v2530 = vpop.f32.mrb[0].mxu0
        %2531 = vmatprep.mubr.f32.mxu0 0.0
        %2532 = vmatmul.mubr.f32.gmra.mrb[0].mxu0 %v2382
        %v2533 = vpop.f32.mrb[0].mxu0
        %v2534 = vadd.f32 0.0, %v2533
        %v2535 = vpop.f32.mrb[0].mxu0
        %2536 = vmatprep.mubr.f32.mxu0 0.0
        %2537 = vmatmul.mubr.f32.gmra.mrb[0].mxu0 %v2385
        %v2538 = vpop.f32.mrb[0].mxu0
        %v2539 = vadd.f32 0.0, %v2538
        %v2540 = vpop.f32.mrb[0].mxu0
        %2541 = vmatprep.mubr.f32.mxu0 0.0
        %2542 = vmatmul.mubr.f32.gmra.mrb[0].mxu0 %v2388
        %v2543 = vpop.f32.mrb[0].mxu0
        %v2544 = vadd.f32 0.0, %v2543
        %v2545 = vpop.f32.mrb[0].mxu0
        %2546 = vmatprep.mubr.f32.mxu0 0.0
        %2547 = vmatmul.mubr.f32.gmra.mrb[0].mxu0 %v2391
        %v2548 = vpop.f32.mrb[0].mxu0
        %v2549 = vadd.f32 0.0, %v2548
        %v2550 = vpop.f32.mrb[0].mxu0
        %2551 = vmatprep.mubr.f32.mxu0 0.0
        %2552 = vmatmul.mubr.f32.gmra.mrb[0].mxu0 %v2394
        %v2553 = vpop.f32.mrb[0].mxu0
        %v2554 = vadd.f32 0.0, %v2553
        %v2555 = vpop.f32.mrb[0].mxu0
        %2556 = vmatprep.mubr.f32.mxu0 0.0
        %2557 = vmatmul.mubr.f32.gmra.mrb[0].mxu0 %v2397
        %v2558 = vpop.f32.mrb[0].mxu0
        %v2559 = vadd.f32 0.0, %v2558
        %v2560 = vpop.f32.mrb[0].mxu0
        %2561 = vmatprep.mubr.f32.mxu0 0.0
        %2562 = vmatmul.mubr.f32.gmra.mrb[0].mxu0 %v2400
        %v2563 = vpop.f32.mrb[0].mxu0
        %v2564 = vadd.f32 0.0, %v2563
        %v2565 = vpop.f32.mrb[0].mxu0
        %2566 = vmatprep.mubr.f32.mxu0 0.0
        %2567 = vmatmul.mubr.f32.gmra.mrb[0].mxu0 %v2403
        %v2568 = vpop.f32.mrb[0].mxu0
        %v2569 = vadd.f32 0.0, %v2568
        %v2570 = vpop.f32.mrb[0].mxu0
        %2571 = vmatprep.mubr.f32.mxu0 0.0
        %2572 = vmatmul.mubr.f32.gmra.mrb[0].mxu0 %v2406
        %v2573 = vpop.f32.mrb[0].mxu0
        %v2574 = vadd.f32 0.0, %v2573
        %v2575 = vpop.f32.mrb[0].mxu0
        %2576 = vmatprep.mubr.f32.mxu0 0.0
        %2577 = vmatmul.mubr.f32.gmra.mrb[0].mxu0 %v2409
        %v2578 = vpop.f32.mrb[0].mxu0
        %v2579 = vadd.f32 0.0, %v2578
        %v2580 = vpop.f32.mrb[0].mxu0
        %2581 = vmatprep.mubr.f32.mxu0 0.0
        %2582 = vmatmul.mubr.f32.gmra.mrb[0].mxu0 %v2412
        %v2583 = vpop.f32.mrb[0].mxu0
        %v2584 = vadd.f32 0.0, %v2583
        %v2585 = vpop.f32.mrb[0].mxu0
        %2586 = vmatprep.mubr.f32.mxu0 0.0
        %2587 = vmatmul.mubr.f32.gmra.mrb[0].mxu0 %v2415
        %v2588 = vpop.f32.mrb[0].mxu0
        %v2589 = vadd.f32 0.0, %v2588
        %v2590 = vpop.f32.mrb[0].mxu0
        %2591 = vmatprep.mubr.f32.mxu0 0.0
        %2592 = vmatmul.mubr.f32.gmra.mrb[0].mxu0 %v2418
        %v2593 = vpop.f32.mrb[0].mxu0
        %v2594 = vadd.f32 0.0, %v2593
        %v2595 = vpop.f32.mrb[0].mxu0
        %2596 = vmatprep.mubr.f32.mxu0 0.0
        %2597 = vmatmul.mubr.f32.gmra.mrb[0].mxu0 %v2421
        %v2598 = vpop.f32.mrb[0].mxu0
        %v2599 = vadd.f32 0.0, %v2598
        %v2600 = vpop.f32.mrb[0].mxu0
        %2601 = vmatprep.mubr.f32.mxu0 0.0
        %2602 = vmatmul.mubr.f32.gmra.mrb[0].mxu0 %v2424
        %v2603 = vpop.f32.mrb[0].mxu0
        %v2604 = vadd.f32 0.0, %v2603
        %v2605 = vpop.f32.mrb[0].mxu0
        %2606 = vmatprep.mubr.f32.mxu0 0.0
        %2607 = vmatmul.mubr.f32.gmra.mrb[0].mxu0 %v2427
        %v2608 = vpop.f32.mrb[0].mxu0
        %v2609 = vadd.f32 0.0, %v2608
        %v2610 = vpop.f32.mrb[0].mxu0
        %2611 = vmatprep.mubr.f32.mxu0 0.0
        %2612 = vmatmul.mubr.f32.gmra.mrb[0].mxu0 %v2430
        %v2613 = vpop.f32.mrb[0].mxu0
        %v2614 = vadd.f32 0.0, %v2613
        %v2615 = vpop.f32.mrb[0].mxu0
        %2616 = vdwg.mxu0
        %v2617 = vadd.f32 %v2311, %v2499
        %v2618 = vadd.f32 %v2312, %v2504
        %v2619 = vadd.f32 %v2313, %v2509
        %v2620 = vadd.f32 %v2314, %v2514
        %v2621 = vadd.f32 %v2315, %v2519
        %v2622 = vadd.f32 %v2316, %v2524
        %v2623 = vadd.f32 %v2317, %v2529
        %v2624 = vadd.f32 %v2318, %v2534
        %v2625 = vadd.f32 %v2319, %v2539
        %v2626 = vadd.f32 %v2320, %v2544
        %v2627 = vadd.f32 %v2321, %v2549
        %v2628 = vadd.f32 %v2322, %v2554
        %v2629 = vadd.f32 %v2323, %v2559
        %v2630 = vadd.f32 %v2324, %v2564
        %v2631 = vadd.f32 %v2325, %v2569
        %v2632 = vadd.f32 %v2326, %v2574
        %v2633 = vadd.f32 %v2327, %v2579
        %v2634 = vadd.f32 %v2328, %v2584
        %v2635 = vadd.f32 %v2329, %v2589
        %v2636 = vadd.f32 %v2330, %v2594
        %v2637 = vadd.f32 %v2331, %v2599
        %v2638 = vadd.f32 %v2332, %v2604
        %v2639 = vadd.f32 %v2333, %v2609
        %v2640 = vadd.f32 %v2334, %v2614
        %v2641 = vld [vmem:[%s234 + $0x13] sm:$0xff]
        %v2642 = vld [vmem:[%s234 + $0x1b] sm:$0xff]
        %v2643 = vld [vmem:[%s234 + $0x23] sm:$0xff]
        %v2644 = vld [vmem:[%s234 + $0x2b] sm:$0xff]
        %v2645 = vld [vmem:[%s234 + $0x33] sm:$0xff]
        %v2646 = vld [vmem:[%s234 + $0x3b] sm:$0xff]
        %v2647 = vld [vmem:[%s234 + $0x43] sm:$0xff]
        %v2648 = vld [vmem:[%s234 + $0x4b] sm:$0xff]
        %v2649 = vld [vmem:[%s234 + $0x53] sm:$0xff]
        %v2650 = vld [vmem:[%s234 + $0x5b] sm:$0xff]
        %v2651 = vld [vmem:[%s234 + $0x63] sm:$0xff]
        %v2652 = vld [vmem:[%s234 + $0x6b] sm:$0xff]
        %v2653 = vld [vmem:[%s234 + $0x73] sm:$0xff]
        %v2654 = vld [vmem:[%s234 + $0x7b] sm:$0xff]
        %v2655 = vld [vmem:[%s234 + $0x83] sm:$0xff]
        %v2656 = vld [vmem:[%s234 + $0x8b] sm:$0xff]
        %v2657 = vld [vmem:[%s234 + $0x93] sm:$0xff]
        %v2658 = vld [vmem:[%s234 + $0x9b] sm:$0xff]
        %v2659 = vld [vmem:[%s234 + $0xa3] sm:$0xff]
        %v2660 = vld [vmem:[%s234 + $0xab] sm:$0xff]
        %v2661 = vld [vmem:[%s234 + $0xb3] sm:$0xff]
        %v2662 = vld [vmem:[%s234 + $0xbb] sm:$0xff]
        %v2663 = vld [vmem:[%s234 + $0xc3] sm:$0xff]
        %v2664 = vld [vmem:[%s234 + $0xcb] sm:$0xf]
        %v2665 = vld [vmem:[#allocation2 + $0x40] sm:$0xff]
        %v2667 = vsel %vm290, %v2641, 0
        %v2670 = vsel %vm290, %v2642, 0
        %v2673 = vsel %vm290, %v2643, 0
        %v2676 = vsel %vm290, %v2644, 0
        %v2679 = vsel %vm290, %v2645, 0
        %v2682 = vsel %vm290, %v2646, 0
        %v2685 = vsel %vm290, %v2647, 0
        %v2688 = vsel %vm290, %v2648, 0
        %v2691 = vsel %vm290, %v2649, 0
        %v2694 = vsel %vm290, %v2650, 0
        %v2697 = vsel %vm290, %v2651, 0
        %v2700 = vsel %vm290, %v2652, 0
        %v2703 = vsel %vm290, %v2653, 0
        %v2706 = vsel %vm290, %v2654, 0
        %v2709 = vsel %vm290, %v2655, 0
        %v2712 = vsel %vm290, %v2656, 0
        %v2715 = vsel %vm290, %v2657, 0
        %v2718 = vsel %vm290, %v2658, 0
        %v2721 = vsel %vm290, %v2659, 0
        %v2724 = vsel %vm290, %v2660, 0
        %v2727 = vsel %vm290, %v2661, 0
        %v2730 = vsel %vm290, %v2662, 0
        %v2733 = vsel %vm290, %v2663, 0
        %v2736 = vsel %vm290, %v2664, 0
        %2738 = vmatprep.subr.mxu0 0.0
        %2739 = vmatpush1.msra.mxu0 %v2665
        %2740 = vmatprep.subr.mxu0 0.0
        %2741 = vmatpush1.msra.mxu0 0.0
        %2742 = vmatprep.subr.mxu0 0.0
        %2743 = vmatpush1.msra.mxu0 0.0
        %2744 = vmatprep.subr.mxu0 0.0
        %2745 = vmatpush1.msra.mxu0 0.0
        %2746 = vmatprep.subr.mxu0 0.0
        %2747 = vmatpush1.msra.mxu0 0.0
        %2748 = vmatprep.subr.mxu0 0.0
        %2749 = vmatpush1.msra.mxu0 0.0
        %2750 = vmatprep.subr.mxu0 0.0
        %2751 = vmatpush1.msra.mxu0 0.0
        %2752 = vmatprep.subr.mxu0 0.0
        %2753 = vmatpush1.msra.mxu0 0.0
        %2754 = vmatprep.subr.mxu0 0.0
        %2755 = vmatpush1.msra.mxu0 0.0
        %2756 = vmatprep.subr.mxu0 0.0
        %2757 = vmatpush1.msra.mxu0 0.0
        %2758 = vmatprep.subr.mxu0 0.0
        %2759 = vmatpush1.msra.mxu0 0.0
        %2760 = vmatprep.subr.mxu0 0.0
        %2761 = vmatpush1.msra.mxu0 0.0
        %2762 = vmatprep.subr.mxu0 0.0
        %2763 = vmatpush1.msra.mxu0 0.0
        %2764 = vmatprep.subr.mxu0 0.0
        %2765 = vmatpush1.msra.mxu0 0.0
        %2766 = vmatprep.subr.mxu0 0.0
        %2767 = vmatpush1.msra.mxu0 0.0
        %2768 = vmatprep.subr.mxu0 0.0
        %2769 = vmatpush1.msra.mxu0 0.0
        %2770 = vmatprep.subr.mxu0 0.0
        %2771 = vmatpush1.msra.mxu0 0.0
        %2772 = vmatprep.subr.mxu0 0.0
        %2773 = vmatpush1.msra.mxu0 0.0
        %2774 = vmatprep.subr.mxu0 0.0
        %2775 = vmatpush1.msra.mxu0 0.0
        %2776 = vmatprep.subr.mxu0 0.0
        %2777 = vmatpush1.msra.mxu0 0.0
        %2778 = vmatprep.subr.mxu0 0.0
        %2779 = vmatpush1.msra.mxu0 0.0
        %2780 = vmatprep.subr.mxu0 0.0
        %2781 = vmatpush1.msra.mxu0 0.0
        %2782 = vmatprep.subr.mxu0 0.0
        %2783 = vmatpush1.msra.mxu0 0.0
        %2784 = vmatprep.subr.mxu0 0.0
        %2785 = vmatpush1.msra.mxu0 0.0
        %2786 = vmatprep.subr.mxu0 0.0
        %2787 = vmatpush1.msra.mxu0 0.0
        %2788 = vmatprep.subr.mxu0 0.0
        %2789 = vmatpush1.msra.mxu0 0.0
        %2790 = vmatprep.subr.mxu0 0.0
        %2791 = vmatpush1.msra.mxu0 0.0
        %2792 = vmatprep.subr.mxu0 0.0
        %2793 = vmatpush1.msra.mxu0 0.0
        %2794 = vmatprep.subr.mxu0 0.0
        %2795 = vmatpush1.msra.mxu0 0.0
        %2796 = vmatprep.subr.mxu0 0.0
        %2797 = vmatpush1.msra.mxu0 0.0
        %2798 = vmatprep.subr.mxu0 0.0
        %2799 = vmatpush1.msra.mxu0 0.0
        %2800 = vmatprep.subr.mxu0 0.0
        %2801 = vmatpush1.msra.mxu0 0.0
        %2802 = vmatprep.mubr.f32.mxu0 0.0
        %2803 = vmatmul.mubr.f32.gmra.mrb[0].mxu0 %v2667
        %v2804 = vpop.f32.mrb[0].mxu0
        %v2805 = vadd.f32 0.0, %v2804
        %v2806 = vpop.f32.mrb[0].mxu0
        %2807 = vmatprep.mubr.f32.mxu0 0.0
        %2808 = vmatmul.mubr.f32.gmra.mrb[0].mxu0 %v2670
        %v2809 = vpop.f32.mrb[0].mxu0
        %v2810 = vadd.f32 0.0, %v2809
        %v2811 = vpop.f32.mrb[0].mxu0
        %2812 = vmatprep.mubr.f32.mxu0 0.0
        %2813 = vmatmul.mubr.f32.gmra.mrb[0].mxu0 %v2673
        %v2814 = vpop.f32.mrb[0].mxu0
        %v2815 = vadd.f32 0.0, %v2814
        %v2816 = vpop.f32.mrb[0].mxu0
        %2817 = vmatprep.mubr.f32.mxu0 0.0
        %2818 = vmatmul.mubr.f32.gmra.mrb[0].mxu0 %v2676
        %v2819 = vpop.f32.mrb[0].mxu0
        %v2820 = vadd.f32 0.0, %v2819
        %v2821 = vpop.f32.mrb[0].mxu0
        %2822 = vmatprep.mubr.f32.mxu0 0.0
        %2823 = vmatmul.mubr.f32.gmra.mrb[0].mxu0 %v2679
        %v2824 = vpop.f32.mrb[0].mxu0
        %v2825 = vadd.f32 0.0, %v2824
        %v2826 = vpop.f32.mrb[0].mxu0
        %2827 = vmatprep.mubr.f32.mxu0 0.0
        %2828 = vmatmul.mubr.f32.gmra.mrb[0].mxu0 %v2682
        %v2829 = vpop.f32.mrb[0].mxu0
        %v2830 = vadd.f32 0.0, %v2829
        %v2831 = vpop.f32.mrb[0].mxu0
        %2832 = vmatprep.mubr.f32.mxu0 0.0
        %2833 = vmatmul.mubr.f32.gmra.mrb[0].mxu0 %v2685
        %v2834 = vpop.f32.mrb[0].mxu0
        %v2835 = vadd.f32 0.0, %v2834
        %v2836 = vpop.f32.mrb[0].mxu0
        %2837 = vmatprep.mubr.f32.mxu0 0.0
        %2838 = vmatmul.mubr.f32.gmra.mrb[0].mxu0 %v2688
        %v2839 = vpop.f32.mrb[0].mxu0
        %v2840 = vadd.f32 0.0, %v2839
        %v2841 = vpop.f32.mrb[0].mxu0
        %2842 = vmatprep.mubr.f32.mxu0 0.0
        %2843 = vmatmul.mubr.f32.gmra.mrb[0].mxu0 %v2691
        %v2844 = vpop.f32.mrb[0].mxu0
        %v2845 = vadd.f32 0.0, %v2844
        %v2846 = vpop.f32.mrb[0].mxu0
        %2847 = vmatprep.mubr.f32.mxu0 0.0
        %2848 = vmatmul.mubr.f32.gmra.mrb[0].mxu0 %v2694
        %v2849 = vpop.f32.mrb[0].mxu0
        %v2850 = vadd.f32 0.0, %v2849
        %v2851 = vpop.f32.mrb[0].mxu0
        %2852 = vmatprep.mubr.f32.mxu0 0.0
        %2853 = vmatmul.mubr.f32.gmra.mrb[0].mxu0 %v2697
        %v2854 = vpop.f32.mrb[0].mxu0
        %v2855 = vadd.f32 0.0, %v2854
        %v2856 = vpop.f32.mrb[0].mxu0
        %2857 = vmatprep.mubr.f32.mxu0 0.0
        %2858 = vmatmul.mubr.f32.gmra.mrb[0].mxu0 %v2700
        %v2859 = vpop.f32.mrb[0].mxu0
        %v2860 = vadd.f32 0.0, %v2859
        %v2861 = vpop.f32.mrb[0].mxu0
        %2862 = vmatprep.mubr.f32.mxu0 0.0
        %2863 = vmatmul.mubr.f32.gmra.mrb[0].mxu0 %v2703
        %v2864 = vpop.f32.mrb[0].mxu0
        %v2865 = vadd.f32 0.0, %v2864
        %v2866 = vpop.f32.mrb[0].mxu0
        %2867 = vmatprep.mubr.f32.mxu0 0.0
        %2868 = vmatmul.mubr.f32.gmra.mrb[0].mxu0 %v2706
        %v2869 = vpop.f32.mrb[0].mxu0
        %v2870 = vadd.f32 0.0, %v2869
        %v2871 = vpop.f32.mrb[0].mxu0
        %2872 = vmatprep.mubr.f32.mxu0 0.0
        %2873 = vmatmul.mubr.f32.gmra.mrb[0].mxu0 %v2709
        %v2874 = vpop.f32.mrb[0].mxu0
        %v2875 = vadd.f32 0.0, %v2874
        %v2876 = vpop.f32.mrb[0].mxu0
        %2877 = vmatprep.mubr.f32.mxu0 0.0
        %2878 = vmatmul.mubr.f32.gmra.mrb[0].mxu0 %v2712
        %v2879 = vpop.f32.mrb[0].mxu0
        %v2880 = vadd.f32 0.0, %v2879
        %v2881 = vpop.f32.mrb[0].mxu0
        %2882 = vmatprep.mubr.f32.mxu0 0.0
        %2883 = vmatmul.mubr.f32.gmra.mrb[0].mxu0 %v2715
        %v2884 = vpop.f32.mrb[0].mxu0
        %v2885 = vadd.f32 0.0, %v2884
        %v2886 = vpop.f32.mrb[0].mxu0
        %2887 = vmatprep.mubr.f32.mxu0 0.0
        %2888 = vmatmul.mubr.f32.gmra.mrb[0].mxu0 %v2718
        %v2889 = vpop.f32.mrb[0].mxu0
        %v2890 = vadd.f32 0.0, %v2889
        %v2891 = vpop.f32.mrb[0].mxu0
        %2892 = vmatprep.mubr.f32.mxu0 0.0
        %2893 = vmatmul.mubr.f32.gmra.mrb[0].mxu0 %v2721
        %v2894 = vpop.f32.mrb[0].mxu0
        %v2895 = vadd.f32 0.0, %v2894
        %v2896 = vpop.f32.mrb[0].mxu0
        %2897 = vmatprep.mubr.f32.mxu0 0.0
        %2898 = vmatmul.mubr.f32.gmra.mrb[0].mxu0 %v2724
        %v2899 = vpop.f32.mrb[0].mxu0
        %v2900 = vadd.f32 0.0, %v2899
        %v2901 = vpop.f32.mrb[0].mxu0
        %2902 = vmatprep.mubr.f32.mxu0 0.0
        %2903 = vmatmul.mubr.f32.gmra.mrb[0].mxu0 %v2727
        %v2904 = vpop.f32.mrb[0].mxu0
        %v2905 = vadd.f32 0.0, %v2904
        %v2906 = vpop.f32.mrb[0].mxu0
        %2907 = vmatprep.mubr.f32.mxu0 0.0
        %2908 = vmatmul.mubr.f32.gmra.mrb[0].mxu0 %v2730
        %v2909 = vpop.f32.mrb[0].mxu0
        %v2910 = vadd.f32 0.0, %v2909
        %v2911 = vpop.f32.mrb[0].mxu0
        %2912 = vmatprep.mubr.f32.mxu0 0.0
        %2913 = vmatmul.mubr.f32.gmra.mrb[0].mxu0 %v2733
        %v2914 = vpop.f32.mrb[0].mxu0
        %v2915 = vadd.f32 0.0, %v2914
        %v2916 = vpop.f32.mrb[0].mxu0
        %2917 = vmatprep.mubr.f32.mxu0 0.0
        %2918 = vmatmul.mubr.f32.gmra.mrb[0].mxu0 %v2736
        %v2919 = vpop.f32.mrb[0].mxu0
        %v2920 = vadd.f32 0.0, %v2919
        %v2921 = vpop.f32.mrb[0].mxu0
        %2922 = vdwg.mxu0
        %v2923 = vadd.f32 %v2617, %v2805
        %v2924 = vadd.f32 %v2618, %v2810
        %v2925 = vadd.f32 %v2619, %v2815
        %v2926 = vadd.f32 %v2620, %v2820
        %v2927 = vadd.f32 %v2621, %v2825
        %v2928 = vadd.f32 %v2622, %v2830
        %v2929 = vadd.f32 %v2623, %v2835
        %v2930 = vadd.f32 %v2624, %v2840
        %v2931 = vadd.f32 %v2625, %v2845
        %v2932 = vadd.f32 %v2626, %v2850
        %v2933 = vadd.f32 %v2627, %v2855
        %v2934 = vadd.f32 %v2628, %v2860
        %v2935 = vadd.f32 %v2629, %v2865
        %v2936 = vadd.f32 %v2630, %v2870
        %v2937 = vadd.f32 %v2631, %v2875
        %v2938 = vadd.f32 %v2632, %v2880
        %v2939 = vadd.f32 %v2633, %v2885
        %v2940 = vadd.f32 %v2634, %v2890
        %v2941 = vadd.f32 %v2635, %v2895
        %v2942 = vadd.f32 %v2636, %v2900
        %v2943 = vadd.f32 %v2637, %v2905
        %v2944 = vadd.f32 %v2638, %v2910
        %v2945 = vadd.f32 %v2639, %v2915
        %v2946 = vadd.f32 %v2640, %v2920
        %v2947 = vld [vmem:[%s234 + $0x14] sm:$0xff]
        %v2948 = vld [vmem:[%s234 + $0x1c] sm:$0xff]
        %v2949 = vld [vmem:[%s234 + $0x24] sm:$0xff]
        %v2950 = vld [vmem:[%s234 + $0x2c] sm:$0xff]
        %v2951 = vld [vmem:[%s234 + $0x34] sm:$0xff]
        %v2952 = vld [vmem:[%s234 + $0x3c] sm:$0xff]
        %v2953 = vld [vmem:[%s234 + $0x44] sm:$0xff]
        %v2954 = vld [vmem:[%s234 + $0x4c] sm:$0xff]
        %v2955 = vld [vmem:[%s234 + $0x54] sm:$0xff]
        %v2956 = vld [vmem:[%s234 + $0x5c] sm:$0xff]
        %v2957 = vld [vmem:[%s234 + $0x64] sm:$0xff]
        %v2958 = vld [vmem:[%s234 + $0x6c] sm:$0xff]
        %v2959 = vld [vmem:[%s234 + $0x74] sm:$0xff]
        %v2960 = vld [vmem:[%s234 + $0x7c] sm:$0xff]
        %v2961 = vld [vmem:[%s234 + $0x84] sm:$0xff]
        %v2962 = vld [vmem:[%s234 + $0x8c] sm:$0xff]
        %v2963 = vld [vmem:[%s234 + $0x94] sm:$0xff]
        %v2964 = vld [vmem:[%s234 + $0x9c] sm:$0xff]
        %v2965 = vld [vmem:[%s234 + $0xa4] sm:$0xff]
        %v2966 = vld [vmem:[%s234 + $0xac] sm:$0xff]
        %v2967 = vld [vmem:[%s234 + $0xb4] sm:$0xff]
        %v2968 = vld [vmem:[%s234 + $0xbc] sm:$0xff]
        %v2969 = vld [vmem:[%s234 + $0xc4] sm:$0xff]
        %v2970 = vld [vmem:[%s234 + $0xcc] sm:$0xf]
        %v2971 = vld [vmem:[#allocation2 + $0x48] sm:$0xff]
        %v2973 = vsel %vm290, %v2947, 0
        %v2976 = vsel %vm290, %v2948, 0
        %v2979 = vsel %vm290, %v2949, 0
        %v2982 = vsel %vm290, %v2950, 0
        %v2985 = vsel %vm290, %v2951, 0
        %v2988 = vsel %vm290, %v2952, 0
        %v2991 = vsel %vm290, %v2953, 0
        %v2994 = vsel %vm290, %v2954, 0
        %v2997 = vsel %vm290, %v2955, 0
        %v3000 = vsel %vm290, %v2956, 0
        %v3003 = vsel %vm290, %v2957, 0
        %v3006 = vsel %vm290, %v2958, 0
        %v3009 = vsel %vm290, %v2959, 0
        %v3012 = vsel %vm290, %v2960, 0
        %v3015 = vsel %vm290, %v2961, 0
        %v3018 = vsel %vm290, %v2962, 0
        %v3021 = vsel %vm290, %v2963, 0
        %v3024 = vsel %vm290, %v2964, 0
        %v3027 = vsel %vm290, %v2965, 0
        %v3030 = vsel %vm290, %v2966, 0
        %v3033 = vsel %vm290, %v2967, 0
        %v3036 = vsel %vm290, %v2968, 0
        %v3039 = vsel %vm290, %v2969, 0
        %v3042 = vsel %vm290, %v2970, 0
        %3044 = vmatprep.subr.mxu0 0.0
        %3045 = vmatpush1.msra.mxu0 %v2971
        %3046 = vmatprep.subr.mxu0 0.0
        %3047 = vmatpush1.msra.mxu0 0.0
        %3048 = vmatprep.subr.mxu0 0.0
        %3049 = vmatpush1.msra.mxu0 0.0
        %3050 = vmatprep.subr.mxu0 0.0
        %3051 = vmatpush1.msra.mxu0 0.0
        %3052 = vmatprep.subr.mxu0 0.0
        %3053 = vmatpush1.msra.mxu0 0.0
        %3054 = vmatprep.subr.mxu0 0.0
        %3055 = vmatpush1.msra.mxu0 0.0
        %3056 = vmatprep.subr.mxu0 0.0
        %3057 = vmatpush1.msra.mxu0 0.0
        %3058 = vmatprep.subr.mxu0 0.0
        %3059 = vmatpush1.msra.mxu0 0.0
        %3060 = vmatprep.subr.mxu0 0.0
        %3061 = vmatpush1.msra.mxu0 0.0
        %3062 = vmatprep.subr.mxu0 0.0
        %3063 = vmatpush1.msra.mxu0 0.0
        %3064 = vmatprep.subr.mxu0 0.0
        %3065 = vmatpush1.msra.mxu0 0.0
        %3066 = vmatprep.subr.mxu0 0.0
        %3067 = vmatpush1.msra.mxu0 0.0
        %3068 = vmatprep.subr.mxu0 0.0
        %3069 = vmatpush1.msra.mxu0 0.0
        %3070 = vmatprep.subr.mxu0 0.0
        %3071 = vmatpush1.msra.mxu0 0.0
        %3072 = vmatprep.subr.mxu0 0.0
        %3073 = vmatpush1.msra.mxu0 0.0
        %3074 = vmatprep.subr.mxu0 0.0
        %3075 = vmatpush1.msra.mxu0 0.0
        %3076 = vmatprep.subr.mxu0 0.0
        %3077 = vmatpush1.msra.mxu0 0.0
        %3078 = vmatprep.subr.mxu0 0.0
        %3079 = vmatpush1.msra.mxu0 0.0
        %3080 = vmatprep.subr.mxu0 0.0
        %3081 = vmatpush1.msra.mxu0 0.0
        %3082 = vmatprep.subr.mxu0 0.0
        %3083 = vmatpush1.msra.mxu0 0.0
        %3084 = vmatprep.subr.mxu0 0.0
        %3085 = vmatpush1.msra.mxu0 0.0
        %3086 = vmatprep.subr.mxu0 0.0
        %3087 = vmatpush1.msra.mxu0 0.0
        %3088 = vmatprep.subr.mxu0 0.0
        %3089 = vmatpush1.msra.mxu0 0.0
        %3090 = vmatprep.subr.mxu0 0.0
        %3091 = vmatpush1.msra.mxu0 0.0
        %3092 = vmatprep.subr.mxu0 0.0
        %3093 = vmatpush1.msra.mxu0 0.0
        %3094 = vmatprep.subr.mxu0 0.0
        %3095 = vmatpush1.msra.mxu0 0.0
        %3096 = vmatprep.subr.mxu0 0.0
        %3097 = vmatpush1.msra.mxu0 0.0
        %3098 = vmatprep.subr.mxu0 0.0
        %3099 = vmatpush1.msra.mxu0 0.0
        %3100 = vmatprep.subr.mxu0 0.0
        %3101 = vmatpush1.msra.mxu0 0.0
        %3102 = vmatprep.subr.mxu0 0.0
        %3103 = vmatpush1.msra.mxu0 0.0
        %3104 = vmatprep.subr.mxu0 0.0
        %3105 = vmatpush1.msra.mxu0 0.0
        %3106 = vmatprep.subr.mxu0 0.0
        %3107 = vmatpush1.msra.mxu0 0.0
        %3108 = vmatprep.mubr.f32.mxu0 0.0
        %3109 = vmatmul.mubr.f32.gmra.mrb[0].mxu0 %v2973
        %v3110 = vpop.f32.mrb[0].mxu0
        %v3111 = vadd.f32 0.0, %v3110
        %v3112 = vpop.f32.mrb[0].mxu0
        %3113 = vmatprep.mubr.f32.mxu0 0.0
        %3114 = vmatmul.mubr.f32.gmra.mrb[0].mxu0 %v2976
        %v3115 = vpop.f32.mrb[0].mxu0
        %v3116 = vadd.f32 0.0, %v3115
        %v3117 = vpop.f32.mrb[0].mxu0
        %3118 = vmatprep.mubr.f32.mxu0 0.0
        %3119 = vmatmul.mubr.f32.gmra.mrb[0].mxu0 %v2979
        %v3120 = vpop.f32.mrb[0].mxu0
        %v3121 = vadd.f32 0.0, %v3120
        %v3122 = vpop.f32.mrb[0].mxu0
        %3123 = vmatprep.mubr.f32.mxu0 0.0
        %3124 = vmatmul.mubr.f32.gmra.mrb[0].mxu0 %v2982
        %v3125 = vpop.f32.mrb[0].mxu0
        %v3126 = vadd.f32 0.0, %v3125
        %v3127 = vpop.f32.mrb[0].mxu0
        %3128 = vmatprep.mubr.f32.mxu0 0.0
        %3129 = vmatmul.mubr.f32.gmra.mrb[0].mxu0 %v2985
        %v3130 = vpop.f32.mrb[0].mxu0
        %v3131 = vadd.f32 0.0, %v3130
        %v3132 = vpop.f32.mrb[0].mxu0
        %3133 = vmatprep.mubr.f32.mxu0 0.0
        %3134 = vmatmul.mubr.f32.gmra.mrb[0].mxu0 %v2988
        %v3135 = vpop.f32.mrb[0].mxu0
        %v3136 = vadd.f32 0.0, %v3135
        %v3137 = vpop.f32.mrb[0].mxu0
        %3138 = vmatprep.mubr.f32.mxu0 0.0
        %3139 = vmatmul.mubr.f32.gmra.mrb[0].mxu0 %v2991
        %v3140 = vpop.f32.mrb[0].mxu0
        %v3141 = vadd.f32 0.0, %v3140
        %v3142 = vpop.f32.mrb[0].mxu0
        %3143 = vmatprep.mubr.f32.mxu0 0.0
        %3144 = vmatmul.mubr.f32.gmra.mrb[0].mxu0 %v2994
        %v3145 = vpop.f32.mrb[0].mxu0
        %v3146 = vadd.f32 0.0, %v3145
        %v3147 = vpop.f32.mrb[0].mxu0
        %3148 = vmatprep.mubr.f32.mxu0 0.0
        %3149 = vmatmul.mubr.f32.gmra.mrb[0].mxu0 %v2997
        %v3150 = vpop.f32.mrb[0].mxu0
        %v3151 = vadd.f32 0.0, %v3150
        %v3152 = vpop.f32.mrb[0].mxu0
        %3153 = vmatprep.mubr.f32.mxu0 0.0
        %3154 = vmatmul.mubr.f32.gmra.mrb[0].mxu0 %v3000
        %v3155 = vpop.f32.mrb[0].mxu0
        %v3156 = vadd.f32 0.0, %v3155
        %v3157 = vpop.f32.mrb[0].mxu0
        %3158 = vmatprep.mubr.f32.mxu0 0.0
        %3159 = vmatmul.mubr.f32.gmra.mrb[0].mxu0 %v3003
        %v3160 = vpop.f32.mrb[0].mxu0
        %v3161 = vadd.f32 0.0, %v3160
        %v3162 = vpop.f32.mrb[0].mxu0
        %3163 = vmatprep.mubr.f32.mxu0 0.0
        %3164 = vmatmul.mubr.f32.gmra.mrb[0].mxu0 %v3006
        %v3165 = vpop.f32.mrb[0].mxu0
        %v3166 = vadd.f32 0.0, %v3165
        %v3167 = vpop.f32.mrb[0].mxu0
        %3168 = vmatprep.mubr.f32.mxu0 0.0
        %3169 = vmatmul.mubr.f32.gmra.mrb[0].mxu0 %v3009
        %v3170 = vpop.f32.mrb[0].mxu0
        %v3171 = vadd.f32 0.0, %v3170
        %v3172 = vpop.f32.mrb[0].mxu0
        %3173 = vmatprep.mubr.f32.mxu0 0.0
        %3174 = vmatmul.mubr.f32.gmra.mrb[0].mxu0 %v3012
        %v3175 = vpop.f32.mrb[0].mxu0
        %v3176 = vadd.f32 0.0, %v3175
        %v3177 = vpop.f32.mrb[0].mxu0
        %3178 = vmatprep.mubr.f32.mxu0 0.0
        %3179 = vmatmul.mubr.f32.gmra.mrb[0].mxu0 %v3015
        %v3180 = vpop.f32.mrb[0].mxu0
        %v3181 = vadd.f32 0.0, %v3180
        %v3182 = vpop.f32.mrb[0].mxu0
        %3183 = vmatprep.mubr.f32.mxu0 0.0
        %3184 = vmatmul.mubr.f32.gmra.mrb[0].mxu0 %v3018
        %v3185 = vpop.f32.mrb[0].mxu0
        %v3186 = vadd.f32 0.0, %v3185
        %v3187 = vpop.f32.mrb[0].mxu0
        %3188 = vmatprep.mubr.f32.mxu0 0.0
        %3189 = vmatmul.mubr.f32.gmra.mrb[0].mxu0 %v3021
        %v3190 = vpop.f32.mrb[0].mxu0
        %v3191 = vadd.f32 0.0, %v3190
        %v3192 = vpop.f32.mrb[0].mxu0
        %3193 = vmatprep.mubr.f32.mxu0 0.0
        %3194 = vmatmul.mubr.f32.gmra.mrb[0].mxu0 %v3024
        %v3195 = vpop.f32.mrb[0].mxu0
        %v3196 = vadd.f32 0.0, %v3195
        %v3197 = vpop.f32.mrb[0].mxu0
        %3198 = vmatprep.mubr.f32.mxu0 0.0
        %3199 = vmatmul.mubr.f32.gmra.mrb[0].mxu0 %v3027
        %v3200 = vpop.f32.mrb[0].mxu0
        %v3201 = vadd.f32 0.0, %v3200
        %v3202 = vpop.f32.mrb[0].mxu0
        %3203 = vmatprep.mubr.f32.mxu0 0.0
        %3204 = vmatmul.mubr.f32.gmra.mrb[0].mxu0 %v3030
        %v3205 = vpop.f32.mrb[0].mxu0
        %v3206 = vadd.f32 0.0, %v3205
        %v3207 = vpop.f32.mrb[0].mxu0
        %3208 = vmatprep.mubr.f32.mxu0 0.0
        %3209 = vmatmul.mubr.f32.gmra.mrb[0].mxu0 %v3033
        %v3210 = vpop.f32.mrb[0].mxu0
        %v3211 = vadd.f32 0.0, %v3210
        %v3212 = vpop.f32.mrb[0].mxu0
        %3213 = vmatprep.mubr.f32.mxu0 0.0
        %3214 = vmatmul.mubr.f32.gmra.mrb[0].mxu0 %v3036
        %v3215 = vpop.f32.mrb[0].mxu0
        %v3216 = vadd.f32 0.0, %v3215
        %v3217 = vpop.f32.mrb[0].mxu0
        %3218 = vmatprep.mubr.f32.mxu0 0.0
        %3219 = vmatmul.mubr.f32.gmra.mrb[0].mxu0 %v3039
        %v3220 = vpop.f32.mrb[0].mxu0
        %v3221 = vadd.f32 0.0, %v3220
        %v3222 = vpop.f32.mrb[0].mxu0
        %3223 = vmatprep.mubr.f32.mxu0 0.0
        %3224 = vmatmul.mubr.f32.gmra.mrb[0].mxu0 %v3042
        %v3225 = vpop.f32.mrb[0].mxu0
        %v3226 = vadd.f32 0.0, %v3225
        %v3227 = vpop.f32.mrb[0].mxu0
        %3228 = vdwg.mxu0
        %v3229 = vadd.f32 %v2923, %v3111
        %v3230 = vadd.f32 %v2924, %v3116
        %v3231 = vadd.f32 %v2925, %v3121
        %v3232 = vadd.f32 %v2926, %v3126
        %v3233 = vadd.f32 %v2927, %v3131
        %v3234 = vadd.f32 %v2928, %v3136
        %v3235 = vadd.f32 %v2929, %v3141
        %v3236 = vadd.f32 %v2930, %v3146
        %v3237 = vadd.f32 %v2931, %v3151
        %v3238 = vadd.f32 %v2932, %v3156
        %v3239 = vadd.f32 %v2933, %v3161
        %v3240 = vadd.f32 %v2934, %v3166
        %v3241 = vadd.f32 %v2935, %v3171
        %v3242 = vadd.f32 %v2936, %v3176
        %v3243 = vadd.f32 %v2937, %v3181
        %v3244 = vadd.f32 %v2938, %v3186
        %v3245 = vadd.f32 %v2939, %v3191
        %v3246 = vadd.f32 %v2940, %v3196
        %v3247 = vadd.f32 %v2941, %v3201
        %v3248 = vadd.f32 %v2942, %v3206
        %v3249 = vadd.f32 %v2943, %v3211
        %v3250 = vadd.f32 %v2944, %v3216
        %v3251 = vadd.f32 %v2945, %v3221
        %v3252 = vadd.f32 %v2946, %v3226
        %v3253 = vld [vmem:[%s234 + $0x20] sm:$0xff]
        %v3254 = vld [vmem:[%s234 + $0x28] sm:$0xff]
        %v3255 = vld [vmem:[%s234 + $0x30] sm:$0xff]
        %v3256 = vld [vmem:[%s234 + $0x38] sm:$0xff]
        %v3257 = vld [vmem:[%s234 + $0x40] sm:$0xff]
        %v3258 = vld [vmem:[%s234 + $0x48] sm:$0xff]
        %v3259 = vld [vmem:[%s234 + $0x50] sm:$0xff]
        %v3260 = vld [vmem:[%s234 + $0x58] sm:$0xff]
        %v3261 = vld [vmem:[%s234 + $0x60] sm:$0xff]
        %v3262 = vld [vmem:[%s234 + $0x68] sm:$0xff]
        %v3263 = vld [vmem:[%s234 + $0x70] sm:$0xff]
        %v3264 = vld [vmem:[%s234 + $0x78] sm:$0xff]
        %v3265 = vld [vmem:[%s234 + $0x80] sm:$0xff]
        %v3266 = vld [vmem:[%s234 + $0x88] sm:$0xff]
        %v3267 = vld [vmem:[%s234 + $0x90] sm:$0xff]
        %v3268 = vld [vmem:[%s234 + $0x98] sm:$0xff]
        %v3269 = vld [vmem:[%s234 + $0xa0] sm:$0xff]
        %v3270 = vld [vmem:[%s234 + $0xa8] sm:$0xff]
        %v3271 = vld [vmem:[%s234 + $0xb0] sm:$0xff]
        %v3272 = vld [vmem:[%s234 + $0xb8] sm:$0xff]
        %v3273 = vld [vmem:[%s234 + $0xc0] sm:$0xff]
        %v3274 = vld [vmem:[%s234 + $0xc8] sm:$0xff]
        %v3275 = vld [vmem:[%s234 + $0xd0] sm:$0xff]
        %v3276 = vld [vmem:[%s234 + $0xd8] sm:$0xf]
        %v3277 = vld [vmem:[#allocation2 + $0x50] sm:$0xff]
        %v3279 = vsel %vm290, %v3253, 0
        %v3282 = vsel %vm290, %v3254, 0
        %v3285 = vsel %vm290, %v3255, 0
        %v3288 = vsel %vm290, %v3256, 0
        %v3291 = vsel %vm290, %v3257, 0
        %v3294 = vsel %vm290, %v3258, 0
        %v3297 = vsel %vm290, %v3259, 0
        %v3300 = vsel %vm290, %v3260, 0
        %v3303 = vsel %vm290, %v3261, 0
        %v3306 = vsel %vm290, %v3262, 0
        %v3309 = vsel %vm290, %v3263, 0
        %v3312 = vsel %vm290, %v3264, 0
        %v3315 = vsel %vm290, %v3265, 0
        %v3318 = vsel %vm290, %v3266, 0
        %v3321 = vsel %vm290, %v3267, 0
        %v3324 = vsel %vm290, %v3268, 0
        %v3327 = vsel %vm290, %v3269, 0
        %v3330 = vsel %vm290, %v3270, 0
        %v3333 = vsel %vm290, %v3271, 0
        %v3336 = vsel %vm290, %v3272, 0
        %v3339 = vsel %vm290, %v3273, 0
        %v3342 = vsel %vm290, %v3274, 0
        %v3345 = vsel %vm290, %v3275, 0
        %v3348 = vsel %vm290, %v3276, 0
        %3350 = vmatprep.subr.mxu0 0.0
        %3351 = vmatpush1.msra.mxu0 %v3277
        %3352 = vmatprep.subr.mxu0 0.0
        %3353 = vmatpush1.msra.mxu0 0.0
        %3354 = vmatprep.subr.mxu0 0.0
        %3355 = vmatpush1.msra.mxu0 0.0
        %3356 = vmatprep.subr.mxu0 0.0
        %3357 = vmatpush1.msra.mxu0 0.0
        %3358 = vmatprep.subr.mxu0 0.0
        %3359 = vmatpush1.msra.mxu0 0.0
        %3360 = vmatprep.subr.mxu0 0.0
        %3361 = vmatpush1.msra.mxu0 0.0
        %3362 = vmatprep.subr.mxu0 0.0
        %3363 = vmatpush1.msra.mxu0 0.0
        %3364 = vmatprep.subr.mxu0 0.0
        %3365 = vmatpush1.msra.mxu0 0.0
        %3366 = vmatprep.subr.mxu0 0.0
        %3367 = vmatpush1.msra.mxu0 0.0
        %3368 = vmatprep.subr.mxu0 0.0
        %3369 = vmatpush1.msra.mxu0 0.0
        %3370 = vmatprep.subr.mxu0 0.0
        %3371 = vmatpush1.msra.mxu0 0.0
        %3372 = vmatprep.subr.mxu0 0.0
        %3373 = vmatpush1.msra.mxu0 0.0
        %3374 = vmatprep.subr.mxu0 0.0
        %3375 = vmatpush1.msra.mxu0 0.0
        %3376 = vmatprep.subr.mxu0 0.0
        %3377 = vmatpush1.msra.mxu0 0.0
        %3378 = vmatprep.subr.mxu0 0.0
        %3379 = vmatpush1.msra.mxu0 0.0
        %3380 = vmatprep.subr.mxu0 0.0
        %3381 = vmatpush1.msra.mxu0 0.0
        %3382 = vmatprep.subr.mxu0 0.0
        %3383 = vmatpush1.msra.mxu0 0.0
        %3384 = vmatprep.subr.mxu0 0.0
        %3385 = vmatpush1.msra.mxu0 0.0
        %3386 = vmatprep.subr.mxu0 0.0
        %3387 = vmatpush1.msra.mxu0 0.0
        %3388 = vmatprep.subr.mxu0 0.0
        %3389 = vmatpush1.msra.mxu0 0.0
        %3390 = vmatprep.subr.mxu0 0.0
        %3391 = vmatpush1.msra.mxu0 0.0
        %3392 = vmatprep.subr.mxu0 0.0
        %3393 = vmatpush1.msra.mxu0 0.0
        %3394 = vmatprep.subr.mxu0 0.0
        %3395 = vmatpush1.msra.mxu0 0.0
        %3396 = vmatprep.subr.mxu0 0.0
        %3397 = vmatpush1.msra.mxu0 0.0
        %3398 = vmatprep.subr.mxu0 0.0
        %3399 = vmatpush1.msra.mxu0 0.0
        %3400 = vmatprep.subr.mxu0 0.0
        %3401 = vmatpush1.msra.mxu0 0.0
        %3402 = vmatprep.subr.mxu0 0.0
        %3403 = vmatpush1.msra.mxu0 0.0
        %3404 = vmatprep.subr.mxu0 0.0
        %3405 = vmatpush1.msra.mxu0 0.0
        %3406 = vmatprep.subr.mxu0 0.0
        %3407 = vmatpush1.msra.mxu0 0.0
        %3408 = vmatprep.subr.mxu0 0.0
        %3409 = vmatpush1.msra.mxu0 0.0
        %3410 = vmatprep.subr.mxu0 0.0
        %3411 = vmatpush1.msra.mxu0 0.0
        %3412 = vmatprep.subr.mxu0 0.0
        %3413 = vmatpush1.msra.mxu0 0.0
        %3414 = vmatprep.mubr.f32.mxu0 0.0
        %3415 = vmatmul.mubr.f32.gmra.mrb[0].mxu0 %v3279
        %v3416 = vpop.f32.mrb[0].mxu0
        %v3417 = vadd.f32 0.0, %v3416
        %v3418 = vpop.f32.mrb[0].mxu0
        %3419 = vmatprep.mubr.f32.mxu0 0.0
        %3420 = vmatmul.mubr.f32.gmra.mrb[0].mxu0 %v3282
        %v3421 = vpop.f32.mrb[0].mxu0
        %v3422 = vadd.f32 0.0, %v3421
        %v3423 = vpop.f32.mrb[0].mxu0
        %3424 = vmatprep.mubr.f32.mxu0 0.0
        %3425 = vmatmul.mubr.f32.gmra.mrb[0].mxu0 %v3285
        %v3426 = vpop.f32.mrb[0].mxu0
        %v3427 = vadd.f32 0.0, %v3426
        %v3428 = vpop.f32.mrb[0].mxu0
        %3429 = vmatprep.mubr.f32.mxu0 0.0
        %3430 = vmatmul.mubr.f32.gmra.mrb[0].mxu0 %v3288
        %v3431 = vpop.f32.mrb[0].mxu0
        %v3432 = vadd.f32 0.0, %v3431
        %v3433 = vpop.f32.mrb[0].mxu0
        %3434 = vmatprep.mubr.f32.mxu0 0.0
        %3435 = vmatmul.mubr.f32.gmra.mrb[0].mxu0 %v3291
        %v3436 = vpop.f32.mrb[0].mxu0
        %v3437 = vadd.f32 0.0, %v3436
        %v3438 = vpop.f32.mrb[0].mxu0
        %3439 = vmatprep.mubr.f32.mxu0 0.0
        %3440 = vmatmul.mubr.f32.gmra.mrb[0].mxu0 %v3294
        %v3441 = vpop.f32.mrb[0].mxu0
        %v3442 = vadd.f32 0.0, %v3441
        %v3443 = vpop.f32.mrb[0].mxu0
        %3444 = vmatprep.mubr.f32.mxu0 0.0
        %3445 = vmatmul.mubr.f32.gmra.mrb[0].mxu0 %v3297
        %v3446 = vpop.f32.mrb[0].mxu0
        %v3447 = vadd.f32 0.0, %v3446
        %v3448 = vpop.f32.mrb[0].mxu0
        %3449 = vmatprep.mubr.f32.mxu0 0.0
        %3450 = vmatmul.mubr.f32.gmra.mrb[0].mxu0 %v3300
        %v3451 = vpop.f32.mrb[0].mxu0
        %v3452 = vadd.f32 0.0, %v3451
        %v3453 = vpop.f32.mrb[0].mxu0
        %3454 = vmatprep.mubr.f32.mxu0 0.0
        %3455 = vmatmul.mubr.f32.gmra.mrb[0].mxu0 %v3303
        %v3456 = vpop.f32.mrb[0].mxu0
        %v3457 = vadd.f32 0.0, %v3456
        %v3458 = vpop.f32.mrb[0].mxu0
        %3459 = vmatprep.mubr.f32.mxu0 0.0
        %3460 = vmatmul.mubr.f32.gmra.mrb[0].mxu0 %v3306
        %v3461 = vpop.f32.mrb[0].mxu0
        %v3462 = vadd.f32 0.0, %v3461
        %v3463 = vpop.f32.mrb[0].mxu0
        %3464 = vmatprep.mubr.f32.mxu0 0.0
        %3465 = vmatmul.mubr.f32.gmra.mrb[0].mxu0 %v3309
        %v3466 = vpop.f32.mrb[0].mxu0
        %v3467 = vadd.f32 0.0, %v3466
        %v3468 = vpop.f32.mrb[0].mxu0
        %3469 = vmatprep.mubr.f32.mxu0 0.0
        %3470 = vmatmul.mubr.f32.gmra.mrb[0].mxu0 %v3312
        %v3471 = vpop.f32.mrb[0].mxu0
        %v3472 = vadd.f32 0.0, %v3471
        %v3473 = vpop.f32.mrb[0].mxu0
        %3474 = vmatprep.mubr.f32.mxu0 0.0
        %3475 = vmatmul.mubr.f32.gmra.mrb[0].mxu0 %v3315
        %v3476 = vpop.f32.mrb[0].mxu0
        %v3477 = vadd.f32 0.0, %v3476
        %v3478 = vpop.f32.mrb[0].mxu0
        %3479 = vmatprep.mubr.f32.mxu0 0.0
        %3480 = vmatmul.mubr.f32.gmra.mrb[0].mxu0 %v3318
        %v3481 = vpop.f32.mrb[0].mxu0
        %v3482 = vadd.f32 0.0, %v3481
        %v3483 = vpop.f32.mrb[0].mxu0
        %3484 = vmatprep.mubr.f32.mxu0 0.0
        %3485 = vmatmul.mubr.f32.gmra.mrb[0].mxu0 %v3321
        %v3486 = vpop.f32.mrb[0].mxu0
        %v3487 = vadd.f32 0.0, %v3486
        %v3488 = vpop.f32.mrb[0].mxu0
        %3489 = vmatprep.mubr.f32.mxu0 0.0
        %3490 = vmatmul.mubr.f32.gmra.mrb[0].mxu0 %v3324
        %v3491 = vpop.f32.mrb[0].mxu0
        %v3492 = vadd.f32 0.0, %v3491
        %v3493 = vpop.f32.mrb[0].mxu0
        %3494 = vmatprep.mubr.f32.mxu0 0.0
        %3495 = vmatmul.mubr.f32.gmra.mrb[0].mxu0 %v3327
        %v3496 = vpop.f32.mrb[0].mxu0
        %v3497 = vadd.f32 0.0, %v3496
        %v3498 = vpop.f32.mrb[0].mxu0
        %3499 = vmatprep.mubr.f32.mxu0 0.0
        %3500 = vmatmul.mubr.f32.gmra.mrb[0].mxu0 %v3330
        %v3501 = vpop.f32.mrb[0].mxu0
        %v3502 = vadd.f32 0.0, %v3501
        %v3503 = vpop.f32.mrb[0].mxu0
        %3504 = vmatprep.mubr.f32.mxu0 0.0
        %3505 = vmatmul.mubr.f32.gmra.mrb[0].mxu0 %v3333
        %v3506 = vpop.f32.mrb[0].mxu0
        %v3507 = vadd.f32 0.0, %v3506
        %v3508 = vpop.f32.mrb[0].mxu0
        %3509 = vmatprep.mubr.f32.mxu0 0.0
        %3510 = vmatmul.mubr.f32.gmra.mrb[0].mxu0 %v3336
        %v3511 = vpop.f32.mrb[0].mxu0
        %v3512 = vadd.f32 0.0, %v3511
        %v3513 = vpop.f32.mrb[0].mxu0
        %3514 = vmatprep.mubr.f32.mxu0 0.0
        %3515 = vmatmul.mubr.f32.gmra.mrb[0].mxu0 %v3339
        %v3516 = vpop.f32.mrb[0].mxu0
        %v3517 = vadd.f32 0.0, %v3516
        %v3518 = vpop.f32.mrb[0].mxu0
        %3519 = vmatprep.mubr.f32.mxu0 0.0
        %3520 = vmatmul.mubr.f32.gmra.mrb[0].mxu0 %v3342
        %v3521 = vpop.f32.mrb[0].mxu0
        %v3522 = vadd.f32 0.0, %v3521
        %v3523 = vpop.f32.mrb[0].mxu0
        %3524 = vmatprep.mubr.f32.mxu0 0.0
        %3525 = vmatmul.mubr.f32.gmra.mrb[0].mxu0 %v3345
        %v3526 = vpop.f32.mrb[0].mxu0
        %v3527 = vadd.f32 0.0, %v3526
        %v3528 = vpop.f32.mrb[0].mxu0
        %3529 = vmatprep.mubr.f32.mxu0 0.0
        %3530 = vmatmul.mubr.f32.gmra.mrb[0].mxu0 %v3348
        %v3531 = vpop.f32.mrb[0].mxu0
        %v3532 = vadd.f32 0.0, %v3531
        %v3533 = vpop.f32.mrb[0].mxu0
        %3534 = vdwg.mxu0
        %v3535 = vadd.f32 %v3229, %v3417
        %v3536 = vadd.f32 %v3230, %v3422
        %v3537 = vadd.f32 %v3231, %v3427
        %v3538 = vadd.f32 %v3232, %v3432
        %v3539 = vadd.f32 %v3233, %v3437
        %v3540 = vadd.f32 %v3234, %v3442
        %v3541 = vadd.f32 %v3235, %v3447
        %v3542 = vadd.f32 %v3236, %v3452
        %v3543 = vadd.f32 %v3237, %v3457
        %v3544 = vadd.f32 %v3238, %v3462
        %v3545 = vadd.f32 %v3239, %v3467
        %v3546 = vadd.f32 %v3240, %v3472
        %v3547 = vadd.f32 %v3241, %v3477
        %v3548 = vadd.f32 %v3242, %v3482
        %v3549 = vadd.f32 %v3243, %v3487
        %v3550 = vadd.f32 %v3244, %v3492
        %v3551 = vadd.f32 %v3245, %v3497
        %v3552 = vadd.f32 %v3246, %v3502
        %v3553 = vadd.f32 %v3247, %v3507
        %v3554 = vadd.f32 %v3248, %v3512
        %v3555 = vadd.f32 %v3249, %v3517
        %v3556 = vadd.f32 %v3250, %v3522
        %v3557 = vadd.f32 %v3251, %v3527
        %v3558 = vadd.f32 %v3252, %v3532
        %v3559 = vld [vmem:[%s234 + $0x21] sm:$0xff]
        %v3560 = vld [vmem:[%s234 + $0x29] sm:$0xff]
        %v3561 = vld [vmem:[%s234 + $0x31] sm:$0xff]
        %v3562 = vld [vmem:[%s234 + $0x39] sm:$0xff]
        %v3563 = vld [vmem:[%s234 + $0x41] sm:$0xff]
        %v3564 = vld [vmem:[%s234 + $0x49] sm:$0xff]
        %v3565 = vld [vmem:[%s234 + $0x51] sm:$0xff]
        %v3566 = vld [vmem:[%s234 + $0x59] sm:$0xff]
        %v3567 = vld [vmem:[%s234 + $0x61] sm:$0xff]
        %v3568 = vld [vmem:[%s234 + $0x69] sm:$0xff]
        %v3569 = vld [vmem:[%s234 + $0x71] sm:$0xff]
        %v3570 = vld [vmem:[%s234 + $0x79] sm:$0xff]
        %v3571 = vld [vmem:[%s234 + $0x81] sm:$0xff]
        %v3572 = vld [vmem:[%s234 + $0x89] sm:$0xff]
        %v3573 = vld [vmem:[%s234 + $0x91] sm:$0xff]
        %v3574 = vld [vmem:[%s234 + $0x99] sm:$0xff]
        %v3575 = vld [vmem:[%s234 + $0xa1] sm:$0xff]
        %v3576 = vld [vmem:[%s234 + $0xa9] sm:$0xff]
        %v3577 = vld [vmem:[%s234 + $0xb1] sm:$0xff]
        %v3578 = vld [vmem:[%s234 + $0xb9] sm:$0xff]
        %v3579 = vld [vmem:[%s234 + $0xc1] sm:$0xff]
        %v3580 = vld [vmem:[%s234 + $0xc9] sm:$0xff]
        %v3581 = vld [vmem:[%s234 + $0xd1] sm:$0xff]
        %v3582 = vld [vmem:[%s234 + $0xd9] sm:$0xf]
        %v3583 = vld [vmem:[#allocation2 + $0x58] sm:$0xff]
        %v3585 = vsel %vm290, %v3559, 0
        %v3588 = vsel %vm290, %v3560, 0
        %v3591 = vsel %vm290, %v3561, 0
        %v3594 = vsel %vm290, %v3562, 0
        %v3597 = vsel %vm290, %v3563, 0
        %v3600 = vsel %vm290, %v3564, 0
        %v3603 = vsel %vm290, %v3565, 0
        %v3606 = vsel %vm290, %v3566, 0
        %v3609 = vsel %vm290, %v3567, 0
        %v3612 = vsel %vm290, %v3568, 0
        %v3615 = vsel %vm290, %v3569, 0
        %v3618 = vsel %vm290, %v3570, 0
        %v3621 = vsel %vm290, %v3571, 0
        %v3624 = vsel %vm290, %v3572, 0
        %v3627 = vsel %vm290, %v3573, 0
        %v3630 = vsel %vm290, %v3574, 0
        %v3633 = vsel %vm290, %v3575, 0
        %v3636 = vsel %vm290, %v3576, 0
        %v3639 = vsel %vm290, %v3577, 0
        %v3642 = vsel %vm290, %v3578, 0
        %v3645 = vsel %vm290, %v3579, 0
        %v3648 = vsel %vm290, %v3580, 0
        %v3651 = vsel %vm290, %v3581, 0
        %v3654 = vsel %vm290, %v3582, 0
        %3656 = vmatprep.subr.mxu0 0.0
        %3657 = vmatpush1.msra.mxu0 %v3583
        %3658 = vmatprep.subr.mxu0 0.0
        %3659 = vmatpush1.msra.mxu0 0.0
        %3660 = vmatprep.subr.mxu0 0.0
        %3661 = vmatpush1.msra.mxu0 0.0
        %3662 = vmatprep.subr.mxu0 0.0
        %3663 = vmatpush1.msra.mxu0 0.0
        %3664 = vmatprep.subr.mxu0 0.0
        %3665 = vmatpush1.msra.mxu0 0.0
        %3666 = vmatprep.subr.mxu0 0.0
        %3667 = vmatpush1.msra.mxu0 0.0
        %3668 = vmatprep.subr.mxu0 0.0
        %3669 = vmatpush1.msra.mxu0 0.0
        %3670 = vmatprep.subr.mxu0 0.0
        %3671 = vmatpush1.msra.mxu0 0.0
        %3672 = vmatprep.subr.mxu0 0.0
        %3673 = vmatpush1.msra.mxu0 0.0
        %3674 = vmatprep.subr.mxu0 0.0
        %3675 = vmatpush1.msra.mxu0 0.0
        %3676 = vmatprep.subr.mxu0 0.0
        %3677 = vmatpush1.msra.mxu0 0.0
        %3678 = vmatprep.subr.mxu0 0.0
        %3679 = vmatpush1.msra.mxu0 0.0
        %3680 = vmatprep.subr.mxu0 0.0
        %3681 = vmatpush1.msra.mxu0 0.0
        %3682 = vmatprep.subr.mxu0 0.0
        %3683 = vmatpush1.msra.mxu0 0.0
        %3684 = vmatprep.subr.mxu0 0.0
        %3685 = vmatpush1.msra.mxu0 0.0
        %3686 = vmatprep.subr.mxu0 0.0
        %3687 = vmatpush1.msra.mxu0 0.0
        %3688 = vmatprep.subr.mxu0 0.0
        %3689 = vmatpush1.msra.mxu0 0.0
        %3690 = vmatprep.subr.mxu0 0.0
        %3691 = vmatpush1.msra.mxu0 0.0
        %3692 = vmatprep.subr.mxu0 0.0
        %3693 = vmatpush1.msra.mxu0 0.0
        %3694 = vmatprep.subr.mxu0 0.0
        %3695 = vmatpush1.msra.mxu0 0.0
        %3696 = vmatprep.subr.mxu0 0.0
        %3697 = vmatpush1.msra.mxu0 0.0
        %3698 = vmatprep.subr.mxu0 0.0
        %3699 = vmatpush1.msra.mxu0 0.0
        %3700 = vmatprep.subr.mxu0 0.0
        %3701 = vmatpush1.msra.mxu0 0.0
        %3702 = vmatprep.subr.mxu0 0.0
        %3703 = vmatpush1.msra.mxu0 0.0
        %3704 = vmatprep.subr.mxu0 0.0
        %3705 = vmatpush1.msra.mxu0 0.0
        %3706 = vmatprep.subr.mxu0 0.0
        %3707 = vmatpush1.msra.mxu0 0.0
        %3708 = vmatprep.subr.mxu0 0.0
        %3709 = vmatpush1.msra.mxu0 0.0
        %3710 = vmatprep.subr.mxu0 0.0
        %3711 = vmatpush1.msra.mxu0 0.0
        %3712 = vmatprep.subr.mxu0 0.0
        %3713 = vmatpush1.msra.mxu0 0.0
        %3714 = vmatprep.subr.mxu0 0.0
        %3715 = vmatpush1.msra.mxu0 0.0
        %3716 = vmatprep.subr.mxu0 0.0
        %3717 = vmatpush1.msra.mxu0 0.0
        %3718 = vmatprep.subr.mxu0 0.0
        %3719 = vmatpush1.msra.mxu0 0.0
        %3720 = vmatprep.mubr.f32.mxu0 0.0
        %3721 = vmatmul.mubr.f32.gmra.mrb[0].mxu0 %v3585
        %v3722 = vpop.f32.mrb[0].mxu0
        %v3723 = vadd.f32 0.0, %v3722
        %v3724 = vpop.f32.mrb[0].mxu0
        %3725 = vmatprep.mubr.f32.mxu0 0.0
        %3726 = vmatmul.mubr.f32.gmra.mrb[0].mxu0 %v3588
        %v3727 = vpop.f32.mrb[0].mxu0
        %v3728 = vadd.f32 0.0, %v3727
        %v3729 = vpop.f32.mrb[0].mxu0
        %3730 = vmatprep.mubr.f32.mxu0 0.0
        %3731 = vmatmul.mubr.f32.gmra.mrb[0].mxu0 %v3591
        %v3732 = vpop.f32.mrb[0].mxu0
        %v3733 = vadd.f32 0.0, %v3732
        %v3734 = vpop.f32.mrb[0].mxu0
        %3735 = vmatprep.mubr.f32.mxu0 0.0
        %3736 = vmatmul.mubr.f32.gmra.mrb[0].mxu0 %v3594
        %v3737 = vpop.f32.mrb[0].mxu0
        %v3738 = vadd.f32 0.0, %v3737
        %v3739 = vpop.f32.mrb[0].mxu0
        %3740 = vmatprep.mubr.f32.mxu0 0.0
        %3741 = vmatmul.mubr.f32.gmra.mrb[0].mxu0 %v3597
        %v3742 = vpop.f32.mrb[0].mxu0
        %v3743 = vadd.f32 0.0, %v3742
        %v3744 = vpop.f32.mrb[0].mxu0
        %3745 = vmatprep.mubr.f32.mxu0 0.0
        %3746 = vmatmul.mubr.f32.gmra.mrb[0].mxu0 %v3600
        %v3747 = vpop.f32.mrb[0].mxu0
        %v3748 = vadd.f32 0.0, %v3747
        %v3749 = vpop.f32.mrb[0].mxu0
        %3750 = vmatprep.mubr.f32.mxu0 0.0
        %3751 = vmatmul.mubr.f32.gmra.mrb[0].mxu0 %v3603
        %v3752 = vpop.f32.mrb[0].mxu0
        %v3753 = vadd.f32 0.0, %v3752
        %v3754 = vpop.f32.mrb[0].mxu0
        %3755 = vmatprep.mubr.f32.mxu0 0.0
        %3756 = vmatmul.mubr.f32.gmra.mrb[0].mxu0 %v3606
        %v3757 = vpop.f32.mrb[0].mxu0
        %v3758 = vadd.f32 0.0, %v3757
        %v3759 = vpop.f32.mrb[0].mxu0
        %3760 = vmatprep.mubr.f32.mxu0 0.0
        %3761 = vmatmul.mubr.f32.gmra.mrb[0].mxu0 %v3609
        %v3762 = vpop.f32.mrb[0].mxu0
        %v3763 = vadd.f32 0.0, %v3762
        %v3764 = vpop.f32.mrb[0].mxu0
        %3765 = vmatprep.mubr.f32.mxu0 0.0
        %3766 = vmatmul.mubr.f32.gmra.mrb[0].mxu0 %v3612
        %v3767 = vpop.f32.mrb[0].mxu0
        %v3768 = vadd.f32 0.0, %v3767
        %v3769 = vpop.f32.mrb[0].mxu0
        %3770 = vmatprep.mubr.f32.mxu0 0.0
        %3771 = vmatmul.mubr.f32.gmra.mrb[0].mxu0 %v3615
        %v3772 = vpop.f32.mrb[0].mxu0
        %v3773 = vadd.f32 0.0, %v3772
        %v3774 = vpop.f32.mrb[0].mxu0
        %3775 = vmatprep.mubr.f32.mxu0 0.0
        %3776 = vmatmul.mubr.f32.gmra.mrb[0].mxu0 %v3618
        %v3777 = vpop.f32.mrb[0].mxu0
        %v3778 = vadd.f32 0.0, %v3777
        %v3779 = vpop.f32.mrb[0].mxu0
        %3780 = vmatprep.mubr.f32.mxu0 0.0
        %3781 = vmatmul.mubr.f32.gmra.mrb[0].mxu0 %v3621
        %v3782 = vpop.f32.mrb[0].mxu0
        %v3783 = vadd.f32 0.0, %v3782
        %v3784 = vpop.f32.mrb[0].mxu0
        %3785 = vmatprep.mubr.f32.mxu0 0.0
        %3786 = vmatmul.mubr.f32.gmra.mrb[0].mxu0 %v3624
        %v3787 = vpop.f32.mrb[0].mxu0
        %v3788 = vadd.f32 0.0, %v3787
        %v3789 = vpop.f32.mrb[0].mxu0
        %3790 = vmatprep.mubr.f32.mxu0 0.0
        %3791 = vmatmul.mubr.f32.gmra.mrb[0].mxu0 %v3627
        %v3792 = vpop.f32.mrb[0].mxu0
        %v3793 = vadd.f32 0.0, %v3792
        %v3794 = vpop.f32.mrb[0].mxu0
        %3795 = vmatprep.mubr.f32.mxu0 0.0
        %3796 = vmatmul.mubr.f32.gmra.mrb[0].mxu0 %v3630
        %v3797 = vpop.f32.mrb[0].mxu0
        %v3798 = vadd.f32 0.0, %v3797
        %v3799 = vpop.f32.mrb[0].mxu0
        %3800 = vmatprep.mubr.f32.mxu0 0.0
        %3801 = vmatmul.mubr.f32.gmra.mrb[0].mxu0 %v3633
        %v3802 = vpop.f32.mrb[0].mxu0
        %v3803 = vadd.f32 0.0, %v3802
        %v3804 = vpop.f32.mrb[0].mxu0
        %3805 = vmatprep.mubr.f32.mxu0 0.0
        %3806 = vmatmul.mubr.f32.gmra.mrb[0].mxu0 %v3636
        %v3807 = vpop.f32.mrb[0].mxu0
        %v3808 = vadd.f32 0.0, %v3807
        %v3809 = vpop.f32.mrb[0].mxu0
        %3810 = vmatprep.mubr.f32.mxu0 0.0
        %3811 = vmatmul.mubr.f32.gmra.mrb[0].mxu0 %v3639
        %v3812 = vpop.f32.mrb[0].mxu0
        %v3813 = vadd.f32 0.0, %v3812
        %v3814 = vpop.f32.mrb[0].mxu0
        %3815 = vmatprep.mubr.f32.mxu0 0.0
        %3816 = vmatmul.mubr.f32.gmra.mrb[0].mxu0 %v3642
        %v3817 = vpop.f32.mrb[0].mxu0
        %v3818 = vadd.f32 0.0, %v3817
        %v3819 = vpop.f32.mrb[0].mxu0
        %3820 = vmatprep.mubr.f32.mxu0 0.0
        %3821 = vmatmul.mubr.f32.gmra.mrb[0].mxu0 %v3645
        %v3822 = vpop.f32.mrb[0].mxu0
        %v3823 = vadd.f32 0.0, %v3822
        %v3824 = vpop.f32.mrb[0].mxu0
        %3825 = vmatprep.mubr.f32.mxu0 0.0
        %3826 = vmatmul.mubr.f32.gmra.mrb[0].mxu0 %v3648
        %v3827 = vpop.f32.mrb[0].mxu0
        %v3828 = vadd.f32 0.0, %v3827
        %v3829 = vpop.f32.mrb[0].mxu0
        %3830 = vmatprep.mubr.f32.mxu0 0.0
        %3831 = vmatmul.mubr.f32.gmra.mrb[0].mxu0 %v3651
        %v3832 = vpop.f32.mrb[0].mxu0
        %v3833 = vadd.f32 0.0, %v3832
        %v3834 = vpop.f32.mrb[0].mxu0
        %3835 = vmatprep.mubr.f32.mxu0 0.0
        %3836 = vmatmul.mubr.f32.gmra.mrb[0].mxu0 %v3654
        %v3837 = vpop.f32.mrb[0].mxu0
        %v3838 = vadd.f32 0.0, %v3837
        %v3839 = vpop.f32.mrb[0].mxu0
        %3840 = vdwg.mxu0
        %v3841 = vadd.f32 %v3535, %v3723
        %v3842 = vadd.f32 %v3536, %v3728
        %v3843 = vadd.f32 %v3537, %v3733
        %v3844 = vadd.f32 %v3538, %v3738
        %v3845 = vadd.f32 %v3539, %v3743
        %v3846 = vadd.f32 %v3540, %v3748
        %v3847 = vadd.f32 %v3541, %v3753
        %v3848 = vadd.f32 %v3542, %v3758
        %v3849 = vadd.f32 %v3543, %v3763
        %v3850 = vadd.f32 %v3544, %v3768
        %v3851 = vadd.f32 %v3545, %v3773
        %v3852 = vadd.f32 %v3546, %v3778
        %v3853 = vadd.f32 %v3547, %v3783
        %v3854 = vadd.f32 %v3548, %v3788
        %v3855 = vadd.f32 %v3549, %v3793
        %v3856 = vadd.f32 %v3550, %v3798
        %v3857 = vadd.f32 %v3551, %v3803
        %v3858 = vadd.f32 %v3552, %v3808
        %v3859 = vadd.f32 %v3553, %v3813
        %v3860 = vadd.f32 %v3554, %v3818
        %v3861 = vadd.f32 %v3555, %v3823
        %v3862 = vadd.f32 %v3556, %v3828
        %v3863 = vadd.f32 %v3557, %v3833
        %v3864 = vadd.f32 %v3558, %v3838
        %v3865 = vld [vmem:[%s234 + $0x22] sm:$0xff]
        %v3866 = vld [vmem:[%s234 + $0x2a] sm:$0xff]
        %v3867 = vld [vmem:[%s234 + $0x32] sm:$0xff]
        %v3868 = vld [vmem:[%s234 + $0x3a] sm:$0xff]
        %v3869 = vld [vmem:[%s234 + $0x42] sm:$0xff]
        %v3870 = vld [vmem:[%s234 + $0x4a] sm:$0xff]
        %v3871 = vld [vmem:[%s234 + $0x52] sm:$0xff]
        %v3872 = vld [vmem:[%s234 + $0x5a] sm:$0xff]
        %v3873 = vld [vmem:[%s234 + $0x62] sm:$0xff]
        %v3874 = vld [vmem:[%s234 + $0x6a] sm:$0xff]
        %v3875 = vld [vmem:[%s234 + $0x72] sm:$0xff]
        %v3876 = vld [vmem:[%s234 + $0x7a] sm:$0xff]
        %v3877 = vld [vmem:[%s234 + $0x82] sm:$0xff]
        %v3878 = vld [vmem:[%s234 + $0x8a] sm:$0xff]
        %v3879 = vld [vmem:[%s234 + $0x92] sm:$0xff]
        %v3880 = vld [vmem:[%s234 + $0x9a] sm:$0xff]
        %v3881 = vld [vmem:[%s234 + $0xa2] sm:$0xff]
        %v3882 = vld [vmem:[%s234 + $0xaa] sm:$0xff]
        %v3883 = vld [vmem:[%s234 + $0xb2] sm:$0xff]
        %v3884 = vld [vmem:[%s234 + $0xba] sm:$0xff]
        %v3885 = vld [vmem:[%s234 + $0xc2] sm:$0xff]
        %v3886 = vld [vmem:[%s234 + $0xca] sm:$0xff]
        %v3887 = vld [vmem:[%s234 + $0xd2] sm:$0xff]
        %v3888 = vld [vmem:[%s234 + $0xda] sm:$0xf]
        %v3889 = vld [vmem:[#allocation2 + $0x60] sm:$0xff]
        %v3891 = vsel %vm290, %v3865, 0
        %v3894 = vsel %vm290, %v3866, 0
        %v3897 = vsel %vm290, %v3867, 0
        %v3900 = vsel %vm290, %v3868, 0
        %v3903 = vsel %vm290, %v3869, 0
        %v3906 = vsel %vm290, %v3870, 0
        %v3909 = vsel %vm290, %v3871, 0
        %v3912 = vsel %vm290, %v3872, 0
        %v3915 = vsel %vm290, %v3873, 0
        %v3918 = vsel %vm290, %v3874, 0
        %v3921 = vsel %vm290, %v3875, 0
        %v3924 = vsel %vm290, %v3876, 0
        %v3927 = vsel %vm290, %v3877, 0
        %v3930 = vsel %vm290, %v3878, 0
        %v3933 = vsel %vm290, %v3879, 0
        %v3936 = vsel %vm290, %v3880, 0
        %v3939 = vsel %vm290, %v3881, 0
        %v3942 = vsel %vm290, %v3882, 0
        %v3945 = vsel %vm290, %v3883, 0
        %v3948 = vsel %vm290, %v3884, 0
        %v3951 = vsel %vm290, %v3885, 0
        %v3954 = vsel %vm290, %v3886, 0
        %v3957 = vsel %vm290, %v3887, 0
        %v3960 = vsel %vm290, %v3888, 0
        %3962 = vmatprep.subr.mxu0 0.0
        %3963 = vmatpush1.msra.mxu0 %v3889
        %3964 = vmatprep.subr.mxu0 0.0
        %3965 = vmatpush1.msra.mxu0 0.0
        %3966 = vmatprep.subr.mxu0 0.0
        %3967 = vmatpush1.msra.mxu0 0.0
        %3968 = vmatprep.subr.mxu0 0.0
        %3969 = vmatpush1.msra.mxu0 0.0
        %3970 = vmatprep.subr.mxu0 0.0
        %3971 = vmatpush1.msra.mxu0 0.0
        %3972 = vmatprep.subr.mxu0 0.0
        %3973 = vmatpush1.msra.mxu0 0.0
        %3974 = vmatprep.subr.mxu0 0.0
        %3975 = vmatpush1.msra.mxu0 0.0
        %3976 = vmatprep.subr.mxu0 0.0
        %3977 = vmatpush1.msra.mxu0 0.0
        %3978 = vmatprep.subr.mxu0 0.0
        %3979 = vmatpush1.msra.mxu0 0.0
        %3980 = vmatprep.subr.mxu0 0.0
        %3981 = vmatpush1.msra.mxu0 0.0
        %3982 = vmatprep.subr.mxu0 0.0
        %3983 = vmatpush1.msra.mxu0 0.0
        %3984 = vmatprep.subr.mxu0 0.0
        %3985 = vmatpush1.msra.mxu0 0.0
        %3986 = vmatprep.subr.mxu0 0.0
        %3987 = vmatpush1.msra.mxu0 0.0
        %3988 = vmatprep.subr.mxu0 0.0
        %3989 = vmatpush1.msra.mxu0 0.0
        %3990 = vmatprep.subr.mxu0 0.0
        %3991 = vmatpush1.msra.mxu0 0.0
        %3992 = vmatprep.subr.mxu0 0.0
        %3993 = vmatpush1.msra.mxu0 0.0
        %3994 = vmatprep.subr.mxu0 0.0
        %3995 = vmatpush1.msra.mxu0 0.0
        %3996 = vmatprep.subr.mxu0 0.0
        %3997 = vmatpush1.msra.mxu0 0.0
        %3998 = vmatprep.subr.mxu0 0.0
        %3999 = vmatpush1.msra.mxu0 0.0
        %4000 = vmatprep.subr.mxu0 0.0
        %4001 = vmatpush1.msra.mxu0 0.0
        %4002 = vmatprep.subr.mxu0 0.0
        %4003 = vmatpush1.msra.mxu0 0.0
        %4004 = vmatprep.subr.mxu0 0.0
        %4005 = vmatpush1.msra.mxu0 0.0
        %4006 = vmatprep.subr.mxu0 0.0
        %4007 = vmatpush1.msra.mxu0 0.0
        %4008 = vmatprep.subr.mxu0 0.0
        %4009 = vmatpush1.msra.mxu0 0.0
        %4010 = vmatprep.subr.mxu0 0.0
        %4011 = vmatpush1.msra.mxu0 0.0
        %4012 = vmatprep.subr.mxu0 0.0
        %4013 = vmatpush1.msra.mxu0 0.0
        %4014 = vmatprep.subr.mxu0 0.0
        %4015 = vmatpush1.msra.mxu0 0.0
        %4016 = vmatprep.subr.mxu0 0.0
        %4017 = vmatpush1.msra.mxu0 0.0
        %4018 = vmatprep.subr.mxu0 0.0
        %4019 = vmatpush1.msra.mxu0 0.0
        %4020 = vmatprep.subr.mxu0 0.0
        %4021 = vmatpush1.msra.mxu0 0.0
        %4022 = vmatprep.subr.mxu0 0.0
        %4023 = vmatpush1.msra.mxu0 0.0
        %4024 = vmatprep.subr.mxu0 0.0
        %4025 = vmatpush1.msra.mxu0 0.0
        %4026 = vmatprep.mubr.f32.mxu0 0.0
        %4027 = vmatmul.mubr.f32.gmra.mrb[0].mxu0 %v3891
        %v4028 = vpop.f32.mrb[0].mxu0
        %v4029 = vadd.f32 0.0, %v4028
        %v4030 = vpop.f32.mrb[0].mxu0
        %4031 = vmatprep.mubr.f32.mxu0 0.0
        %4032 = vmatmul.mubr.f32.gmra.mrb[0].mxu0 %v3894
        %v4033 = vpop.f32.mrb[0].mxu0
        %v4034 = vadd.f32 0.0, %v4033
        %v4035 = vpop.f32.mrb[0].mxu0
        %4036 = vmatprep.mubr.f32.mxu0 0.0
        %4037 = vmatmul.mubr.f32.gmra.mrb[0].mxu0 %v3897
        %v4038 = vpop.f32.mrb[0].mxu0
        %v4039 = vadd.f32 0.0, %v4038
        %v4040 = vpop.f32.mrb[0].mxu0
        %4041 = vmatprep.mubr.f32.mxu0 0.0
        %4042 = vmatmul.mubr.f32.gmra.mrb[0].mxu0 %v3900
        %v4043 = vpop.f32.mrb[0].mxu0
        %v4044 = vadd.f32 0.0, %v4043
        %v4045 = vpop.f32.mrb[0].mxu0
        %4046 = vmatprep.mubr.f32.mxu0 0.0
        %4047 = vmatmul.mubr.f32.gmra.mrb[0].mxu0 %v3903
        %v4048 = vpop.f32.mrb[0].mxu0
        %v4049 = vadd.f32 0.0, %v4048
        %v4050 = vpop.f32.mrb[0].mxu0
        %4051 = vmatprep.mubr.f32.mxu0 0.0
        %4052 = vmatmul.mubr.f32.gmra.mrb[0].mxu0 %v3906
        %v4053 = vpop.f32.mrb[0].mxu0
        %v4054 = vadd.f32 0.0, %v4053
        %v4055 = vpop.f32.mrb[0].mxu0
        %4056 = vmatprep.mubr.f32.mxu0 0.0
        %4057 = vmatmul.mubr.f32.gmra.mrb[0].mxu0 %v3909
        %v4058 = vpop.f32.mrb[0].mxu0
        %v4059 = vadd.f32 0.0, %v4058
        %v4060 = vpop.f32.mrb[0].mxu0
        %4061 = vmatprep.mubr.f32.mxu0 0.0
        %4062 = vmatmul.mubr.f32.gmra.mrb[0].mxu0 %v3912
        %v4063 = vpop.f32.mrb[0].mxu0
        %v4064 = vadd.f32 0.0, %v4063
        %v4065 = vpop.f32.mrb[0].mxu0
        %4066 = vmatprep.mubr.f32.mxu0 0.0
        %4067 = vmatmul.mubr.f32.gmra.mrb[0].mxu0 %v3915
        %v4068 = vpop.f32.mrb[0].mxu0
        %v4069 = vadd.f32 0.0, %v4068
        %v4070 = vpop.f32.mrb[0].mxu0
        %4071 = vmatprep.mubr.f32.mxu0 0.0
        %4072 = vmatmul.mubr.f32.gmra.mrb[0].mxu0 %v3918
        %v4073 = vpop.f32.mrb[0].mxu0
        %v4074 = vadd.f32 0.0, %v4073
        %v4075 = vpop.f32.mrb[0].mxu0
        %4076 = vmatprep.mubr.f32.mxu0 0.0
        %4077 = vmatmul.mubr.f32.gmra.mrb[0].mxu0 %v3921
        %v4078 = vpop.f32.mrb[0].mxu0
        %v4079 = vadd.f32 0.0, %v4078
        %v4080 = vpop.f32.mrb[0].mxu0
        %4081 = vmatprep.mubr.f32.mxu0 0.0
        %4082 = vmatmul.mubr.f32.gmra.mrb[0].mxu0 %v3924
        %v4083 = vpop.f32.mrb[0].mxu0
        %v4084 = vadd.f32 0.0, %v4083
        %v4085 = vpop.f32.mrb[0].mxu0
        %4086 = vmatprep.mubr.f32.mxu0 0.0
        %4087 = vmatmul.mubr.f32.gmra.mrb[0].mxu0 %v3927
        %v4088 = vpop.f32.mrb[0].mxu0
        %v4089 = vadd.f32 0.0, %v4088
        %v4090 = vpop.f32.mrb[0].mxu0
        %4091 = vmatprep.mubr.f32.mxu0 0.0
        %4092 = vmatmul.mubr.f32.gmra.mrb[0].mxu0 %v3930
        %v4093 = vpop.f32.mrb[0].mxu0
        %v4094 = vadd.f32 0.0, %v4093
        %v4095 = vpop.f32.mrb[0].mxu0
        %4096 = vmatprep.mubr.f32.mxu0 0.0
        %4097 = vmatmul.mubr.f32.gmra.mrb[0].mxu0 %v3933
        %v4098 = vpop.f32.mrb[0].mxu0
        %v4099 = vadd.f32 0.0, %v4098
        %v4100 = vpop.f32.mrb[0].mxu0
        %4101 = vmatprep.mubr.f32.mxu0 0.0
        %4102 = vmatmul.mubr.f32.gmra.mrb[0].mxu0 %v3936
        %v4103 = vpop.f32.mrb[0].mxu0
        %v4104 = vadd.f32 0.0, %v4103
        %v4105 = vpop.f32.mrb[0].mxu0
        %4106 = vmatprep.mubr.f32.mxu0 0.0
        %4107 = vmatmul.mubr.f32.gmra.mrb[0].mxu0 %v3939
        %v4108 = vpop.f32.mrb[0].mxu0
        %v4109 = vadd.f32 0.0, %v4108
        %v4110 = vpop.f32.mrb[0].mxu0
        %4111 = vmatprep.mubr.f32.mxu0 0.0
        %4112 = vmatmul.mubr.f32.gmra.mrb[0].mxu0 %v3942
        %v4113 = vpop.f32.mrb[0].mxu0
        %v4114 = vadd.f32 0.0, %v4113
        %v4115 = vpop.f32.mrb[0].mxu0
        %4116 = vmatprep.mubr.f32.mxu0 0.0
        %4117 = vmatmul.mubr.f32.gmra.mrb[0].mxu0 %v3945
        %v4118 = vpop.f32.mrb[0].mxu0
        %v4119 = vadd.f32 0.0, %v4118
        %v4120 = vpop.f32.mrb[0].mxu0
        %4121 = vmatprep.mubr.f32.mxu0 0.0
        %4122 = vmatmul.mubr.f32.gmra.mrb[0].mxu0 %v3948
        %v4123 = vpop.f32.mrb[0].mxu0
        %v4124 = vadd.f32 0.0, %v4123
        %v4125 = vpop.f32.mrb[0].mxu0
        %4126 = vmatprep.mubr.f32.mxu0 0.0
        %4127 = vmatmul.mubr.f32.gmra.mrb[0].mxu0 %v3951
        %v4128 = vpop.f32.mrb[0].mxu0
        %v4129 = vadd.f32 0.0, %v4128
        %v4130 = vpop.f32.mrb[0].mxu0
        %4131 = vmatprep.mubr.f32.mxu0 0.0
        %4132 = vmatmul.mubr.f32.gmra.mrb[0].mxu0 %v3954
        %v4133 = vpop.f32.mrb[0].mxu0
        %v4134 = vadd.f32 0.0, %v4133
        %v4135 = vpop.f32.mrb[0].mxu0
        %4136 = vmatprep.mubr.f32.mxu0 0.0
        %4137 = vmatmul.mubr.f32.gmra.mrb[0].mxu0 %v3957
        %v4138 = vpop.f32.mrb[0].mxu0
        %v4139 = vadd.f32 0.0, %v4138
        %v4140 = vpop.f32.mrb[0].mxu0
        %4141 = vmatprep.mubr.f32.mxu0 0.0
        %4142 = vmatmul.mubr.f32.gmra.mrb[0].mxu0 %v3960
        %v4143 = vpop.f32.mrb[0].mxu0
        %v4144 = vadd.f32 0.0, %v4143
        %v4145 = vpop.f32.mrb[0].mxu0
        %4146 = vdwg.mxu0
        %v4147 = vadd.f32 %v3841, %v4029
        %v4148 = vadd.f32 %v3842, %v4034
        %v4149 = vadd.f32 %v3843, %v4039
        %v4150 = vadd.f32 %v3844, %v4044
        %v4151 = vadd.f32 %v3845, %v4049
        %v4152 = vadd.f32 %v3846, %v4054
        %v4153 = vadd.f32 %v3847, %v4059
        %v4154 = vadd.f32 %v3848, %v4064
        %v4155 = vadd.f32 %v3849, %v4069
        %v4156 = vadd.f32 %v3850, %v4074
        %v4157 = vadd.f32 %v3851, %v4079
        %v4158 = vadd.f32 %v3852, %v4084
        %v4159 = vadd.f32 %v3853, %v4089
        %v4160 = vadd.f32 %v3854, %v4094
        %v4161 = vadd.f32 %v3855, %v4099
        %v4162 = vadd.f32 %v3856, %v4104
        %v4163 = vadd.f32 %v3857, %v4109
        %v4164 = vadd.f32 %v3858, %v4114
        %v4165 = vadd.f32 %v3859, %v4119
        %v4166 = vadd.f32 %v3860, %v4124
        %v4167 = vadd.f32 %v3861, %v4129
        %v4168 = vadd.f32 %v3862, %v4134
        %v4169 = vadd.f32 %v3863, %v4139
        %v4170 = vadd.f32 %v3864, %v4144
        %v4171 = vld [vmem:[%s234 + $0x23] sm:$0xff]
        %v4172 = vld [vmem:[%s234 + $0x2b] sm:$0xff]
        %v4173 = vld [vmem:[%s234 + $0x33] sm:$0xff]
        %v4174 = vld [vmem:[%s234 + $0x3b] sm:$0xff]
        %v4175 = vld [vmem:[%s234 + $0x43] sm:$0xff]
        %v4176 = vld [vmem:[%s234 + $0x4b] sm:$0xff]
        %v4177 = vld [vmem:[%s234 + $0x53] sm:$0xff]
        %v4178 = vld [vmem:[%s234 + $0x5b] sm:$0xff]
        %v4179 = vld [vmem:[%s234 + $0x63] sm:$0xff]
        %v4180 = vld [vmem:[%s234 + $0x6b] sm:$0xff]
        %v4181 = vld [vmem:[%s234 + $0x73] sm:$0xff]
        %v4182 = vld [vmem:[%s234 + $0x7b] sm:$0xff]
        %v4183 = vld [vmem:[%s234 + $0x83] sm:$0xff]
        %v4184 = vld [vmem:[%s234 + $0x8b] sm:$0xff]
        %v4185 = vld [vmem:[%s234 + $0x93] sm:$0xff]
        %v4186 = vld [vmem:[%s234 + $0x9b] sm:$0xff]
        %v4187 = vld [vmem:[%s234 + $0xa3] sm:$0xff]
        %v4188 = vld [vmem:[%s234 + $0xab] sm:$0xff]
        %v4189 = vld [vmem:[%s234 + $0xb3] sm:$0xff]
        %v4190 = vld [vmem:[%s234 + $0xbb] sm:$0xff]
        %v4191 = vld [vmem:[%s234 + $0xc3] sm:$0xff]
        %v4192 = vld [vmem:[%s234 + $0xcb] sm:$0xff]
        %v4193 = vld [vmem:[%s234 + $0xd3] sm:$0xff]
        %v4194 = vld [vmem:[%s234 + $0xdb] sm:$0xf]
        %v4195 = vld [vmem:[#allocation2 + $0x68] sm:$0xff]
        %v4197 = vsel %vm290, %v4171, 0
        %v4200 = vsel %vm290, %v4172, 0
        %v4203 = vsel %vm290, %v4173, 0
        %v4206 = vsel %vm290, %v4174, 0
        %v4209 = vsel %vm290, %v4175, 0
        %v4212 = vsel %vm290, %v4176, 0
        %v4215 = vsel %vm290, %v4177, 0
        %v4218 = vsel %vm290, %v4178, 0
        %v4221 = vsel %vm290, %v4179, 0
        %v4224 = vsel %vm290, %v4180, 0
        %v4227 = vsel %vm290, %v4181, 0
        %v4230 = vsel %vm290, %v4182, 0
        %v4233 = vsel %vm290, %v4183, 0
        %v4236 = vsel %vm290, %v4184, 0
        %v4239 = vsel %vm290, %v4185, 0
        %v4242 = vsel %vm290, %v4186, 0
        %v4245 = vsel %vm290, %v4187, 0
        %v4248 = vsel %vm290, %v4188, 0
        %v4251 = vsel %vm290, %v4189, 0
        %v4254 = vsel %vm290, %v4190, 0
        %v4257 = vsel %vm290, %v4191, 0
        %v4260 = vsel %vm290, %v4192, 0
        %v4263 = vsel %vm290, %v4193, 0
        %v4266 = vsel %vm290, %v4194, 0
        %4268 = vmatprep.subr.mxu0 0.0
        %4269 = vmatpush1.msra.mxu0 %v4195
        %4270 = vmatprep.subr.mxu0 0.0
        %4271 = vmatpush1.msra.mxu0 0.0
        %4272 = vmatprep.subr.mxu0 0.0
        %4273 = vmatpush1.msra.mxu0 0.0
        %4274 = vmatprep.subr.mxu0 0.0
        %4275 = vmatpush1.msra.mxu0 0.0
        %4276 = vmatprep.subr.mxu0 0.0
        %4277 = vmatpush1.msra.mxu0 0.0
        %4278 = vmatprep.subr.mxu0 0.0
        %4279 = vmatpush1.msra.mxu0 0.0
        %4280 = vmatprep.subr.mxu0 0.0
        %4281 = vmatpush1.msra.mxu0 0.0
        %4282 = vmatprep.subr.mxu0 0.0
        %4283 = vmatpush1.msra.mxu0 0.0
        %4284 = vmatprep.subr.mxu0 0.0
        %4285 = vmatpush1.msra.mxu0 0.0
        %4286 = vmatprep.subr.mxu0 0.0
        %4287 = vmatpush1.msra.mxu0 0.0
        %4288 = vmatprep.subr.mxu0 0.0
        %4289 = vmatpush1.msra.mxu0 0.0
        %4290 = vmatprep.subr.mxu0 0.0
        %4291 = vmatpush1.msra.mxu0 0.0
        %4292 = vmatprep.subr.mxu0 0.0
        %4293 = vmatpush1.msra.mxu0 0.0
        %4294 = vmatprep.subr.mxu0 0.0
        %4295 = vmatpush1.msra.mxu0 0.0
        %4296 = vmatprep.subr.mxu0 0.0
        %4297 = vmatpush1.msra.mxu0 0.0
        %4298 = vmatprep.subr.mxu0 0.0
        %4299 = vmatpush1.msra.mxu0 0.0
        %4300 = vmatprep.subr.mxu0 0.0
        %4301 = vmatpush1.msra.mxu0 0.0
        %4302 = vmatprep.subr.mxu0 0.0
        %4303 = vmatpush1.msra.mxu0 0.0
        %4304 = vmatprep.subr.mxu0 0.0
        %4305 = vmatpush1.msra.mxu0 0.0
        %4306 = vmatprep.subr.mxu0 0.0
        %4307 = vmatpush1.msra.mxu0 0.0
        %4308 = vmatprep.subr.mxu0 0.0
        %4309 = vmatpush1.msra.mxu0 0.0
        %4310 = vmatprep.subr.mxu0 0.0
        %4311 = vmatpush1.msra.mxu0 0.0
        %4312 = vmatprep.subr.mxu0 0.0
        %4313 = vmatpush1.msra.mxu0 0.0
        %4314 = vmatprep.subr.mxu0 0.0
        %4315 = vmatpush1.msra.mxu0 0.0
        %4316 = vmatprep.subr.mxu0 0.0
        %4317 = vmatpush1.msra.mxu0 0.0
        %4318 = vmatprep.subr.mxu0 0.0
        %4319 = vmatpush1.msra.mxu0 0.0
        %4320 = vmatprep.subr.mxu0 0.0
        %4321 = vmatpush1.msra.mxu0 0.0
        %4322 = vmatprep.subr.mxu0 0.0
        %4323 = vmatpush1.msra.mxu0 0.0
        %4324 = vmatprep.subr.mxu0 0.0
        %4325 = vmatpush1.msra.mxu0 0.0
        %4326 = vmatprep.subr.mxu0 0.0
        %4327 = vmatpush1.msra.mxu0 0.0
        %4328 = vmatprep.subr.mxu0 0.0
        %4329 = vmatpush1.msra.mxu0 0.0
        %4330 = vmatprep.subr.mxu0 0.0
        %4331 = vmatpush1.msra.mxu0 0.0
        %4332 = vmatprep.mubr.f32.mxu0 0.0
        %4333 = vmatmul.mubr.f32.gmra.mrb[0].mxu0 %v4197
        %v4334 = vpop.f32.mrb[0].mxu0
        %v4335 = vadd.f32 0.0, %v4334
        %v4336 = vpop.f32.mrb[0].mxu0
        %4337 = vmatprep.mubr.f32.mxu0 0.0
        %4338 = vmatmul.mubr.f32.gmra.mrb[0].mxu0 %v4200
        %v4339 = vpop.f32.mrb[0].mxu0
        %v4340 = vadd.f32 0.0, %v4339
        %v4341 = vpop.f32.mrb[0].mxu0
        %4342 = vmatprep.mubr.f32.mxu0 0.0
        %4343 = vmatmul.mubr.f32.gmra.mrb[0].mxu0 %v4203
        %v4344 = vpop.f32.mrb[0].mxu0
        %v4345 = vadd.f32 0.0, %v4344
        %v4346 = vpop.f32.mrb[0].mxu0
        %4347 = vmatprep.mubr.f32.mxu0 0.0
        %4348 = vmatmul.mubr.f32.gmra.mrb[0].mxu0 %v4206
        %v4349 = vpop.f32.mrb[0].mxu0
        %v4350 = vadd.f32 0.0, %v4349
        %v4351 = vpop.f32.mrb[0].mxu0
        %4352 = vmatprep.mubr.f32.mxu0 0.0
        %4353 = vmatmul.mubr.f32.gmra.mrb[0].mxu0 %v4209
        %v4354 = vpop.f32.mrb[0].mxu0
        %v4355 = vadd.f32 0.0, %v4354
        %v4356 = vpop.f32.mrb[0].mxu0
        %4357 = vmatprep.mubr.f32.mxu0 0.0
        %4358 = vmatmul.mubr.f32.gmra.mrb[0].mxu0 %v4212
        %v4359 = vpop.f32.mrb[0].mxu0
        %v4360 = vadd.f32 0.0, %v4359
        %v4361 = vpop.f32.mrb[0].mxu0
        %4362 = vmatprep.mubr.f32.mxu0 0.0
        %4363 = vmatmul.mubr.f32.gmra.mrb[0].mxu0 %v4215
        %v4364 = vpop.f32.mrb[0].mxu0
        %v4365 = vadd.f32 0.0, %v4364
        %v4366 = vpop.f32.mrb[0].mxu0
        %4367 = vmatprep.mubr.f32.mxu0 0.0
        %4368 = vmatmul.mubr.f32.gmra.mrb[0].mxu0 %v4218
        %v4369 = vpop.f32.mrb[0].mxu0
        %v4370 = vadd.f32 0.0, %v4369
        %v4371 = vpop.f32.mrb[0].mxu0
        %4372 = vmatprep.mubr.f32.mxu0 0.0
        %4373 = vmatmul.mubr.f32.gmra.mrb[0].mxu0 %v4221
        %v4374 = vpop.f32.mrb[0].mxu0
        %v4375 = vadd.f32 0.0, %v4374
        %v4376 = vpop.f32.mrb[0].mxu0
        %4377 = vmatprep.mubr.f32.mxu0 0.0
        %4378 = vmatmul.mubr.f32.gmra.mrb[0].mxu0 %v4224
        %v4379 = vpop.f32.mrb[0].mxu0
        %v4380 = vadd.f32 0.0, %v4379
        %v4381 = vpop.f32.mrb[0].mxu0
        %4382 = vmatprep.mubr.f32.mxu0 0.0
        %4383 = vmatmul.mubr.f32.gmra.mrb[0].mxu0 %v4227
        %v4384 = vpop.f32.mrb[0].mxu0
        %v4385 = vadd.f32 0.0, %v4384
        %v4386 = vpop.f32.mrb[0].mxu0
        %4387 = vmatprep.mubr.f32.mxu0 0.0
        %4388 = vmatmul.mubr.f32.gmra.mrb[0].mxu0 %v4230
        %v4389 = vpop.f32.mrb[0].mxu0
        %v4390 = vadd.f32 0.0, %v4389
        %v4391 = vpop.f32.mrb[0].mxu0
        %4392 = vmatprep.mubr.f32.mxu0 0.0
        %4393 = vmatmul.mubr.f32.gmra.mrb[0].mxu0 %v4233
        %v4394 = vpop.f32.mrb[0].mxu0
        %v4395 = vadd.f32 0.0, %v4394
        %v4396 = vpop.f32.mrb[0].mxu0
        %4397 = vmatprep.mubr.f32.mxu0 0.0
        %4398 = vmatmul.mubr.f32.gmra.mrb[0].mxu0 %v4236
        %v4399 = vpop.f32.mrb[0].mxu0
        %v4400 = vadd.f32 0.0, %v4399
        %v4401 = vpop.f32.mrb[0].mxu0
        %4402 = vmatprep.mubr.f32.mxu0 0.0
        %4403 = vmatmul.mubr.f32.gmra.mrb[0].mxu0 %v4239
        %v4404 = vpop.f32.mrb[0].mxu0
        %v4405 = vadd.f32 0.0, %v4404
        %v4406 = vpop.f32.mrb[0].mxu0
        %4407 = vmatprep.mubr.f32.mxu0 0.0
        %4408 = vmatmul.mubr.f32.gmra.mrb[0].mxu0 %v4242
        %v4409 = vpop.f32.mrb[0].mxu0
        %v4410 = vadd.f32 0.0, %v4409
        %v4411 = vpop.f32.mrb[0].mxu0
        %4412 = vmatprep.mubr.f32.mxu0 0.0
        %4413 = vmatmul.mubr.f32.gmra.mrb[0].mxu0 %v4245
        %v4414 = vpop.f32.mrb[0].mxu0
        %v4415 = vadd.f32 0.0, %v4414
        %v4416 = vpop.f32.mrb[0].mxu0
        %4417 = vmatprep.mubr.f32.mxu0 0.0
        %4418 = vmatmul.mubr.f32.gmra.mrb[0].mxu0 %v4248
        %v4419 = vpop.f32.mrb[0].mxu0
        %v4420 = vadd.f32 0.0, %v4419
        %v4421 = vpop.f32.mrb[0].mxu0
        %4422 = vmatprep.mubr.f32.mxu0 0.0
        %4423 = vmatmul.mubr.f32.gmra.mrb[0].mxu0 %v4251
        %v4424 = vpop.f32.mrb[0].mxu0
        %v4425 = vadd.f32 0.0, %v4424
        %v4426 = vpop.f32.mrb[0].mxu0
        %4427 = vmatprep.mubr.f32.mxu0 0.0
        %4428 = vmatmul.mubr.f32.gmra.mrb[0].mxu0 %v4254
        %v4429 = vpop.f32.mrb[0].mxu0
        %v4430 = vadd.f32 0.0, %v4429
        %v4431 = vpop.f32.mrb[0].mxu0
        %4432 = vmatprep.mubr.f32.mxu0 0.0
        %4433 = vmatmul.mubr.f32.gmra.mrb[0].mxu0 %v4257
        %v4434 = vpop.f32.mrb[0].mxu0
        %v4435 = vadd.f32 0.0, %v4434
        %v4436 = vpop.f32.mrb[0].mxu0
        %4437 = vmatprep.mubr.f32.mxu0 0.0
        %4438 = vmatmul.mubr.f32.gmra.mrb[0].mxu0 %v4260
        %v4439 = vpop.f32.mrb[0].mxu0
        %v4440 = vadd.f32 0.0, %v4439
        %v4441 = vpop.f32.mrb[0].mxu0
        %4442 = vmatprep.mubr.f32.mxu0 0.0
        %4443 = vmatmul.mubr.f32.gmra.mrb[0].mxu0 %v4263
        %v4444 = vpop.f32.mrb[0].mxu0
        %v4445 = vadd.f32 0.0, %v4444
        %v4446 = vpop.f32.mrb[0].mxu0
        %4447 = vmatprep.mubr.f32.mxu0 0.0
        %4448 = vmatmul.mubr.f32.gmra.mrb[0].mxu0 %v4266
        %v4449 = vpop.f32.mrb[0].mxu0
        %v4450 = vadd.f32 0.0, %v4449
        %v4451 = vpop.f32.mrb[0].mxu0
        %4452 = vdwg.mxu0
        %v4453 = vadd.f32 %v4147, %v4335
        %v4454 = vadd.f32 %v4148, %v4340
        %v4455 = vadd.f32 %v4149, %v4345
        %v4456 = vadd.f32 %v4150, %v4350
        %v4457 = vadd.f32 %v4151, %v4355
        %v4458 = vadd.f32 %v4152, %v4360
        %v4459 = vadd.f32 %v4153, %v4365
        %v4460 = vadd.f32 %v4154, %v4370
        %v4461 = vadd.f32 %v4155, %v4375
        %v4462 = vadd.f32 %v4156, %v4380
        %v4463 = vadd.f32 %v4157, %v4385
        %v4464 = vadd.f32 %v4158, %v4390
        %v4465 = vadd.f32 %v4159, %v4395
        %v4466 = vadd.f32 %v4160, %v4400
        %v4467 = vadd.f32 %v4161, %v4405
        %v4468 = vadd.f32 %v4162, %v4410
        %v4469 = vadd.f32 %v4163, %v4415
        %v4470 = vadd.f32 %v4164, %v4420
        %v4471 = vadd.f32 %v4165, %v4425
        %v4472 = vadd.f32 %v4166, %v4430
        %v4473 = vadd.f32 %v4167, %v4435
        %v4474 = vadd.f32 %v4168, %v4440
        %v4475 = vadd.f32 %v4169, %v4445
        %v4476 = vadd.f32 %v4170, %v4450
        %v4477 = vld [vmem:[%s234 + $0x24] sm:$0xff]
        %v4478 = vld [vmem:[%s234 + $0x2c] sm:$0xff]
        %v4479 = vld [vmem:[%s234 + $0x34] sm:$0xff]
        %v4480 = vld [vmem:[%s234 + $0x3c] sm:$0xff]
        %v4481 = vld [vmem:[%s234 + $0x44] sm:$0xff]
        %v4482 = vld [vmem:[%s234 + $0x4c] sm:$0xff]
        %v4483 = vld [vmem:[%s234 + $0x54] sm:$0xff]
        %v4484 = vld [vmem:[%s234 + $0x5c] sm:$0xff]
        %v4485 = vld [vmem:[%s234 + $0x64] sm:$0xff]
        %v4486 = vld [vmem:[%s234 + $0x6c] sm:$0xff]
        %v4487 = vld [vmem:[%s234 + $0x74] sm:$0xff]
        %v4488 = vld [vmem:[%s234 + $0x7c] sm:$0xff]
        %v4489 = vld [vmem:[%s234 + $0x84] sm:$0xff]
        %v4490 = vld [vmem:[%s234 + $0x8c] sm:$0xff]
        %v4491 = vld [vmem:[%s234 + $0x94] sm:$0xff]
        %v4492 = vld [vmem:[%s234 + $0x9c] sm:$0xff]
        %v4493 = vld [vmem:[%s234 + $0xa4] sm:$0xff]
        %v4494 = vld [vmem:[%s234 + $0xac] sm:$0xff]
        %v4495 = vld [vmem:[%s234 + $0xb4] sm:$0xff]
        %v4496 = vld [vmem:[%s234 + $0xbc] sm:$0xff]
        %v4497 = vld [vmem:[%s234 + $0xc4] sm:$0xff]
        %v4498 = vld [vmem:[%s234 + $0xcc] sm:$0xff]
        %v4499 = vld [vmem:[%s234 + $0xd4] sm:$0xff]
        %v4500 = vld [vmem:[%s234 + $0xdc] sm:$0xf]
        %v4501 = vld [vmem:[#allocation2 + $0x70] sm:$0xff]
        %v4503 = vsel %vm290, %v4477, 0
        %v4506 = vsel %vm290, %v4478, 0
        %v4509 = vsel %vm290, %v4479, 0
        %v4512 = vsel %vm290, %v4480, 0
        %v4515 = vsel %vm290, %v4481, 0
        %v4518 = vsel %vm290, %v4482, 0
        %v4521 = vsel %vm290, %v4483, 0
        %v4524 = vsel %vm290, %v4484, 0
        %v4527 = vsel %vm290, %v4485, 0
        %v4530 = vsel %vm290, %v4486, 0
        %v4533 = vsel %vm290, %v4487, 0
        %v4536 = vsel %vm290, %v4488, 0
        %v4539 = vsel %vm290, %v4489, 0
        %v4542 = vsel %vm290, %v4490, 0
        %v4545 = vsel %vm290, %v4491, 0
        %v4548 = vsel %vm290, %v4492, 0
        %v4551 = vsel %vm290, %v4493, 0
        %v4554 = vsel %vm290, %v4494, 0
        %v4557 = vsel %vm290, %v4495, 0
        %v4560 = vsel %vm290, %v4496, 0
        %v4563 = vsel %vm290, %v4497, 0
        %v4566 = vsel %vm290, %v4498, 0
        %v4569 = vsel %vm290, %v4499, 0
        %v4572 = vsel %vm290, %v4500, 0
        %4574 = vmatprep.subr.mxu0 0.0
        %4575 = vmatpush1.msra.mxu0 %v4501
        %4576 = vmatprep.subr.mxu0 0.0
        %4577 = vmatpush1.msra.mxu0 0.0
        %4578 = vmatprep.subr.mxu0 0.0
        %4579 = vmatpush1.msra.mxu0 0.0
        %4580 = vmatprep.subr.mxu0 0.0
        %4581 = vmatpush1.msra.mxu0 0.0
        %4582 = vmatprep.subr.mxu0 0.0
        %4583 = vmatpush1.msra.mxu0 0.0
        %4584 = vmatprep.subr.mxu0 0.0
        %4585 = vmatpush1.msra.mxu0 0.0
        %4586 = vmatprep.subr.mxu0 0.0
        %4587 = vmatpush1.msra.mxu0 0.0
        %4588 = vmatprep.subr.mxu0 0.0
        %4589 = vmatpush1.msra.mxu0 0.0
        %4590 = vmatprep.subr.mxu0 0.0
        %4591 = vmatpush1.msra.mxu0 0.0
        %4592 = vmatprep.subr.mxu0 0.0
        %4593 = vmatpush1.msra.mxu0 0.0
        %4594 = vmatprep.subr.mxu0 0.0
        %4595 = vmatpush1.msra.mxu0 0.0
        %4596 = vmatprep.subr.mxu0 0.0
        %4597 = vmatpush1.msra.mxu0 0.0
        %4598 = vmatprep.subr.mxu0 0.0
        %4599 = vmatpush1.msra.mxu0 0.0
        %4600 = vmatprep.subr.mxu0 0.0
        %4601 = vmatpush1.msra.mxu0 0.0
        %4602 = vmatprep.subr.mxu0 0.0
        %4603 = vmatpush1.msra.mxu0 0.0
        %4604 = vmatprep.subr.mxu0 0.0
        %4605 = vmatpush1.msra.mxu0 0.0
        %4606 = vmatprep.subr.mxu0 0.0
        %4607 = vmatpush1.msra.mxu0 0.0
        %4608 = vmatprep.subr.mxu0 0.0
        %4609 = vmatpush1.msra.mxu0 0.0
        %4610 = vmatprep.subr.mxu0 0.0
        %4611 = vmatpush1.msra.mxu0 0.0
        %4612 = vmatprep.subr.mxu0 0.0
        %4613 = vmatpush1.msra.mxu0 0.0
        %4614 = vmatprep.subr.mxu0 0.0
        %4615 = vmatpush1.msra.mxu0 0.0
        %4616 = vmatprep.subr.mxu0 0.0
        %4617 = vmatpush1.msra.mxu0 0.0
        %4618 = vmatprep.subr.mxu0 0.0
        %4619 = vmatpush1.msra.mxu0 0.0
        %4620 = vmatprep.subr.mxu0 0.0
        %4621 = vmatpush1.msra.mxu0 0.0
        %4622 = vmatprep.subr.mxu0 0.0
        %4623 = vmatpush1.msra.mxu0 0.0
        %4624 = vmatprep.subr.mxu0 0.0
        %4625 = vmatpush1.msra.mxu0 0.0
        %4626 = vmatprep.subr.mxu0 0.0
        %4627 = vmatpush1.msra.mxu0 0.0
        %4628 = vmatprep.subr.mxu0 0.0
        %4629 = vmatpush1.msra.mxu0 0.0
        %4630 = vmatprep.subr.mxu0 0.0
        %4631 = vmatpush1.msra.mxu0 0.0
        %4632 = vmatprep.subr.mxu0 0.0
        %4633 = vmatpush1.msra.mxu0 0.0
        %4634 = vmatprep.subr.mxu0 0.0
        %4635 = vmatpush1.msra.mxu0 0.0
        %4636 = vmatprep.subr.mxu0 0.0
        %4637 = vmatpush1.msra.mxu0 0.0
        %4638 = vmatprep.mubr.f32.mxu0 0.0
        %4639 = vmatmul.mubr.f32.gmra.mrb[0].mxu0 %v4503
        %v4640 = vpop.f32.mrb[0].mxu0
        %v4641 = vadd.f32 0.0, %v4640
        %v4642 = vpop.f32.mrb[0].mxu0
        %4643 = vmatprep.mubr.f32.mxu0 0.0
        %4644 = vmatmul.mubr.f32.gmra.mrb[0].mxu0 %v4506
        %v4645 = vpop.f32.mrb[0].mxu0
        %v4646 = vadd.f32 0.0, %v4645
        %v4647 = vpop.f32.mrb[0].mxu0
        %4648 = vmatprep.mubr.f32.mxu0 0.0
        %4649 = vmatmul.mubr.f32.gmra.mrb[0].mxu0 %v4509
        %v4650 = vpop.f32.mrb[0].mxu0
        %v4651 = vadd.f32 0.0, %v4650
        %v4652 = vpop.f32.mrb[0].mxu0
        %4653 = vmatprep.mubr.f32.mxu0 0.0
        %4654 = vmatmul.mubr.f32.gmra.mrb[0].mxu0 %v4512
        %v4655 = vpop.f32.mrb[0].mxu0
        %v4656 = vadd.f32 0.0, %v4655
        %v4657 = vpop.f32.mrb[0].mxu0
        %4658 = vmatprep.mubr.f32.mxu0 0.0
        %4659 = vmatmul.mubr.f32.gmra.mrb[0].mxu0 %v4515
        %v4660 = vpop.f32.mrb[0].mxu0
        %v4661 = vadd.f32 0.0, %v4660
        %v4662 = vpop.f32.mrb[0].mxu0
        %4663 = vmatprep.mubr.f32.mxu0 0.0
        %4664 = vmatmul.mubr.f32.gmra.mrb[0].mxu0 %v4518
        %v4665 = vpop.f32.mrb[0].mxu0
        %v4666 = vadd.f32 0.0, %v4665
        %v4667 = vpop.f32.mrb[0].mxu0
        %4668 = vmatprep.mubr.f32.mxu0 0.0
        %4669 = vmatmul.mubr.f32.gmra.mrb[0].mxu0 %v4521
        %v4670 = vpop.f32.mrb[0].mxu0
        %v4671 = vadd.f32 0.0, %v4670
        %v4672 = vpop.f32.mrb[0].mxu0
        %4673 = vmatprep.mubr.f32.mxu0 0.0
        %4674 = vmatmul.mubr.f32.gmra.mrb[0].mxu0 %v4524
        %v4675 = vpop.f32.mrb[0].mxu0
        %v4676 = vadd.f32 0.0, %v4675
        %v4677 = vpop.f32.mrb[0].mxu0
        %4678 = vmatprep.mubr.f32.mxu0 0.0
        %4679 = vmatmul.mubr.f32.gmra.mrb[0].mxu0 %v4527
        %v4680 = vpop.f32.mrb[0].mxu0
        %v4681 = vadd.f32 0.0, %v4680
        %v4682 = vpop.f32.mrb[0].mxu0
        %4683 = vmatprep.mubr.f32.mxu0 0.0
        %4684 = vmatmul.mubr.f32.gmra.mrb[0].mxu0 %v4530
        %v4685 = vpop.f32.mrb[0].mxu0
        %v4686 = vadd.f32 0.0, %v4685
        %v4687 = vpop.f32.mrb[0].mxu0
        %4688 = vmatprep.mubr.f32.mxu0 0.0
        %4689 = vmatmul.mubr.f32.gmra.mrb[0].mxu0 %v4533
        %v4690 = vpop.f32.mrb[0].mxu0
        %v4691 = vadd.f32 0.0, %v4690
        %v4692 = vpop.f32.mrb[0].mxu0
        %4693 = vmatprep.mubr.f32.mxu0 0.0
        %4694 = vmatmul.mubr.f32.gmra.mrb[0].mxu0 %v4536
        %v4695 = vpop.f32.mrb[0].mxu0
        %v4696 = vadd.f32 0.0, %v4695
        %v4697 = vpop.f32.mrb[0].mxu0
        %4698 = vmatprep.mubr.f32.mxu0 0.0
        %4699 = vmatmul.mubr.f32.gmra.mrb[0].mxu0 %v4539
        %v4700 = vpop.f32.mrb[0].mxu0
        %v4701 = vadd.f32 0.0, %v4700
        %v4702 = vpop.f32.mrb[0].mxu0
        %4703 = vmatprep.mubr.f32.mxu0 0.0
        %4704 = vmatmul.mubr.f32.gmra.mrb[0].mxu0 %v4542
        %v4705 = vpop.f32.mrb[0].mxu0
        %v4706 = vadd.f32 0.0, %v4705
        %v4707 = vpop.f32.mrb[0].mxu0
        %4708 = vmatprep.mubr.f32.mxu0 0.0
        %4709 = vmatmul.mubr.f32.gmra.mrb[0].mxu0 %v4545
        %v4710 = vpop.f32.mrb[0].mxu0
        %v4711 = vadd.f32 0.0, %v4710
        %v4712 = vpop.f32.mrb[0].mxu0
        %4713 = vmatprep.mubr.f32.mxu0 0.0
        %4714 = vmatmul.mubr.f32.gmra.mrb[0].mxu0 %v4548
        %v4715 = vpop.f32.mrb[0].mxu0
        %v4716 = vadd.f32 0.0, %v4715
        %v4717 = vpop.f32.mrb[0].mxu0
        %4718 = vmatprep.mubr.f32.mxu0 0.0
        %4719 = vmatmul.mubr.f32.gmra.mrb[0].mxu0 %v4551
        %v4720 = vpop.f32.mrb[0].mxu0
        %v4721 = vadd.f32 0.0, %v4720
        %v4722 = vpop.f32.mrb[0].mxu0
        %4723 = vmatprep.mubr.f32.mxu0 0.0
        %4724 = vmatmul.mubr.f32.gmra.mrb[0].mxu0 %v4554
        %v4725 = vpop.f32.mrb[0].mxu0
        %v4726 = vadd.f32 0.0, %v4725
        %v4727 = vpop.f32.mrb[0].mxu0
        %4728 = vmatprep.mubr.f32.mxu0 0.0
        %4729 = vmatmul.mubr.f32.gmra.mrb[0].mxu0 %v4557
        %v4730 = vpop.f32.mrb[0].mxu0
        %v4731 = vadd.f32 0.0, %v4730
        %v4732 = vpop.f32.mrb[0].mxu0
        %4733 = vmatprep.mubr.f32.mxu0 0.0
        %4734 = vmatmul.mubr.f32.gmra.mrb[0].mxu0 %v4560
        %v4735 = vpop.f32.mrb[0].mxu0
        %v4736 = vadd.f32 0.0, %v4735
        %v4737 = vpop.f32.mrb[0].mxu0
        %4738 = vmatprep.mubr.f32.mxu0 0.0
        %4739 = vmatmul.mubr.f32.gmra.mrb[0].mxu0 %v4563
        %v4740 = vpop.f32.mrb[0].mxu0
        %v4741 = vadd.f32 0.0, %v4740
        %v4742 = vpop.f32.mrb[0].mxu0
        %4743 = vmatprep.mubr.f32.mxu0 0.0
        %4744 = vmatmul.mubr.f32.gmra.mrb[0].mxu0 %v4566
        %v4745 = vpop.f32.mrb[0].mxu0
        %v4746 = vadd.f32 0.0, %v4745
        %v4747 = vpop.f32.mrb[0].mxu0
        %4748 = vmatprep.mubr.f32.mxu0 0.0
        %4749 = vmatmul.mubr.f32.gmra.mrb[0].mxu0 %v4569
        %v4750 = vpop.f32.mrb[0].mxu0
        %v4751 = vadd.f32 0.0, %v4750
        %v4752 = vpop.f32.mrb[0].mxu0
        %4753 = vmatprep.mubr.f32.mxu0 0.0
        %4754 = vmatmul.mubr.f32.gmra.mrb[0].mxu0 %v4572
        %v4755 = vpop.f32.mrb[0].mxu0
        %v4756 = vadd.f32 0.0, %v4755
        %v4757 = vpop.f32.mrb[0].mxu0
        %4758 = vdwg.mxu0
        %v4759 = vadd.f32 %v4453, %v4641
        %v4760 = vadd.f32 %v4454, %v4646
        %v4761 = vadd.f32 %v4455, %v4651
        %v4762 = vadd.f32 %v4456, %v4656
        %v4763 = vadd.f32 %v4457, %v4661
        %v4764 = vadd.f32 %v4458, %v4666
        %v4765 = vadd.f32 %v4459, %v4671
        %v4766 = vadd.f32 %v4460, %v4676
        %v4767 = vadd.f32 %v4461, %v4681
        %v4768 = vadd.f32 %v4462, %v4686
        %v4769 = vadd.f32 %v4463, %v4691
        %v4770 = vadd.f32 %v4464, %v4696
        %v4771 = vadd.f32 %v4465, %v4701
        %v4772 = vadd.f32 %v4466, %v4706
        %v4773 = vadd.f32 %v4467, %v4711
        %v4774 = vadd.f32 %v4468, %v4716
        %v4775 = vadd.f32 %v4469, %v4721
        %v4776 = vadd.f32 %v4470, %v4726
        %v4777 = vadd.f32 %v4471, %v4731
        %v4778 = vadd.f32 %v4472, %v4736
        %v4779 = vadd.f32 %v4473, %v4741
        %v4780 = vadd.f32 %v4474, %v4746
        %v4781 = vadd.f32 %v4475, %v4751
        %v4782 = vadd.f32 %v4476, %v4756
        %v4783 = vld [vmem:[%s234 + $0x30] sm:$0xff]
        %v4784 = vld [vmem:[%s234 + $0x38] sm:$0xff]
        %v4785 = vld [vmem:[%s234 + $0x40] sm:$0xff]
        %v4786 = vld [vmem:[%s234 + $0x48] sm:$0xff]
        %v4787 = vld [vmem:[%s234 + $0x50] sm:$0xff]
        %v4788 = vld [vmem:[%s234 + $0x58] sm:$0xff]
        %v4789 = vld [vmem:[%s234 + $0x60] sm:$0xff]
        %v4790 = vld [vmem:[%s234 + $0x68] sm:$0xff]
        %v4791 = vld [vmem:[%s234 + $0x70] sm:$0xff]
        %v4792 = vld [vmem:[%s234 + $0x78] sm:$0xff]
        %v4793 = vld [vmem:[%s234 + $0x80] sm:$0xff]
        %v4794 = vld [vmem:[%s234 + $0x88] sm:$0xff]
        %v4795 = vld [vmem:[%s234 + $0x90] sm:$0xff]
        %v4796 = vld [vmem:[%s234 + $0x98] sm:$0xff]
        %v4797 = vld [vmem:[%s234 + $0xa0] sm:$0xff]
        %v4798 = vld [vmem:[%s234 + $0xa8] sm:$0xff]
        %v4799 = vld [vmem:[%s234 + $0xb0] sm:$0xff]
        %v4800 = vld [vmem:[%s234 + $0xb8] sm:$0xff]
        %v4801 = vld [vmem:[%s234 + $0xc0] sm:$0xff]
        %v4802 = vld [vmem:[%s234 + $0xc8] sm:$0xff]
        %v4803 = vld [vmem:[%s234 + $0xd0] sm:$0xff]
        %v4804 = vld [vmem:[%s234 + $0xd8] sm:$0xff]
        %v4805 = vld [vmem:[%s234 + $0xe0] sm:$0xff]
        %v4806 = vld [vmem:[%s234 + $0xe8] sm:$0xf]
        %v4807 = vld [vmem:[#allocation2 + $0x78] sm:$0xff]
        %v4809 = vsel %vm290, %v4783, 0
        %v4812 = vsel %vm290, %v4784, 0
        %v4815 = vsel %vm290, %v4785, 0
        %v4818 = vsel %vm290, %v4786, 0
        %v4821 = vsel %vm290, %v4787, 0
        %v4824 = vsel %vm290, %v4788, 0
        %v4827 = vsel %vm290, %v4789, 0
        %v4830 = vsel %vm290, %v4790, 0
        %v4833 = vsel %vm290, %v4791, 0
        %v4836 = vsel %vm290, %v4792, 0
        %v4839 = vsel %vm290, %v4793, 0
        %v4842 = vsel %vm290, %v4794, 0
        %v4845 = vsel %vm290, %v4795, 0
        %v4848 = vsel %vm290, %v4796, 0
        %v4851 = vsel %vm290, %v4797, 0
        %v4854 = vsel %vm290, %v4798, 0
        %v4857 = vsel %vm290, %v4799, 0
        %v4860 = vsel %vm290, %v4800, 0
        %v4863 = vsel %vm290, %v4801, 0
        %v4866 = vsel %vm290, %v4802, 0
        %v4869 = vsel %vm290, %v4803, 0
        %v4872 = vsel %vm290, %v4804, 0
        %v4875 = vsel %vm290, %v4805, 0
        %v4878 = vsel %vm290, %v4806, 0
        %4880 = vmatprep.subr.mxu0 0.0
        %4881 = vmatpush1.msra.mxu0 %v4807
        %4882 = vmatprep.subr.mxu0 0.0
        %4883 = vmatpush1.msra.mxu0 0.0
        %4884 = vmatprep.subr.mxu0 0.0
        %4885 = vmatpush1.msra.mxu0 0.0
        %4886 = vmatprep.subr.mxu0 0.0
        %4887 = vmatpush1.msra.mxu0 0.0
        %4888 = vmatprep.subr.mxu0 0.0
        %4889 = vmatpush1.msra.mxu0 0.0
        %4890 = vmatprep.subr.mxu0 0.0
        %4891 = vmatpush1.msra.mxu0 0.0
        %4892 = vmatprep.subr.mxu0 0.0
        %4893 = vmatpush1.msra.mxu0 0.0
        %4894 = vmatprep.subr.mxu0 0.0
        %4895 = vmatpush1.msra.mxu0 0.0
        %4896 = vmatprep.subr.mxu0 0.0
        %4897 = vmatpush1.msra.mxu0 0.0
        %4898 = vmatprep.subr.mxu0 0.0
        %4899 = vmatpush1.msra.mxu0 0.0
        %4900 = vmatprep.subr.mxu0 0.0
        %4901 = vmatpush1.msra.mxu0 0.0
        %4902 = vmatprep.subr.mxu0 0.0
        %4903 = vmatpush1.msra.mxu0 0.0
        %4904 = vmatprep.subr.mxu0 0.0
        %4905 = vmatpush1.msra.mxu0 0.0
        %4906 = vmatprep.subr.mxu0 0.0
        %4907 = vmatpush1.msra.mxu0 0.0
        %4908 = vmatprep.subr.mxu0 0.0
        %4909 = vmatpush1.msra.mxu0 0.0
        %4910 = vmatprep.subr.mxu0 0.0
        %4911 = vmatpush1.msra.mxu0 0.0
        %4912 = vmatprep.subr.mxu0 0.0
        %4913 = vmatpush1.msra.mxu0 0.0
        %4914 = vmatprep.subr.mxu0 0.0
        %4915 = vmatpush1.msra.mxu0 0.0
        %4916 = vmatprep.subr.mxu0 0.0
        %4917 = vmatpush1.msra.mxu0 0.0
        %4918 = vmatprep.subr.mxu0 0.0
        %4919 = vmatpush1.msra.mxu0 0.0
        %4920 = vmatprep.subr.mxu0 0.0
        %4921 = vmatpush1.msra.mxu0 0.0
        %4922 = vmatprep.subr.mxu0 0.0
        %4923 = vmatpush1.msra.mxu0 0.0
        %4924 = vmatprep.subr.mxu0 0.0
        %4925 = vmatpush1.msra.mxu0 0.0
        %4926 = vmatprep.subr.mxu0 0.0
        %4927 = vmatpush1.msra.mxu0 0.0
        %4928 = vmatprep.subr.mxu0 0.0
        %4929 = vmatpush1.msra.mxu0 0.0
        %4930 = vmatprep.subr.mxu0 0.0
        %4931 = vmatpush1.msra.mxu0 0.0
        %4932 = vmatprep.subr.mxu0 0.0
        %4933 = vmatpush1.msra.mxu0 0.0
        %4934 = vmatprep.subr.mxu0 0.0
        %4935 = vmatpush1.msra.mxu0 0.0
        %4936 = vmatprep.subr.mxu0 0.0
        %4937 = vmatpush1.msra.mxu0 0.0
        %4938 = vmatprep.subr.mxu0 0.0
        %4939 = vmatpush1.msra.mxu0 0.0
        %4940 = vmatprep.subr.mxu0 0.0
        %4941 = vmatpush1.msra.mxu0 0.0
        %4942 = vmatprep.subr.mxu0 0.0
        %4943 = vmatpush1.msra.mxu0 0.0
        %4944 = vmatprep.mubr.f32.mxu0 0.0
        %4945 = vmatmul.mubr.f32.gmra.mrb[0].mxu0 %v4809
        %v4946 = vpop.f32.mrb[0].mxu0
        %v4947 = vadd.f32 0.0, %v4946
        %v4948 = vpop.f32.mrb[0].mxu0
        %4949 = vmatprep.mubr.f32.mxu0 0.0
        %4950 = vmatmul.mubr.f32.gmra.mrb[0].mxu0 %v4812
        %v4951 = vpop.f32.mrb[0].mxu0
        %v4952 = vadd.f32 0.0, %v4951
        %v4953 = vpop.f32.mrb[0].mxu0
        %4954 = vmatprep.mubr.f32.mxu0 0.0
        %4955 = vmatmul.mubr.f32.gmra.mrb[0].mxu0 %v4815
        %v4956 = vpop.f32.mrb[0].mxu0
        %v4957 = vadd.f32 0.0, %v4956
        %v4958 = vpop.f32.mrb[0].mxu0
        %4959 = vmatprep.mubr.f32.mxu0 0.0
        %4960 = vmatmul.mubr.f32.gmra.mrb[0].mxu0 %v4818
        %v4961 = vpop.f32.mrb[0].mxu0
        %v4962 = vadd.f32 0.0, %v4961
        %v4963 = vpop.f32.mrb[0].mxu0
        %4964 = vmatprep.mubr.f32.mxu0 0.0
        %4965 = vmatmul.mubr.f32.gmra.mrb[0].mxu0 %v4821
        %v4966 = vpop.f32.mrb[0].mxu0
        %v4967 = vadd.f32 0.0, %v4966
        %v4968 = vpop.f32.mrb[0].mxu0
        %4969 = vmatprep.mubr.f32.mxu0 0.0
        %4970 = vmatmul.mubr.f32.gmra.mrb[0].mxu0 %v4824
        %v4971 = vpop.f32.mrb[0].mxu0
        %v4972 = vadd.f32 0.0, %v4971
        %v4973 = vpop.f32.mrb[0].mxu0
        %4974 = vmatprep.mubr.f32.mxu0 0.0
        %4975 = vmatmul.mubr.f32.gmra.mrb[0].mxu0 %v4827
        %v4976 = vpop.f32.mrb[0].mxu0
        %v4977 = vadd.f32 0.0, %v4976
        %v4978 = vpop.f32.mrb[0].mxu0
        %4979 = vmatprep.mubr.f32.mxu0 0.0
        %4980 = vmatmul.mubr.f32.gmra.mrb[0].mxu0 %v4830
        %v4981 = vpop.f32.mrb[0].mxu0
        %v4982 = vadd.f32 0.0, %v4981
        %v4983 = vpop.f32.mrb[0].mxu0
        %4984 = vmatprep.mubr.f32.mxu0 0.0
        %4985 = vmatmul.mubr.f32.gmra.mrb[0].mxu0 %v4833
        %v4986 = vpop.f32.mrb[0].mxu0
        %v4987 = vadd.f32 0.0, %v4986
        %v4988 = vpop.f32.mrb[0].mxu0
        %4989 = vmatprep.mubr.f32.mxu0 0.0
        %4990 = vmatmul.mubr.f32.gmra.mrb[0].mxu0 %v4836
        %v4991 = vpop.f32.mrb[0].mxu0
        %v4992 = vadd.f32 0.0, %v4991
        %v4993 = vpop.f32.mrb[0].mxu0
        %4994 = vmatprep.mubr.f32.mxu0 0.0
        %4995 = vmatmul.mubr.f32.gmra.mrb[0].mxu0 %v4839
        %v4996 = vpop.f32.mrb[0].mxu0
        %v4997 = vadd.f32 0.0, %v4996
        %v4998 = vpop.f32.mrb[0].mxu0
        %4999 = vmatprep.mubr.f32.mxu0 0.0
        %5000 = vmatmul.mubr.f32.gmra.mrb[0].mxu0 %v4842
        %v5001 = vpop.f32.mrb[0].mxu0
        %v5002 = vadd.f32 0.0, %v5001
        %v5003 = vpop.f32.mrb[0].mxu0
        %5004 = vmatprep.mubr.f32.mxu0 0.0
        %5005 = vmatmul.mubr.f32.gmra.mrb[0].mxu0 %v4845
        %v5006 = vpop.f32.mrb[0].mxu0
        %v5007 = vadd.f32 0.0, %v5006
        %v5008 = vpop.f32.mrb[0].mxu0
        %5009 = vmatprep.mubr.f32.mxu0 0.0
        %5010 = vmatmul.mubr.f32.gmra.mrb[0].mxu0 %v4848
        %v5011 = vpop.f32.mrb[0].mxu0
        %v5012 = vadd.f32 0.0, %v5011
        %v5013 = vpop.f32.mrb[0].mxu0
        %5014 = vmatprep.mubr.f32.mxu0 0.0
        %5015 = vmatmul.mubr.f32.gmra.mrb[0].mxu0 %v4851
        %v5016 = vpop.f32.mrb[0].mxu0
        %v5017 = vadd.f32 0.0, %v5016
        %v5018 = vpop.f32.mrb[0].mxu0
        %5019 = vmatprep.mubr.f32.mxu0 0.0
        %5020 = vmatmul.mubr.f32.gmra.mrb[0].mxu0 %v4854
        %v5021 = vpop.f32.mrb[0].mxu0
        %v5022 = vadd.f32 0.0, %v5021
        %v5023 = vpop.f32.mrb[0].mxu0
        %5024 = vmatprep.mubr.f32.mxu0 0.0
        %5025 = vmatmul.mubr.f32.gmra.mrb[0].mxu0 %v4857
        %v5026 = vpop.f32.mrb[0].mxu0
        %v5027 = vadd.f32 0.0, %v5026
        %v5028 = vpop.f32.mrb[0].mxu0
        %5029 = vmatprep.mubr.f32.mxu0 0.0
        %5030 = vmatmul.mubr.f32.gmra.mrb[0].mxu0 %v4860
        %v5031 = vpop.f32.mrb[0].mxu0
        %v5032 = vadd.f32 0.0, %v5031
        %v5033 = vpop.f32.mrb[0].mxu0
        %5034 = vmatprep.mubr.f32.mxu0 0.0
        %5035 = vmatmul.mubr.f32.gmra.mrb[0].mxu0 %v4863
        %v5036 = vpop.f32.mrb[0].mxu0
        %v5037 = vadd.f32 0.0, %v5036
        %v5038 = vpop.f32.mrb[0].mxu0
        %5039 = vmatprep.mubr.f32.mxu0 0.0
        %5040 = vmatmul.mubr.f32.gmra.mrb[0].mxu0 %v4866
        %v5041 = vpop.f32.mrb[0].mxu0
        %v5042 = vadd.f32 0.0, %v5041
        %v5043 = vpop.f32.mrb[0].mxu0
        %5044 = vmatprep.mubr.f32.mxu0 0.0
        %5045 = vmatmul.mubr.f32.gmra.mrb[0].mxu0 %v4869
        %v5046 = vpop.f32.mrb[0].mxu0
        %v5047 = vadd.f32 0.0, %v5046
        %v5048 = vpop.f32.mrb[0].mxu0
        %5049 = vmatprep.mubr.f32.mxu0 0.0
        %5050 = vmatmul.mubr.f32.gmra.mrb[0].mxu0 %v4872
        %v5051 = vpop.f32.mrb[0].mxu0
        %v5052 = vadd.f32 0.0, %v5051
        %v5053 = vpop.f32.mrb[0].mxu0
        %5054 = vmatprep.mubr.f32.mxu0 0.0
        %5055 = vmatmul.mubr.f32.gmra.mrb[0].mxu0 %v4875
        %v5056 = vpop.f32.mrb[0].mxu0
        %v5057 = vadd.f32 0.0, %v5056
        %v5058 = vpop.f32.mrb[0].mxu0
        %5059 = vmatprep.mubr.f32.mxu0 0.0
        %5060 = vmatmul.mubr.f32.gmra.mrb[0].mxu0 %v4878
        %v5061 = vpop.f32.mrb[0].mxu0
        %v5062 = vadd.f32 0.0, %v5061
        %v5063 = vpop.f32.mrb[0].mxu0
        %5064 = vdwg.mxu0
        %v5065 = vadd.f32 %v4759, %v4947
        %v5066 = vadd.f32 %v4760, %v4952
        %v5067 = vadd.f32 %v4761, %v4957
        %v5068 = vadd.f32 %v4762, %v4962
        %v5069 = vadd.f32 %v4763, %v4967
        %v5070 = vadd.f32 %v4764, %v4972
        %v5071 = vadd.f32 %v4765, %v4977
        %v5072 = vadd.f32 %v4766, %v4982
        %v5073 = vadd.f32 %v4767, %v4987
        %v5074 = vadd.f32 %v4768, %v4992
        %v5075 = vadd.f32 %v4769, %v4997
        %v5076 = vadd.f32 %v4770, %v5002
        %v5077 = vadd.f32 %v4771, %v5007
        %v5078 = vadd.f32 %v4772, %v5012
        %v5079 = vadd.f32 %v4773, %v5017
        %v5080 = vadd.f32 %v4774, %v5022
        %v5081 = vadd.f32 %v4775, %v5027
        %v5082 = vadd.f32 %v4776, %v5032
        %v5083 = vadd.f32 %v4777, %v5037
        %v5084 = vadd.f32 %v4778, %v5042
        %v5085 = vadd.f32 %v4779, %v5047
        %v5086 = vadd.f32 %v4780, %v5052
        %v5087 = vadd.f32 %v4781, %v5057
        %v5088 = vadd.f32 %v4782, %v5062
        %v5089 = vld [vmem:[%s234 + $0x31] sm:$0xff]
        %v5090 = vld [vmem:[%s234 + $0x39] sm:$0xff]
        %v5091 = vld [vmem:[%s234 + $0x41] sm:$0xff]
        %v5092 = vld [vmem:[%s234 + $0x49] sm:$0xff]
        %v5093 = vld [vmem:[%s234 + $0x51] sm:$0xff]
        %v5094 = vld [vmem:[%s234 + $0x59] sm:$0xff]
        %v5095 = vld [vmem:[%s234 + $0x61] sm:$0xff]
        %v5096 = vld [vmem:[%s234 + $0x69] sm:$0xff]
        %v5097 = vld [vmem:[%s234 + $0x71] sm:$0xff]
        %v5098 = vld [vmem:[%s234 + $0x79] sm:$0xff]
        %v5099 = vld [vmem:[%s234 + $0x81] sm:$0xff]
        %v5100 = vld [vmem:[%s234 + $0x89] sm:$0xff]
        %v5101 = vld [vmem:[%s234 + $0x91] sm:$0xff]
        %v5102 = vld [vmem:[%s234 + $0x99] sm:$0xff]
        %v5103 = vld [vmem:[%s234 + $0xa1] sm:$0xff]
        %v5104 = vld [vmem:[%s234 + $0xa9] sm:$0xff]
        %v5105 = vld [vmem:[%s234 + $0xb1] sm:$0xff]
        %v5106 = vld [vmem:[%s234 + $0xb9] sm:$0xff]
        %v5107 = vld [vmem:[%s234 + $0xc1] sm:$0xff]
        %v5108 = vld [vmem:[%s234 + $0xc9] sm:$0xff]
        %v5109 = vld [vmem:[%s234 + $0xd1] sm:$0xff]
        %v5110 = vld [vmem:[%s234 + $0xd9] sm:$0xff]
        %v5111 = vld [vmem:[%s234 + $0xe1] sm:$0xff]
        %v5112 = vld [vmem:[%s234 + $0xe9] sm:$0xf]
        %v5113 = vld [vmem:[#allocation2 + $0x80] sm:$0xff]
        %v5115 = vsel %vm290, %v5089, 0
        %v5118 = vsel %vm290, %v5090, 0
        %v5121 = vsel %vm290, %v5091, 0
        %v5124 = vsel %vm290, %v5092, 0
        %v5127 = vsel %vm290, %v5093, 0
        %v5130 = vsel %vm290, %v5094, 0
        %v5133 = vsel %vm290, %v5095, 0
        %v5136 = vsel %vm290, %v5096, 0
        %v5139 = vsel %vm290, %v5097, 0
        %v5142 = vsel %vm290, %v5098, 0
        %v5145 = vsel %vm290, %v5099, 0
        %v5148 = vsel %vm290, %v5100, 0
        %v5151 = vsel %vm290, %v5101, 0
        %v5154 = vsel %vm290, %v5102, 0
        %v5157 = vsel %vm290, %v5103, 0
        %v5160 = vsel %vm290, %v5104, 0
        %v5163 = vsel %vm290, %v5105, 0
        %v5166 = vsel %vm290, %v5106, 0
        %v5169 = vsel %vm290, %v5107, 0
        %v5172 = vsel %vm290, %v5108, 0
        %v5175 = vsel %vm290, %v5109, 0
        %v5178 = vsel %vm290, %v5110, 0
        %v5181 = vsel %vm290, %v5111, 0
        %v5184 = vsel %vm290, %v5112, 0
        %5186 = vmatprep.subr.mxu0 0.0
        %5187 = vmatpush1.msra.mxu0 %v5113
        %5188 = vmatprep.subr.mxu0 0.0
        %5189 = vmatpush1.msra.mxu0 0.0
        %5190 = vmatprep.subr.mxu0 0.0
        %5191 = vmatpush1.msra.mxu0 0.0
        %5192 = vmatprep.subr.mxu0 0.0
        %5193 = vmatpush1.msra.mxu0 0.0
        %5194 = vmatprep.subr.mxu0 0.0
        %5195 = vmatpush1.msra.mxu0 0.0
        %5196 = vmatprep.subr.mxu0 0.0
        %5197 = vmatpush1.msra.mxu0 0.0
        %5198 = vmatprep.subr.mxu0 0.0
        %5199 = vmatpush1.msra.mxu0 0.0
        %5200 = vmatprep.subr.mxu0 0.0
        %5201 = vmatpush1.msra.mxu0 0.0
        %5202 = vmatprep.subr.mxu0 0.0
        %5203 = vmatpush1.msra.mxu0 0.0
        %5204 = vmatprep.subr.mxu0 0.0
        %5205 = vmatpush1.msra.mxu0 0.0
        %5206 = vmatprep.subr.mxu0 0.0
        %5207 = vmatpush1.msra.mxu0 0.0
        %5208 = vmatprep.subr.mxu0 0.0
        %5209 = vmatpush1.msra.mxu0 0.0
        %5210 = vmatprep.subr.mxu0 0.0
        %5211 = vmatpush1.msra.mxu0 0.0
        %5212 = vmatprep.subr.mxu0 0.0
        %5213 = vmatpush1.msra.mxu0 0.0
        %5214 = vmatprep.subr.mxu0 0.0
        %5215 = vmatpush1.msra.mxu0 0.0
        %5216 = vmatprep.subr.mxu0 0.0
        %5217 = vmatpush1.msra.mxu0 0.0
        %5218 = vmatprep.subr.mxu0 0.0
        %5219 = vmatpush1.msra.mxu0 0.0
        %5220 = vmatprep.subr.mxu0 0.0
        %5221 = vmatpush1.msra.mxu0 0.0
        %5222 = vmatprep.subr.mxu0 0.0
        %5223 = vmatpush1.msra.mxu0 0.0
        %5224 = vmatprep.subr.mxu0 0.0
        %5225 = vmatpush1.msra.mxu0 0.0
        %5226 = vmatprep.subr.mxu0 0.0
        %5227 = vmatpush1.msra.mxu0 0.0
        %5228 = vmatprep.subr.mxu0 0.0
        %5229 = vmatpush1.msra.mxu0 0.0
        %5230 = vmatprep.subr.mxu0 0.0
        %5231 = vmatpush1.msra.mxu0 0.0
        %5232 = vmatprep.subr.mxu0 0.0
        %5233 = vmatpush1.msra.mxu0 0.0
        %5234 = vmatprep.subr.mxu0 0.0
        %5235 = vmatpush1.msra.mxu0 0.0
        %5236 = vmatprep.subr.mxu0 0.0
        %5237 = vmatpush1.msra.mxu0 0.0
        %5238 = vmatprep.subr.mxu0 0.0
        %5239 = vmatpush1.msra.mxu0 0.0
        %5240 = vmatprep.subr.mxu0 0.0
        %5241 = vmatpush1.msra.mxu0 0.0
        %5242 = vmatprep.subr.mxu0 0.0
        %5243 = vmatpush1.msra.mxu0 0.0
        %5244 = vmatprep.subr.mxu0 0.0
        %5245 = vmatpush1.msra.mxu0 0.0
        %5246 = vmatprep.subr.mxu0 0.0
        %5247 = vmatpush1.msra.mxu0 0.0
        %5248 = vmatprep.subr.mxu0 0.0
        %5249 = vmatpush1.msra.mxu0 0.0
        %5250 = vmatprep.mubr.f32.mxu0 0.0
        %5251 = vmatmul.mubr.f32.gmra.mrb[0].mxu0 %v5115
        %v5252 = vpop.f32.mrb[0].mxu0
        %v5253 = vadd.f32 0.0, %v5252
        %v5254 = vpop.f32.mrb[0].mxu0
        %5255 = vmatprep.mubr.f32.mxu0 0.0
        %5256 = vmatmul.mubr.f32.gmra.mrb[0].mxu0 %v5118
        %v5257 = vpop.f32.mrb[0].mxu0
        %v5258 = vadd.f32 0.0, %v5257
        %v5259 = vpop.f32.mrb[0].mxu0
        %5260 = vmatprep.mubr.f32.mxu0 0.0
        %5261 = vmatmul.mubr.f32.gmra.mrb[0].mxu0 %v5121
        %v5262 = vpop.f32.mrb[0].mxu0
        %v5263 = vadd.f32 0.0, %v5262
        %v5264 = vpop.f32.mrb[0].mxu0
        %5265 = vmatprep.mubr.f32.mxu0 0.0
        %5266 = vmatmul.mubr.f32.gmra.mrb[0].mxu0 %v5124
        %v5267 = vpop.f32.mrb[0].mxu0
        %v5268 = vadd.f32 0.0, %v5267
        %v5269 = vpop.f32.mrb[0].mxu0
        %5270 = vmatprep.mubr.f32.mxu0 0.0
        %5271 = vmatmul.mubr.f32.gmra.mrb[0].mxu0 %v5127
        %v5272 = vpop.f32.mrb[0].mxu0
        %v5273 = vadd.f32 0.0, %v5272
        %v5274 = vpop.f32.mrb[0].mxu0
        %5275 = vmatprep.mubr.f32.mxu0 0.0
        %5276 = vmatmul.mubr.f32.gmra.mrb[0].mxu0 %v5130
        %v5277 = vpop.f32.mrb[0].mxu0
        %v5278 = vadd.f32 0.0, %v5277
        %v5279 = vpop.f32.mrb[0].mxu0
        %5280 = vmatprep.mubr.f32.mxu0 0.0
        %5281 = vmatmul.mubr.f32.gmra.mrb[0].mxu0 %v5133
        %v5282 = vpop.f32.mrb[0].mxu0
        %v5283 = vadd.f32 0.0, %v5282
        %v5284 = vpop.f32.mrb[0].mxu0
        %5285 = vmatprep.mubr.f32.mxu0 0.0
        %5286 = vmatmul.mubr.f32.gmra.mrb[0].mxu0 %v5136
        %v5287 = vpop.f32.mrb[0].mxu0
        %v5288 = vadd.f32 0.0, %v5287
        %v5289 = vpop.f32.mrb[0].mxu0
        %5290 = vmatprep.mubr.f32.mxu0 0.0
        %5291 = vmatmul.mubr.f32.gmra.mrb[0].mxu0 %v5139
        %v5292 = vpop.f32.mrb[0].mxu0
        %v5293 = vadd.f32 0.0, %v5292
        %v5294 = vpop.f32.mrb[0].mxu0
        %5295 = vmatprep.mubr.f32.mxu0 0.0
        %5296 = vmatmul.mubr.f32.gmra.mrb[0].mxu0 %v5142
        %v5297 = vpop.f32.mrb[0].mxu0
        %v5298 = vadd.f32 0.0, %v5297
        %v5299 = vpop.f32.mrb[0].mxu0
        %5300 = vmatprep.mubr.f32.mxu0 0.0
        %5301 = vmatmul.mubr.f32.gmra.mrb[0].mxu0 %v5145
        %v5302 = vpop.f32.mrb[0].mxu0
        %v5303 = vadd.f32 0.0, %v5302
        %v5304 = vpop.f32.mrb[0].mxu0
        %5305 = vmatprep.mubr.f32.mxu0 0.0
        %5306 = vmatmul.mubr.f32.gmra.mrb[0].mxu0 %v5148
        %v5307 = vpop.f32.mrb[0].mxu0
        %v5308 = vadd.f32 0.0, %v5307
        %v5309 = vpop.f32.mrb[0].mxu0
        %5310 = vmatprep.mubr.f32.mxu0 0.0
        %5311 = vmatmul.mubr.f32.gmra.mrb[0].mxu0 %v5151
        %v5312 = vpop.f32.mrb[0].mxu0
        %v5313 = vadd.f32 0.0, %v5312
        %v5314 = vpop.f32.mrb[0].mxu0
        %5315 = vmatprep.mubr.f32.mxu0 0.0
        %5316 = vmatmul.mubr.f32.gmra.mrb[0].mxu0 %v5154
        %v5317 = vpop.f32.mrb[0].mxu0
        %v5318 = vadd.f32 0.0, %v5317
        %v5319 = vpop.f32.mrb[0].mxu0
        %5320 = vmatprep.mubr.f32.mxu0 0.0
        %5321 = vmatmul.mubr.f32.gmra.mrb[0].mxu0 %v5157
        %v5322 = vpop.f32.mrb[0].mxu0
        %v5323 = vadd.f32 0.0, %v5322
        %v5324 = vpop.f32.mrb[0].mxu0
        %5325 = vmatprep.mubr.f32.mxu0 0.0
        %5326 = vmatmul.mubr.f32.gmra.mrb[0].mxu0 %v5160
        %v5327 = vpop.f32.mrb[0].mxu0
        %v5328 = vadd.f32 0.0, %v5327
        %v5329 = vpop.f32.mrb[0].mxu0
        %5330 = vmatprep.mubr.f32.mxu0 0.0
        %5331 = vmatmul.mubr.f32.gmra.mrb[0].mxu0 %v5163
        %v5332 = vpop.f32.mrb[0].mxu0
        %v5333 = vadd.f32 0.0, %v5332
        %v5334 = vpop.f32.mrb[0].mxu0
        %5335 = vmatprep.mubr.f32.mxu0 0.0
        %5336 = vmatmul.mubr.f32.gmra.mrb[0].mxu0 %v5166
        %v5337 = vpop.f32.mrb[0].mxu0
        %v5338 = vadd.f32 0.0, %v5337
        %v5339 = vpop.f32.mrb[0].mxu0
        %5340 = vmatprep.mubr.f32.mxu0 0.0
        %5341 = vmatmul.mubr.f32.gmra.mrb[0].mxu0 %v5169
        %v5342 = vpop.f32.mrb[0].mxu0
        %v5343 = vadd.f32 0.0, %v5342
        %v5344 = vpop.f32.mrb[0].mxu0
        %5345 = vmatprep.mubr.f32.mxu0 0.0
        %5346 = vmatmul.mubr.f32.gmra.mrb[0].mxu0 %v5172
        %v5347 = vpop.f32.mrb[0].mxu0
        %v5348 = vadd.f32 0.0, %v5347
        %v5349 = vpop.f32.mrb[0].mxu0
        %5350 = vmatprep.mubr.f32.mxu0 0.0
        %5351 = vmatmul.mubr.f32.gmra.mrb[0].mxu0 %v5175
        %v5352 = vpop.f32.mrb[0].mxu0
        %v5353 = vadd.f32 0.0, %v5352
        %v5354 = vpop.f32.mrb[0].mxu0
        %5355 = vmatprep.mubr.f32.mxu0 0.0
        %5356 = vmatmul.mubr.f32.gmra.mrb[0].mxu0 %v5178
        %v5357 = vpop.f32.mrb[0].mxu0
        %v5358 = vadd.f32 0.0, %v5357
        %v5359 = vpop.f32.mrb[0].mxu0
        %5360 = vmatprep.mubr.f32.mxu0 0.0
        %5361 = vmatmul.mubr.f32.gmra.mrb[0].mxu0 %v5181
        %v5362 = vpop.f32.mrb[0].mxu0
        %v5363 = vadd.f32 0.0, %v5362
        %v5364 = vpop.f32.mrb[0].mxu0
        %5365 = vmatprep.mubr.f32.mxu0 0.0
        %5366 = vmatmul.mubr.f32.gmra.mrb[0].mxu0 %v5184
        %v5367 = vpop.f32.mrb[0].mxu0
        %v5368 = vadd.f32 0.0, %v5367
        %v5369 = vpop.f32.mrb[0].mxu0
        %5370 = vdwg.mxu0
        %v5371 = vadd.f32 %v5065, %v5253
        %v5372 = vadd.f32 %v5066, %v5258
        %v5373 = vadd.f32 %v5067, %v5263
        %v5374 = vadd.f32 %v5068, %v5268
        %v5375 = vadd.f32 %v5069, %v5273
        %v5376 = vadd.f32 %v5070, %v5278
        %v5377 = vadd.f32 %v5071, %v5283
        %v5378 = vadd.f32 %v5072, %v5288
        %v5379 = vadd.f32 %v5073, %v5293
        %v5380 = vadd.f32 %v5074, %v5298
        %v5381 = vadd.f32 %v5075, %v5303
        %v5382 = vadd.f32 %v5076, %v5308
        %v5383 = vadd.f32 %v5077, %v5313
        %v5384 = vadd.f32 %v5078, %v5318
        %v5385 = vadd.f32 %v5079, %v5323
        %v5386 = vadd.f32 %v5080, %v5328
        %v5387 = vadd.f32 %v5081, %v5333
        %v5388 = vadd.f32 %v5082, %v5338
        %v5389 = vadd.f32 %v5083, %v5343
        %v5390 = vadd.f32 %v5084, %v5348
        %v5391 = vadd.f32 %v5085, %v5353
        %v5392 = vadd.f32 %v5086, %v5358
        %v5393 = vadd.f32 %v5087, %v5363
        %v5394 = vadd.f32 %v5088, %v5368
        %v5395 = vld [vmem:[%s234 + $0x32] sm:$0xff]
        %v5396 = vld [vmem:[%s234 + $0x3a] sm:$0xff]
        %v5397 = vld [vmem:[%s234 + $0x42] sm:$0xff]
        %v5398 = vld [vmem:[%s234 + $0x4a] sm:$0xff]
        %v5399 = vld [vmem:[%s234 + $0x52] sm:$0xff]
        %v5400 = vld [vmem:[%s234 + $0x5a] sm:$0xff]
        %v5401 = vld [vmem:[%s234 + $0x62] sm:$0xff]
        %v5402 = vld [vmem:[%s234 + $0x6a] sm:$0xff]
        %v5403 = vld [vmem:[%s234 + $0x72] sm:$0xff]
        %v5404 = vld [vmem:[%s234 + $0x7a] sm:$0xff]
        %v5405 = vld [vmem:[%s234 + $0x82] sm:$0xff]
        %v5406 = vld [vmem:[%s234 + $0x8a] sm:$0xff]
        %v5407 = vld [vmem:[%s234 + $0x92] sm:$0xff]
        %v5408 = vld [vmem:[%s234 + $0x9a] sm:$0xff]
        %v5409 = vld [vmem:[%s234 + $0xa2] sm:$0xff]
        %v5410 = vld [vmem:[%s234 + $0xaa] sm:$0xff]
        %v5411 = vld [vmem:[%s234 + $0xb2] sm:$0xff]
        %v5412 = vld [vmem:[%s234 + $0xba] sm:$0xff]
        %v5413 = vld [vmem:[%s234 + $0xc2] sm:$0xff]
        %v5414 = vld [vmem:[%s234 + $0xca] sm:$0xff]
        %v5415 = vld [vmem:[%s234 + $0xd2] sm:$0xff]
        %v5416 = vld [vmem:[%s234 + $0xda] sm:$0xff]
        %v5417 = vld [vmem:[%s234 + $0xe2] sm:$0xff]
        %v5418 = vld [vmem:[%s234 + $0xea] sm:$0xf]
        %v5419 = vld [vmem:[#allocation2 + $0x88] sm:$0xff]
        %v5421 = vsel %vm290, %v5395, 0
        %v5424 = vsel %vm290, %v5396, 0
        %v5427 = vsel %vm290, %v5397, 0
        %v5430 = vsel %vm290, %v5398, 0
        %v5433 = vsel %vm290, %v5399, 0
        %v5436 = vsel %vm290, %v5400, 0
        %v5439 = vsel %vm290, %v5401, 0
        %v5442 = vsel %vm290, %v5402, 0
        %v5445 = vsel %vm290, %v5403, 0
        %v5448 = vsel %vm290, %v5404, 0
        %v5451 = vsel %vm290, %v5405, 0
        %v5454 = vsel %vm290, %v5406, 0
        %v5457 = vsel %vm290, %v5407, 0
        %v5460 = vsel %vm290, %v5408, 0
        %v5463 = vsel %vm290, %v5409, 0
        %v5466 = vsel %vm290, %v5410, 0
        %v5469 = vsel %vm290, %v5411, 0
        %v5472 = vsel %vm290, %v5412, 0
        %v5475 = vsel %vm290, %v5413, 0
        %v5478 = vsel %vm290, %v5414, 0
        %v5481 = vsel %vm290, %v5415, 0
        %v5484 = vsel %vm290, %v5416, 0
        %v5487 = vsel %vm290, %v5417, 0
        %v5490 = vsel %vm290, %v5418, 0
        %5492 = vmatprep.subr.mxu0 0.0
        %5493 = vmatpush1.msra.mxu0 %v5419
        %5494 = vmatprep.subr.mxu0 0.0
        %5495 = vmatpush1.msra.mxu0 0.0
        %5496 = vmatprep.subr.mxu0 0.0
        %5497 = vmatpush1.msra.mxu0 0.0
        %5498 = vmatprep.subr.mxu0 0.0
        %5499 = vmatpush1.msra.mxu0 0.0
        %5500 = vmatprep.subr.mxu0 0.0
        %5501 = vmatpush1.msra.mxu0 0.0
        %5502 = vmatprep.subr.mxu0 0.0
        %5503 = vmatpush1.msra.mxu0 0.0
        %5504 = vmatprep.subr.mxu0 0.0
        %5505 = vmatpush1.msra.mxu0 0.0
        %5506 = vmatprep.subr.mxu0 0.0
        %5507 = vmatpush1.msra.mxu0 0.0
        %5508 = vmatprep.subr.mxu0 0.0
        %5509 = vmatpush1.msra.mxu0 0.0
        %5510 = vmatprep.subr.mxu0 0.0
        %5511 = vmatpush1.msra.mxu0 0.0
        %5512 = vmatprep.subr.mxu0 0.0
        %5513 = vmatpush1.msra.mxu0 0.0
        %5514 = vmatprep.subr.mxu0 0.0
        %5515 = vmatpush1.msra.mxu0 0.0
        %5516 = vmatprep.subr.mxu0 0.0
        %5517 = vmatpush1.msra.mxu0 0.0
        %5518 = vmatprep.subr.mxu0 0.0
        %5519 = vmatpush1.msra.mxu0 0.0
        %5520 = vmatprep.subr.mxu0 0.0
        %5521 = vmatpush1.msra.mxu0 0.0
        %5522 = vmatprep.subr.mxu0 0.0
        %5523 = vmatpush1.msra.mxu0 0.0
        %5524 = vmatprep.subr.mxu0 0.0
        %5525 = vmatpush1.msra.mxu0 0.0
        %5526 = vmatprep.subr.mxu0 0.0
        %5527 = vmatpush1.msra.mxu0 0.0
        %5528 = vmatprep.subr.mxu0 0.0
        %5529 = vmatpush1.msra.mxu0 0.0
        %5530 = vmatprep.subr.mxu0 0.0
        %5531 = vmatpush1.msra.mxu0 0.0
        %5532 = vmatprep.subr.mxu0 0.0
        %5533 = vmatpush1.msra.mxu0 0.0
        %5534 = vmatprep.subr.mxu0 0.0
        %5535 = vmatpush1.msra.mxu0 0.0
        %5536 = vmatprep.subr.mxu0 0.0
        %5537 = vmatpush1.msra.mxu0 0.0
        %5538 = vmatprep.subr.mxu0 0.0
        %5539 = vmatpush1.msra.mxu0 0.0
        %5540 = vmatprep.subr.mxu0 0.0
        %5541 = vmatpush1.msra.mxu0 0.0
        %5542 = vmatprep.subr.mxu0 0.0
        %5543 = vmatpush1.msra.mxu0 0.0
        %5544 = vmatprep.subr.mxu0 0.0
        %5545 = vmatpush1.msra.mxu0 0.0
        %5546 = vmatprep.subr.mxu0 0.0
        %5547 = vmatpush1.msra.mxu0 0.0
        %5548 = vmatprep.subr.mxu0 0.0
        %5549 = vmatpush1.msra.mxu0 0.0
        %5550 = vmatprep.subr.mxu0 0.0
        %5551 = vmatpush1.msra.mxu0 0.0
        %5552 = vmatprep.subr.mxu0 0.0
        %5553 = vmatpush1.msra.mxu0 0.0
        %5554 = vmatprep.subr.mxu0 0.0
        %5555 = vmatpush1.msra.mxu0 0.0
        %5556 = vmatprep.mubr.f32.mxu0 0.0
        %5557 = vmatmul.mubr.f32.gmra.mrb[0].mxu0 %v5421
        %v5558 = vpop.f32.mrb[0].mxu0
        %v5559 = vadd.f32 0.0, %v5558
        %v5560 = vpop.f32.mrb[0].mxu0
        %5561 = vmatprep.mubr.f32.mxu0 0.0
        %5562 = vmatmul.mubr.f32.gmra.mrb[0].mxu0 %v5424
        %v5563 = vpop.f32.mrb[0].mxu0
        %v5564 = vadd.f32 0.0, %v5563
        %v5565 = vpop.f32.mrb[0].mxu0
        %5566 = vmatprep.mubr.f32.mxu0 0.0
        %5567 = vmatmul.mubr.f32.gmra.mrb[0].mxu0 %v5427
        %v5568 = vpop.f32.mrb[0].mxu0
        %v5569 = vadd.f32 0.0, %v5568
        %v5570 = vpop.f32.mrb[0].mxu0
        %5571 = vmatprep.mubr.f32.mxu0 0.0
        %5572 = vmatmul.mubr.f32.gmra.mrb[0].mxu0 %v5430
        %v5573 = vpop.f32.mrb[0].mxu0
        %v5574 = vadd.f32 0.0, %v5573
        %v5575 = vpop.f32.mrb[0].mxu0
        %5576 = vmatprep.mubr.f32.mxu0 0.0
        %5577 = vmatmul.mubr.f32.gmra.mrb[0].mxu0 %v5433
        %v5578 = vpop.f32.mrb[0].mxu0
        %v5579 = vadd.f32 0.0, %v5578
        %v5580 = vpop.f32.mrb[0].mxu0
        %5581 = vmatprep.mubr.f32.mxu0 0.0
        %5582 = vmatmul.mubr.f32.gmra.mrb[0].mxu0 %v5436
        %v5583 = vpop.f32.mrb[0].mxu0
        %v5584 = vadd.f32 0.0, %v5583
        %v5585 = vpop.f32.mrb[0].mxu0
        %5586 = vmatprep.mubr.f32.mxu0 0.0
        %5587 = vmatmul.mubr.f32.gmra.mrb[0].mxu0 %v5439
        %v5588 = vpop.f32.mrb[0].mxu0
        %v5589 = vadd.f32 0.0, %v5588
        %v5590 = vpop.f32.mrb[0].mxu0
        %5591 = vmatprep.mubr.f32.mxu0 0.0
        %5592 = vmatmul.mubr.f32.gmra.mrb[0].mxu0 %v5442
        %v5593 = vpop.f32.mrb[0].mxu0
        %v5594 = vadd.f32 0.0, %v5593
        %v5595 = vpop.f32.mrb[0].mxu0
        %5596 = vmatprep.mubr.f32.mxu0 0.0
        %5597 = vmatmul.mubr.f32.gmra.mrb[0].mxu0 %v5445
        %v5598 = vpop.f32.mrb[0].mxu0
        %v5599 = vadd.f32 0.0, %v5598
        %v5600 = vpop.f32.mrb[0].mxu0
        %5601 = vmatprep.mubr.f32.mxu0 0.0
        %5602 = vmatmul.mubr.f32.gmra.mrb[0].mxu0 %v5448
        %v5603 = vpop.f32.mrb[0].mxu0
        %v5604 = vadd.f32 0.0, %v5603
        %v5605 = vpop.f32.mrb[0].mxu0
        %5606 = vmatprep.mubr.f32.mxu0 0.0
        %5607 = vmatmul.mubr.f32.gmra.mrb[0].mxu0 %v5451
        %v5608 = vpop.f32.mrb[0].mxu0
        %v5609 = vadd.f32 0.0, %v5608
        %v5610 = vpop.f32.mrb[0].mxu0
        %5611 = vmatprep.mubr.f32.mxu0 0.0
        %5612 = vmatmul.mubr.f32.gmra.mrb[0].mxu0 %v5454
        %v5613 = vpop.f32.mrb[0].mxu0
        %v5614 = vadd.f32 0.0, %v5613
        %v5615 = vpop.f32.mrb[0].mxu0
        %5616 = vmatprep.mubr.f32.mxu0 0.0
        %5617 = vmatmul.mubr.f32.gmra.mrb[0].mxu0 %v5457
        %v5618 = vpop.f32.mrb[0].mxu0
        %v5619 = vadd.f32 0.0, %v5618
        %v5620 = vpop.f32.mrb[0].mxu0
        %5621 = vmatprep.mubr.f32.mxu0 0.0
        %5622 = vmatmul.mubr.f32.gmra.mrb[0].mxu0 %v5460
        %v5623 = vpop.f32.mrb[0].mxu0
        %v5624 = vadd.f32 0.0, %v5623
        %v5625 = vpop.f32.mrb[0].mxu0
        %5626 = vmatprep.mubr.f32.mxu0 0.0
        %5627 = vmatmul.mubr.f32.gmra.mrb[0].mxu0 %v5463
        %v5628 = vpop.f32.mrb[0].mxu0
        %v5629 = vadd.f32 0.0, %v5628
        %v5630 = vpop.f32.mrb[0].mxu0
        %5631 = vmatprep.mubr.f32.mxu0 0.0
        %5632 = vmatmul.mubr.f32.gmra.mrb[0].mxu0 %v5466
        %v5633 = vpop.f32.mrb[0].mxu0
        %v5634 = vadd.f32 0.0, %v5633
        %v5635 = vpop.f32.mrb[0].mxu0
        %5636 = vmatprep.mubr.f32.mxu0 0.0
        %5637 = vmatmul.mubr.f32.gmra.mrb[0].mxu0 %v5469
        %v5638 = vpop.f32.mrb[0].mxu0
        %v5639 = vadd.f32 0.0, %v5638
        %v5640 = vpop.f32.mrb[0].mxu0
        %5641 = vmatprep.mubr.f32.mxu0 0.0
        %5642 = vmatmul.mubr.f32.gmra.mrb[0].mxu0 %v5472
        %v5643 = vpop.f32.mrb[0].mxu0
        %v5644 = vadd.f32 0.0, %v5643
        %v5645 = vpop.f32.mrb[0].mxu0
        %5646 = vmatprep.mubr.f32.mxu0 0.0
        %5647 = vmatmul.mubr.f32.gmra.mrb[0].mxu0 %v5475
        %v5648 = vpop.f32.mrb[0].mxu0
        %v5649 = vadd.f32 0.0, %v5648
        %v5650 = vpop.f32.mrb[0].mxu0
        %5651 = vmatprep.mubr.f32.mxu0 0.0
        %5652 = vmatmul.mubr.f32.gmra.mrb[0].mxu0 %v5478
        %v5653 = vpop.f32.mrb[0].mxu0
        %v5654 = vadd.f32 0.0, %v5653
        %v5655 = vpop.f32.mrb[0].mxu0
        %5656 = vmatprep.mubr.f32.mxu0 0.0
        %5657 = vmatmul.mubr.f32.gmra.mrb[0].mxu0 %v5481
        %v5658 = vpop.f32.mrb[0].mxu0
        %v5659 = vadd.f32 0.0, %v5658
        %v5660 = vpop.f32.mrb[0].mxu0
        %5661 = vmatprep.mubr.f32.mxu0 0.0
        %5662 = vmatmul.mubr.f32.gmra.mrb[0].mxu0 %v5484
        %v5663 = vpop.f32.mrb[0].mxu0
        %v5664 = vadd.f32 0.0, %v5663
        %v5665 = vpop.f32.mrb[0].mxu0
        %5666 = vmatprep.mubr.f32.mxu0 0.0
        %5667 = vmatmul.mubr.f32.gmra.mrb[0].mxu0 %v5487
        %v5668 = vpop.f32.mrb[0].mxu0
        %v5669 = vadd.f32 0.0, %v5668
        %v5670 = vpop.f32.mrb[0].mxu0
        %5671 = vmatprep.mubr.f32.mxu0 0.0
        %5672 = vmatmul.mubr.f32.gmra.mrb[0].mxu0 %v5490
        %v5673 = vpop.f32.mrb[0].mxu0
        %v5674 = vadd.f32 0.0, %v5673
        %v5675 = vpop.f32.mrb[0].mxu0
        %5676 = vdwg.mxu0
        %v5677 = vadd.f32 %v5371, %v5559
        %v5678 = vadd.f32 %v5372, %v5564
        %v5679 = vadd.f32 %v5373, %v5569
        %v5680 = vadd.f32 %v5374, %v5574
        %v5681 = vadd.f32 %v5375, %v5579
        %v5682 = vadd.f32 %v5376, %v5584
        %v5683 = vadd.f32 %v5377, %v5589
        %v5684 = vadd.f32 %v5378, %v5594
        %v5685 = vadd.f32 %v5379, %v5599
        %v5686 = vadd.f32 %v5380, %v5604
        %v5687 = vadd.f32 %v5381, %v5609
        %v5688 = vadd.f32 %v5382, %v5614
        %v5689 = vadd.f32 %v5383, %v5619
        %v5690 = vadd.f32 %v5384, %v5624
        %v5691 = vadd.f32 %v5385, %v5629
        %v5692 = vadd.f32 %v5386, %v5634
        %v5693 = vadd.f32 %v5387, %v5639
        %v5694 = vadd.f32 %v5388, %v5644
        %v5695 = vadd.f32 %v5389, %v5649
        %v5696 = vadd.f32 %v5390, %v5654
        %v5697 = vadd.f32 %v5391, %v5659
        %v5698 = vadd.f32 %v5392, %v5664
        %v5699 = vadd.f32 %v5393, %v5669
        %v5700 = vadd.f32 %v5394, %v5674
        %v5701 = vld [vmem:[%s234 + $0x33] sm:$0xff]
        %v5702 = vld [vmem:[%s234 + $0x3b] sm:$0xff]
        %v5703 = vld [vmem:[%s234 + $0x43] sm:$0xff]
        %v5704 = vld [vmem:[%s234 + $0x4b] sm:$0xff]
        %v5705 = vld [vmem:[%s234 + $0x53] sm:$0xff]
        %v5706 = vld [vmem:[%s234 + $0x5b] sm:$0xff]
        %v5707 = vld [vmem:[%s234 + $0x63] sm:$0xff]
        %v5708 = vld [vmem:[%s234 + $0x6b] sm:$0xff]
        %v5709 = vld [vmem:[%s234 + $0x73] sm:$0xff]
        %v5710 = vld [vmem:[%s234 + $0x7b] sm:$0xff]
        %v5711 = vld [vmem:[%s234 + $0x83] sm:$0xff]
        %v5712 = vld [vmem:[%s234 + $0x8b] sm:$0xff]
        %v5713 = vld [vmem:[%s234 + $0x93] sm:$0xff]
        %v5714 = vld [vmem:[%s234 + $0x9b] sm:$0xff]
        %v5715 = vld [vmem:[%s234 + $0xa3] sm:$0xff]
        %v5716 = vld [vmem:[%s234 + $0xab] sm:$0xff]
        %v5717 = vld [vmem:[%s234 + $0xb3] sm:$0xff]
        %v5718 = vld [vmem:[%s234 + $0xbb] sm:$0xff]
        %v5719 = vld [vmem:[%s234 + $0xc3] sm:$0xff]
        %v5720 = vld [vmem:[%s234 + $0xcb] sm:$0xff]
        %v5721 = vld [vmem:[%s234 + $0xd3] sm:$0xff]
        %v5722 = vld [vmem:[%s234 + $0xdb] sm:$0xff]
        %v5723 = vld [vmem:[%s234 + $0xe3] sm:$0xff]
        %v5724 = vld [vmem:[%s234 + $0xeb] sm:$0xf]
        %v5725 = vld [vmem:[#allocation2 + $0x90] sm:$0xff]
        %v5727 = vsel %vm290, %v5701, 0
        %v5730 = vsel %vm290, %v5702, 0
        %v5733 = vsel %vm290, %v5703, 0
        %v5736 = vsel %vm290, %v5704, 0
        %v5739 = vsel %vm290, %v5705, 0
        %v5742 = vsel %vm290, %v5706, 0
        %v5745 = vsel %vm290, %v5707, 0
        %v5748 = vsel %vm290, %v5708, 0
        %v5751 = vsel %vm290, %v5709, 0
        %v5754 = vsel %vm290, %v5710, 0
        %v5757 = vsel %vm290, %v5711, 0
        %v5760 = vsel %vm290, %v5712, 0
        %v5763 = vsel %vm290, %v5713, 0
        %v5766 = vsel %vm290, %v5714, 0
        %v5769 = vsel %vm290, %v5715, 0
        %v5772 = vsel %vm290, %v5716, 0
        %v5775 = vsel %vm290, %v5717, 0
        %v5778 = vsel %vm290, %v5718, 0
        %v5781 = vsel %vm290, %v5719, 0
        %v5784 = vsel %vm290, %v5720, 0
        %v5787 = vsel %vm290, %v5721, 0
        %v5790 = vsel %vm290, %v5722, 0
        %v5793 = vsel %vm290, %v5723, 0
        %v5796 = vsel %vm290, %v5724, 0
        %5798 = vmatprep.subr.mxu0 0.0
        %5799 = vmatpush1.msra.mxu0 %v5725
        %5800 = vmatprep.subr.mxu0 0.0
        %5801 = vmatpush1.msra.mxu0 0.0
        %5802 = vmatprep.subr.mxu0 0.0
        %5803 = vmatpush1.msra.mxu0 0.0
        %5804 = vmatprep.subr.mxu0 0.0
        %5805 = vmatpush1.msra.mxu0 0.0
        %5806 = vmatprep.subr.mxu0 0.0
        %5807 = vmatpush1.msra.mxu0 0.0
        %5808 = vmatprep.subr.mxu0 0.0
        %5809 = vmatpush1.msra.mxu0 0.0
        %5810 = vmatprep.subr.mxu0 0.0
        %5811 = vmatpush1.msra.mxu0 0.0
        %5812 = vmatprep.subr.mxu0 0.0
        %5813 = vmatpush1.msra.mxu0 0.0
        %5814 = vmatprep.subr.mxu0 0.0
        %5815 = vmatpush1.msra.mxu0 0.0
        %5816 = vmatprep.subr.mxu0 0.0
        %5817 = vmatpush1.msra.mxu0 0.0
        %5818 = vmatprep.subr.mxu0 0.0
        %5819 = vmatpush1.msra.mxu0 0.0
        %5820 = vmatprep.subr.mxu0 0.0
        %5821 = vmatpush1.msra.mxu0 0.0
        %5822 = vmatprep.subr.mxu0 0.0
        %5823 = vmatpush1.msra.mxu0 0.0
        %5824 = vmatprep.subr.mxu0 0.0
        %5825 = vmatpush1.msra.mxu0 0.0
        %5826 = vmatprep.subr.mxu0 0.0
        %5827 = vmatpush1.msra.mxu0 0.0
        %5828 = vmatprep.subr.mxu0 0.0
        %5829 = vmatpush1.msra.mxu0 0.0
        %5830 = vmatprep.subr.mxu0 0.0
        %5831 = vmatpush1.msra.mxu0 0.0
        %5832 = vmatprep.subr.mxu0 0.0
        %5833 = vmatpush1.msra.mxu0 0.0
        %5834 = vmatprep.subr.mxu0 0.0
        %5835 = vmatpush1.msra.mxu0 0.0
        %5836 = vmatprep.subr.mxu0 0.0
        %5837 = vmatpush1.msra.mxu0 0.0
        %5838 = vmatprep.subr.mxu0 0.0
        %5839 = vmatpush1.msra.mxu0 0.0
        %5840 = vmatprep.subr.mxu0 0.0
        %5841 = vmatpush1.msra.mxu0 0.0
        %5842 = vmatprep.subr.mxu0 0.0
        %5843 = vmatpush1.msra.mxu0 0.0
        %5844 = vmatprep.subr.mxu0 0.0
        %5845 = vmatpush1.msra.mxu0 0.0
        %5846 = vmatprep.subr.mxu0 0.0
        %5847 = vmatpush1.msra.mxu0 0.0
        %5848 = vmatprep.subr.mxu0 0.0
        %5849 = vmatpush1.msra.mxu0 0.0
        %5850 = vmatprep.subr.mxu0 0.0
        %5851 = vmatpush1.msra.mxu0 0.0
        %5852 = vmatprep.subr.mxu0 0.0
        %5853 = vmatpush1.msra.mxu0 0.0
        %5854 = vmatprep.subr.mxu0 0.0
        %5855 = vmatpush1.msra.mxu0 0.0
        %5856 = vmatprep.subr.mxu0 0.0
        %5857 = vmatpush1.msra.mxu0 0.0
        %5858 = vmatprep.subr.mxu0 0.0
        %5859 = vmatpush1.msra.mxu0 0.0
        %5860 = vmatprep.subr.mxu0 0.0
        %5861 = vmatpush1.msra.mxu0 0.0
        %5862 = vmatprep.mubr.f32.mxu0 0.0
        %5863 = vmatmul.mubr.f32.gmra.mrb[0].mxu0 %v5727
        %v5864 = vpop.f32.mrb[0].mxu0
        %v5865 = vadd.f32 0.0, %v5864
        %v5866 = vpop.f32.mrb[0].mxu0
        %5867 = vmatprep.mubr.f32.mxu0 0.0
        %5868 = vmatmul.mubr.f32.gmra.mrb[0].mxu0 %v5730
        %v5869 = vpop.f32.mrb[0].mxu0
        %v5870 = vadd.f32 0.0, %v5869
        %v5871 = vpop.f32.mrb[0].mxu0
        %5872 = vmatprep.mubr.f32.mxu0 0.0
        %5873 = vmatmul.mubr.f32.gmra.mrb[0].mxu0 %v5733
        %v5874 = vpop.f32.mrb[0].mxu0
        %v5875 = vadd.f32 0.0, %v5874
        %v5876 = vpop.f32.mrb[0].mxu0
        %5877 = vmatprep.mubr.f32.mxu0 0.0
        %5878 = vmatmul.mubr.f32.gmra.mrb[0].mxu0 %v5736
        %v5879 = vpop.f32.mrb[0].mxu0
        %v5880 = vadd.f32 0.0, %v5879
        %v5881 = vpop.f32.mrb[0].mxu0
        %5882 = vmatprep.mubr.f32.mxu0 0.0
        %5883 = vmatmul.mubr.f32.gmra.mrb[0].mxu0 %v5739
        %v5884 = vpop.f32.mrb[0].mxu0
        %v5885 = vadd.f32 0.0, %v5884
        %v5886 = vpop.f32.mrb[0].mxu0
        %5887 = vmatprep.mubr.f32.mxu0 0.0
        %5888 = vmatmul.mubr.f32.gmra.mrb[0].mxu0 %v5742
        %v5889 = vpop.f32.mrb[0].mxu0
        %v5890 = vadd.f32 0.0, %v5889
        %v5891 = vpop.f32.mrb[0].mxu0
        %5892 = vmatprep.mubr.f32.mxu0 0.0
        %5893 = vmatmul.mubr.f32.gmra.mrb[0].mxu0 %v5745
        %v5894 = vpop.f32.mrb[0].mxu0
        %v5895 = vadd.f32 0.0, %v5894
        %v5896 = vpop.f32.mrb[0].mxu0
        %5897 = vmatprep.mubr.f32.mxu0 0.0
        %5898 = vmatmul.mubr.f32.gmra.mrb[0].mxu0 %v5748
        %v5899 = vpop.f32.mrb[0].mxu0
        %v5900 = vadd.f32 0.0, %v5899
        %v5901 = vpop.f32.mrb[0].mxu0
        %5902 = vmatprep.mubr.f32.mxu0 0.0
        %5903 = vmatmul.mubr.f32.gmra.mrb[0].mxu0 %v5751
        %v5904 = vpop.f32.mrb[0].mxu0
        %v5905 = vadd.f32 0.0, %v5904
        %v5906 = vpop.f32.mrb[0].mxu0
        %5907 = vmatprep.mubr.f32.mxu0 0.0
        %5908 = vmatmul.mubr.f32.gmra.mrb[0].mxu0 %v5754
        %v5909 = vpop.f32.mrb[0].mxu0
        %v5910 = vadd.f32 0.0, %v5909
        %v5911 = vpop.f32.mrb[0].mxu0
        %5912 = vmatprep.mubr.f32.mxu0 0.0
        %5913 = vmatmul.mubr.f32.gmra.mrb[0].mxu0 %v5757
        %v5914 = vpop.f32.mrb[0].mxu0
        %v5915 = vadd.f32 0.0, %v5914
        %v5916 = vpop.f32.mrb[0].mxu0
        %5917 = vmatprep.mubr.f32.mxu0 0.0
        %5918 = vmatmul.mubr.f32.gmra.mrb[0].mxu0 %v5760
        %v5919 = vpop.f32.mrb[0].mxu0
        %v5920 = vadd.f32 0.0, %v5919
        %v5921 = vpop.f32.mrb[0].mxu0
        %5922 = vmatprep.mubr.f32.mxu0 0.0
        %5923 = vmatmul.mubr.f32.gmra.mrb[0].mxu0 %v5763
        %v5924 = vpop.f32.mrb[0].mxu0
        %v5925 = vadd.f32 0.0, %v5924
        %v5926 = vpop.f32.mrb[0].mxu0
        %5927 = vmatprep.mubr.f32.mxu0 0.0
        %5928 = vmatmul.mubr.f32.gmra.mrb[0].mxu0 %v5766
        %v5929 = vpop.f32.mrb[0].mxu0
        %v5930 = vadd.f32 0.0, %v5929
        %v5931 = vpop.f32.mrb[0].mxu0
        %5932 = vmatprep.mubr.f32.mxu0 0.0
        %5933 = vmatmul.mubr.f32.gmra.mrb[0].mxu0 %v5769
        %v5934 = vpop.f32.mrb[0].mxu0
        %v5935 = vadd.f32 0.0, %v5934
        %v5936 = vpop.f32.mrb[0].mxu0
        %5937 = vmatprep.mubr.f32.mxu0 0.0
        %5938 = vmatmul.mubr.f32.gmra.mrb[0].mxu0 %v5772
        %v5939 = vpop.f32.mrb[0].mxu0
        %v5940 = vadd.f32 0.0, %v5939
        %v5941 = vpop.f32.mrb[0].mxu0
        %5942 = vmatprep.mubr.f32.mxu0 0.0
        %5943 = vmatmul.mubr.f32.gmra.mrb[0].mxu0 %v5775
        %v5944 = vpop.f32.mrb[0].mxu0
        %v5945 = vadd.f32 0.0, %v5944
        %v5946 = vpop.f32.mrb[0].mxu0
        %5947 = vmatprep.mubr.f32.mxu0 0.0
        %5948 = vmatmul.mubr.f32.gmra.mrb[0].mxu0 %v5778
        %v5949 = vpop.f32.mrb[0].mxu0
        %v5950 = vadd.f32 0.0, %v5949
        %v5951 = vpop.f32.mrb[0].mxu0
        %5952 = vmatprep.mubr.f32.mxu0 0.0
        %5953 = vmatmul.mubr.f32.gmra.mrb[0].mxu0 %v5781
        %v5954 = vpop.f32.mrb[0].mxu0
        %v5955 = vadd.f32 0.0, %v5954
        %v5956 = vpop.f32.mrb[0].mxu0
        %5957 = vmatprep.mubr.f32.mxu0 0.0
        %5958 = vmatmul.mubr.f32.gmra.mrb[0].mxu0 %v5784
        %v5959 = vpop.f32.mrb[0].mxu0
        %v5960 = vadd.f32 0.0, %v5959
        %v5961 = vpop.f32.mrb[0].mxu0
        %5962 = vmatprep.mubr.f32.mxu0 0.0
        %5963 = vmatmul.mubr.f32.gmra.mrb[0].mxu0 %v5787
        %v5964 = vpop.f32.mrb[0].mxu0
        %v5965 = vadd.f32 0.0, %v5964
        %v5966 = vpop.f32.mrb[0].mxu0
        %5967 = vmatprep.mubr.f32.mxu0 0.0
        %5968 = vmatmul.mubr.f32.gmra.mrb[0].mxu0 %v5790
        %v5969 = vpop.f32.mrb[0].mxu0
        %v5970 = vadd.f32 0.0, %v5969
        %v5971 = vpop.f32.mrb[0].mxu0
        %5972 = vmatprep.mubr.f32.mxu0 0.0
        %5973 = vmatmul.mubr.f32.gmra.mrb[0].mxu0 %v5793
        %v5974 = vpop.f32.mrb[0].mxu0
        %v5975 = vadd.f32 0.0, %v5974
        %v5976 = vpop.f32.mrb[0].mxu0
        %5977 = vmatprep.mubr.f32.mxu0 0.0
        %5978 = vmatmul.mubr.f32.gmra.mrb[0].mxu0 %v5796
        %v5979 = vpop.f32.mrb[0].mxu0
        %v5980 = vadd.f32 0.0, %v5979
        %v5981 = vpop.f32.mrb[0].mxu0
        %5982 = vdwg.mxu0
        %v5983 = vadd.f32 %v5677, %v5865
        %v5984 = vadd.f32 %v5678, %v5870
        %v5985 = vadd.f32 %v5679, %v5875
        %v5986 = vadd.f32 %v5680, %v5880
        %v5987 = vadd.f32 %v5681, %v5885
        %v5988 = vadd.f32 %v5682, %v5890
        %v5989 = vadd.f32 %v5683, %v5895
        %v5990 = vadd.f32 %v5684, %v5900
        %v5991 = vadd.f32 %v5685, %v5905
        %v5992 = vadd.f32 %v5686, %v5910
        %v5993 = vadd.f32 %v5687, %v5915
        %v5994 = vadd.f32 %v5688, %v5920
        %v5995 = vadd.f32 %v5689, %v5925
        %v5996 = vadd.f32 %v5690, %v5930
        %v5997 = vadd.f32 %v5691, %v5935
        %v5998 = vadd.f32 %v5692, %v5940
        %v5999 = vadd.f32 %v5693, %v5945
        %v6000 = vadd.f32 %v5694, %v5950
        %v6001 = vadd.f32 %v5695, %v5955
        %v6002 = vadd.f32 %v5696, %v5960
        %v6003 = vadd.f32 %v5697, %v5965
        %v6004 = vadd.f32 %v5698, %v5970
        %v6005 = vadd.f32 %v5699, %v5975
        %v6006 = vadd.f32 %v5700, %v5980
        %v6007 = vld [vmem:[%s234 + $0x34] sm:$0xff]
        %v6008 = vld [vmem:[%s234 + $0x3c] sm:$0xff]
        %v6009 = vld [vmem:[%s234 + $0x44] sm:$0xff]
        %v6010 = vld [vmem:[%s234 + $0x4c] sm:$0xff]
        %v6011 = vld [vmem:[%s234 + $0x54] sm:$0xff]
        %v6012 = vld [vmem:[%s234 + $0x5c] sm:$0xff]
        %v6013 = vld [vmem:[%s234 + $0x64] sm:$0xff]
        %v6014 = vld [vmem:[%s234 + $0x6c] sm:$0xff]
        %v6015 = vld [vmem:[%s234 + $0x74] sm:$0xff]
        %v6016 = vld [vmem:[%s234 + $0x7c] sm:$0xff]
        %v6017 = vld [vmem:[%s234 + $0x84] sm:$0xff]
        %v6018 = vld [vmem:[%s234 + $0x8c] sm:$0xff]
        %v6019 = vld [vmem:[%s234 + $0x94] sm:$0xff]
        %v6020 = vld [vmem:[%s234 + $0x9c] sm:$0xff]
        %v6021 = vld [vmem:[%s234 + $0xa4] sm:$0xff]
        %v6022 = vld [vmem:[%s234 + $0xac] sm:$0xff]
        %v6023 = vld [vmem:[%s234 + $0xb4] sm:$0xff]
        %v6024 = vld [vmem:[%s234 + $0xbc] sm:$0xff]
        %v6025 = vld [vmem:[%s234 + $0xc4] sm:$0xff]
        %v6026 = vld [vmem:[%s234 + $0xcc] sm:$0xff]
        %v6027 = vld [vmem:[%s234 + $0xd4] sm:$0xff]
        %v6028 = vld [vmem:[%s234 + $0xdc] sm:$0xff]
        %v6029 = vld [vmem:[%s234 + $0xe4] sm:$0xff]
        %v6030 = vld [vmem:[%s234 + $0xec] sm:$0xf]
        %v6031 = vld [vmem:[#allocation2 + $0x98] sm:$0xff]
        %v6033 = vsel %vm290, %v6007, 0
        %v6036 = vsel %vm290, %v6008, 0
        %v6039 = vsel %vm290, %v6009, 0
        %v6042 = vsel %vm290, %v6010, 0
        %v6045 = vsel %vm290, %v6011, 0
        %v6048 = vsel %vm290, %v6012, 0
        %v6051 = vsel %vm290, %v6013, 0
        %v6054 = vsel %vm290, %v6014, 0
        %v6057 = vsel %vm290, %v6015, 0
        %v6060 = vsel %vm290, %v6016, 0
        %v6063 = vsel %vm290, %v6017, 0
        %v6066 = vsel %vm290, %v6018, 0
        %v6069 = vsel %vm290, %v6019, 0
        %v6072 = vsel %vm290, %v6020, 0
        %v6075 = vsel %vm290, %v6021, 0
        %v6078 = vsel %vm290, %v6022, 0
        %v6081 = vsel %vm290, %v6023, 0
        %v6084 = vsel %vm290, %v6024, 0
        %v6087 = vsel %vm290, %v6025, 0
        %v6090 = vsel %vm290, %v6026, 0
        %v6093 = vsel %vm290, %v6027, 0
        %v6096 = vsel %vm290, %v6028, 0
        %v6099 = vsel %vm290, %v6029, 0
        %v6102 = vsel %vm290, %v6030, 0
        %6104 = vmatprep.subr.mxu0 0.0
        %6105 = vmatpush1.msra.mxu0 %v6031
        %6106 = vmatprep.subr.mxu0 0.0
        %6107 = vmatpush1.msra.mxu0 0.0
        %6108 = vmatprep.subr.mxu0 0.0
        %6109 = vmatpush1.msra.mxu0 0.0
        %6110 = vmatprep.subr.mxu0 0.0
        %6111 = vmatpush1.msra.mxu0 0.0
        %6112 = vmatprep.subr.mxu0 0.0
        %6113 = vmatpush1.msra.mxu0 0.0
        %6114 = vmatprep.subr.mxu0 0.0
        %6115 = vmatpush1.msra.mxu0 0.0
        %6116 = vmatprep.subr.mxu0 0.0
        %6117 = vmatpush1.msra.mxu0 0.0
        %6118 = vmatprep.subr.mxu0 0.0
        %6119 = vmatpush1.msra.mxu0 0.0
        %6120 = vmatprep.subr.mxu0 0.0
        %6121 = vmatpush1.msra.mxu0 0.0
        %6122 = vmatprep.subr.mxu0 0.0
        %6123 = vmatpush1.msra.mxu0 0.0
        %6124 = vmatprep.subr.mxu0 0.0
        %6125 = vmatpush1.msra.mxu0 0.0
        %6126 = vmatprep.subr.mxu0 0.0
        %6127 = vmatpush1.msra.mxu0 0.0
        %6128 = vmatprep.subr.mxu0 0.0
        %6129 = vmatpush1.msra.mxu0 0.0
        %6130 = vmatprep.subr.mxu0 0.0
        %6131 = vmatpush1.msra.mxu0 0.0
        %6132 = vmatprep.subr.mxu0 0.0
        %6133 = vmatpush1.msra.mxu0 0.0
        %6134 = vmatprep.subr.mxu0 0.0
        %6135 = vmatpush1.msra.mxu0 0.0
        %6136 = vmatprep.subr.mxu0 0.0
        %6137 = vmatpush1.msra.mxu0 0.0
        %6138 = vmatprep.subr.mxu0 0.0
        %6139 = vmatpush1.msra.mxu0 0.0
        %6140 = vmatprep.subr.mxu0 0.0
        %6141 = vmatpush1.msra.mxu0 0.0
        %6142 = vmatprep.subr.mxu0 0.0
        %6143 = vmatpush1.msra.mxu0 0.0
        %6144 = vmatprep.subr.mxu0 0.0
        %6145 = vmatpush1.msra.mxu0 0.0
        %6146 = vmatprep.subr.mxu0 0.0
        %6147 = vmatpush1.msra.mxu0 0.0
        %6148 = vmatprep.subr.mxu0 0.0
        %6149 = vmatpush1.msra.mxu0 0.0
        %6150 = vmatprep.subr.mxu0 0.0
        %6151 = vmatpush1.msra.mxu0 0.0
        %6152 = vmatprep.subr.mxu0 0.0
        %6153 = vmatpush1.msra.mxu0 0.0
        %6154 = vmatprep.subr.mxu0 0.0
        %6155 = vmatpush1.msra.mxu0 0.0
        %6156 = vmatprep.subr.mxu0 0.0
        %6157 = vmatpush1.msra.mxu0 0.0
        %6158 = vmatprep.subr.mxu0 0.0
        %6159 = vmatpush1.msra.mxu0 0.0
        %6160 = vmatprep.subr.mxu0 0.0
        %6161 = vmatpush1.msra.mxu0 0.0
        %6162 = vmatprep.subr.mxu0 0.0
        %6163 = vmatpush1.msra.mxu0 0.0
        %6164 = vmatprep.subr.mxu0 0.0
        %6165 = vmatpush1.msra.mxu0 0.0
        %6166 = vmatprep.subr.mxu0 0.0
        %6167 = vmatpush1.msra.mxu0 0.0
        %6168 = vmatprep.mubr.f32.mxu0 0.0
        %6169 = vmatmul.mubr.f32.gmra.mrb[0].mxu0 %v6033
        %v6170 = vpop.f32.mrb[0].mxu0
        %v6171 = vadd.f32 0.0, %v6170
        %v6172 = vpop.f32.mrb[0].mxu0
        %6173 = vmatprep.mubr.f32.mxu0 0.0
        %6174 = vmatmul.mubr.f32.gmra.mrb[0].mxu0 %v6036
        %v6175 = vpop.f32.mrb[0].mxu0
        %v6176 = vadd.f32 0.0, %v6175
        %v6177 = vpop.f32.mrb[0].mxu0
        %6178 = vmatprep.mubr.f32.mxu0 0.0
        %6179 = vmatmul.mubr.f32.gmra.mrb[0].mxu0 %v6039
        %v6180 = vpop.f32.mrb[0].mxu0
        %v6181 = vadd.f32 0.0, %v6180
        %v6182 = vpop.f32.mrb[0].mxu0
        %6183 = vmatprep.mubr.f32.mxu0 0.0
        %6184 = vmatmul.mubr.f32.gmra.mrb[0].mxu0 %v6042
        %v6185 = vpop.f32.mrb[0].mxu0
        %v6186 = vadd.f32 0.0, %v6185
        %v6187 = vpop.f32.mrb[0].mxu0
        %6188 = vmatprep.mubr.f32.mxu0 0.0
        %6189 = vmatmul.mubr.f32.gmra.mrb[0].mxu0 %v6045
        %v6190 = vpop.f32.mrb[0].mxu0
        %v6191 = vadd.f32 0.0, %v6190
        %v6192 = vpop.f32.mrb[0].mxu0
        %6193 = vmatprep.mubr.f32.mxu0 0.0
        %6194 = vmatmul.mubr.f32.gmra.mrb[0].mxu0 %v6048
        %v6195 = vpop.f32.mrb[0].mxu0
        %v6196 = vadd.f32 0.0, %v6195
        %v6197 = vpop.f32.mrb[0].mxu0
        %6198 = vmatprep.mubr.f32.mxu0 0.0
        %6199 = vmatmul.mubr.f32.gmra.mrb[0].mxu0 %v6051
        %v6200 = vpop.f32.mrb[0].mxu0
        %v6201 = vadd.f32 0.0, %v6200
        %v6202 = vpop.f32.mrb[0].mxu0
        %6203 = vmatprep.mubr.f32.mxu0 0.0
        %6204 = vmatmul.mubr.f32.gmra.mrb[0].mxu0 %v6054
        %v6205 = vpop.f32.mrb[0].mxu0
        %v6206 = vadd.f32 0.0, %v6205
        %v6207 = vpop.f32.mrb[0].mxu0
        %6208 = vmatprep.mubr.f32.mxu0 0.0
        %6209 = vmatmul.mubr.f32.gmra.mrb[0].mxu0 %v6057
        %v6210 = vpop.f32.mrb[0].mxu0
        %v6211 = vadd.f32 0.0, %v6210
        %v6212 = vpop.f32.mrb[0].mxu0
        %6213 = vmatprep.mubr.f32.mxu0 0.0
        %6214 = vmatmul.mubr.f32.gmra.mrb[0].mxu0 %v6060
        %v6215 = vpop.f32.mrb[0].mxu0
        %v6216 = vadd.f32 0.0, %v6215
        %v6217 = vpop.f32.mrb[0].mxu0
        %6218 = vmatprep.mubr.f32.mxu0 0.0
        %6219 = vmatmul.mubr.f32.gmra.mrb[0].mxu0 %v6063
        %v6220 = vpop.f32.mrb[0].mxu0
        %v6221 = vadd.f32 0.0, %v6220
        %v6222 = vpop.f32.mrb[0].mxu0
        %6223 = vmatprep.mubr.f32.mxu0 0.0
        %6224 = vmatmul.mubr.f32.gmra.mrb[0].mxu0 %v6066
        %v6225 = vpop.f32.mrb[0].mxu0
        %v6226 = vadd.f32 0.0, %v6225
        %v6227 = vpop.f32.mrb[0].mxu0
        %6228 = vmatprep.mubr.f32.mxu0 0.0
        %6229 = vmatmul.mubr.f32.gmra.mrb[0].mxu0 %v6069
        %v6230 = vpop.f32.mrb[0].mxu0
        %v6231 = vadd.f32 0.0, %v6230
        %v6232 = vpop.f32.mrb[0].mxu0
        %6233 = vmatprep.mubr.f32.mxu0 0.0
        %6234 = vmatmul.mubr.f32.gmra.mrb[0].mxu0 %v6072
        %v6235 = vpop.f32.mrb[0].mxu0
        %v6236 = vadd.f32 0.0, %v6235
        %v6237 = vpop.f32.mrb[0].mxu0
        %6238 = vmatprep.mubr.f32.mxu0 0.0
        %6239 = vmatmul.mubr.f32.gmra.mrb[0].mxu0 %v6075
        %v6240 = vpop.f32.mrb[0].mxu0
        %v6241 = vadd.f32 0.0, %v6240
        %v6242 = vpop.f32.mrb[0].mxu0
        %6243 = vmatprep.mubr.f32.mxu0 0.0
        %6244 = vmatmul.mubr.f32.gmra.mrb[0].mxu0 %v6078
        %v6245 = vpop.f32.mrb[0].mxu0
        %v6246 = vadd.f32 0.0, %v6245
        %v6247 = vpop.f32.mrb[0].mxu0
        %6248 = vmatprep.mubr.f32.mxu0 0.0
        %6249 = vmatmul.mubr.f32.gmra.mrb[0].mxu0 %v6081
        %v6250 = vpop.f32.mrb[0].mxu0
        %v6251 = vadd.f32 0.0, %v6250
        %v6252 = vpop.f32.mrb[0].mxu0
        %6253 = vmatprep.mubr.f32.mxu0 0.0
        %6254 = vmatmul.mubr.f32.gmra.mrb[0].mxu0 %v6084
        %v6255 = vpop.f32.mrb[0].mxu0
        %v6256 = vadd.f32 0.0, %v6255
        %v6257 = vpop.f32.mrb[0].mxu0
        %6258 = vmatprep.mubr.f32.mxu0 0.0
        %6259 = vmatmul.mubr.f32.gmra.mrb[0].mxu0 %v6087
        %v6260 = vpop.f32.mrb[0].mxu0
        %v6261 = vadd.f32 0.0, %v6260
        %v6262 = vpop.f32.mrb[0].mxu0
        %6263 = vmatprep.mubr.f32.mxu0 0.0
        %6264 = vmatmul.mubr.f32.gmra.mrb[0].mxu0 %v6090
        %v6265 = vpop.f32.mrb[0].mxu0
        %v6266 = vadd.f32 0.0, %v6265
        %v6267 = vpop.f32.mrb[0].mxu0
        %6268 = vmatprep.mubr.f32.mxu0 0.0
        %6269 = vmatmul.mubr.f32.gmra.mrb[0].mxu0 %v6093
        %v6270 = vpop.f32.mrb[0].mxu0
        %v6271 = vadd.f32 0.0, %v6270
        %v6272 = vpop.f32.mrb[0].mxu0
        %6273 = vmatprep.mubr.f32.mxu0 0.0
        %6274 = vmatmul.mubr.f32.gmra.mrb[0].mxu0 %v6096
        %v6275 = vpop.f32.mrb[0].mxu0
        %v6276 = vadd.f32 0.0, %v6275
        %v6277 = vpop.f32.mrb[0].mxu0
        %6278 = vmatprep.mubr.f32.mxu0 0.0
        %6279 = vmatmul.mubr.f32.gmra.mrb[0].mxu0 %v6099
        %v6280 = vpop.f32.mrb[0].mxu0
        %v6281 = vadd.f32 0.0, %v6280
        %v6282 = vpop.f32.mrb[0].mxu0
        %6283 = vmatprep.mubr.f32.mxu0 0.0
        %6284 = vmatmul.mubr.f32.gmra.mrb[0].mxu0 %v6102
        %v6285 = vpop.f32.mrb[0].mxu0
        %v6286 = vadd.f32 0.0, %v6285
        %v6287 = vpop.f32.mrb[0].mxu0
        %6288 = vdwg.mxu0
        %v6289 = vadd.f32 %v5983, %v6171
        %v6290 = vadd.f32 %v5984, %v6176
        %v6291 = vadd.f32 %v5985, %v6181
        %v6292 = vadd.f32 %v5986, %v6186
        %v6293 = vadd.f32 %v5987, %v6191
        %v6294 = vadd.f32 %v5988, %v6196
        %v6295 = vadd.f32 %v5989, %v6201
        %v6296 = vadd.f32 %v5990, %v6206
        %v6297 = vadd.f32 %v5991, %v6211
        %v6298 = vadd.f32 %v5992, %v6216
        %v6299 = vadd.f32 %v5993, %v6221
        %v6300 = vadd.f32 %v5994, %v6226
        %v6301 = vadd.f32 %v5995, %v6231
        %v6302 = vadd.f32 %v5996, %v6236
        %v6303 = vadd.f32 %v5997, %v6241
        %v6304 = vadd.f32 %v5998, %v6246
        %v6305 = vadd.f32 %v5999, %v6251
        %v6306 = vadd.f32 %v6000, %v6256
        %v6307 = vadd.f32 %v6001, %v6261
        %v6308 = vadd.f32 %v6002, %v6266
        %v6309 = vadd.f32 %v6003, %v6271
        %v6310 = vadd.f32 %v6004, %v6276
        %v6311 = vadd.f32 %v6005, %v6281
        %v6312 = vadd.f32 %v6006, %v6286
        %v6313 = vld [vmem:[%s234 + $0x40] sm:$0xff]
        %v6314 = vld [vmem:[%s234 + $0x48] sm:$0xff]
        %v6315 = vld [vmem:[%s234 + $0x50] sm:$0xff]
        %v6316 = vld [vmem:[%s234 + $0x58] sm:$0xff]
        %v6317 = vld [vmem:[%s234 + $0x60] sm:$0xff]
        %v6318 = vld [vmem:[%s234 + $0x68] sm:$0xff]
        %v6319 = vld [vmem:[%s234 + $0x70] sm:$0xff]
        %v6320 = vld [vmem:[%s234 + $0x78] sm:$0xff]
        %v6321 = vld [vmem:[%s234 + $0x80] sm:$0xff]
        %v6322 = vld [vmem:[%s234 + $0x88] sm:$0xff]
        %v6323 = vld [vmem:[%s234 + $0x90] sm:$0xff]
        %v6324 = vld [vmem:[%s234 + $0x98] sm:$0xff]
        %v6325 = vld [vmem:[%s234 + $0xa0] sm:$0xff]
        %v6326 = vld [vmem:[%s234 + $0xa8] sm:$0xff]
        %v6327 = vld [vmem:[%s234 + $0xb0] sm:$0xff]
        %v6328 = vld [vmem:[%s234 + $0xb8] sm:$0xff]
        %v6329 = vld [vmem:[%s234 + $0xc0] sm:$0xff]
        %v6330 = vld [vmem:[%s234 + $0xc8] sm:$0xff]
        %v6331 = vld [vmem:[%s234 + $0xd0] sm:$0xff]
        %v6332 = vld [vmem:[%s234 + $0xd8] sm:$0xff]
        %v6333 = vld [vmem:[%s234 + $0xe0] sm:$0xff]
        %v6334 = vld [vmem:[%s234 + $0xe8] sm:$0xff]
        %v6335 = vld [vmem:[%s234 + $0xf0] sm:$0xff]
        %v6336 = vld [vmem:[%s234 + $0xf8] sm:$0xf]
        %v6337 = vld [vmem:[#allocation2 + $0xa0] sm:$0xff]
        %v6339 = vsel %vm290, %v6313, 0
        %v6342 = vsel %vm290, %v6314, 0
        %v6345 = vsel %vm290, %v6315, 0
        %v6348 = vsel %vm290, %v6316, 0
        %v6351 = vsel %vm290, %v6317, 0
        %v6354 = vsel %vm290, %v6318, 0
        %v6357 = vsel %vm290, %v6319, 0
        %v6360 = vsel %vm290, %v6320, 0
        %v6363 = vsel %vm290, %v6321, 0
        %v6366 = vsel %vm290, %v6322, 0
        %v6369 = vsel %vm290, %v6323, 0
        %v6372 = vsel %vm290, %v6324, 0
        %v6375 = vsel %vm290, %v6325, 0
        %v6378 = vsel %vm290, %v6326, 0
        %v6381 = vsel %vm290, %v6327, 0
        %v6384 = vsel %vm290, %v6328, 0
        %v6387 = vsel %vm290, %v6329, 0
        %v6390 = vsel %vm290, %v6330, 0
        %v6393 = vsel %vm290, %v6331, 0
        %v6396 = vsel %vm290, %v6332, 0
        %v6399 = vsel %vm290, %v6333, 0
        %v6402 = vsel %vm290, %v6334, 0
        %v6405 = vsel %vm290, %v6335, 0
        %v6408 = vsel %vm290, %v6336, 0
        %6410 = vmatprep.subr.mxu0 0.0
        %6411 = vmatpush1.msra.mxu0 %v6337
        %6412 = vmatprep.subr.mxu0 0.0
        %6413 = vmatpush1.msra.mxu0 0.0
        %6414 = vmatprep.subr.mxu0 0.0
        %6415 = vmatpush1.msra.mxu0 0.0
        %6416 = vmatprep.subr.mxu0 0.0
        %6417 = vmatpush1.msra.mxu0 0.0
        %6418 = vmatprep.subr.mxu0 0.0
        %6419 = vmatpush1.msra.mxu0 0.0
        %6420 = vmatprep.subr.mxu0 0.0
        %6421 = vmatpush1.msra.mxu0 0.0
        %6422 = vmatprep.subr.mxu0 0.0
        %6423 = vmatpush1.msra.mxu0 0.0
        %6424 = vmatprep.subr.mxu0 0.0
        %6425 = vmatpush1.msra.mxu0 0.0
        %6426 = vmatprep.subr.mxu0 0.0
        %6427 = vmatpush1.msra.mxu0 0.0
        %6428 = vmatprep.subr.mxu0 0.0
        %6429 = vmatpush1.msra.mxu0 0.0
        %6430 = vmatprep.subr.mxu0 0.0
        %6431 = vmatpush1.msra.mxu0 0.0
        %6432 = vmatprep.subr.mxu0 0.0
        %6433 = vmatpush1.msra.mxu0 0.0
        %6434 = vmatprep.subr.mxu0 0.0
        %6435 = vmatpush1.msra.mxu0 0.0
        %6436 = vmatprep.subr.mxu0 0.0
        %6437 = vmatpush1.msra.mxu0 0.0
        %6438 = vmatprep.subr.mxu0 0.0
        %6439 = vmatpush1.msra.mxu0 0.0
        %6440 = vmatprep.subr.mxu0 0.0
        %6441 = vmatpush1.msra.mxu0 0.0
        %6442 = vmatprep.subr.mxu0 0.0
        %6443 = vmatpush1.msra.mxu0 0.0
        %6444 = vmatprep.subr.mxu0 0.0
        %6445 = vmatpush1.msra.mxu0 0.0
        %6446 = vmatprep.subr.mxu0 0.0
        %6447 = vmatpush1.msra.mxu0 0.0
        %6448 = vmatprep.subr.mxu0 0.0
        %6449 = vmatpush1.msra.mxu0 0.0
        %6450 = vmatprep.subr.mxu0 0.0
        %6451 = vmatpush1.msra.mxu0 0.0
        %6452 = vmatprep.subr.mxu0 0.0
        %6453 = vmatpush1.msra.mxu0 0.0
        %6454 = vmatprep.subr.mxu0 0.0
        %6455 = vmatpush1.msra.mxu0 0.0
        %6456 = vmatprep.subr.mxu0 0.0
        %6457 = vmatpush1.msra.mxu0 0.0
        %6458 = vmatprep.subr.mxu0 0.0
        %6459 = vmatpush1.msra.mxu0 0.0
        %6460 = vmatprep.subr.mxu0 0.0
        %6461 = vmatpush1.msra.mxu0 0.0
        %6462 = vmatprep.subr.mxu0 0.0
        %6463 = vmatpush1.msra.mxu0 0.0
        %6464 = vmatprep.subr.mxu0 0.0
        %6465 = vmatpush1.msra.mxu0 0.0
        %6466 = vmatprep.subr.mxu0 0.0
        %6467 = vmatpush1.msra.mxu0 0.0
        %6468 = vmatprep.subr.mxu0 0.0
        %6469 = vmatpush1.msra.mxu0 0.0
        %6470 = vmatprep.subr.mxu0 0.0
        %6471 = vmatpush1.msra.mxu0 0.0
        %6472 = vmatprep.subr.mxu0 0.0
        %6473 = vmatpush1.msra.mxu0 0.0
        %6474 = vmatprep.mubr.f32.mxu0 0.0
        %6475 = vmatmul.mubr.f32.gmra.mrb[0].mxu0 %v6339
        %v6476 = vpop.f32.mrb[0].mxu0
        %v6477 = vadd.f32 0.0, %v6476
        %v6478 = vpop.f32.mrb[0].mxu0
        %6479 = vmatprep.mubr.f32.mxu0 0.0
        %6480 = vmatmul.mubr.f32.gmra.mrb[0].mxu0 %v6342
        %v6481 = vpop.f32.mrb[0].mxu0
        %v6482 = vadd.f32 0.0, %v6481
        %v6483 = vpop.f32.mrb[0].mxu0
        %6484 = vmatprep.mubr.f32.mxu0 0.0
        %6485 = vmatmul.mubr.f32.gmra.mrb[0].mxu0 %v6345
        %v6486 = vpop.f32.mrb[0].mxu0
        %v6487 = vadd.f32 0.0, %v6486
        %v6488 = vpop.f32.mrb[0].mxu0
        %6489 = vmatprep.mubr.f32.mxu0 0.0
        %6490 = vmatmul.mubr.f32.gmra.mrb[0].mxu0 %v6348
        %v6491 = vpop.f32.mrb[0].mxu0
        %v6492 = vadd.f32 0.0, %v6491
        %v6493 = vpop.f32.mrb[0].mxu0
        %6494 = vmatprep.mubr.f32.mxu0 0.0
        %6495 = vmatmul.mubr.f32.gmra.mrb[0].mxu0 %v6351
        %v6496 = vpop.f32.mrb[0].mxu0
        %v6497 = vadd.f32 0.0, %v6496
        %v6498 = vpop.f32.mrb[0].mxu0
        %6499 = vmatprep.mubr.f32.mxu0 0.0
        %6500 = vmatmul.mubr.f32.gmra.mrb[0].mxu0 %v6354
        %v6501 = vpop.f32.mrb[0].mxu0
        %v6502 = vadd.f32 0.0, %v6501
        %v6503 = vpop.f32.mrb[0].mxu0
        %6504 = vmatprep.mubr.f32.mxu0 0.0
        %6505 = vmatmul.mubr.f32.gmra.mrb[0].mxu0 %v6357
        %v6506 = vpop.f32.mrb[0].mxu0
        %v6507 = vadd.f32 0.0, %v6506
        %v6508 = vpop.f32.mrb[0].mxu0
        %6509 = vmatprep.mubr.f32.mxu0 0.0
        %6510 = vmatmul.mubr.f32.gmra.mrb[0].mxu0 %v6360
        %v6511 = vpop.f32.mrb[0].mxu0
        %v6512 = vadd.f32 0.0, %v6511
        %v6513 = vpop.f32.mrb[0].mxu0
        %6514 = vmatprep.mubr.f32.mxu0 0.0
        %6515 = vmatmul.mubr.f32.gmra.mrb[0].mxu0 %v6363
        %v6516 = vpop.f32.mrb[0].mxu0
        %v6517 = vadd.f32 0.0, %v6516
        %v6518 = vpop.f32.mrb[0].mxu0
        %6519 = vmatprep.mubr.f32.mxu0 0.0
        %6520 = vmatmul.mubr.f32.gmra.mrb[0].mxu0 %v6366
        %v6521 = vpop.f32.mrb[0].mxu0
        %v6522 = vadd.f32 0.0, %v6521
        %v6523 = vpop.f32.mrb[0].mxu0
        %6524 = vmatprep.mubr.f32.mxu0 0.0
        %6525 = vmatmul.mubr.f32.gmra.mrb[0].mxu0 %v6369
        %v6526 = vpop.f32.mrb[0].mxu0
        %v6527 = vadd.f32 0.0, %v6526
        %v6528 = vpop.f32.mrb[0].mxu0
        %6529 = vmatprep.mubr.f32.mxu0 0.0
        %6530 = vmatmul.mubr.f32.gmra.mrb[0].mxu0 %v6372
        %v6531 = vpop.f32.mrb[0].mxu0
        %v6532 = vadd.f32 0.0, %v6531
        %v6533 = vpop.f32.mrb[0].mxu0
        %6534 = vmatprep.mubr.f32.mxu0 0.0
        %6535 = vmatmul.mubr.f32.gmra.mrb[0].mxu0 %v6375
        %v6536 = vpop.f32.mrb[0].mxu0
        %v6537 = vadd.f32 0.0, %v6536
        %v6538 = vpop.f32.mrb[0].mxu0
        %6539 = vmatprep.mubr.f32.mxu0 0.0
        %6540 = vmatmul.mubr.f32.gmra.mrb[0].mxu0 %v6378
        %v6541 = vpop.f32.mrb[0].mxu0
        %v6542 = vadd.f32 0.0, %v6541
        %v6543 = vpop.f32.mrb[0].mxu0
        %6544 = vmatprep.mubr.f32.mxu0 0.0
        %6545 = vmatmul.mubr.f32.gmra.mrb[0].mxu0 %v6381
        %v6546 = vpop.f32.mrb[0].mxu0
        %v6547 = vadd.f32 0.0, %v6546
        %v6548 = vpop.f32.mrb[0].mxu0
        %6549 = vmatprep.mubr.f32.mxu0 0.0
        %6550 = vmatmul.mubr.f32.gmra.mrb[0].mxu0 %v6384
        %v6551 = vpop.f32.mrb[0].mxu0
        %v6552 = vadd.f32 0.0, %v6551
        %v6553 = vpop.f32.mrb[0].mxu0
        %6554 = vmatprep.mubr.f32.mxu0 0.0
        %6555 = vmatmul.mubr.f32.gmra.mrb[0].mxu0 %v6387
        %v6556 = vpop.f32.mrb[0].mxu0
        %v6557 = vadd.f32 0.0, %v6556
        %v6558 = vpop.f32.mrb[0].mxu0
        %6559 = vmatprep.mubr.f32.mxu0 0.0
        %6560 = vmatmul.mubr.f32.gmra.mrb[0].mxu0 %v6390
        %v6561 = vpop.f32.mrb[0].mxu0
        %v6562 = vadd.f32 0.0, %v6561
        %v6563 = vpop.f32.mrb[0].mxu0
        %6564 = vmatprep.mubr.f32.mxu0 0.0
        %6565 = vmatmul.mubr.f32.gmra.mrb[0].mxu0 %v6393
        %v6566 = vpop.f32.mrb[0].mxu0
        %v6567 = vadd.f32 0.0, %v6566
        %v6568 = vpop.f32.mrb[0].mxu0
        %6569 = vmatprep.mubr.f32.mxu0 0.0
        %6570 = vmatmul.mubr.f32.gmra.mrb[0].mxu0 %v6396
        %v6571 = vpop.f32.mrb[0].mxu0
        %v6572 = vadd.f32 0.0, %v6571
        %v6573 = vpop.f32.mrb[0].mxu0
        %6574 = vmatprep.mubr.f32.mxu0 0.0
        %6575 = vmatmul.mubr.f32.gmra.mrb[0].mxu0 %v6399
        %v6576 = vpop.f32.mrb[0].mxu0
        %v6577 = vadd.f32 0.0, %v6576
        %v6578 = vpop.f32.mrb[0].mxu0
        %6579 = vmatprep.mubr.f32.mxu0 0.0
        %6580 = vmatmul.mubr.f32.gmra.mrb[0].mxu0 %v6402
        %v6581 = vpop.f32.mrb[0].mxu0
        %v6582 = vadd.f32 0.0, %v6581
        %v6583 = vpop.f32.mrb[0].mxu0
        %6584 = vmatprep.mubr.f32.mxu0 0.0
        %6585 = vmatmul.mubr.f32.gmra.mrb[0].mxu0 %v6405
        %v6586 = vpop.f32.mrb[0].mxu0
        %v6587 = vadd.f32 0.0, %v6586
        %v6588 = vpop.f32.mrb[0].mxu0
        %6589 = vmatprep.mubr.f32.mxu0 0.0
        %6590 = vmatmul.mubr.f32.gmra.mrb[0].mxu0 %v6408
        %v6591 = vpop.f32.mrb[0].mxu0
        %v6592 = vadd.f32 0.0, %v6591
        %v6593 = vpop.f32.mrb[0].mxu0
        %6594 = vdwg.mxu0
        %v6595 = vadd.f32 %v6289, %v6477
        %v6596 = vadd.f32 %v6290, %v6482
        %v6597 = vadd.f32 %v6291, %v6487
        %v6598 = vadd.f32 %v6292, %v6492
        %v6599 = vadd.f32 %v6293, %v6497
        %v6600 = vadd.f32 %v6294, %v6502
        %v6601 = vadd.f32 %v6295, %v6507
        %v6602 = vadd.f32 %v6296, %v6512
        %v6603 = vadd.f32 %v6297, %v6517
        %v6604 = vadd.f32 %v6298, %v6522
        %v6605 = vadd.f32 %v6299, %v6527
        %v6606 = vadd.f32 %v6300, %v6532
        %v6607 = vadd.f32 %v6301, %v6537
        %v6608 = vadd.f32 %v6302, %v6542
        %v6609 = vadd.f32 %v6303, %v6547
        %v6610 = vadd.f32 %v6304, %v6552
        %v6611 = vadd.f32 %v6305, %v6557
        %v6612 = vadd.f32 %v6306, %v6562
        %v6613 = vadd.f32 %v6307, %v6567
        %v6614 = vadd.f32 %v6308, %v6572
        %v6615 = vadd.f32 %v6309, %v6577
        %v6616 = vadd.f32 %v6310, %v6582
        %v6617 = vadd.f32 %v6311, %v6587
        %v6618 = vadd.f32 %v6312, %v6592
        %v6619 = vld [vmem:[%s234 + $0x41] sm:$0xff]
        %v6620 = vld [vmem:[%s234 + $0x49] sm:$0xff]
        %v6621 = vld [vmem:[%s234 + $0x51] sm:$0xff]
        %v6622 = vld [vmem:[%s234 + $0x59] sm:$0xff]
        %v6623 = vld [vmem:[%s234 + $0x61] sm:$0xff]
        %v6624 = vld [vmem:[%s234 + $0x69] sm:$0xff]
        %v6625 = vld [vmem:[%s234 + $0x71] sm:$0xff]
        %v6626 = vld [vmem:[%s234 + $0x79] sm:$0xff]
        %v6627 = vld [vmem:[%s234 + $0x81] sm:$0xff]
        %v6628 = vld [vmem:[%s234 + $0x89] sm:$0xff]
        %v6629 = vld [vmem:[%s234 + $0x91] sm:$0xff]
        %v6630 = vld [vmem:[%s234 + $0x99] sm:$0xff]
        %v6631 = vld [vmem:[%s234 + $0xa1] sm:$0xff]
        %v6632 = vld [vmem:[%s234 + $0xa9] sm:$0xff]
        %v6633 = vld [vmem:[%s234 + $0xb1] sm:$0xff]
        %v6634 = vld [vmem:[%s234 + $0xb9] sm:$0xff]
        %v6635 = vld [vmem:[%s234 + $0xc1] sm:$0xff]
        %v6636 = vld [vmem:[%s234 + $0xc9] sm:$0xff]
        %v6637 = vld [vmem:[%s234 + $0xd1] sm:$0xff]
        %v6638 = vld [vmem:[%s234 + $0xd9] sm:$0xff]
        %v6639 = vld [vmem:[%s234 + $0xe1] sm:$0xff]
        %v6640 = vld [vmem:[%s234 + $0xe9] sm:$0xff]
        %v6641 = vld [vmem:[%s234 + $0xf1] sm:$0xff]
        %v6642 = vld [vmem:[%s234 + $0xf9] sm:$0xf]
        %v6643 = vld [vmem:[#allocation2 + $0xa8] sm:$0xff]
        %v6645 = vsel %vm290, %v6619, 0
        %v6648 = vsel %vm290, %v6620, 0
        %v6651 = vsel %vm290, %v6621, 0
        %v6654 = vsel %vm290, %v6622, 0
        %v6657 = vsel %vm290, %v6623, 0
        %v6660 = vsel %vm290, %v6624, 0
        %v6663 = vsel %vm290, %v6625, 0
        %v6666 = vsel %vm290, %v6626, 0
        %v6669 = vsel %vm290, %v6627, 0
        %v6672 = vsel %vm290, %v6628, 0
        %v6675 = vsel %vm290, %v6629, 0
        %v6678 = vsel %vm290, %v6630, 0
        %v6681 = vsel %vm290, %v6631, 0
        %v6684 = vsel %vm290, %v6632, 0
        %v6687 = vsel %vm290, %v6633, 0
        %v6690 = vsel %vm290, %v6634, 0
        %v6693 = vsel %vm290, %v6635, 0
        %v6696 = vsel %vm290, %v6636, 0
        %v6699 = vsel %vm290, %v6637, 0
        %v6702 = vsel %vm290, %v6638, 0
        %v6705 = vsel %vm290, %v6639, 0
        %v6708 = vsel %vm290, %v6640, 0
        %v6711 = vsel %vm290, %v6641, 0
        %v6714 = vsel %vm290, %v6642, 0
        %6716 = vmatprep.subr.mxu0 0.0
        %6717 = vmatpush1.msra.mxu0 %v6643
        %6718 = vmatprep.subr.mxu0 0.0
        %6719 = vmatpush1.msra.mxu0 0.0
        %6720 = vmatprep.subr.mxu0 0.0
        %6721 = vmatpush1.msra.mxu0 0.0
        %6722 = vmatprep.subr.mxu0 0.0
        %6723 = vmatpush1.msra.mxu0 0.0
        %6724 = vmatprep.subr.mxu0 0.0
        %6725 = vmatpush1.msra.mxu0 0.0
        %6726 = vmatprep.subr.mxu0 0.0
        %6727 = vmatpush1.msra.mxu0 0.0
        %6728 = vmatprep.subr.mxu0 0.0
        %6729 = vmatpush1.msra.mxu0 0.0
        %6730 = vmatprep.subr.mxu0 0.0
        %6731 = vmatpush1.msra.mxu0 0.0
        %6732 = vmatprep.subr.mxu0 0.0
        %6733 = vmatpush1.msra.mxu0 0.0
        %6734 = vmatprep.subr.mxu0 0.0
        %6735 = vmatpush1.msra.mxu0 0.0
        %6736 = vmatprep.subr.mxu0 0.0
        %6737 = vmatpush1.msra.mxu0 0.0
        %6738 = vmatprep.subr.mxu0 0.0
        %6739 = vmatpush1.msra.mxu0 0.0
        %6740 = vmatprep.subr.mxu0 0.0
        %6741 = vmatpush1.msra.mxu0 0.0
        %6742 = vmatprep.subr.mxu0 0.0
        %6743 = vmatpush1.msra.mxu0 0.0
        %6744 = vmatprep.subr.mxu0 0.0
        %6745 = vmatpush1.msra.mxu0 0.0
        %6746 = vmatprep.subr.mxu0 0.0
        %6747 = vmatpush1.msra.mxu0 0.0
        %6748 = vmatprep.subr.mxu0 0.0
        %6749 = vmatpush1.msra.mxu0 0.0
        %6750 = vmatprep.subr.mxu0 0.0
        %6751 = vmatpush1.msra.mxu0 0.0
        %6752 = vmatprep.subr.mxu0 0.0
        %6753 = vmatpush1.msra.mxu0 0.0
        %6754 = vmatprep.subr.mxu0 0.0
        %6755 = vmatpush1.msra.mxu0 0.0
        %6756 = vmatprep.subr.mxu0 0.0
        %6757 = vmatpush1.msra.mxu0 0.0
        %6758 = vmatprep.subr.mxu0 0.0
        %6759 = vmatpush1.msra.mxu0 0.0
        %6760 = vmatprep.subr.mxu0 0.0
        %6761 = vmatpush1.msra.mxu0 0.0
        %6762 = vmatprep.subr.mxu0 0.0
        %6763 = vmatpush1.msra.mxu0 0.0
        %6764 = vmatprep.subr.mxu0 0.0
        %6765 = vmatpush1.msra.mxu0 0.0
        %6766 = vmatprep.subr.mxu0 0.0
        %6767 = vmatpush1.msra.mxu0 0.0
        %6768 = vmatprep.subr.mxu0 0.0
        %6769 = vmatpush1.msra.mxu0 0.0
        %6770 = vmatprep.subr.mxu0 0.0
        %6771 = vmatpush1.msra.mxu0 0.0
        %6772 = vmatprep.subr.mxu0 0.0
        %6773 = vmatpush1.msra.mxu0 0.0
        %6774 = vmatprep.subr.mxu0 0.0
        %6775 = vmatpush1.msra.mxu0 0.0
        %6776 = vmatprep.subr.mxu0 0.0
        %6777 = vmatpush1.msra.mxu0 0.0
        %6778 = vmatprep.subr.mxu0 0.0
        %6779 = vmatpush1.msra.mxu0 0.0
        %6780 = vmatprep.mubr.f32.mxu0 0.0
        %6781 = vmatmul.mubr.f32.gmra.mrb[0].mxu0 %v6645
        %v6782 = vpop.f32.mrb[0].mxu0
        %v6783 = vadd.f32 0.0, %v6782
        %v6784 = vpop.f32.mrb[0].mxu0
        %6785 = vmatprep.mubr.f32.mxu0 0.0
        %6786 = vmatmul.mubr.f32.gmra.mrb[0].mxu0 %v6648
        %v6787 = vpop.f32.mrb[0].mxu0
        %v6788 = vadd.f32 0.0, %v6787
        %v6789 = vpop.f32.mrb[0].mxu0
        %6790 = vmatprep.mubr.f32.mxu0 0.0
        %6791 = vmatmul.mubr.f32.gmra.mrb[0].mxu0 %v6651
        %v6792 = vpop.f32.mrb[0].mxu0
        %v6793 = vadd.f32 0.0, %v6792
        %v6794 = vpop.f32.mrb[0].mxu0
        %6795 = vmatprep.mubr.f32.mxu0 0.0
        %6796 = vmatmul.mubr.f32.gmra.mrb[0].mxu0 %v6654
        %v6797 = vpop.f32.mrb[0].mxu0
        %v6798 = vadd.f32 0.0, %v6797
        %v6799 = vpop.f32.mrb[0].mxu0
        %6800 = vmatprep.mubr.f32.mxu0 0.0
        %6801 = vmatmul.mubr.f32.gmra.mrb[0].mxu0 %v6657
        %v6802 = vpop.f32.mrb[0].mxu0
        %v6803 = vadd.f32 0.0, %v6802
        %v6804 = vpop.f32.mrb[0].mxu0
        %6805 = vmatprep.mubr.f32.mxu0 0.0
        %6806 = vmatmul.mubr.f32.gmra.mrb[0].mxu0 %v6660
        %v6807 = vpop.f32.mrb[0].mxu0
        %v6808 = vadd.f32 0.0, %v6807
        %v6809 = vpop.f32.mrb[0].mxu0
        %6810 = vmatprep.mubr.f32.mxu0 0.0
        %6811 = vmatmul.mubr.f32.gmra.mrb[0].mxu0 %v6663
        %v6812 = vpop.f32.mrb[0].mxu0
        %v6813 = vadd.f32 0.0, %v6812
        %v6814 = vpop.f32.mrb[0].mxu0
        %6815 = vmatprep.mubr.f32.mxu0 0.0
        %6816 = vmatmul.mubr.f32.gmra.mrb[0].mxu0 %v6666
        %v6817 = vpop.f32.mrb[0].mxu0
        %v6818 = vadd.f32 0.0, %v6817
        %v6819 = vpop.f32.mrb[0].mxu0
        %6820 = vmatprep.mubr.f32.mxu0 0.0
        %6821 = vmatmul.mubr.f32.gmra.mrb[0].mxu0 %v6669
        %v6822 = vpop.f32.mrb[0].mxu0
        %v6823 = vadd.f32 0.0, %v6822
        %v6824 = vpop.f32.mrb[0].mxu0
        %6825 = vmatprep.mubr.f32.mxu0 0.0
        %6826 = vmatmul.mubr.f32.gmra.mrb[0].mxu0 %v6672
        %v6827 = vpop.f32.mrb[0].mxu0
        %v6828 = vadd.f32 0.0, %v6827
        %v6829 = vpop.f32.mrb[0].mxu0
        %6830 = vmatprep.mubr.f32.mxu0 0.0
        %6831 = vmatmul.mubr.f32.gmra.mrb[0].mxu0 %v6675
        %v6832 = vpop.f32.mrb[0].mxu0
        %v6833 = vadd.f32 0.0, %v6832
        %v6834 = vpop.f32.mrb[0].mxu0
        %6835 = vmatprep.mubr.f32.mxu0 0.0
        %6836 = vmatmul.mubr.f32.gmra.mrb[0].mxu0 %v6678
        %v6837 = vpop.f32.mrb[0].mxu0
        %v6838 = vadd.f32 0.0, %v6837
        %v6839 = vpop.f32.mrb[0].mxu0
        %6840 = vmatprep.mubr.f32.mxu0 0.0
        %6841 = vmatmul.mubr.f32.gmra.mrb[0].mxu0 %v6681
        %v6842 = vpop.f32.mrb[0].mxu0
        %v6843 = vadd.f32 0.0, %v6842
        %v6844 = vpop.f32.mrb[0].mxu0
        %6845 = vmatprep.mubr.f32.mxu0 0.0
        %6846 = vmatmul.mubr.f32.gmra.mrb[0].mxu0 %v6684
        %v6847 = vpop.f32.mrb[0].mxu0
        %v6848 = vadd.f32 0.0, %v6847
        %v6849 = vpop.f32.mrb[0].mxu0
        %6850 = vmatprep.mubr.f32.mxu0 0.0
        %6851 = vmatmul.mubr.f32.gmra.mrb[0].mxu0 %v6687
        %v6852 = vpop.f32.mrb[0].mxu0
        %v6853 = vadd.f32 0.0, %v6852
        %v6854 = vpop.f32.mrb[0].mxu0
        %6855 = vmatprep.mubr.f32.mxu0 0.0
        %6856 = vmatmul.mubr.f32.gmra.mrb[0].mxu0 %v6690
        %v6857 = vpop.f32.mrb[0].mxu0
        %v6858 = vadd.f32 0.0, %v6857
        %v6859 = vpop.f32.mrb[0].mxu0
        %6860 = vmatprep.mubr.f32.mxu0 0.0
        %6861 = vmatmul.mubr.f32.gmra.mrb[0].mxu0 %v6693
        %v6862 = vpop.f32.mrb[0].mxu0
        %v6863 = vadd.f32 0.0, %v6862
        %v6864 = vpop.f32.mrb[0].mxu0
        %6865 = vmatprep.mubr.f32.mxu0 0.0
        %6866 = vmatmul.mubr.f32.gmra.mrb[0].mxu0 %v6696
        %v6867 = vpop.f32.mrb[0].mxu0
        %v6868 = vadd.f32 0.0, %v6867
        %v6869 = vpop.f32.mrb[0].mxu0
        %6870 = vmatprep.mubr.f32.mxu0 0.0
        %6871 = vmatmul.mubr.f32.gmra.mrb[0].mxu0 %v6699
        %v6872 = vpop.f32.mrb[0].mxu0
        %v6873 = vadd.f32 0.0, %v6872
        %v6874 = vpop.f32.mrb[0].mxu0
        %6875 = vmatprep.mubr.f32.mxu0 0.0
        %6876 = vmatmul.mubr.f32.gmra.mrb[0].mxu0 %v6702
        %v6877 = vpop.f32.mrb[0].mxu0
        %v6878 = vadd.f32 0.0, %v6877
        %v6879 = vpop.f32.mrb[0].mxu0
        %6880 = vmatprep.mubr.f32.mxu0 0.0
        %6881 = vmatmul.mubr.f32.gmra.mrb[0].mxu0 %v6705
        %v6882 = vpop.f32.mrb[0].mxu0
        %v6883 = vadd.f32 0.0, %v6882
        %v6884 = vpop.f32.mrb[0].mxu0
        %6885 = vmatprep.mubr.f32.mxu0 0.0
        %6886 = vmatmul.mubr.f32.gmra.mrb[0].mxu0 %v6708
        %v6887 = vpop.f32.mrb[0].mxu0
        %v6888 = vadd.f32 0.0, %v6887
        %v6889 = vpop.f32.mrb[0].mxu0
        %6890 = vmatprep.mubr.f32.mxu0 0.0
        %6891 = vmatmul.mubr.f32.gmra.mrb[0].mxu0 %v6711
        %v6892 = vpop.f32.mrb[0].mxu0
        %v6893 = vadd.f32 0.0, %v6892
        %v6894 = vpop.f32.mrb[0].mxu0
        %6895 = vmatprep.mubr.f32.mxu0 0.0
        %6896 = vmatmul.mubr.f32.gmra.mrb[0].mxu0 %v6714
        %v6897 = vpop.f32.mrb[0].mxu0
        %v6898 = vadd.f32 0.0, %v6897
        %v6899 = vpop.f32.mrb[0].mxu0
        %6900 = vdwg.mxu0
        %v6901 = vadd.f32 %v6595, %v6783
        %v6902 = vadd.f32 %v6596, %v6788
        %v6903 = vadd.f32 %v6597, %v6793
        %v6904 = vadd.f32 %v6598, %v6798
        %v6905 = vadd.f32 %v6599, %v6803
        %v6906 = vadd.f32 %v6600, %v6808
        %v6907 = vadd.f32 %v6601, %v6813
        %v6908 = vadd.f32 %v6602, %v6818
        %v6909 = vadd.f32 %v6603, %v6823
        %v6910 = vadd.f32 %v6604, %v6828
        %v6911 = vadd.f32 %v6605, %v6833
        %v6912 = vadd.f32 %v6606, %v6838
        %v6913 = vadd.f32 %v6607, %v6843
        %v6914 = vadd.f32 %v6608, %v6848
        %v6915 = vadd.f32 %v6609, %v6853
        %v6916 = vadd.f32 %v6610, %v6858
        %v6917 = vadd.f32 %v6611, %v6863
        %v6918 = vadd.f32 %v6612, %v6868
        %v6919 = vadd.f32 %v6613, %v6873
        %v6920 = vadd.f32 %v6614, %v6878
        %v6921 = vadd.f32 %v6615, %v6883
        %v6922 = vadd.f32 %v6616, %v6888
        %v6923 = vadd.f32 %v6617, %v6893
        %v6924 = vadd.f32 %v6618, %v6898
        %v6925 = vld [vmem:[%s234 + $0x42] sm:$0xff]
        %v6926 = vld [vmem:[%s234 + $0x4a] sm:$0xff]
        %v6927 = vld [vmem:[%s234 + $0x52] sm:$0xff]
        %v6928 = vld [vmem:[%s234 + $0x5a] sm:$0xff]
        %v6929 = vld [vmem:[%s234 + $0x62] sm:$0xff]
        %v6930 = vld [vmem:[%s234 + $0x6a] sm:$0xff]
        %v6931 = vld [vmem:[%s234 + $0x72] sm:$0xff]
        %v6932 = vld [vmem:[%s234 + $0x7a] sm:$0xff]
        %v6933 = vld [vmem:[%s234 + $0x82] sm:$0xff]
        %v6934 = vld [vmem:[%s234 + $0x8a] sm:$0xff]
        %v6935 = vld [vmem:[%s234 + $0x92] sm:$0xff]
        %v6936 = vld [vmem:[%s234 + $0x9a] sm:$0xff]
        %v6937 = vld [vmem:[%s234 + $0xa2] sm:$0xff]
        %v6938 = vld [vmem:[%s234 + $0xaa] sm:$0xff]
        %v6939 = vld [vmem:[%s234 + $0xb2] sm:$0xff]
        %v6940 = vld [vmem:[%s234 + $0xba] sm:$0xff]
        %v6941 = vld [vmem:[%s234 + $0xc2] sm:$0xff]
        %v6942 = vld [vmem:[%s234 + $0xca] sm:$0xff]
        %v6943 = vld [vmem:[%s234 + $0xd2] sm:$0xff]
        %v6944 = vld [vmem:[%s234 + $0xda] sm:$0xff]
        %v6945 = vld [vmem:[%s234 + $0xe2] sm:$0xff]
        %v6946 = vld [vmem:[%s234 + $0xea] sm:$0xff]
        %v6947 = vld [vmem:[%s234 + $0xf2] sm:$0xff]
        %v6948 = vld [vmem:[%s234 + $0xfa] sm:$0xf]
        %v6949 = vld [vmem:[#allocation2 + $0xb0] sm:$0xff]
        %v6951 = vsel %vm290, %v6925, 0
        %v6954 = vsel %vm290, %v6926, 0
        %v6957 = vsel %vm290, %v6927, 0
        %v6960 = vsel %vm290, %v6928, 0
        %v6963 = vsel %vm290, %v6929, 0
        %v6966 = vsel %vm290, %v6930, 0
        %v6969 = vsel %vm290, %v6931, 0
        %v6972 = vsel %vm290, %v6932, 0
        %v6975 = vsel %vm290, %v6933, 0
        %v6978 = vsel %vm290, %v6934, 0
        %v6981 = vsel %vm290, %v6935, 0
        %v6984 = vsel %vm290, %v6936, 0
        %v6987 = vsel %vm290, %v6937, 0
        %v6990 = vsel %vm290, %v6938, 0
        %v6993 = vsel %vm290, %v6939, 0
        %v6996 = vsel %vm290, %v6940, 0
        %v6999 = vsel %vm290, %v6941, 0
        %v7002 = vsel %vm290, %v6942, 0
        %v7005 = vsel %vm290, %v6943, 0
        %v7008 = vsel %vm290, %v6944, 0
        %v7011 = vsel %vm290, %v6945, 0
        %v7014 = vsel %vm290, %v6946, 0
        %v7017 = vsel %vm290, %v6947, 0
        %v7020 = vsel %vm290, %v6948, 0
        %7022 = vmatprep.subr.mxu0 0.0
        %7023 = vmatpush1.msra.mxu0 %v6949
        %7024 = vmatprep.subr.mxu0 0.0
        %7025 = vmatpush1.msra.mxu0 0.0
        %7026 = vmatprep.subr.mxu0 0.0
        %7027 = vmatpush1.msra.mxu0 0.0
        %7028 = vmatprep.subr.mxu0 0.0
        %7029 = vmatpush1.msra.mxu0 0.0
        %7030 = vmatprep.subr.mxu0 0.0
        %7031 = vmatpush1.msra.mxu0 0.0
        %7032 = vmatprep.subr.mxu0 0.0
        %7033 = vmatpush1.msra.mxu0 0.0
        %7034 = vmatprep.subr.mxu0 0.0
        %7035 = vmatpush1.msra.mxu0 0.0
        %7036 = vmatprep.subr.mxu0 0.0
        %7037 = vmatpush1.msra.mxu0 0.0
        %7038 = vmatprep.subr.mxu0 0.0
        %7039 = vmatpush1.msra.mxu0 0.0
        %7040 = vmatprep.subr.mxu0 0.0
        %7041 = vmatpush1.msra.mxu0 0.0
        %7042 = vmatprep.subr.mxu0 0.0
        %7043 = vmatpush1.msra.mxu0 0.0
        %7044 = vmatprep.subr.mxu0 0.0
        %7045 = vmatpush1.msra.mxu0 0.0
        %7046 = vmatprep.subr.mxu0 0.0
        %7047 = vmatpush1.msra.mxu0 0.0
        %7048 = vmatprep.subr.mxu0 0.0
        %7049 = vmatpush1.msra.mxu0 0.0
        %7050 = vmatprep.subr.mxu0 0.0
        %7051 = vmatpush1.msra.mxu0 0.0
        %7052 = vmatprep.subr.mxu0 0.0
        %7053 = vmatpush1.msra.mxu0 0.0
        %7054 = vmatprep.subr.mxu0 0.0
        %7055 = vmatpush1.msra.mxu0 0.0
        %7056 = vmatprep.subr.mxu0 0.0
        %7057 = vmatpush1.msra.mxu0 0.0
        %7058 = vmatprep.subr.mxu0 0.0
        %7059 = vmatpush1.msra.mxu0 0.0
        %7060 = vmatprep.subr.mxu0 0.0
        %7061 = vmatpush1.msra.mxu0 0.0
        %7062 = vmatprep.subr.mxu0 0.0
        %7063 = vmatpush1.msra.mxu0 0.0
        %7064 = vmatprep.subr.mxu0 0.0
        %7065 = vmatpush1.msra.mxu0 0.0
        %7066 = vmatprep.subr.mxu0 0.0
        %7067 = vmatpush1.msra.mxu0 0.0
        %7068 = vmatprep.subr.mxu0 0.0
        %7069 = vmatpush1.msra.mxu0 0.0
        %7070 = vmatprep.subr.mxu0 0.0
        %7071 = vmatpush1.msra.mxu0 0.0
        %7072 = vmatprep.subr.mxu0 0.0
        %7073 = vmatpush1.msra.mxu0 0.0
        %7074 = vmatprep.subr.mxu0 0.0
        %7075 = vmatpush1.msra.mxu0 0.0
        %7076 = vmatprep.subr.mxu0 0.0
        %7077 = vmatpush1.msra.mxu0 0.0
        %7078 = vmatprep.subr.mxu0 0.0
        %7079 = vmatpush1.msra.mxu0 0.0
        %7080 = vmatprep.subr.mxu0 0.0
        %7081 = vmatpush1.msra.mxu0 0.0
        %7082 = vmatprep.subr.mxu0 0.0
        %7083 = vmatpush1.msra.mxu0 0.0
        %7084 = vmatprep.subr.mxu0 0.0
        %7085 = vmatpush1.msra.mxu0 0.0
        %7086 = vmatprep.mubr.f32.mxu0 0.0
        %7087 = vmatmul.mubr.f32.gmra.mrb[0].mxu0 %v6951
        %v7088 = vpop.f32.mrb[0].mxu0
        %v7089 = vadd.f32 0.0, %v7088
        %v7090 = vpop.f32.mrb[0].mxu0
        %7091 = vmatprep.mubr.f32.mxu0 0.0
        %7092 = vmatmul.mubr.f32.gmra.mrb[0].mxu0 %v6954
        %v7093 = vpop.f32.mrb[0].mxu0
        %v7094 = vadd.f32 0.0, %v7093
        %v7095 = vpop.f32.mrb[0].mxu0
        %7096 = vmatprep.mubr.f32.mxu0 0.0
        %7097 = vmatmul.mubr.f32.gmra.mrb[0].mxu0 %v6957
        %v7098 = vpop.f32.mrb[0].mxu0
        %v7099 = vadd.f32 0.0, %v7098
        %v7100 = vpop.f32.mrb[0].mxu0
        %7101 = vmatprep.mubr.f32.mxu0 0.0
        %7102 = vmatmul.mubr.f32.gmra.mrb[0].mxu0 %v6960
        %v7103 = vpop.f32.mrb[0].mxu0
        %v7104 = vadd.f32 0.0, %v7103
        %v7105 = vpop.f32.mrb[0].mxu0
        %7106 = vmatprep.mubr.f32.mxu0 0.0
        %7107 = vmatmul.mubr.f32.gmra.mrb[0].mxu0 %v6963
        %v7108 = vpop.f32.mrb[0].mxu0
        %v7109 = vadd.f32 0.0, %v7108
        %v7110 = vpop.f32.mrb[0].mxu0
        %7111 = vmatprep.mubr.f32.mxu0 0.0
        %7112 = vmatmul.mubr.f32.gmra.mrb[0].mxu0 %v6966
        %v7113 = vpop.f32.mrb[0].mxu0
        %v7114 = vadd.f32 0.0, %v7113
        %v7115 = vpop.f32.mrb[0].mxu0
        %7116 = vmatprep.mubr.f32.mxu0 0.0
        %7117 = vmatmul.mubr.f32.gmra.mrb[0].mxu0 %v6969
        %v7118 = vpop.f32.mrb[0].mxu0
        %v7119 = vadd.f32 0.0, %v7118
        %v7120 = vpop.f32.mrb[0].mxu0
        %7121 = vmatprep.mubr.f32.mxu0 0.0
        %7122 = vmatmul.mubr.f32.gmra.mrb[0].mxu0 %v6972
        %v7123 = vpop.f32.mrb[0].mxu0
        %v7124 = vadd.f32 0.0, %v7123
        %v7125 = vpop.f32.mrb[0].mxu0
        %7126 = vmatprep.mubr.f32.mxu0 0.0
        %7127 = vmatmul.mubr.f32.gmra.mrb[0].mxu0 %v6975
        %v7128 = vpop.f32.mrb[0].mxu0
        %v7129 = vadd.f32 0.0, %v7128
        %v7130 = vpop.f32.mrb[0].mxu0
        %7131 = vmatprep.mubr.f32.mxu0 0.0
        %7132 = vmatmul.mubr.f32.gmra.mrb[0].mxu0 %v6978
        %v7133 = vpop.f32.mrb[0].mxu0
        %v7134 = vadd.f32 0.0, %v7133
        %v7135 = vpop.f32.mrb[0].mxu0
        %7136 = vmatprep.mubr.f32.mxu0 0.0
        %7137 = vmatmul.mubr.f32.gmra.mrb[0].mxu0 %v6981
        %v7138 = vpop.f32.mrb[0].mxu0
        %v7139 = vadd.f32 0.0, %v7138
        %v7140 = vpop.f32.mrb[0].mxu0
        %7141 = vmatprep.mubr.f32.mxu0 0.0
        %7142 = vmatmul.mubr.f32.gmra.mrb[0].mxu0 %v6984
        %v7143 = vpop.f32.mrb[0].mxu0
        %v7144 = vadd.f32 0.0, %v7143
        %v7145 = vpop.f32.mrb[0].mxu0
        %7146 = vmatprep.mubr.f32.mxu0 0.0
        %7147 = vmatmul.mubr.f32.gmra.mrb[0].mxu0 %v6987
        %v7148 = vpop.f32.mrb[0].mxu0
        %v7149 = vadd.f32 0.0, %v7148
        %v7150 = vpop.f32.mrb[0].mxu0
        %7151 = vmatprep.mubr.f32.mxu0 0.0
        %7152 = vmatmul.mubr.f32.gmra.mrb[0].mxu0 %v6990
        %v7153 = vpop.f32.mrb[0].mxu0
        %v7154 = vadd.f32 0.0, %v7153
        %v7155 = vpop.f32.mrb[0].mxu0
        %7156 = vmatprep.mubr.f32.mxu0 0.0
        %7157 = vmatmul.mubr.f32.gmra.mrb[0].mxu0 %v6993
        %v7158 = vpop.f32.mrb[0].mxu0
        %v7159 = vadd.f32 0.0, %v7158
        %v7160 = vpop.f32.mrb[0].mxu0
        %7161 = vmatprep.mubr.f32.mxu0 0.0
        %7162 = vmatmul.mubr.f32.gmra.mrb[0].mxu0 %v6996
        %v7163 = vpop.f32.mrb[0].mxu0
        %v7164 = vadd.f32 0.0, %v7163
        %v7165 = vpop.f32.mrb[0].mxu0
        %7166 = vmatprep.mubr.f32.mxu0 0.0
        %7167 = vmatmul.mubr.f32.gmra.mrb[0].mxu0 %v6999
        %v7168 = vpop.f32.mrb[0].mxu0
        %v7169 = vadd.f32 0.0, %v7168
        %v7170 = vpop.f32.mrb[0].mxu0
        %7171 = vmatprep.mubr.f32.mxu0 0.0
        %7172 = vmatmul.mubr.f32.gmra.mrb[0].mxu0 %v7002
        %v7173 = vpop.f32.mrb[0].mxu0
        %v7174 = vadd.f32 0.0, %v7173
        %v7175 = vpop.f32.mrb[0].mxu0
        %7176 = vmatprep.mubr.f32.mxu0 0.0
        %7177 = vmatmul.mubr.f32.gmra.mrb[0].mxu0 %v7005
        %v7178 = vpop.f32.mrb[0].mxu0
        %v7179 = vadd.f32 0.0, %v7178
        %v7180 = vpop.f32.mrb[0].mxu0
        %7181 = vmatprep.mubr.f32.mxu0 0.0
        %7182 = vmatmul.mubr.f32.gmra.mrb[0].mxu0 %v7008
        %v7183 = vpop.f32.mrb[0].mxu0
        %v7184 = vadd.f32 0.0, %v7183
        %v7185 = vpop.f32.mrb[0].mxu0
        %7186 = vmatprep.mubr.f32.mxu0 0.0
        %7187 = vmatmul.mubr.f32.gmra.mrb[0].mxu0 %v7011
        %v7188 = vpop.f32.mrb[0].mxu0
        %v7189 = vadd.f32 0.0, %v7188
        %v7190 = vpop.f32.mrb[0].mxu0
        %7191 = vmatprep.mubr.f32.mxu0 0.0
        %7192 = vmatmul.mubr.f32.gmra.mrb[0].mxu0 %v7014
        %v7193 = vpop.f32.mrb[0].mxu0
        %v7194 = vadd.f32 0.0, %v7193
        %v7195 = vpop.f32.mrb[0].mxu0
        %7196 = vmatprep.mubr.f32.mxu0 0.0
        %7197 = vmatmul.mubr.f32.gmra.mrb[0].mxu0 %v7017
        %v7198 = vpop.f32.mrb[0].mxu0
        %v7199 = vadd.f32 0.0, %v7198
        %v7200 = vpop.f32.mrb[0].mxu0
        %7201 = vmatprep.mubr.f32.mxu0 0.0
        %7202 = vmatmul.mubr.f32.gmra.mrb[0].mxu0 %v7020
        %v7203 = vpop.f32.mrb[0].mxu0
        %v7204 = vadd.f32 0.0, %v7203
        %v7205 = vpop.f32.mrb[0].mxu0
        %7206 = vdwg.mxu0
        %v7207 = vadd.f32 %v6901, %v7089
        %v7208 = vadd.f32 %v6902, %v7094
        %v7209 = vadd.f32 %v6903, %v7099
        %v7210 = vadd.f32 %v6904, %v7104
        %v7211 = vadd.f32 %v6905, %v7109
        %v7212 = vadd.f32 %v6906, %v7114
        %v7213 = vadd.f32 %v6907, %v7119
        %v7214 = vadd.f32 %v6908, %v7124
        %v7215 = vadd.f32 %v6909, %v7129
        %v7216 = vadd.f32 %v6910, %v7134
        %v7217 = vadd.f32 %v6911, %v7139
        %v7218 = vadd.f32 %v6912, %v7144
        %v7219 = vadd.f32 %v6913, %v7149
        %v7220 = vadd.f32 %v6914, %v7154
        %v7221 = vadd.f32 %v6915, %v7159
        %v7222 = vadd.f32 %v6916, %v7164
        %v7223 = vadd.f32 %v6917, %v7169
        %v7224 = vadd.f32 %v6918, %v7174
        %v7225 = vadd.f32 %v6919, %v7179
        %v7226 = vadd.f32 %v6920, %v7184
        %v7227 = vadd.f32 %v6921, %v7189
        %v7228 = vadd.f32 %v6922, %v7194
        %v7229 = vadd.f32 %v6923, %v7199
        %v7230 = vadd.f32 %v6924, %v7204
        %v7231 = vld [vmem:[%s234 + $0x43] sm:$0xff]
        %v7232 = vld [vmem:[%s234 + $0x4b] sm:$0xff]
        %v7233 = vld [vmem:[%s234 + $0x53] sm:$0xff]
        %v7234 = vld [vmem:[%s234 + $0x5b] sm:$0xff]
        %v7235 = vld [vmem:[%s234 + $0x63] sm:$0xff]
        %v7236 = vld [vmem:[%s234 + $0x6b] sm:$0xff]
        %v7237 = vld [vmem:[%s234 + $0x73] sm:$0xff]
        %v7238 = vld [vmem:[%s234 + $0x7b] sm:$0xff]
        %v7239 = vld [vmem:[%s234 + $0x83] sm:$0xff]
        %v7240 = vld [vmem:[%s234 + $0x8b] sm:$0xff]
        %v7241 = vld [vmem:[%s234 + $0x93] sm:$0xff]
        %v7242 = vld [vmem:[%s234 + $0x9b] sm:$0xff]
        %v7243 = vld [vmem:[%s234 + $0xa3] sm:$0xff]
        %v7244 = vld [vmem:[%s234 + $0xab] sm:$0xff]
        %v7245 = vld [vmem:[%s234 + $0xb3] sm:$0xff]
        %v7246 = vld [vmem:[%s234 + $0xbb] sm:$0xff]
        %v7247 = vld [vmem:[%s234 + $0xc3] sm:$0xff]
        %v7248 = vld [vmem:[%s234 + $0xcb] sm:$0xff]
        %v7249 = vld [vmem:[%s234 + $0xd3] sm:$0xff]
        %v7250 = vld [vmem:[%s234 + $0xdb] sm:$0xff]
        %v7251 = vld [vmem:[%s234 + $0xe3] sm:$0xff]
        %v7252 = vld [vmem:[%s234 + $0xeb] sm:$0xff]
        %v7253 = vld [vmem:[%s234 + $0xf3] sm:$0xff]
        %v7254 = vld [vmem:[%s234 + $0xfb] sm:$0xf]
        %v7255 = vld [vmem:[#allocation2 + $0xb8] sm:$0xff]
        %v7257 = vsel %vm290, %v7231, 0
        %v7260 = vsel %vm290, %v7232, 0
        %v7263 = vsel %vm290, %v7233, 0
        %v7266 = vsel %vm290, %v7234, 0
        %v7269 = vsel %vm290, %v7235, 0
        %v7272 = vsel %vm290, %v7236, 0
        %v7275 = vsel %vm290, %v7237, 0
        %v7278 = vsel %vm290, %v7238, 0
        %v7281 = vsel %vm290, %v7239, 0
        %v7284 = vsel %vm290, %v7240, 0
        %v7287 = vsel %vm290, %v7241, 0
        %v7290 = vsel %vm290, %v7242, 0
        %v7293 = vsel %vm290, %v7243, 0
        %v7296 = vsel %vm290, %v7244, 0
        %v7299 = vsel %vm290, %v7245, 0
        %v7302 = vsel %vm290, %v7246, 0
        %v7305 = vsel %vm290, %v7247, 0
        %v7308 = vsel %vm290, %v7248, 0
        %v7311 = vsel %vm290, %v7249, 0
        %v7314 = vsel %vm290, %v7250, 0
        %v7317 = vsel %vm290, %v7251, 0
        %v7320 = vsel %vm290, %v7252, 0
        %v7323 = vsel %vm290, %v7253, 0
        %v7326 = vsel %vm290, %v7254, 0
        %7328 = vmatprep.subr.mxu0 0.0
        %7329 = vmatpush1.msra.mxu0 %v7255
        %7330 = vmatprep.subr.mxu0 0.0
        %7331 = vmatpush1.msra.mxu0 0.0
        %7332 = vmatprep.subr.mxu0 0.0
        %7333 = vmatpush1.msra.mxu0 0.0
        %7334 = vmatprep.subr.mxu0 0.0
        %7335 = vmatpush1.msra.mxu0 0.0
        %7336 = vmatprep.subr.mxu0 0.0
        %7337 = vmatpush1.msra.mxu0 0.0
        %7338 = vmatprep.subr.mxu0 0.0
        %7339 = vmatpush1.msra.mxu0 0.0
        %7340 = vmatprep.subr.mxu0 0.0
        %7341 = vmatpush1.msra.mxu0 0.0
        %7342 = vmatprep.subr.mxu0 0.0
        %7343 = vmatpush1.msra.mxu0 0.0
        %7344 = vmatprep.subr.mxu0 0.0
        %7345 = vmatpush1.msra.mxu0 0.0
        %7346 = vmatprep.subr.mxu0 0.0
        %7347 = vmatpush1.msra.mxu0 0.0
        %7348 = vmatprep.subr.mxu0 0.0
        %7349 = vmatpush1.msra.mxu0 0.0
        %7350 = vmatprep.subr.mxu0 0.0
        %7351 = vmatpush1.msra.mxu0 0.0
        %7352 = vmatprep.subr.mxu0 0.0
        %7353 = vmatpush1.msra.mxu0 0.0
        %7354 = vmatprep.subr.mxu0 0.0
        %7355 = vmatpush1.msra.mxu0 0.0
        %7356 = vmatprep.subr.mxu0 0.0
        %7357 = vmatpush1.msra.mxu0 0.0
        %7358 = vmatprep.subr.mxu0 0.0
        %7359 = vmatpush1.msra.mxu0 0.0
        %7360 = vmatprep.subr.mxu0 0.0
        %7361 = vmatpush1.msra.mxu0 0.0
        %7362 = vmatprep.subr.mxu0 0.0
        %7363 = vmatpush1.msra.mxu0 0.0
        %7364 = vmatprep.subr.mxu0 0.0
        %7365 = vmatpush1.msra.mxu0 0.0
        %7366 = vmatprep.subr.mxu0 0.0
        %7367 = vmatpush1.msra.mxu0 0.0
        %7368 = vmatprep.subr.mxu0 0.0
        %7369 = vmatpush1.msra.mxu0 0.0
        %7370 = vmatprep.subr.mxu0 0.0
        %7371 = vmatpush1.msra.mxu0 0.0
        %7372 = vmatprep.subr.mxu0 0.0
        %7373 = vmatpush1.msra.mxu0 0.0
        %7374 = vmatprep.subr.mxu0 0.0
        %7375 = vmatpush1.msra.mxu0 0.0
        %7376 = vmatprep.subr.mxu0 0.0
        %7377 = vmatpush1.msra.mxu0 0.0
        %7378 = vmatprep.subr.mxu0 0.0
        %7379 = vmatpush1.msra.mxu0 0.0
        %7380 = vmatprep.subr.mxu0 0.0
        %7381 = vmatpush1.msra.mxu0 0.0
        %7382 = vmatprep.subr.mxu0 0.0
        %7383 = vmatpush1.msra.mxu0 0.0
        %7384 = vmatprep.subr.mxu0 0.0
        %7385 = vmatpush1.msra.mxu0 0.0
        %7386 = vmatprep.subr.mxu0 0.0
        %7387 = vmatpush1.msra.mxu0 0.0
        %7388 = vmatprep.subr.mxu0 0.0
        %7389 = vmatpush1.msra.mxu0 0.0
        %7390 = vmatprep.subr.mxu0 0.0
        %7391 = vmatpush1.msra.mxu0 0.0
        %7392 = vmatprep.mubr.f32.mxu0 0.0
        %7393 = vmatmul.mubr.f32.gmra.mrb[0].mxu0 %v7257
        %v7394 = vpop.f32.mrb[0].mxu0
        %v7395 = vadd.f32 0.0, %v7394
        %v7396 = vpop.f32.mrb[0].mxu0
        %7397 = vmatprep.mubr.f32.mxu0 0.0
        %7398 = vmatmul.mubr.f32.gmra.mrb[0].mxu0 %v7260
        %v7399 = vpop.f32.mrb[0].mxu0
        %v7400 = vadd.f32 0.0, %v7399
        %v7401 = vpop.f32.mrb[0].mxu0
        %7402 = vmatprep.mubr.f32.mxu0 0.0
        %7403 = vmatmul.mubr.f32.gmra.mrb[0].mxu0 %v7263
        %v7404 = vpop.f32.mrb[0].mxu0
        %v7405 = vadd.f32 0.0, %v7404
        %v7406 = vpop.f32.mrb[0].mxu0
        %7407 = vmatprep.mubr.f32.mxu0 0.0
        %7408 = vmatmul.mubr.f32.gmra.mrb[0].mxu0 %v7266
        %v7409 = vpop.f32.mrb[0].mxu0
        %v7410 = vadd.f32 0.0, %v7409
        %v7411 = vpop.f32.mrb[0].mxu0
        %7412 = vmatprep.mubr.f32.mxu0 0.0
        %7413 = vmatmul.mubr.f32.gmra.mrb[0].mxu0 %v7269
        %v7414 = vpop.f32.mrb[0].mxu0
        %v7415 = vadd.f32 0.0, %v7414
        %v7416 = vpop.f32.mrb[0].mxu0
        %7417 = vmatprep.mubr.f32.mxu0 0.0
        %7418 = vmatmul.mubr.f32.gmra.mrb[0].mxu0 %v7272
        %v7419 = vpop.f32.mrb[0].mxu0
        %v7420 = vadd.f32 0.0, %v7419
        %v7421 = vpop.f32.mrb[0].mxu0
        %7422 = vmatprep.mubr.f32.mxu0 0.0
        %7423 = vmatmul.mubr.f32.gmra.mrb[0].mxu0 %v7275
        %v7424 = vpop.f32.mrb[0].mxu0
        %v7425 = vadd.f32 0.0, %v7424
        %v7426 = vpop.f32.mrb[0].mxu0
        %7427 = vmatprep.mubr.f32.mxu0 0.0
        %7428 = vmatmul.mubr.f32.gmra.mrb[0].mxu0 %v7278
        %v7429 = vpop.f32.mrb[0].mxu0
        %v7430 = vadd.f32 0.0, %v7429
        %v7431 = vpop.f32.mrb[0].mxu0
        %7432 = vmatprep.mubr.f32.mxu0 0.0
        %7433 = vmatmul.mubr.f32.gmra.mrb[0].mxu0 %v7281
        %v7434 = vpop.f32.mrb[0].mxu0
        %v7435 = vadd.f32 0.0, %v7434
        %v7436 = vpop.f32.mrb[0].mxu0
        %7437 = vmatprep.mubr.f32.mxu0 0.0
        %7438 = vmatmul.mubr.f32.gmra.mrb[0].mxu0 %v7284
        %v7439 = vpop.f32.mrb[0].mxu0
        %v7440 = vadd.f32 0.0, %v7439
        %v7441 = vpop.f32.mrb[0].mxu0
        %7442 = vmatprep.mubr.f32.mxu0 0.0
        %7443 = vmatmul.mubr.f32.gmra.mrb[0].mxu0 %v7287
        %v7444 = vpop.f32.mrb[0].mxu0
        %v7445 = vadd.f32 0.0, %v7444
        %v7446 = vpop.f32.mrb[0].mxu0
        %7447 = vmatprep.mubr.f32.mxu0 0.0
        %7448 = vmatmul.mubr.f32.gmra.mrb[0].mxu0 %v7290
        %v7449 = vpop.f32.mrb[0].mxu0
        %v7450 = vadd.f32 0.0, %v7449
        %v7451 = vpop.f32.mrb[0].mxu0
        %7452 = vmatprep.mubr.f32.mxu0 0.0
        %7453 = vmatmul.mubr.f32.gmra.mrb[0].mxu0 %v7293
        %v7454 = vpop.f32.mrb[0].mxu0
        %v7455 = vadd.f32 0.0, %v7454
        %v7456 = vpop.f32.mrb[0].mxu0
        %7457 = vmatprep.mubr.f32.mxu0 0.0
        %7458 = vmatmul.mubr.f32.gmra.mrb[0].mxu0 %v7296
        %v7459 = vpop.f32.mrb[0].mxu0
        %v7460 = vadd.f32 0.0, %v7459
        %v7461 = vpop.f32.mrb[0].mxu0
        %7462 = vmatprep.mubr.f32.mxu0 0.0
        %7463 = vmatmul.mubr.f32.gmra.mrb[0].mxu0 %v7299
        %v7464 = vpop.f32.mrb[0].mxu0
        %v7465 = vadd.f32 0.0, %v7464
        %v7466 = vpop.f32.mrb[0].mxu0
        %7467 = vmatprep.mubr.f32.mxu0 0.0
        %7468 = vmatmul.mubr.f32.gmra.mrb[0].mxu0 %v7302
        %v7469 = vpop.f32.mrb[0].mxu0
        %v7470 = vadd.f32 0.0, %v7469
        %v7471 = vpop.f32.mrb[0].mxu0
        %7472 = vmatprep.mubr.f32.mxu0 0.0
        %7473 = vmatmul.mubr.f32.gmra.mrb[0].mxu0 %v7305
        %v7474 = vpop.f32.mrb[0].mxu0
        %v7475 = vadd.f32 0.0, %v7474
        %v7476 = vpop.f32.mrb[0].mxu0
        %7477 = vmatprep.mubr.f32.mxu0 0.0
        %7478 = vmatmul.mubr.f32.gmra.mrb[0].mxu0 %v7308
        %v7479 = vpop.f32.mrb[0].mxu0
        %v7480 = vadd.f32 0.0, %v7479
        %v7481 = vpop.f32.mrb[0].mxu0
        %7482 = vmatprep.mubr.f32.mxu0 0.0
        %7483 = vmatmul.mubr.f32.gmra.mrb[0].mxu0 %v7311
        %v7484 = vpop.f32.mrb[0].mxu0
        %v7485 = vadd.f32 0.0, %v7484
        %v7486 = vpop.f32.mrb[0].mxu0
        %7487 = vmatprep.mubr.f32.mxu0 0.0
        %7488 = vmatmul.mubr.f32.gmra.mrb[0].mxu0 %v7314
        %v7489 = vpop.f32.mrb[0].mxu0
        %v7490 = vadd.f32 0.0, %v7489
        %v7491 = vpop.f32.mrb[0].mxu0
        %7492 = vmatprep.mubr.f32.mxu0 0.0
        %7493 = vmatmul.mubr.f32.gmra.mrb[0].mxu0 %v7317
        %v7494 = vpop.f32.mrb[0].mxu0
        %v7495 = vadd.f32 0.0, %v7494
        %v7496 = vpop.f32.mrb[0].mxu0
        %7497 = vmatprep.mubr.f32.mxu0 0.0
        %7498 = vmatmul.mubr.f32.gmra.mrb[0].mxu0 %v7320
        %v7499 = vpop.f32.mrb[0].mxu0
        %v7500 = vadd.f32 0.0, %v7499
        %v7501 = vpop.f32.mrb[0].mxu0
        %7502 = vmatprep.mubr.f32.mxu0 0.0
        %7503 = vmatmul.mubr.f32.gmra.mrb[0].mxu0 %v7323
        %v7504 = vpop.f32.mrb[0].mxu0
        %v7505 = vadd.f32 0.0, %v7504
        %v7506 = vpop.f32.mrb[0].mxu0
        %7507 = vmatprep.mubr.f32.mxu0 0.0
        %7508 = vmatmul.mubr.f32.gmra.mrb[0].mxu0 %v7326
        %v7509 = vpop.f32.mrb[0].mxu0
        %v7510 = vadd.f32 0.0, %v7509
        %v7511 = vpop.f32.mrb[0].mxu0
        %7512 = vdwg.mxu0
        %v7513 = vadd.f32 %v7207, %v7395
        %v7514 = vadd.f32 %v7208, %v7400
        %v7515 = vadd.f32 %v7209, %v7405
        %v7516 = vadd.f32 %v7210, %v7410
        %v7517 = vadd.f32 %v7211, %v7415
        %v7518 = vadd.f32 %v7212, %v7420
        %v7519 = vadd.f32 %v7213, %v7425
        %v7520 = vadd.f32 %v7214, %v7430
        %v7521 = vadd.f32 %v7215, %v7435
        %v7522 = vadd.f32 %v7216, %v7440
        %v7523 = vadd.f32 %v7217, %v7445
        %v7524 = vadd.f32 %v7218, %v7450
        %v7525 = vadd.f32 %v7219, %v7455
        %v7526 = vadd.f32 %v7220, %v7460
        %v7527 = vadd.f32 %v7221, %v7465
        %v7528 = vadd.f32 %v7222, %v7470
        %v7529 = vadd.f32 %v7223, %v7475
        %v7530 = vadd.f32 %v7224, %v7480
        %v7531 = vadd.f32 %v7225, %v7485
        %v7532 = vadd.f32 %v7226, %v7490
        %v7533 = vadd.f32 %v7227, %v7495
        %v7534 = vadd.f32 %v7228, %v7500
        %v7535 = vadd.f32 %v7229, %v7505
        %v7536 = vadd.f32 %v7230, %v7510
        %v7537 = vld [vmem:[%s234 + $0x44] sm:$0xff]
        %v7538 = vld [vmem:[%s234 + $0x4c] sm:$0xff]
        %v7539 = vld [vmem:[%s234 + $0x54] sm:$0xff]
        %v7540 = vld [vmem:[%s234 + $0x5c] sm:$0xff]
        %v7541 = vld [vmem:[%s234 + $0x64] sm:$0xff]
        %v7542 = vld [vmem:[%s234 + $0x6c] sm:$0xff]
        %v7543 = vld [vmem:[%s234 + $0x74] sm:$0xff]
        %v7544 = vld [vmem:[%s234 + $0x7c] sm:$0xff]
        %v7545 = vld [vmem:[%s234 + $0x84] sm:$0xff]
        %v7546 = vld [vmem:[%s234 + $0x8c] sm:$0xff]
        %v7547 = vld [vmem:[%s234 + $0x94] sm:$0xff]
        %v7548 = vld [vmem:[%s234 + $0x9c] sm:$0xff]
        %v7549 = vld [vmem:[%s234 + $0xa4] sm:$0xff]
        %v7550 = vld [vmem:[%s234 + $0xac] sm:$0xff]
        %v7551 = vld [vmem:[%s234 + $0xb4] sm:$0xff]
        %v7552 = vld [vmem:[%s234 + $0xbc] sm:$0xff]
        %v7553 = vld [vmem:[%s234 + $0xc4] sm:$0xff]
        %v7554 = vld [vmem:[%s234 + $0xcc] sm:$0xff]
        %v7555 = vld [vmem:[%s234 + $0xd4] sm:$0xff]
        %v7556 = vld [vmem:[%s234 + $0xdc] sm:$0xff]
        %v7557 = vld [vmem:[%s234 + $0xe4] sm:$0xff]
        %v7558 = vld [vmem:[%s234 + $0xec] sm:$0xff]
        %v7559 = vld [vmem:[%s234 + $0xf4] sm:$0xff]
        %v7560 = vld [vmem:[%s234 + $0xfc] sm:$0xf]
        %v7561 = vld [vmem:[#allocation2 + $0xc0] sm:$0xff]
        %v7563 = vsel %vm290, %v7537, 0
        %v7566 = vsel %vm290, %v7538, 0
        %v7569 = vsel %vm290, %v7539, 0
        %v7572 = vsel %vm290, %v7540, 0
        %v7575 = vsel %vm290, %v7541, 0
        %v7578 = vsel %vm290, %v7542, 0
        %v7581 = vsel %vm290, %v7543, 0
        %v7584 = vsel %vm290, %v7544, 0
        %v7587 = vsel %vm290, %v7545, 0
        %v7590 = vsel %vm290, %v7546, 0
        %v7593 = vsel %vm290, %v7547, 0
        %v7596 = vsel %vm290, %v7548, 0
        %v7599 = vsel %vm290, %v7549, 0
        %v7602 = vsel %vm290, %v7550, 0
        %v7605 = vsel %vm290, %v7551, 0
        %v7608 = vsel %vm290, %v7552, 0
        %v7611 = vsel %vm290, %v7553, 0
        %v7614 = vsel %vm290, %v7554, 0
        %v7617 = vsel %vm290, %v7555, 0
        %v7620 = vsel %vm290, %v7556, 0
        %v7623 = vsel %vm290, %v7557, 0
        %v7626 = vsel %vm290, %v7558, 0
        %v7629 = vsel %vm290, %v7559, 0
        %v7632 = vsel %vm290, %v7560, 0
        %7634 = vmatprep.subr.mxu0 0.0
        %7635 = vmatpush1.msra.mxu0 %v7561
        %7636 = vmatprep.subr.mxu0 0.0
        %7637 = vmatpush1.msra.mxu0 0.0
        %7638 = vmatprep.subr.mxu0 0.0
        %7639 = vmatpush1.msra.mxu0 0.0
        %7640 = vmatprep.subr.mxu0 0.0
        %7641 = vmatpush1.msra.mxu0 0.0
        %7642 = vmatprep.subr.mxu0 0.0
        %7643 = vmatpush1.msra.mxu0 0.0
        %7644 = vmatprep.subr.mxu0 0.0
        %7645 = vmatpush1.msra.mxu0 0.0
        %7646 = vmatprep.subr.mxu0 0.0
        %7647 = vmatpush1.msra.mxu0 0.0
        %7648 = vmatprep.subr.mxu0 0.0
        %7649 = vmatpush1.msra.mxu0 0.0
        %7650 = vmatprep.subr.mxu0 0.0
        %7651 = vmatpush1.msra.mxu0 0.0
        %7652 = vmatprep.subr.mxu0 0.0
        %7653 = vmatpush1.msra.mxu0 0.0
        %7654 = vmatprep.subr.mxu0 0.0
        %7655 = vmatpush1.msra.mxu0 0.0
        %7656 = vmatprep.subr.mxu0 0.0
        %7657 = vmatpush1.msra.mxu0 0.0
        %7658 = vmatprep.subr.mxu0 0.0
        %7659 = vmatpush1.msra.mxu0 0.0
        %7660 = vmatprep.subr.mxu0 0.0
        %7661 = vmatpush1.msra.mxu0 0.0
        %7662 = vmatprep.subr.mxu0 0.0
        %7663 = vmatpush1.msra.mxu0 0.0
        %7664 = vmatprep.subr.mxu0 0.0
        %7665 = vmatpush1.msra.mxu0 0.0
        %7666 = vmatprep.subr.mxu0 0.0
        %7667 = vmatpush1.msra.mxu0 0.0
        %7668 = vmatprep.subr.mxu0 0.0
        %7669 = vmatpush1.msra.mxu0 0.0
        %7670 = vmatprep.subr.mxu0 0.0
        %7671 = vmatpush1.msra.mxu0 0.0
        %7672 = vmatprep.subr.mxu0 0.0
        %7673 = vmatpush1.msra.mxu0 0.0
        %7674 = vmatprep.subr.mxu0 0.0
        %7675 = vmatpush1.msra.mxu0 0.0
        %7676 = vmatprep.subr.mxu0 0.0
        %7677 = vmatpush1.msra.mxu0 0.0
        %7678 = vmatprep.subr.mxu0 0.0
        %7679 = vmatpush1.msra.mxu0 0.0
        %7680 = vmatprep.subr.mxu0 0.0
        %7681 = vmatpush1.msra.mxu0 0.0
        %7682 = vmatprep.subr.mxu0 0.0
        %7683 = vmatpush1.msra.mxu0 0.0
        %7684 = vmatprep.subr.mxu0 0.0
        %7685 = vmatpush1.msra.mxu0 0.0
        %7686 = vmatprep.subr.mxu0 0.0
        %7687 = vmatpush1.msra.mxu0 0.0
        %7688 = vmatprep.subr.mxu0 0.0
        %7689 = vmatpush1.msra.mxu0 0.0
        %7690 = vmatprep.subr.mxu0 0.0
        %7691 = vmatpush1.msra.mxu0 0.0
        %7692 = vmatprep.subr.mxu0 0.0
        %7693 = vmatpush1.msra.mxu0 0.0
        %7694 = vmatprep.subr.mxu0 0.0
        %7695 = vmatpush1.msra.mxu0 0.0
        %7696 = vmatprep.subr.mxu0 0.0
        %7697 = vmatpush1.msra.mxu0 0.0
        %7698 = vmatprep.mubr.f32.mxu0 0.0
        %7699 = vmatmul.mubr.f32.gmra.mrb[0].mxu0 %v7563
        %v7700 = vpop.f32.mrb[0].mxu0
        %v7701 = vadd.f32 0.0, %v7700
        %v7702 = vpop.f32.mrb[0].mxu0
        %7703 = vmatprep.mubr.f32.mxu0 0.0
        %7704 = vmatmul.mubr.f32.gmra.mrb[0].mxu0 %v7566
        %v7705 = vpop.f32.mrb[0].mxu0
        %v7706 = vadd.f32 0.0, %v7705
        %v7707 = vpop.f32.mrb[0].mxu0
        %7708 = vmatprep.mubr.f32.mxu0 0.0
        %7709 = vmatmul.mubr.f32.gmra.mrb[0].mxu0 %v7569
        %v7710 = vpop.f32.mrb[0].mxu0
        %v7711 = vadd.f32 0.0, %v7710
        %v7712 = vpop.f32.mrb[0].mxu0
        %7713 = vmatprep.mubr.f32.mxu0 0.0
        %7714 = vmatmul.mubr.f32.gmra.mrb[0].mxu0 %v7572
        %v7715 = vpop.f32.mrb[0].mxu0
        %v7716 = vadd.f32 0.0, %v7715
        %v7717 = vpop.f32.mrb[0].mxu0
        %7718 = vmatprep.mubr.f32.mxu0 0.0
        %7719 = vmatmul.mubr.f32.gmra.mrb[0].mxu0 %v7575
        %v7720 = vpop.f32.mrb[0].mxu0
        %v7721 = vadd.f32 0.0, %v7720
        %v7722 = vpop.f32.mrb[0].mxu0
        %7723 = vmatprep.mubr.f32.mxu0 0.0
        %7724 = vmatmul.mubr.f32.gmra.mrb[0].mxu0 %v7578
        %v7725 = vpop.f32.mrb[0].mxu0
        %v7726 = vadd.f32 0.0, %v7725
        %v7727 = vpop.f32.mrb[0].mxu0
        %7728 = vmatprep.mubr.f32.mxu0 0.0
        %7729 = vmatmul.mubr.f32.gmra.mrb[0].mxu0 %v7581
        %v7730 = vpop.f32.mrb[0].mxu0
        %v7731 = vadd.f32 0.0, %v7730
        %v7732 = vpop.f32.mrb[0].mxu0
        %7733 = vmatprep.mubr.f32.mxu0 0.0
        %7734 = vmatmul.mubr.f32.gmra.mrb[0].mxu0 %v7584
        %v7735 = vpop.f32.mrb[0].mxu0
        %v7736 = vadd.f32 0.0, %v7735
        %v7737 = vpop.f32.mrb[0].mxu0
        %7738 = vmatprep.mubr.f32.mxu0 0.0
        %7739 = vmatmul.mubr.f32.gmra.mrb[0].mxu0 %v7587
        %v7740 = vpop.f32.mrb[0].mxu0
        %v7741 = vadd.f32 0.0, %v7740
        %v7742 = vpop.f32.mrb[0].mxu0
        %7743 = vmatprep.mubr.f32.mxu0 0.0
        %7744 = vmatmul.mubr.f32.gmra.mrb[0].mxu0 %v7590
        %v7745 = vpop.f32.mrb[0].mxu0
        %v7746 = vadd.f32 0.0, %v7745
        %v7747 = vpop.f32.mrb[0].mxu0
        %7748 = vmatprep.mubr.f32.mxu0 0.0
        %7749 = vmatmul.mubr.f32.gmra.mrb[0].mxu0 %v7593
        %v7750 = vpop.f32.mrb[0].mxu0
        %v7751 = vadd.f32 0.0, %v7750
        %v7752 = vpop.f32.mrb[0].mxu0
        %7753 = vmatprep.mubr.f32.mxu0 0.0
        %7754 = vmatmul.mubr.f32.gmra.mrb[0].mxu0 %v7596
        %v7755 = vpop.f32.mrb[0].mxu0
        %v7756 = vadd.f32 0.0, %v7755
        %v7757 = vpop.f32.mrb[0].mxu0
        %7758 = vmatprep.mubr.f32.mxu0 0.0
        %7759 = vmatmul.mubr.f32.gmra.mrb[0].mxu0 %v7599
        %v7760 = vpop.f32.mrb[0].mxu0
        %v7761 = vadd.f32 0.0, %v7760
        %v7762 = vpop.f32.mrb[0].mxu0
        %7763 = vmatprep.mubr.f32.mxu0 0.0
        %7764 = vmatmul.mubr.f32.gmra.mrb[0].mxu0 %v7602
        %v7765 = vpop.f32.mrb[0].mxu0
        %v7766 = vadd.f32 0.0, %v7765
        %v7767 = vpop.f32.mrb[0].mxu0
        %7768 = vmatprep.mubr.f32.mxu0 0.0
        %7769 = vmatmul.mubr.f32.gmra.mrb[0].mxu0 %v7605
        %v7770 = vpop.f32.mrb[0].mxu0
        %v7771 = vadd.f32 0.0, %v7770
        %v7772 = vpop.f32.mrb[0].mxu0
        %7773 = vmatprep.mubr.f32.mxu0 0.0
        %7774 = vmatmul.mubr.f32.gmra.mrb[0].mxu0 %v7608
        %v7775 = vpop.f32.mrb[0].mxu0
        %v7776 = vadd.f32 0.0, %v7775
        %v7777 = vpop.f32.mrb[0].mxu0
        %7778 = vmatprep.mubr.f32.mxu0 0.0
        %7779 = vmatmul.mubr.f32.gmra.mrb[0].mxu0 %v7611
        %v7780 = vpop.f32.mrb[0].mxu0
        %v7781 = vadd.f32 0.0, %v7780
        %v7782 = vpop.f32.mrb[0].mxu0
        %7783 = vmatprep.mubr.f32.mxu0 0.0
        %7784 = vmatmul.mubr.f32.gmra.mrb[0].mxu0 %v7614
        %v7785 = vpop.f32.mrb[0].mxu0
        %v7786 = vadd.f32 0.0, %v7785
        %v7787 = vpop.f32.mrb[0].mxu0
        %7788 = vmatprep.mubr.f32.mxu0 0.0
        %7789 = vmatmul.mubr.f32.gmra.mrb[0].mxu0 %v7617
        %v7790 = vpop.f32.mrb[0].mxu0
        %v7791 = vadd.f32 0.0, %v7790
        %v7792 = vpop.f32.mrb[0].mxu0
        %7793 = vmatprep.mubr.f32.mxu0 0.0
        %7794 = vmatmul.mubr.f32.gmra.mrb[0].mxu0 %v7620
        %v7795 = vpop.f32.mrb[0].mxu0
        %v7796 = vadd.f32 0.0, %v7795
        %v7797 = vpop.f32.mrb[0].mxu0
        %7798 = vmatprep.mubr.f32.mxu0 0.0
        %7799 = vmatmul.mubr.f32.gmra.mrb[0].mxu0 %v7623
        %v7800 = vpop.f32.mrb[0].mxu0
        %v7801 = vadd.f32 0.0, %v7800
        %v7802 = vpop.f32.mrb[0].mxu0
        %7803 = vmatprep.mubr.f32.mxu0 0.0
        %7804 = vmatmul.mubr.f32.gmra.mrb[0].mxu0 %v7626
        %v7805 = vpop.f32.mrb[0].mxu0
        %v7806 = vadd.f32 0.0, %v7805
        %v7807 = vpop.f32.mrb[0].mxu0
        %7808 = vmatprep.mubr.f32.mxu0 0.0
        %7809 = vmatmul.mubr.f32.gmra.mrb[0].mxu0 %v7629
        %v7810 = vpop.f32.mrb[0].mxu0
        %v7811 = vadd.f32 0.0, %v7810
        %v7812 = vpop.f32.mrb[0].mxu0
        %7813 = vmatprep.mubr.f32.mxu0 0.0
        %7814 = vmatmul.mubr.f32.gmra.mrb[0].mxu0 %v7632
        %v7815 = vpop.f32.mrb[0].mxu0
        %v7816 = vadd.f32 0.0, %v7815
        %v7817 = vpop.f32.mrb[0].mxu0
        %7818 = vdwg.mxu0
        %v7819 = vadd.f32 %v7513, %v7701
        %v7820 = vadd.f32 %v7514, %v7706
        %v7821 = vadd.f32 %v7515, %v7711
        %v7822 = vadd.f32 %v7516, %v7716
        %v7823 = vadd.f32 %v7517, %v7721
        %v7824 = vadd.f32 %v7518, %v7726
        %v7825 = vadd.f32 %v7519, %v7731
        %v7826 = vadd.f32 %v7520, %v7736
        %v7827 = vadd.f32 %v7521, %v7741
        %v7828 = vadd.f32 %v7522, %v7746
        %v7829 = vadd.f32 %v7523, %v7751
        %v7830 = vadd.f32 %v7524, %v7756
        %v7831 = vadd.f32 %v7525, %v7761
        %v7832 = vadd.f32 %v7526, %v7766
        %v7833 = vadd.f32 %v7527, %v7771
        %v7834 = vadd.f32 %v7528, %v7776
        %v7835 = vadd.f32 %v7529, %v7781
        %v7836 = vadd.f32 %v7530, %v7786
        %v7837 = vadd.f32 %v7531, %v7791
        %v7838 = vadd.f32 %v7532, %v7796
        %v7839 = vadd.f32 %v7533, %v7801
        %v7840 = vadd.f32 %v7534, %v7806
        %v7841 = vadd.f32 %v7535, %v7811
        %v7842 = vadd.f32 %v7536, %v7816
        %v7843 = vld [vmem:[#allocation4] sm:$0x1]
        %v7845 = vlaneseq
        %v7846 = vshrl.u32 %v7845, 7
        %v7847 = vsub.s32 0, %v7846
        %v7848 = vrot.slane %v7843, %v7847
        %v7850 = vadd.f32 %v7819, %v7848
        %v7851 = vadd.f32 %v7820, %v7848
        %v7852 = vadd.f32 %v7821, %v7848
        %v7853 = vadd.f32 %v7822, %v7848
        %v7854 = vadd.f32 %v7823, %v7848
        %v7855 = vadd.f32 %v7824, %v7848
        %v7856 = vadd.f32 %v7825, %v7848
        %v7857 = vadd.f32 %v7826, %v7848
        %v7858 = vadd.f32 %v7827, %v7848
        %v7859 = vadd.f32 %v7828, %v7848
        %v7860 = vadd.f32 %v7829, %v7848
        %v7861 = vadd.f32 %v7830, %v7848
        %v7862 = vadd.f32 %v7831, %v7848
        %v7863 = vadd.f32 %v7832, %v7848
        %v7864 = vadd.f32 %v7833, %v7848
        %v7865 = vadd.f32 %v7834, %v7848
        %v7866 = vadd.f32 %v7835, %v7848
        %v7867 = vadd.f32 %v7836, %v7848
        %v7868 = vadd.f32 %v7837, %v7848
        %v7869 = vadd.f32 %v7838, %v7848
        %v7870 = vadd.f32 %v7839, %v7848
        %v7871 = vadd.f32 %v7840, %v7848
        %v7872 = vadd.f32 %v7841, %v7848
        %v7873 = vadd.f32 %v7842, %v7848
        %v7874 = vmax.f32 %v7850, 0.0
        %v7875 = vmax.f32 %v7851, 0.0
        %v7876 = vmax.f32 %v7852, 0.0
        %v7877 = vmax.f32 %v7853, 0.0
        %v7878 = vmax.f32 %v7854, 0.0
        %v7879 = vmax.f32 %v7855, 0.0
        %v7880 = vmax.f32 %v7856, 0.0
        %v7881 = vmax.f32 %v7857, 0.0
        %v7882 = vmax.f32 %v7858, 0.0
        %v7883 = vmax.f32 %v7859, 0.0
        %v7884 = vmax.f32 %v7860, 0.0
        %v7885 = vmax.f32 %v7861, 0.0
        %v7886 = vmax.f32 %v7862, 0.0
        %v7887 = vmax.f32 %v7863, 0.0
        %v7888 = vmax.f32 %v7864, 0.0
        %v7889 = vmax.f32 %v7865, 0.0
        %v7890 = vmax.f32 %v7866, 0.0
        %v7891 = vmax.f32 %v7867, 0.0
        %v7892 = vmax.f32 %v7868, 0.0
        %v7893 = vmax.f32 %v7869, 0.0
        %v7894 = vmax.f32 %v7870, 0.0
        %v7895 = vmax.f32 %v7871, 0.0
        %v7896 = vmax.f32 %v7872, 0.0
        %v7897 = vmax.f32 %v7873, 0.0
        %vm7922 = vcmask 1046528
        %v7923 = vrot.slane %v7874, 1
        %v7924 = vrot.slane %v7875, 1
        %v7925 = vsel %vm7922, %v7923, %v7924
        %v7926 = vrot.slane %v7876, 1
        %v7927 = vsel %vm7922, %v7924, %v7926
        %v7928 = vrot.slane %v7877, 1
        %v7929 = vsel %vm7922, %v7926, %v7928
        %v7930 = vrot.slane %v7878, 1
        %v7931 = vsel %vm7922, %v7928, %v7930
        %v7932 = vrot.slane %v7879, 1
        %v7933 = vsel %vm7922, %v7930, %v7932
        %v7934 = vrot.slane %v7880, 1
        %v7935 = vsel %vm7922, %v7932, %v7934
        %v7936 = vrot.slane %v7881, 1
        %v7937 = vsel %vm7922, %v7934, %v7936
        %v7938 = vrot.slane %v7882, 1
        %v7939 = vsel %vm7922, %v7936, %v7938
        %v7940 = vrot.slane %v7883, 1
        %v7941 = vsel %vm7922, %v7938, %v7940
        %v7942 = vrot.slane %v7884, 1
        %v7943 = vsel %vm7922, %v7940, %v7942
        %v7944 = vrot.slane %v7885, 1
        %v7945 = vsel %vm7922, %v7942, %v7944
        %v7946 = vrot.slane %v7886, 1
        %v7947 = vsel %vm7922, %v7944, %v7946
        %v7948 = vrot.slane %v7887, 1
        %v7949 = vsel %vm7922, %v7946, %v7948
        %v7950 = vrot.slane %v7888, 1
        %v7951 = vsel %vm7922, %v7948, %v7950
        %v7952 = vrot.slane %v7889, 1
        %v7953 = vsel %vm7922, %v7950, %v7952
        %v7954 = vrot.slane %v7890, 1
        %v7955 = vsel %vm7922, %v7952, %v7954
        %v7956 = vrot.slane %v7891, 1
        %v7957 = vsel %vm7922, %v7954, %v7956
        %v7958 = vrot.slane %v7892, 1
        %v7959 = vsel %vm7922, %v7956, %v7958
        %v7960 = vrot.slane %v7893, 1
        %v7961 = vsel %vm7922, %v7958, %v7960
        %v7962 = vrot.slane %v7894, 1
        %v7963 = vsel %vm7922, %v7960, %v7962
        %v7964 = vrot.slane %v7895, 1
        %v7965 = vsel %vm7922, %v7962, %v7964
        %v7966 = vrot.slane %v7896, 1
        %v7967 = vsel %vm7922, %v7964, %v7966
        %v7968 = vrot.slane %v7897, 1
        %v7969 = vsel %vm7922, %v7966, %v7968
        %v7994 = vmax.f32 %v7874, %v7925
        %v7995 = vmax.f32 %v7875, %v7927
        %v7996 = vmax.f32 %v7876, %v7929
        %v7997 = vmax.f32 %v7877, %v7931
        %v7998 = vmax.f32 %v7878, %v7933
        %v7999 = vmax.f32 %v7879, %v7935
        %v8000 = vmax.f32 %v7880, %v7937
        %v8001 = vmax.f32 %v7881, %v7939
        %v8002 = vmax.f32 %v7882, %v7941
        %v8003 = vmax.f32 %v7883, %v7943
        %v8004 = vmax.f32 %v7884, %v7945
        %v8005 = vmax.f32 %v7885, %v7947
        %v8006 = vmax.f32 %v7886, %v7949
        %v8007 = vmax.f32 %v7887, %v7951
        %v8008 = vmax.f32 %v7888, %v7953
        %v8009 = vmax.f32 %v7889, %v7955
        %v8010 = vmax.f32 %v7890, %v7957
        %v8011 = vmax.f32 %v7891, %v7959
        %v8012 = vmax.f32 %v7892, %v7961
        %v8013 = vmax.f32 %v7893, %v7963
        %v8014 = vmax.f32 %v7894, %v7965
        %v8015 = vmax.f32 %v7895, %v7967
        %v8016 = vmax.f32 %v7896, %v7969
        %v8017 = vmax.f32 %v7897, %v7968
        %v8018 = vmax.f32 %v7994, %v7996
        %v8019 = vmax.f32 %v7995, %v7997
        %v8020 = vmax.f32 %v7996, %v7998
        %v8021 = vmax.f32 %v7997, %v7999
        %v8022 = vmax.f32 %v7998, %v8000
        %v8023 = vmax.f32 %v7999, %v8001
        %v8024 = vmax.f32 %v8000, %v8002
        %v8025 = vmax.f32 %v8001, %v8003
        %v8026 = vmax.f32 %v8002, %v8004
        %v8027 = vmax.f32 %v8003, %v8005
        %v8028 = vmax.f32 %v8004, %v8006
        %v8029 = vmax.f32 %v8005, %v8007
        %v8030 = vmax.f32 %v8006, %v8008
        %v8031 = vmax.f32 %v8007, %v8009
        %v8032 = vmax.f32 %v8008, %v8010
        %v8033 = vmax.f32 %v8009, %v8011
        %v8034 = vmax.f32 %v8010, %v8012
        %v8035 = vmax.f32 %v8011, %v8013
        %v8036 = vmax.f32 %v8012, %v8014
        %v8037 = vmax.f32 %v8013, %v8015
        %v8038 = vmax.f32 %v8014, %v8016
        %v8039 = vmax.f32 %v8015, %v8017
        %v8040 = vld [vmem:[#allocation6] sm:$0xff]
        %v8041 = vld [vmem:[#allocation6 + $0x8] sm:$0xff]
        %v8042 = vld [vmem:[#allocation6 + $0x10] sm:$0xff]
        %v8043 = vld [vmem:[#allocation6 + $0x18] sm:$0xff]
        %v8044 = vld [vmem:[#allocation6 + $0x20] sm:$0xff]
        %v8045 = vld [vmem:[#allocation6 + $0x28] sm:$0xff]
        %v8046 = vld [vmem:[#allocation6 + $0x30] sm:$0xff]
        %v8047 = vld [vmem:[#allocation6 + $0x38] sm:$0xff]
        %v8048 = vld [vmem:[#allocation6 + $0x40] sm:$0xf]
        %v8049 = vld [vmem:[#allocation6 + $0x48] sm:$0xf]
        %vm8050 = vcmask 351232
        %v8052 = vsel %vm8050, %v8041, 0
        %v8055 = vsel %vm8050, %v8043, 0
        %v8058 = vsel %vm8050, %v8045, 0
        %v8061 = vsel %vm8050, %v8047, 0
        %v8064 = vsel %vm8050, %v8049, 0
        %vm8066 = vcmask 1042432
        %v8068 = vsel %vm8066, %v8039, 0
        %8070 = vmatprep.subr.mxu0 0.0
        %8071 = vmatpush1.msra.mxu0 %v8018
        %8072 = vmatprep.subr.mxu0 0.0
        %8073 = vmatpush1.msra.mxu0 %v8019
        %8074 = vmatprep.subr.mxu0 0.0
        %8075 = vmatpush1.msra.mxu0 %v8020
        %8076 = vmatprep.subr.mxu0 0.0
        %8077 = vmatpush1.msra.mxu0 %v8021
        %8078 = vmatprep.subr.mxu0 0.0
        %8079 = vmatpush1.msra.mxu0 %v8022
        %8080 = vmatprep.subr.mxu0 0.0
        %8081 = vmatpush1.msra.mxu0 %v8023
        %8082 = vmatprep.subr.mxu0 0.0
        %8083 = vmatpush1.msra.mxu0 %v8024
        %8084 = vmatprep.subr.mxu0 0.0
        %8085 = vmatpush1.msra.mxu0 %v8025
        %8086 = vmatprep.subr.mxu0 0.0
        %8087 = vmatpush1.msra.mxu0 %v8026
        %8088 = vmatprep.subr.mxu0 0.0
        %8089 = vmatpush1.msra.mxu0 %v8027
        %8090 = vmatprep.subr.mxu0 0.0
        %8091 = vmatpush1.msra.mxu0 %v8028
        %8092 = vmatprep.subr.mxu0 0.0
        %8093 = vmatpush1.msra.mxu0 %v8029
        %8094 = vmatprep.subr.mxu0 0.0
        %8095 = vmatpush1.msra.mxu0 %v8030
        %8096 = vmatprep.subr.mxu0 0.0
        %8097 = vmatpush1.msra.mxu0 %v8031
        %8098 = vmatprep.subr.mxu0 0.0
        %8099 = vmatpush1.msra.mxu0 %v8032
        %8100 = vmatprep.subr.mxu0 0.0
        %8101 = vmatpush1.msra.mxu0 %v8033
        %8102 = vmatprep.subr.mxu0 0.0
        %8103 = vmatpush1.msra.mxu0 %v8034
        %8104 = vmatprep.subr.mxu0 0.0
        %8105 = vmatpush1.msra.mxu0 %v8035
        %8106 = vmatprep.subr.mxu0 0.0
        %8107 = vmatpush1.msra.mxu0 %v8036
        %8108 = vmatprep.subr.mxu0 0.0
        %8109 = vmatpush1.msra.mxu0 %v8037
        %8110 = vmatprep.subr.mxu0 0.0
        %8111 = vmatpush1.msra.mxu0 %v8038
        %8112 = vmatprep.subr.mxu0 0.0
        %8113 = vmatpush1.msra.mxu0 %v8068
        %8114 = vmatprep.subr.mxu0 0.0
        %8115 = vmatpush1.msra.mxu0 0.0
        %8116 = vmatprep.subr.mxu0 0.0
        %8117 = vmatpush1.msra.mxu0 0.0
        %8118 = vmatprep.subr.mxu0 0.0
        %8119 = vmatpush1.msra.mxu0 0.0
        %8120 = vmatprep.subr.mxu0 0.0
        %8121 = vmatpush1.msra.mxu0 0.0
        %8122 = vmatprep.subr.mxu0 0.0
        %8123 = vmatpush1.msra.mxu0 0.0
        %8124 = vmatprep.subr.mxu0 0.0
        %8125 = vmatpush1.msra.mxu0 0.0
        %8126 = vmatprep.subr.mxu0 0.0
        %8127 = vmatpush1.msra.mxu0 0.0
        %8128 = vmatprep.subr.mxu0 0.0
        %8129 = vmatpush1.msra.mxu0 0.0
        %8130 = vmatprep.subr.mxu0 0.0
        %8131 = vmatpush1.msra.mxu0 0.0
        %8132 = vmatprep.subr.mxu0 0.0
        %8133 = vmatpush1.msra.mxu0 0.0
        %8134 = vmatprep.mubr.f32.mxu0 %v8052
        %8135 = vmatmul.mubr.f32.gmra.mrb[0].mxu0 %v8040
        %v8136 = vpop.f32.mrb[0].mxu0
        %v8137 = vadd.f32 0.0, %v8136
        %v8138 = vpop.f32.mrb[0].mxu0
        %8139 = vmatprep.mubr.f32.mxu0 %v8055
        %8140 = vmatmul.mubr.f32.gmra.mrb[0].mxu0 %v8042
        %v8141 = vpop.f32.mrb[0].mxu0
        %v8142 = vadd.f32 0.0, %v8141
        %v8143 = vpop.f32.mrb[0].mxu0
        %8144 = vmatprep.mubr.f32.mxu0 %v8058
        %8145 = vmatmul.mubr.f32.gmra.mrb[0].mxu0 %v8044
        %v8146 = vpop.f32.mrb[0].mxu0
        %v8147 = vadd.f32 0.0, %v8146
        %v8148 = vpop.f32.mrb[0].mxu0
        %8149 = vmatprep.mubr.f32.mxu0 %v8061
        %8150 = vmatmul.mubr.f32.gmra.mrb[0].mxu0 %v8046
        %v8151 = vpop.f32.mrb[0].mxu0
        %v8152 = vadd.f32 0.0, %v8151
        %v8153 = vpop.f32.mrb[0].mxu0
        %8154 = vmatprep.mubr.f32.mxu0 %v8064
        %8155 = vmatmul.mubr.f32.gmra.mrb[0].mxu0 %v8048
        %v8156 = vpop.f32.mrb[0].mxu0
        %v8157 = vadd.f32 0.0, %v8156
        %v8158 = vpop.f32.mrb[0].mxu0
        %8159 = vdwg.mxu0
        %8160 = vst [vmem:[%s239] sm:$0xff] %v8137
        %8161 = vst [vmem:[%s239 + $0x8] sm:$0xff] %v8142
        %8162 = vst [vmem:[%s239 + $0x10] sm:$0xff] %v8147
        %8163 = vst [vmem:[%s239 + $0x18] sm:$0xff] %v8152
        %8164 = vst [vmem:[%s239 + $0x20] sm:$0xf] %v8157
        %p8165 = scmp.lt.s32.totalorder %s17, 1
        %s8166 = scalar_select %p8165, %s17, 1
        %s8167 = smul.addr %s8166, 5
        %s8168 = smul.addr %s8167, 8
        %s8169 = scalar_lea.vmem %s4, %s8168
        // Predicated region
        $region49: #{cnn_forward.3} parent=35 // pred_check
          %p8170 = pneg %p124
        $region50: #{cnn_forward.3} parent=35 // pred_check_branch
          %8172 = sbr.rel (%p8170) target = $region52
        $region51: #{cnn_forward.3} parent=35 // pred_region
          _
        $region52: #{cnn_forward.3} parent=35 // pred_fallthru
          _
      $region36: #{cnn_forward.3} parent=5 // pred_fallthru
        _
      %p8173 = scmp.le.s32.totalorder 2, %s12
      // Predicated region
      $region53: #{cnn_forward.3} parent=5 // pred_check
        %p8174 = pneg %p8173
      $region54: #{cnn_forward.3} parent=5 // pred_check_branch
        %8176 = sbr.rel (%p8174) target = $region56
      $region55: #{cnn_forward.3} parent=5 // pred_region
        %s8177 = ssub.s32 %s12, 2
        // Predicated region
        $region57: #{cnn_forward.3} parent=55 // pred_check
          %p8178 = pneg %p130
        $region58: #{cnn_forward.3} parent=55 // pred_check_branch
          %8180 = sbr.rel (%p8178) target = $region60
        $region59: #{cnn_forward.3} parent=55 // pred_region
          %p8181 = scmp.lt.s32.totalorder %s18, 1
          %s8182 = scalar_select %p8181, %s18, 1
          %s8183 = smul.addr %s8182, 5
          %s8184 = smul.addr %s8183, 8
          %s8185 = scalar_lea.vmem %s4, %s8184
        $region60: #{cnn_forward.3} parent=55 // pred_fallthru
          _
      $region56: #{cnn_forward.3} parent=5 // pred_fallthru
        _
    $region6: #{cnn_forward.3} parent=1 // loop_footer
      %s16 = sadd.s32 1, %s12
    $region7: #{cnn_forward.3} parent=1 // loop_footer_branch
      %11 = sbr.rel target = $region3
    $region8: #{cnn_forward.3} parent=1 // loop_exit
      _
    %8186 = vsyncpa [#allocation3], 1
    %s8187 = scalar_lea.sflag [#allocation3], 1
    %8188 = vsyncpa %s8187, 1
    %8189 = vsyncpa [#allocation5], 1

</llo_original>
